<compile_context>
chip_gen: v6e
topology: v6e:2x2x1
jax: 0.10.0
libtpu: 0.0.40
codegen_flags: <defaults>
</compile_context>

<pallas_src>
import math

import jax
import jax.numpy as jnp
from jax import lax
from jax.experimental import pallas as pl
from jax.experimental.pallas import tpu as pltpu


# ------------------------------- tiling helper -------------------------------

def _pick_tile(n, pref, align):
    """Largest tile <= pref dividing n, preferring 2*align multiples, then align; else full n."""
    if n <= pref:
        return n
    for a in (2 * align, align):
        t = (pref // a) * a
        while t >= a:
            if n % t == 0:
                return t
            t -= a
    return n


# --------------------- GroupNorm stats pass (sum / sumsq) --------------------

def _gn_stats_kernel(x_ref, o_ref):
    x = x_ref[0].astype(jnp.float32)                       # (tn, C)
    stat = jnp.concatenate(
        [jnp.sum(x, axis=0, keepdims=True),
         jnp.sum(x * x, axis=0, keepdims=True)], axis=0)   # (2, C)

    @pl.when(pl.program_id(1) == 0)
    def _():
        o_ref[0] = stat

    @pl.when(pl.program_id(1) != 0)
    def _():
        o_ref[0] = o_ref[0] + stat


# ------------------ GroupNorm normalize + proj_in (1x1 conv) -----------------

def _make_gn_norm_proj_kernel(eps, num_groups, count):
    def kernel(x_ref, stat_ref, g_ref, b_ref, w_ref, bias_ref, o_ref):
        x = x_ref[0].astype(jnp.float32)                   # (tn, C)
        c = x.shape[1]
        cpg = c // num_groups
        s = stat_ref[0, 0:1, :]                            # (1, C)
        s2 = stat_ref[0, 1:2, :]
        if cpg == 1:
            mean_c = s / count
            var_c = s2 / count - mean_c * mean_c
        else:
            gs = jnp.sum(s.reshape(num_groups, cpg), axis=1, keepdims=True)
            gs2 = jnp.sum(s2.reshape(num_groups, cpg), axis=1, keepdims=True)
            mean = gs / count
            var = gs2 / count - mean * mean
            mean_c = jnp.broadcast_to(mean, (num_groups, cpg)).reshape(1, c)
            var_c = jnp.broadcast_to(var, (num_groups, cpg)).reshape(1, c)
        xn = ((x - mean_c) * lax.rsqrt(var_c + eps) * g_ref[...] + b_ref[...]
              ).astype(jnp.bfloat16)
        o_ref[0] = (jnp.dot(xn, w_ref[...], preferred_element_type=jnp.float32)
                    + bias_ref[...]).astype(o_ref.dtype)
    return kernel


def groupnorm_proj_in_pallas(x, gamma, beta, w, bias, num_groups=32, eps=1e-6, tn=512):
    B, N, C = x.shape
    _, inner = w.shape
    assert C % num_groups == 0, "GroupNorm requires channels divisible by num_groups"
    tn = _pick_tile(N, tn, 8)
    # pass 1: per-(batch, channel) sum / sum-of-squares, accumulated over N tiles
    stats = pl.pallas_call(
        _gn_stats_kernel,
        grid=(B, N // tn),
        in_specs=[pl.BlockSpec((1, tn, C), lambda b, n: (b, n, 0))],
        out_specs=pl.BlockSpec((1, 2, C), lambda b, n: (b, 0, 0)),
        out_shape=jax.ShapeDtypeStruct((B, 2, C), jnp.float32),
        compiler_params=pltpu.CompilerParams(
            dimension_semantics=("parallel", "arbitrary")),
    )(x)
    # pass 2: normalize + 1x1-conv matmul, tiled over N
    cpg = C // num_groups
    return pl.pallas_call(
        _make_gn_norm_proj_kernel(eps, num_groups, float(N * cpg)),
        grid=(B, N // tn),
        in_specs=[
            pl.BlockSpec((1, tn, C), lambda b, n: (b, n, 0)),
            pl.BlockSpec((1, 2, C), lambda b, n: (b, 0, 0)),
            pl.BlockSpec((1, C), lambda b, n: (0, 0)),
            pl.BlockSpec((1, C), lambda b, n: (0, 0)),
            pl.BlockSpec((C, inner), lambda b, n: (0, 0)),
            pl.BlockSpec((1, inner), lambda b, n: (0, 0)),
        ],
        out_specs=pl.BlockSpec((1, tn, inner), lambda b, n: (b, n, 0)),
        out_shape=jax.ShapeDtypeStruct((B, N, inner), jnp.float32),
        compiler_params=pltpu.CompilerParams(
            dimension_semantics=("parallel", "parallel")),
    )(x, stats, gamma, beta, w.astype(jnp.bfloat16), bias)


# ------------------------ LayerNorm fused with matmul -------------------------
# LayerNorm result is computed once per row tile (j == 0) into a VMEM scratch and
# reused for every output column tile.

def _make_ln_linear_kernel(has_bias, eps):
    def kernel(*refs):
        x_ref, g_ref, b_ref, w_ref = refs[:4]
        bias_ref = refs[4] if has_bias else None
        o_ref = refs[4 + int(has_bias)]
        xn_ref = refs[5 + int(has_bias)]

        @pl.when(pl.program_id(1) == 0)
        def _():
            x = x_ref[...].astype(jnp.float32)
            mean = jnp.mean(x, axis=-1, keepdims=True)
            xc = x - mean
            var = jnp.mean(xc * xc, axis=-1, keepdims=True)
            xn_ref[...] = (xc * lax.rsqrt(var + eps) * g_ref[...] + b_ref[...]
                           ).astype(jnp.bfloat16)

        out = jnp.dot(xn_ref[...], w_ref[...], preferred_element_type=jnp.float32)
        if has_bias:
            out = out + bias_ref[...]
        o_ref[...] = out.astype(o_ref.dtype)
    return kernel


def ln_linear_pallas(x2d, gamma, beta, w, bias=None, eps=1e-5, tm=256, tn=512,
                     out_dtype=jnp.bfloat16):
    M, K = x2d.shape
    _, N = w.shape
    tm = _pick_tile(M, tm, 8)
    tn = _pick_tile(N, tn, 128)
    grid = (M // tm, N // tn)
    in_specs = [
        pl.BlockSpec((tm, K), lambda i, j: (i, 0)),
        pl.BlockSpec((1, K), lambda i, j: (0, 0)),
        pl.BlockSpec((1, K), lambda i, j: (0, 0)),
        pl.BlockSpec((K, tn), lambda i, j: (0, j)),
    ]
    args = [x2d, gamma, beta, w.astype(jnp.bfloat16)]
    if bias is not None:
        in_specs.append(pl.BlockSpec((1, tn), lambda i, j: (0, j)))
        args.append(bias)
    return pl.pallas_call(
        _make_ln_linear_kernel(bias is not None, eps),
        grid=grid,
        in_specs=in_specs,
        out_specs=pl.BlockSpec((tm, tn), lambda i, j: (i, j)),
        out_shape=jax.ShapeDtypeStruct((M, N), out_dtype),
        scratch_shapes=[pltpu.VMEM((tm, K), jnp.bfloat16)],
        compiler_params=pltpu.CompilerParams(
            dimension_semantics=("parallel", "arbitrary")),
    )(*args)


# --------------- tiled matmul with K accumulation (+bias +residual) ----------

def _make_linear_kernel(has_bias, has_res):
    def kernel(*refs):
        x_ref, w_ref = refs[0], refs[1]
        idx = 2
        bias_ref = res_ref = None
        if has_bias:
            bias_ref = refs[idx]; idx += 1
        if has_res:
            res_ref = refs[idx]; idx += 1
        o_ref = refs[idx]
        acc_ref = refs[idx + 1]
        kk = pl.program_id(2)

        @pl.when(kk == 0)
        def _():
            acc_ref[...] = jnp.zeros_like(acc_ref)

        acc_ref[...] += jnp.dot(x_ref[...].astype(jnp.bfloat16), w_ref[...],
                                preferred_element_type=jnp.float32)

        @pl.when(kk == pl.num_programs(2) - 1)
        def _():
            out = acc_ref[...]
            if has_bias:
                out = out + bias_ref[...]
            if has_res:
                out = out + res_ref[...].astype(jnp.float32)
            o_ref[...] = out.astype(o_ref.dtype)
    return kernel


def linear_pallas(x2d, w, bias=None, residual=None, out_dtype=jnp.float32,
                  tm=256, tn=256, tk=512):
    M, K = x2d.shape
    _, N = w.shape
    tm = _pick_tile(M, tm, 8)
    tn = _pick_tile(N, tn, 128)
    tk = _pick_tile(K, tk, 128)
    grid = (M // tm, N // tn, K // tk)
    in_specs = [
        pl.BlockSpec((tm, tk), lambda i, j, k: (i, k)),
        pl.BlockSpec((tk, tn), lambda i, j, k: (k, j)),
    ]
    args = [x2d, w.astype(jnp.bfloat16)]
    if bias is not None:
        in_specs.append(pl.BlockSpec((1, tn), lambda i, j, k: (0, j)))
        args.append(bias)
    if residual is not None:
        in_specs.append(pl.BlockSpec((tm, tn), lambda i, j, k: (i, j)))
        args.append(residual)
    return pl.pallas_call(
        _make_linear_kernel(bias is not None, residual is not None),
        grid=grid,
        in_specs=in_specs,
        out_specs=pl.BlockSpec((tm, tn), lambda i, j, k: (i, j)),
        out_shape=jax.ShapeDtypeStruct((M, N), out_dtype),
        scratch_shapes=[pltpu.VMEM((tm, tn), jnp.float32)],
        compiler_params=pltpu.CompilerParams(
            dimension_semantics=("parallel", "parallel", "arbitrary")),
    )(*args)


# -------------------- LayerNorm + GEGLU (both halves) fused -------------------

def _make_ln_geglu_kernel(eps):
    inv_sqrt2 = 1.0 / math.sqrt(2.0)

    def kernel(x_ref, g_ref, b_ref, wa_ref, ba_ref, wg_ref, bg_ref, o_ref, xn_ref):
        @pl.when(pl.program_id(1) == 0)
        def _():
            x = x_ref[...].astype(jnp.float32)
            mean = jnp.mean(x, axis=-1, keepdims=True)
            xc = x - mean
            var = jnp.mean(xc * xc, axis=-1, keepdims=True)
            xn_ref[...] = (xc * lax.rsqrt(var + eps) * g_ref[...] + b_ref[...]
                           ).astype(jnp.bfloat16)

        xn = xn_ref[...]
        a = jnp.dot(xn, wa_ref[...], preferred_element_type=jnp.float32) + ba_ref[...]
        gt = jnp.dot(xn, wg_ref[...], preferred_element_type=jnp.float32) + bg_ref[...]
        gelu = 0.5 * gt * (1.0 + lax.erf(gt * inv_sqrt2))        # exact (erf) GELU
        o_ref[...] = (a * gelu).astype(o_ref.dtype)
    return kernel


def ln_geglu_pallas(x2d, gamma, beta, wa, ba, wg, bg, eps=1e-5, tm=256, tn=512):
    M, K = x2d.shape
    _, F = wa.shape
    tm = _pick_tile(M, tm, 8)
    tn = _pick_tile(F, tn, 128)
    grid = (M // tm, F // tn)
    return pl.pallas_call(
        _make_ln_geglu_kernel(eps),
        grid=grid,
        in_specs=[
            pl.BlockSpec((tm, K), lambda i, j: (i, 0)),
            pl.BlockSpec((1, K), lambda i, j: (0, 0)),
            pl.BlockSpec((1, K), lambda i, j: (0, 0)),
            pl.BlockSpec((K, tn), lambda i, j: (0, j)),
            pl.BlockSpec((1, tn), lambda i, j: (0, j)),
            pl.BlockSpec((K, tn), lambda i, j: (0, j)),
            pl.BlockSpec((1, tn), lambda i, j: (0, j)),
        ],
        out_specs=pl.BlockSpec((tm, tn), lambda i, j: (i, j)),
        out_shape=jax.ShapeDtypeStruct((M, F), jnp.bfloat16),
        scratch_shapes=[pltpu.VMEM((tm, K), jnp.bfloat16)],
        compiler_params=pltpu.CompilerParams(
            dimension_semantics=("parallel", "arbitrary")),
    )(x2d, gamma, beta, wa.astype(jnp.bfloat16), ba, wg.astype(jnp.bfloat16), bg)


# ------------------------------- attention kernels ----------------------------
# q/k/v enter the kernels in (B, H, N, D) layout so per-head access is a free leading-axis
# index (no lane slicing in the hot loop); the output block is the lane-dense (tq, inner)
# layout and each head's result is stored directly into its slice.

def _make_attn_single_kernel(n_heads, d_head, scale):
    """Whole context in one KV tile -> plain softmax (no online-softmax bookkeeping)."""
    def kernel(q_ref, k_ref, v_ref, o_ref):
        dn = (((1,), (1,)), ((), ()))                    # contract last dims (q @ k^T)
        qf = q_ref[0].astype(jnp.float32) * scale        # scale folded once per grid step
        for h in range(n_heads):
            qh = qf[h].astype(jnp.bfloat16)              # (tq, D)
            kh = k_ref[0, h]                             # (Nk, D) bf16
            vh = v_ref[0, h]
            sim = lax.dot_general(qh, kh, dn, preferred_element_type=jnp.float32)
            m = jnp.max(sim, axis=-1, keepdims=True)
            p = jnp.exp(sim - m)
            l = jnp.sum(p, axis=-1, keepdims=True)
            out_h = jnp.dot(p.astype(jnp.bfloat16), vh,
                            preferred_element_type=jnp.float32) / l
            o_ref[0, :, h * d_head:(h + 1) * d_head] = out_h.astype(o_ref.dtype)
    return kernel


def _make_attn_flash_kernel(n_heads, d_head, scale):
    """Flash-style online softmax over KV tiles; per-head lane-aligned scratch."""
    def kernel(q_ref, k_ref, v_ref, o_ref, m_sc, l_sc, acc_sc):
        ki = pl.program_id(2)

        @pl.when(ki == 0)
        def _():
            m_sc[...] = jnp.full_like(m_sc, -jnp.inf)
            l_sc[...] = jnp.zeros_like(l_sc)
            acc_sc[...] = jnp.zeros_like(acc_sc)

        dn = (((1,), (1,)), ((), ()))
        qf = q_ref[0].astype(jnp.float32) * scale        # scale folded once per grid step
        for h in range(n_heads):
            qh = qf[h].astype(jnp.bfloat16)              # (tq, D)
            kh = k_ref[0, h]                             # (tk, D) bf16
            vh = v_ref[0, h]
            sim = lax.dot_general(qh, kh, dn, preferred_element_type=jnp.float32)
            m_prev = m_sc[h]
            m_new = jnp.maximum(m_prev, jnp.max(sim, axis=-1, keepdims=True))
            alpha = jnp.exp(m_prev - m_new)
            p = jnp.exp(sim - m_new)
            l_sc[h] = alpha * l_sc[h] + jnp.sum(p, axis=-1, keepdims=True)
            acc_sc[h] = alpha * acc_sc[h] + jnp.dot(
                p.astype(jnp.bfloat16), vh, preferred_element_type=jnp.float32)
            m_sc[h] = m_new

        @pl.when(ki == pl.num_programs(2) - 1)
        def _():
            for h in range(n_heads):
                o_ref[0, :, h * d_head:(h + 1) * d_head] = (
                    acc_sc[h] / l_sc[h]).astype(o_ref.dtype)
    return kernel


def attention_pallas(q, k, v, n_heads, d_head, scale,
                     tq_pref=256, tk_pref=512, single_kv_max=256):
    B, Nq, inner = q.shape
    Bk, Nk, _ = k.shape
    assert Bk == B and v.shape[:2] == (B, Nk), "context batch must match x batch"
    tq = _pick_tile(Nq, tq_pref, 8)

    def to_bhnd(t, n):
        return t.astype(jnp.bfloat16).reshape(B, n, n_heads, d_head).transpose(0, 2, 1, 3)

    q4, k4, v4 = to_bhnd(q, Nq), to_bhnd(k, Nk), to_bhnd(v, Nk)
    out_shape = jax.ShapeDtypeStruct((B, Nq, inner), jnp.bfloat16)

    if Nk <= single_kv_max:
        return pl.pallas_call(
            _make_attn_single_kernel(n_heads, d_head, scale),
            grid=(B, Nq // tq),
            in_specs=[
                pl.BlockSpec((1, n_heads, tq, d_head), lambda b, qi: (b, 0, qi, 0)),
                pl.BlockSpec((1, n_heads, Nk, d_head), lambda b, qi: (b, 0, 0, 0)),
                pl.BlockSpec((1, n_heads, Nk, d_head), lambda b, qi: (b, 0, 0, 0)),
            ],
            out_specs=pl.BlockSpec((1, tq, inner), lambda b, qi: (b, qi, 0)),
            out_shape=out_shape,
            compiler_params=pltpu.CompilerParams(
                dimension_semantics=("parallel", "parallel")),
        )(q4, k4, v4)

    tk = _pick_tile(Nk, tk_pref, 8)
    return pl.pallas_call(
        _make_attn_flash_kernel(n_heads, d_head, scale),
        grid=(B, Nq // tq, Nk // tk),
        in_specs=[
            pl.BlockSpec((1, n_heads, tq, d_head), lambda b, qi, ki: (b, 0, qi, 0)),
            pl.BlockSpec((1, n_heads, tk, d_head), lambda b, qi, ki: (b, 0, ki, 0)),
            pl.BlockSpec((1, n_heads, tk, d_head), lambda b, qi, ki: (b, 0, ki, 0)),
        ],
        out_specs=pl.BlockSpec((1, tq, inner), lambda b, qi, ki: (b, qi, 0)),
        out_shape=out_shape,
        scratch_shapes=[
            pltpu.VMEM((n_heads, tq, 1), jnp.float32),       # running max
            pltpu.VMEM((n_heads, tq, 1), jnp.float32),       # running denom
            pltpu.VMEM((n_heads, tq, d_head), jnp.float32),  # running numerator
        ],
        compiler_params=pltpu.CompilerParams(
            dimension_semantics=("parallel", "parallel", "arbitrary")),
    )(q4, k4, v4)


# -------------------------- module-level composition --------------------------

def cross_attention(x, context, p, ln_g, ln_b, n_heads, d_head):
    B, Nq, C = x.shape
    inner = n_heads * d_head
    scale = d_head ** (-0.5)
    x2d = x.reshape(B * Nq, C)
    if context is None:
        # self-attention: one fused LayerNorm + concatenated QKV projection (bf16 out)
        qkv = ln_linear_pallas(x2d, ln_g, ln_b, p["w_qkv"], out_dtype=jnp.bfloat16)
        q = qkv[:, :inner].reshape(B, Nq, inner)
        k = qkv[:, inner:2 * inner].reshape(B, Nq, inner)
        v = qkv[:, 2 * inner:].reshape(B, Nq, inner)
    else:
        q = ln_linear_pallas(x2d, ln_g, ln_b, p["wq"],
                             out_dtype=jnp.bfloat16).reshape(B, Nq, inner)
        Bc, Nk, Cc = context.shape
        assert Bc == B, "context batch must match x batch"
        kv = linear_pallas(context.reshape(Bc * Nk, Cc), p["w_kv"],
                           out_dtype=jnp.bfloat16)                    # (B*Nk, 2*inner)
        k = kv[:, :inner].reshape(B, Nk, inner)
        v = kv[:, inner:].reshape(B, Nk, inner)
    attn_out = attention_pallas(q, k, v, n_heads, d_head, scale)      # (B, Nq, inner) bf16
    # output projection with bias + residual add fused into the kernel epilogue
    out = linear_pallas(attn_out.reshape(B * Nq, inner), p["wo"],
                        bias=p["bo"], residual=x2d)
    return out.reshape(B, Nq, C)


def feed_forward(x, p):
    B, N, C = x.shape
    x2d = x.reshape(B * N, C)
    h = ln_geglu_pallas(x2d, p["ln3_g"], p["ln3_b"],
                        p["ff_w1a"], p["ff_b1a"], p["ff_w1g"], p["ff_b1g"])   # bf16
    out = linear_pallas(h, p["ff_w2"], bias=p["ff_b2"], residual=x2d)
    return out.reshape(B, N, C)


def basic_transformer_block(x, context, p, n_heads, d_head):
    x = cross_attention(x, None, p["attn1"], p["ln1_g"], p["ln1_b"], n_heads, d_head)
    x = cross_attention(x, context, p["attn2"], p["ln2_g"], p["ln2_b"], n_heads, d_head)
    x = feed_forward(x, p)
    return x


def spatial_transformer(x_nchw, context, params, n_heads, d_head):
    b, c, hh, ww = x_nchw.shape
    n = hh * ww
    xt = jnp.transpose(x_nchw, (0, 2, 3, 1)).reshape(b, n, c)     # NCHW -> tokens
    x1 = groupnorm_proj_in_pallas(xt, params["gn_g"], params["gn_b"],
                                  params["proj_in_w"], params["proj_in_b"],
                                  num_groups=32, eps=1e-6)        # (b, n, inner) f32 stream
    for blk in params["blocks"]:
        x1 = basic_transformer_block(x1, context, blk, n_heads, d_head)
    inner = n_heads * d_head
    # proj_out (1x1 conv) with the final residual fused (token layout; transpose after)
    xo = linear_pallas(x1.reshape(b * n, inner), params["proj_out_w"],
                       bias=params["proj_out_b"], residual=xt.reshape(b * n, c))
    return jnp.transpose(xo.reshape(b, hh, ww, c), (0, 3, 1, 2))


# ------------------------------ pure-JAX reference ----------------------------

def reference_forward(x_nchw, context, params, n_heads, d_head):
    inner = n_heads * d_head

    def layer_norm(x, g, b, eps=1e-5):
        mean = jnp.mean(x, axis=-1, keepdims=True)
        var = jnp.mean((x - mean) ** 2, axis=-1, keepdims=True)
        return (x - mean) / jnp.sqrt(var + eps) * g + b

    def gelu(x):
        return 0.5 * x * (1.0 + lax.erf(x / math.sqrt(2.0)))

    def attention(q, k, v):
        B, Nq, _ = q.shape
        def split(t):
            return t.reshape(t.shape[0], t.shape[1], n_heads, d_head).transpose(0, 2, 1, 3)
        qh, kh, vh = split(q), split(k), split(v)
        sim = jnp.einsum("bhid,bhjd->bhij", qh, kh) * (d_head ** -0.5)
        attn = jax.nn.softmax(sim, axis=-1)
        o = jnp.einsum("bhij,bhjd->bhid", attn, vh)
        return o.transpose(0, 2, 1, 3).reshape(B, Nq, inner)

    b, c, hh, ww = x_nchw.shape
    n = hh * ww
    xt = jnp.transpose(x_nchw, (0, 2, 3, 1)).reshape(b, n, c)
    G = 32
    xg = xt.reshape(b, n, G, c // G)
    mean = jnp.mean(xg, axis=(1, 3), keepdims=True)
    var = jnp.mean((xg - mean) ** 2, axis=(1, 3), keepdims=True)
    xg = ((xg - mean) / jnp.sqrt(var + 1e-6)).reshape(b, n, c)
    xg = xg * params["gn_g"].reshape(1, 1, c) + params["gn_b"].reshape(1, 1, c)
    h = xg @ params["proj_in_w"] + params["proj_in_b"]
    for p in params["blocks"]:
        hn = layer_norm(h, p["ln1_g"].reshape(1, 1, -1), p["ln1_b"].reshape(1, 1, -1))
        qkv = hn @ p["attn1"]["w_qkv"]
        q, k, v = qkv[..., :inner], qkv[..., inner:2 * inner], qkv[..., 2 * inner:]
        h = attention(q, k, v) @ p["attn1"]["wo"] + p["attn1"]["bo"] + h
        hn = layer_norm(h, p["ln2_g"].reshape(1, 1, -1), p["ln2_b"].reshape(1, 1, -1))
        q = hn @ p["attn2"]["wq"]
        kv = context @ p["attn2"]["w_kv"]
        k, v = kv[..., :inner], kv[..., inner:]
        h = attention(q, k, v) @ p["attn2"]["wo"] + p["attn2"]["bo"] + h
        hn = layer_norm(h, p["ln3_g"].reshape(1, 1, -1), p["ln3_b"].reshape(1, 1, -1))
        a = hn @ p["ff_w1a"] + p["ff_b1a"]
        g = hn @ p["ff_w1g"] + p["ff_b1g"]
        h = (a * gelu(g)) @ p["ff_w2"] + p["ff_b2"] + h
    xo = h @ params["proj_out_w"] + params["proj_out_b"]
    return jnp.transpose(xo.reshape(b, hh, ww, c), (0, 3, 1, 2)) + x_nchw


# ------------------------------ parameter init --------------------------------
# Matmul weights are stored in bf16 (halved HBM->VMEM DMA and VMEM footprint); biases and
# norm affine parameters stay f32.

def init_params(key, in_channels, n_heads, d_head, context_dim, depth=1):
    inner = n_heads * d_head
    ff_inner = inner * 4
    keys = iter(jax.random.split(key, 4 + depth * 16))

    def wp(shape, scale=0.02):
        return (scale * jax.random.normal(next(keys), shape)).astype(jnp.bfloat16)

    def bp(shape, scale=0.02):
        return (scale * jax.random.normal(next(keys), shape)).astype(jnp.float32)

    params = {
        "gn_g": jnp.ones((1, in_channels), jnp.float32),
        "gn_b": jnp.zeros((1, in_channels), jnp.float32),
        "proj_in_w": wp((in_channels, inner)),
        "proj_in_b": bp((1, inner)),
        # zero_module(proj_out): weights and bias zeroed
        "proj_out_w": jnp.zeros((inner, in_channels), jnp.bfloat16),
        "proj_out_b": jnp.zeros((1, in_channels), jnp.float32),
        "blocks": [],
    }
    for _ in range(depth):
        blk = {
            "ln1_g": jnp.ones((1, inner), jnp.float32), "ln1_b": jnp.zeros((1, inner), jnp.float32),
            "ln2_g": jnp.ones((1, inner), jnp.float32), "ln2_b": jnp.zeros((1, inner), jnp.float32),
            "ln3_g": jnp.ones((1, inner), jnp.float32), "ln3_b": jnp.zeros((1, inner), jnp.float32),
            "attn1": {"w_qkv": wp((inner, 3 * inner)),             # to_q|to_k|to_v (no bias)
                      "wo": wp((inner, inner)), "bo": bp((1, inner))},
            "attn2": {"wq": wp((inner, inner)),
                      "w_kv": wp((context_dim, 2 * inner)),        # to_k|to_v (no bias)
                      "wo": wp((inner, inner)), "bo": bp((1, inner))},
            "ff_w1a": wp((inner, ff_inner)), "ff_b1a": bp((1, ff_inner)),
            "ff_w1g": wp((inner, ff_inner)), "ff_b1g": bp((1, ff_inner)),
            "ff_w2": wp((ff_inner, inner)), "ff_b2": bp((1, inner)),
        }
        params["blocks"].append(blk)
    return params


# ----------------------------------- main --------------------------------------

if __name__ == "__main__":
    # SpatialTransformer(in_channels=32, n_heads=4, d_head=8, depth=1, context_dim=32)
    B, C, H, W = 2, 32, 8, 8          # GroupNorm(32) requires C % 32 == 0
    n_heads, d_head = 4, 8            # inner_dim = 32
    context_dim, ctx_len = 32, 8

    key = jax.random.PRNGKey(0)
    kx, kc, kp, kw, kbias = jax.random.split(key, 5)
    x = jax.random.normal(kx, (B, C, H, W), dtype=jnp.float32)            # NCHW input
    context = jax.random.normal(kc, (B, ctx_len, context_dim), dtype=jnp.float32)
    params = init_params(kp, C, n_heads, d_head, context_dim, depth=1)

    # zero_module(proj_out) makes the whole module an identity at init; swap in small
    # random proj_out weights so the end-to-end numerical check is meaningful.
    inner = n_heads * d_head
    params["proj_out_w"] = (0.02 * jax.random.normal(kw, (inner, C))).astype(jnp.bfloat16)
    params["proj_out_b"] = (0.02 * jax.random.normal(kbias, (1, C))).astype(jnp.float32)

    fwd = jax.jit(lambda xx, cc, pp: spatial_transformer(xx, cc, pp, n_heads, d_head))
    out = jax.block_until_ready(fwd(x, context, params))
    assert out.shape == x.shape and out.dtype == jnp.float32

    ref = reference_forward(x, context, params, n_heads, d_head)
    assert float(jnp.max(jnp.abs(out - ref))) < 5e-2, "mismatch vs pure-JAX reference"

    # Explicitly exercise the multi-KV-tile flash self-attention path (2 kv steps).
    kq, kk2, kv2 = jax.random.split(jax.random.PRNGKey(1), 3)
    nq_big = 256
    qb = jax.random.normal(kq, (1, nq_big, inner), jnp.float32).astype(jnp.bfloat16)
    kb = jax.random.normal(kk2, (1, nq_big, inner), jnp.float32).astype(jnp.bfloat16)
    vb = jax.random.normal(kv2, (1, nq_big, inner), jnp.float32).astype(jnp.bfloat16)
    flash = jax.jit(lambda a, b2, c2: attention_pallas(
        a, b2, c2, n_heads, d_head, d_head ** (-0.5),
        tq_pref=128, tk_pref=128, single_kv_max=0))
    got = jax.block_until_ready(flash(qb, kb, vb)).astype(jnp.float32)

    def _attn_ref(q, k, v):
        qf, kf, vf = (t.astype(jnp.float32) for t in (q, k, v))
        def split(t):
            return t.reshape(1, nq_big, n_heads, d_head).transpose(0, 2, 1, 3)
        sim = jnp.einsum("bhid,bhjd->bhij", split(qf), split(kf)) * (d_head ** -0.5)
        o = jnp.einsum("bhij,bhjd->bhid", jax.nn.softmax(sim, axis=-1), split(vf))
        return o.transpose(0, 2, 1, 3).reshape(1, nq_big, inner)

    assert float(jnp.max(jnp.abs(got - _attn_ref(qb, kb, vb)))) < 2e-2, "flash path mismatch"

    print("KERNEL_OK")
</pallas_src>

<mosaic_0001>
module attributes {stable_mosaic.version = 11 : i64} {
  func.func @_gn_stats_kernel(%arg0: i32, %arg1: i32, %arg2: memref<1x64x32xf32, #tpu.memory_space<vmem>>, %arg3: memref<1x2x32xf32, #tpu.memory_space<vmem>>) attributes {dimension_semantics = [#tpu.dimension_semantics<parallel>, #tpu.dimension_semantics<arbitrary>], iteration_bounds = array<i64: 2, 1>, scalar_prefetch = 0 : i64, scratch_operands = 0 : i64, tpu.core_type = #tpu.core_type<tc>, window_params = [{transform_indices = @transform_0, window_bounds = array<i64: 1, 64, 32>}, {transform_indices = @transform_1, window_bounds = array<i64: 1, 2, 32>}]} {
    %c0 = arith.constant 0 : index
    %c0_0 = arith.constant 0 : index
    %c0_1 = arith.constant 0 : index
    %0 = vector.load %arg2[%c0, %c0_0, %c0_1] : memref<1x64x32xf32, #tpu.memory_space<vmem>>, vector<1x64x32xf32>
    %1 = vector.shape_cast %0 : vector<1x64x32xf32> to vector<64x32xf32>
    %cst = arith.constant dense<0.000000e+00> : vector<32xf32>
    %2 = vector.multi_reduction <add>, %1, %cst [0] : vector<64x32xf32> to vector<32xf32>
    %3 = vector.shape_cast %2 : vector<32xf32> to vector<1x32xf32>
    %4 = arith.mulf %1, %1 : vector<64x32xf32>
    %cst_2 = arith.constant dense<0.000000e+00> : vector<32xf32>
    %5 = vector.multi_reduction <add>, %4, %cst_2 [0] : vector<64x32xf32> to vector<32xf32>
    %6 = vector.shape_cast %5 : vector<32xf32> to vector<1x32xf32>
    %7 = tpu.concatenate %3, %6 in 0 : vector<1x32xf32>, vector<1x32xf32> -> vector<2x32xf32>
    %c0_i32 = arith.constant 0 : i32
    %8 = arith.cmpi eq, %arg1, %c0_i32 : i32
    %9 = arith.extui %8 : i1 to i32
    %c0_i32_3 = arith.constant 0 : i32
    %10 = arith.cmpi ne, %9, %c0_i32_3 : i32
    scf.if %10 {
      %c0_6 = arith.constant 0 : index
      %c0_7 = arith.constant 0 : index
      %c0_8 = arith.constant 0 : index
      %14 = vector.load %arg3[%c0_6, %c0_7, %c0_8] : memref<1x2x32xf32, #tpu.memory_space<vmem>>, vector<1x2x32xf32>
      %15 = vector.shape_cast %14 : vector<1x2x32xf32> to vector<2x32xf32>
      %16 = vector.shape_cast %7 : vector<2x32xf32> to vector<1x2x32xf32>
      tpu.vector_store %arg3[%c0_6, %c0_7, %c0_8], %16 {strides = array<i32>} : memref<1x2x32xf32, #tpu.memory_space<vmem>>, vector<1x2x32xf32>,
    } else {
    }
    %c0_i32_4 = arith.constant 0 : i32
    %11 = arith.cmpi ne, %arg1, %c0_i32_4 : i32
    %12 = arith.extui %11 : i1 to i32
    %c0_i32_5 = arith.constant 0 : i32
    %13 = arith.cmpi ne, %12, %c0_i32_5 : i32
    scf.if %13 {
      %c0_6 = arith.constant 0 : index
      %c0_7 = arith.constant 0 : index
      %c0_8 = arith.constant 0 : index
      %14 = vector.load %arg3[%c0_6, %c0_7, %c0_8] : memref<1x2x32xf32, #tpu.memory_space<vmem>>, vector<1x2x32xf32>
      %15 = vector.shape_cast %14 : vector<1x2x32xf32> to vector<2x32xf32>
      %16 = arith.addf %15, %7 : vector<2x32xf32>
      %c0_9 = arith.constant 0 : index
      %c0_10 = arith.constant 0 : index
      %c0_11 = arith.constant 0 : index
      %17 = vector.load %arg3[%c0_9, %c0_10, %c0_11] : memref<1x2x32xf32, #tpu.memory_space<vmem>>, vector<1x2x32xf32>
      %18 = vector.shape_cast %17 : vector<1x2x32xf32> to vector<2x32xf32>
      %19 = vector.shape_cast %16 : vector<2x32xf32> to vector<1x2x32xf32>
      tpu.vector_store %arg3[%c0_9, %c0_10, %c0_11], %19 {strides = array<i32>} : memref<1x2x32xf32, #tpu.memory_space<vmem>>, vector<1x2x32xf32>,
    } else {
    }
    return
  }
  func.func @transform_0(%arg0: i32, %arg1: i32) -> (i32, i32, i32) {
    %c0_i32 = arith.constant 0 : i32
    %c0_i32_0 = arith.constant 0 : i32
    return %arg0, %arg1, %c0_i32 : i32, i32, i32
  }
  func.func @transform_1(%arg0: i32, %arg1: i32) -> (i32, i32, i32) {
    %c0_i32 = arith.constant 0 : i32
    %c0_i32_0 = arith.constant 0 : i32
    %c0_i32_1 = arith.constant 0 : i32
    return %arg0, %c0_i32, %c0_i32_0 : i32, i32, i32
  }
}

module attributes {stable_mosaic.version = 11 : i64} {
  func.func @kernel(%arg0: i32, %arg1: i32, %arg2: memref<1x64x32xf32, #tpu.memory_space<vmem>>, %arg3: memref<1x2x32xf32, #tpu.memory_space<vmem>>, %arg4: memref<1x32xf32, #tpu.memory_space<vmem>>, %arg5: memref<1x32xf32, #tpu.memory_space<vmem>>, %arg6: memref<32x32xbf16, #tpu.memory_space<vmem>>, %arg7: memref<1x32xf32, #tpu.memory_space<vmem>>, %arg8: memref<1x64x32xf32, #tpu.memory_space<vmem>>) attributes {dimension_semantics = [#tpu.dimension_semantics<parallel>, #tpu.dimension_semantics<parallel>], iteration_bounds = array<i64: 2, 1>, scalar_prefetch = 0 : i64, scratch_operands = 0 : i64, tpu.core_type = #tpu.core_type<tc>, window_params = [{transform_indices = @transform_0, window_bounds = array<i64: 1, 64, 32>}, {transform_indices = @transform_1, window_bounds = array<i64: 1, 2, 32>}, {pipeline_mode = #tpu.pipeline_mode<synchronous>, transform_indices = @transform_2, window_bounds = array<i64: 1, 32>}, {pipeline_mode = #tpu.pipeline_mode<synchronous>, transform_indices = @transform_3, window_bounds = array<i64: 1, 32>}, {pipeline_mode = #tpu.pipeline_mode<synchronous>, transform_indices = @transform_4, window_bounds = array<i64: 32, 32>}, {pipeline_mode = #tpu.pipeline_mode<synchronous>, transform_indices = @transform_5, window_bounds = array<i64: 1, 32>}, {transform_indices = @transform_6, window_bounds = array<i64: 1, 64, 32>}]} {
    %c0 = arith.constant 0 : index
    %c0_0 = arith.constant 0 : index
    %c0_1 = arith.constant 0 : index
    %0 = vector.load %arg2[%c0, %c0_0, %c0_1] : memref<1x64x32xf32, #tpu.memory_space<vmem>>, vector<1x64x32xf32>
    %1 = vector.shape_cast %0 : vector<1x64x32xf32> to vector<64x32xf32>
    %c0_2 = arith.constant 0 : index
    %c0_3 = arith.constant 0 : index
    %c0_4 = arith.constant 0 : index
    %2 = vector.load %arg3[%c0_2, %c0_3, %c0_4] : memref<1x2x32xf32, #tpu.memory_space<vmem>>, vector<1x1x32xf32>
    %3 = vector.shape_cast %2 : vector<1x1x32xf32> to vector<1x32xf32>
    %c0_5 = arith.constant 0 : index
    %c1 = arith.constant 1 : index
    %c0_6 = arith.constant 0 : index
    %4 = vector.load %arg3[%c0_5, %c1, %c0_6] : memref<1x2x32xf32, #tpu.memory_space<vmem>>, vector<1x1x32xf32>
    %5 = vector.shape_cast %4 : vector<1x1x32xf32> to vector<1x32xf32>
    %cst = arith.constant 6.400000e+01 : f32
    %6 = vector.broadcast %cst : f32 to vector<1x32xf32>
    %7 = arith.divf %3, %6 : vector<1x32xf32>
    %cst_7 = arith.constant 6.400000e+01 : f32
    %8 = vector.broadcast %cst_7 : f32 to vector<1x32xf32>
    %9 = arith.divf %5, %8 : vector<1x32xf32>
    %10 = arith.mulf %7, %7 : vector<1x32xf32>
    %11 = arith.subf %9, %10 : vector<1x32xf32>
    %12 = vector.broadcast %7 : vector<1x32xf32> to vector<64x32xf32>
    %13 = arith.subf %1, %12 : vector<64x32xf32>
    %cst_8 = arith.constant 9.99999997E-7 : f32
    %14 = vector.broadcast %cst_8 : f32 to vector<1x32xf32>
    %15 = arith.addf %11, %14 : vector<1x32xf32>
    %16 = math.rsqrt %15 : vector<1x32xf32>
    %17 = vector.broadcast %16 : vector<1x32xf32> to vector<64x32xf32>
    %18 = arith.mulf %13, %17 : vector<64x32xf32>
    %c0_9 = arith.constant 0 : index
    %c0_10 = arith.constant 0 : index
    %19 = vector.load %arg4[%c0_9, %c0_10] : memref<1x32xf32, #tpu.memory_space<vmem>>, vector<1x32xf32>
    %20 = vector.broadcast %19 : vector<1x32xf32> to vector<64x32xf32>
    %21 = arith.mulf %18, %20 : vector<64x32xf32>
    %c0_11 = arith.constant 0 : index
    %c0_12 = arith.constant 0 : index
    %22 = vector.load %arg5[%c0_11, %c0_12] : memref<1x32xf32, #tpu.memory_space<vmem>>, vector<1x32xf32>
    %23 = vector.broadcast %22 : vector<1x32xf32> to vector<64x32xf32>
    %24 = arith.addf %21, %23 : vector<64x32xf32>
    %25 = arith.truncf %24 : vector<64x32xf32> to vector<64x32xbf16>
    %c0_13 = arith.constant 0 : index
    %c0_14 = arith.constant 0 : index
    %26 = vector.load %arg6[%c0_13, %c0_14] : memref<32x32xbf16, #tpu.memory_space<vmem>>, vector<32x32xbf16>
    %cst_15 = arith.constant dense<0.000000e+00> : vector<64x32xf32>
    %27 = tpu.matmul %25, %26, %cst_15 {dimension_numbers = #tpu.dot_dimension_numbers<[1], [0], [0], [1], [0, 0, 1, 1], [], []>} : vector<64x32xbf16>, vector<32x32xbf16>, vector<64x32xf32> -> vector<64x32xf32>
    %c0_16 = arith.constant 0 : index
    %c0_17 = arith.constant 0 : index
    %28 = vector.load %arg7[%c0_16, %c0_17] : memref<1x32xf32, #tpu.memory_space<vmem>>, vector<1x32xf32>
    %29 = vector.broadcast %28 : vector<1x32xf32> to vector<64x32xf32>
    %30 = arith.addf %27, %29 : vector<64x32xf32>
    %c0_18 = arith.constant 0 : index
    %c0_19 = arith.constant 0 : index
    %c0_20 = arith.constant 0 : index
    %31 = vector.load %arg8[%c0_18, %c0_19, %c0_20] : memref<1x64x32xf32, #tpu.memory_space<vmem>>, vector<1x64x32xf32>
    %32 = vector.shape_cast %31 : vector<1x64x32xf32> to vector<64x32xf32>
    %33 = vector.shape_cast %30 : vector<64x32xf32> to vector<1x64x32xf32>
    tpu.vector_store %arg8[%c0_18, %c0_19, %c0_20], %33 {strides = array<i32>} : memref<1x64x32xf32, #tpu.memory_space<vmem>>, vector<1x64x32xf32>,
    return
  }
  func.func @transform_0(%arg0: i32, %arg1: i32) -> (i32, i32, i32) {
    %c0_i32 = arith.constant 0 : i32
    %c0_i32_0 = arith.constant 0 : i32
    return %arg0, %arg1, %c0_i32 : i32, i32, i32
  }
  func.func @transform_1(%arg0: i32, %arg1: i32) -> (i32, i32, i32) {
    %c0_i32 = arith.constant 0 : i32
    %c0_i32_0 = arith.constant 0 : i32
    %c0_i32_1 = arith.constant 0 : i32
    return %arg0, %c0_i32, %c0_i32_0 : i32, i32, i32
  }
  func.func @transform_2(%arg0: i32, %arg1: i32) -> (i32, i32) {
    %c0_i32 = arith.constant 0 : i32
    %c0_i32_0 = arith.constant 0 : i32
    %c0_i32_1 = arith.constant 0 : i32
    return %c0_i32, %c0_i32_0 : i32, i32
  }
  func.func @transform_3(%arg0: i32, %arg1: i32) -> (i32, i32) {
    %c0_i32 = arith.constant 0 : i32
    %c0_i32_0 = arith.constant 0 : i32
    %c0_i32_1 = arith.constant 0 : i32
    return %c0_i32, %c0_i32_0 : i32, i32
  }
  func.func @transform_4(%arg0: i32, %arg1: i32) -> (i32, i32) {
    %c0_i32 = arith.constant 0 : i32
    %c0_i32_0 = arith.constant 0 : i32
    %c0_i32_1 = arith.constant 0 : i32
    return %c0_i32, %c0_i32_0 : i32, i32
  }
  func.func @transform_5(%arg0: i32, %arg1: i32) -> (i32, i32) {
    %c0_i32 = arith.constant 0 : i32
    %c0_i32_0 = arith.constant 0 : i32
    %c0_i32_1 = arith.constant 0 : i32
    return %c0_i32, %c0_i32_0 : i32, i32
  }
  func.func @transform_6(%arg0: i32, %arg1: i32) -> (i32, i32, i32) {
    %c0_i32 = arith.constant 0 : i32
    %c0_i32_0 = arith.constant 0 : i32
    return %arg0, %arg1, %c0_i32 : i32, i32, i32
  }
}

module attributes {stable_mosaic.version = 11 : i64} {
  func.func @kernel(%arg0: i32, %arg1: i32, %arg2: memref<128x32xf32, #tpu.memory_space<vmem>>, %arg3: memref<1x32xf32, #tpu.memory_space<vmem>>, %arg4: memref<1x32xf32, #tpu.memory_space<vmem>>, %arg5: memref<32x96xbf16, #tpu.memory_space<vmem>>, %arg6: memref<128x96xbf16, #tpu.memory_space<vmem>>, %arg7: memref<128x32xbf16, #tpu.memory_space<vmem>>) attributes {dimension_semantics = [#tpu.dimension_semantics<parallel>, #tpu.dimension_semantics<arbitrary>], iteration_bounds = array<i64: 1, 1>, scalar_prefetch = 0 : i64, scratch_operands = 1 : i64, tpu.core_type = #tpu.core_type<tc>, window_params = [{transform_indices = @transform_0, window_bounds = array<i64: 128, 32>}, {pipeline_mode = #tpu.pipeline_mode<synchronous>, transform_indices = @transform_1, window_bounds = array<i64: 1, 32>}, {pipeline_mode = #tpu.pipeline_mode<synchronous>, transform_indices = @transform_2, window_bounds = array<i64: 1, 32>}, {transform_indices = @transform_3, window_bounds = array<i64: 32, 96>}, {transform_indices = @transform_4, window_bounds = array<i64: 128, 96>}]} {
    %c0_i32 = arith.constant 0 : i32
    %0 = arith.cmpi eq, %arg1, %c0_i32 : i32
    %1 = arith.extui %0 : i1 to i32
    %c0_i32_0 = arith.constant 0 : i32
    %2 = arith.cmpi ne, %1, %c0_i32_0 : i32
    scf.if %2 {
      %c0_6 = arith.constant 0 : index
      %c0_7 = arith.constant 0 : index
      %8 = vector.load %arg2[%c0_6, %c0_7] : memref<128x32xf32, #tpu.memory_space<vmem>>, vector<128x32xf32>
      %cst_8 = arith.constant dense<0.000000e+00> : vector<128xf32>
      %9 = vector.multi_reduction <add>, %8, %cst_8 [1] : vector<128x32xf32> to vector<128xf32>
      %10 = vector.shape_cast %9 : vector<128xf32> to vector<128x1xf32>
      %cst_9 = arith.constant 3.200000e+01 : f32
      %11 = vector.broadcast %cst_9 : f32 to vector<128x1xf32>
      %12 = arith.divf %10, %11 : vector<128x1xf32>
      %13 = vector.broadcast %12 : vector<128x1xf32> to vector<128x32xf32>
      %14 = arith.subf %8, %13 : vector<128x32xf32>
      %15 = arith.mulf %14, %14 : vector<128x32xf32>
      %cst_10 = arith.constant dense<0.000000e+00> : vector<128xf32>
      %16 = vector.multi_reduction <add>, %15, %cst_10 [1] : vector<128x32xf32> to vector<128xf32>
      %17 = vector.shape_cast %16 : vector<128xf32> to vector<128x1xf32>
      %cst_11 = arith.constant 3.200000e+01 : f32
      %18 = vector.broadcast %cst_11 : f32 to vector<128x1xf32>
      %19 = arith.divf %17, %18 : vector<128x1xf32>
      %cst_12 = arith.constant 9.99999974E-6 : f32
      %20 = vector.broadcast %cst_12 : f32 to vector<128x1xf32>
      %21 = arith.addf %19, %20 : vector<128x1xf32>
      %22 = math.rsqrt %21 : vector<128x1xf32>
      %23 = vector.broadcast %22 : vector<128x1xf32> to vector<128x32xf32>
      %24 = arith.mulf %14, %23 : vector<128x32xf32>
      %c0_13 = arith.constant 0 : index
      %c0_14 = arith.constant 0 : index
      %25 = vector.load %arg3[%c0_13, %c0_14] : memref<1x32xf32, #tpu.memory_space<vmem>>, vector<1x32xf32>
      %26 = vector.broadcast %25 : vector<1x32xf32> to vector<128x32xf32>
      %27 = arith.mulf %24, %26 : vector<128x32xf32>
      %c0_15 = arith.constant 0 : index
      %c0_16 = arith.constant 0 : index
      %28 = vector.load %arg4[%c0_15, %c0_16] : memref<1x32xf32, #tpu.memory_space<vmem>>, vector<1x32xf32>
      %29 = vector.broadcast %28 : vector<1x32xf32> to vector<128x32xf32>
      %30 = arith.addf %27, %29 : vector<128x32xf32>
      %31 = arith.truncf %30 : vector<128x32xf32> to vector<128x32xbf16>
      %c0_17 = arith.constant 0 : index
      %c0_18 = arith.constant 0 : index
      %32 = vector.load %arg7[%c0_17, %c0_18] : memref<128x32xbf16, #tpu.memory_space<vmem>>, vector<128x32xbf16>
      tpu.vector_store %arg7[%c0_17, %c0_18], %31 {strides = array<i32>} : memref<128x32xbf16, #tpu.memory_space<vmem>>, vector<128x32xbf16>,
    } else {
    }
    %c0 = arith.constant 0 : index
    %c0_1 = arith.constant 0 : index
    %3 = vector.load %arg7[%c0, %c0_1] : memref<128x32xbf16, #tpu.memory_space<vmem>>, vector<128x32xbf16>
    %c0_2 = arith.constant 0 : index
    %c0_3 = arith.constant 0 : index
    %4 = vector.load %arg5[%c0_2, %c0_3] : memref<32x96xbf16, #tpu.memory_space<vmem>>, vector<32x96xbf16>
    %cst = arith.constant dense<0.000000e+00> : vector<128x96xf32>
    %5 = tpu.matmul %3, %4, %cst {dimension_numbers = #tpu.dot_dimension_numbers<[1], [0], [0], [1], [0, 0, 1, 1], [], []>} : vector<128x32xbf16>, vector<32x96xbf16>, vector<128x96xf32> -> vector<128x96xf32>
    %6 = arith.truncf %5 : vector<128x96xf32> to vector<128x96xbf16>
    %c0_4 = arith.constant 0 : index
    %c0_5 = arith.constant 0 : index
    %7 = vector.load %arg6[%c0_4, %c0_5] : memref<128x96xbf16, #tpu.memory_space<vmem>>, vector<128x96xbf16>
    tpu.vector_store %arg6[%c0_4, %c0_5], %6 {strides = array<i32>} : memref<128x96xbf16, #tpu.memory_space<vmem>>, vector<128x96xbf16>,
    return
  }
  func.func @transform_0(%arg0: i32, %arg1: i32) -> (i32, i32) {
    %c0_i32 = arith.constant 0 : i32
    %c0_i32_0 = arith.constant 0 : i32
    return %arg0, %c0_i32 : i32, i32
  }
  func.func @transform_1(%arg0: i32, %arg1: i32) -> (i32, i32) {
    %c0_i32 = arith.constant 0 : i32
    %c0_i32_0 = arith.constant 0 : i32
    %c0_i32_1 = arith.constant 0 : i32
    return %c0_i32, %c0_i32_0 : i32, i32
  }
  func.func @transform_2(%arg0: i32, %arg1: i32) -> (i32, i32) {
    %c0_i32 = arith.constant 0 : i32
    %c0_i32_0 = arith.constant 0 : i32
    %c0_i32_1 = arith.constant 0 : i32
    return %c0_i32, %c0_i32_0 : i32, i32
  }
  func.func @transform_3(%arg0: i32, %arg1: i32) -> (i32, i32) {
    %c0_i32 = arith.constant 0 : i32
    %c0_i32_0 = arith.constant 0 : i32
    return %c0_i32, %arg1 : i32, i32
  }
  func.func @transform_4(%arg0: i32, %arg1: i32) -> (i32, i32) {
    %c0_i32 = arith.constant 0 : i32
    return %arg0, %arg1 : i32, i32
  }
}

module attributes {stable_mosaic.version = 11 : i64} {
  func.func @kernel(%arg0: i32, %arg1: i32, %arg2: i32, %arg3: memref<128x32xbf16, #tpu.memory_space<vmem>>, %arg4: memref<32x32xbf16, #tpu.memory_space<vmem>>, %arg5: memref<1x32xf32, #tpu.memory_space<vmem>>, %arg6: memref<128x32xf32, #tpu.memory_space<vmem>>, %arg7: memref<128x32xf32, #tpu.memory_space<vmem>>, %arg8: memref<128x32xf32, #tpu.memory_space<vmem>>) attributes {dimension_semantics = [#tpu.dimension_semantics<parallel>, #tpu.dimension_semantics<parallel>, #tpu.dimension_semantics<arbitrary>], iteration_bounds = array<i64: 1, 1, 1>, scalar_prefetch = 0 : i64, scratch_operands = 1 : i64, tpu.core_type = #tpu.core_type<tc>, window_params = [{transform_indices = @transform_0, window_bounds = array<i64: 128, 32>}, {transform_indices = @transform_1, window_bounds = array<i64: 32, 32>}, {transform_indices = @transform_2, window_bounds = array<i64: 1, 32>}, {transform_indices = @transform_3, window_bounds = array<i64: 128, 32>}, {transform_indices = @transform_4, window_bounds = array<i64: 128, 32>}]} {
    %c0_i32 = arith.constant 0 : i32
    %0 = arith.cmpi eq, %arg2, %c0_i32 : i32
    %1 = arith.extui %0 : i1 to i32
    %c0_i32_0 = arith.constant 0 : i32
    %2 = arith.cmpi ne, %1, %c0_i32_0 : i32
    scf.if %2 {
      %cst_10 = arith.constant 0.000000e+00 : f32
      %12 = vector.broadcast %cst_10 : f32 to vector<128x32xf32>
      %c0_11 = arith.constant 0 : index
      %c0_12 = arith.constant 0 : index
      %13 = vector.load %arg8[%c0_11, %c0_12] : memref<128x32xf32, #tpu.memory_space<vmem>>, vector<128x32xf32>
      tpu.vector_store %arg8[%c0_11, %c0_12], %12 {strides = array<i32>} : memref<128x32xf32, #tpu.memory_space<vmem>>, vector<128x32xf32>,
    } else {
    }
    %c0 = arith.constant 0 : index
    %c0_1 = arith.constant 0 : index
    %3 = vector.load %arg8[%c0, %c0_1] : memref<128x32xf32, #tpu.memory_space<vmem>>, vector<128x32xf32>
    %c0_2 = arith.constant 0 : index
    %c0_3 = arith.constant 0 : index
    %4 = vector.load %arg3[%c0_2, %c0_3] : memref<128x32xbf16, #tpu.memory_space<vmem>>, vector<128x32xbf16>
    %c0_4 = arith.constant 0 : index
    %c0_5 = arith.constant 0 : index
    %5 = vector.load %arg4[%c0_4, %c0_5] : memref<32x32xbf16, #tpu.memory_space<vmem>>, vector<32x32xbf16>
    %cst = arith.constant dense<0.000000e+00> : vector<128x32xf32>
    %6 = tpu.matmul %4, %5, %cst {dimension_numbers = #tpu.dot_dimension_numbers<[1], [0], [0], [1], [0, 0, 1, 1], [], []>} : vector<128x32xbf16>, vector<32x32xbf16>, vector<128x32xf32> -> vector<128x32xf32>
    %7 = arith.addf %3, %6 : vector<128x32xf32>
    %c0_6 = arith.constant 0 : index
    %c0_7 = arith.constant 0 : index
    %8 = vector.load %arg8[%c0_6, %c0_7] : memref<128x32xf32, #tpu.memory_space<vmem>>, vector<128x32xf32>
    tpu.vector_store %arg8[%c0_6, %c0_7], %7 {strides = array<i32>} : memref<128x32xf32, #tpu.memory_space<vmem>>, vector<128x32xf32>,
    %c0_i32_8 = arith.constant 0 : i32
    %9 = arith.cmpi eq, %arg2, %c0_i32_8 : i32
    %10 = arith.extui %9 : i1 to i32
    %c0_i32_9 = arith.constant 0 : i32
    %11 = arith.cmpi ne, %10, %c0_i32_9 : i32
    scf.if %11 {
      %c0_10 = arith.constant 0 : index
      %c0_11 = arith.constant 0 : index
      %12 = vector.load %arg8[%c0_10, %c0_11] : memref<128x32xf32, #tpu.memory_space<vmem>>, vector<128x32xf32>
      %c0_12 = arith.constant 0 : index
      %c0_13 = arith.constant 0 : index
      %13 = vector.load %arg5[%c0_12, %c0_13] : memref<1x32xf32, #tpu.memory_space<vmem>>, vector<1x32xf32>
      %14 = vector.broadcast %13 : vector<1x32xf32> to vector<128x32xf32>
      %15 = arith.addf %12, %14 : vector<128x32xf32>
      %c0_14 = arith.constant 0 : index
      %c0_15 = arith.constant 0 : index
      %16 = vector.load %arg6[%c0_14, %c0_15] : memref<128x32xf32, #tpu.memory_space<vmem>>, vector<128x32xf32>
      %17 = arith.addf %15, %16 : vector<128x32xf32>
      %c0_16 = arith.constant 0 : index
      %c0_17 = arith.constant 0 : index
      %18 = vector.load %arg7[%c0_16, %c0_17] : memref<128x32xf32, #tpu.memory_space<vmem>>, vector<128x32xf32>
      tpu.vector_store %arg7[%c0_16, %c0_17], %17 {strides = array<i32>} : memref<128x32xf32, #tpu.memory_space<vmem>>, vector<128x32xf32>,
    } else {
    }
    return
  }
  func.func @transform_0(%arg0: i32, %arg1: i32, %arg2: i32) -> (i32, i32) {
    %c0_i32 = arith.constant 0 : i32
    return %arg0, %arg2 : i32, i32
  }
  func.func @transform_1(%arg0: i32, %arg1: i32, %arg2: i32) -> (i32, i32) {
    %c0_i32 = arith.constant 0 : i32
    return %arg2, %arg1 : i32, i32
  }
  func.func @transform_2(%arg0: i32, %arg1: i32, %arg2: i32) -> (i32, i32) {
    %c0_i32 = arith.constant 0 : i32
    %c0_i32_0 = arith.constant 0 : i32
    return %c0_i32, %arg1 : i32, i32
  }
  func.func @transform_3(%arg0: i32, %arg1: i32, %arg2: i32) -> (i32, i32) {
    %c0_i32 = arith.constant 0 : i32
    return %arg0, %arg1 : i32, i32
  }
  func.func @transform_4(%arg0: i32, %arg1: i32, %arg2: i32) -> (i32, i32) {
    %c0_i32 = arith.constant 0 : i32
    return %arg0, %arg1 : i32, i32
  }
}

module attributes {stable_mosaic.version = 11 : i64} {
  func.func @kernel(%arg0: i32, %arg1: i32, %arg2: memref<1x4x64x8xbf16, #tpu.memory_space<vmem>>, %arg3: memref<1x4x64x8xbf16, #tpu.memory_space<vmem>>, %arg4: memref<1x4x64x8xbf16, #tpu.memory_space<vmem>>, %arg5: memref<1x64x32xbf16, #tpu.memory_space<vmem>>) attributes {dimension_semantics = [#tpu.dimension_semantics<parallel>, #tpu.dimension_semantics<parallel>], iteration_bounds = array<i64: 2, 1>, scalar_prefetch = 0 : i64, scratch_operands = 0 : i64, tpu.core_type = #tpu.core_type<tc>, window_params = [{transform_indices = @transform_0, window_bounds = array<i64: 1, 4, 64, 8>}, {transform_indices = @transform_1, window_bounds = array<i64: 1, 4, 64, 8>}, {transform_indices = @transform_2, window_bounds = array<i64: 1, 4, 64, 8>}, {transform_indices = @transform_3, window_bounds = array<i64: 1, 64, 32>}]} {
    %c0 = arith.constant 0 : index
    %c0_0 = arith.constant 0 : index
    %c0_1 = arith.constant 0 : index
    %c0_2 = arith.constant 0 : index
    %0 = vector.load %arg2[%c0, %c0_0, %c0_1, %c0_2] : memref<1x4x64x8xbf16, #tpu.memory_space<vmem>>, vector<1x4x64x8xbf16>
    %1 = vector.shape_cast %0 : vector<1x4x64x8xbf16> to vector<4x64x8xbf16>
    %2 = arith.extf %1 : vector<4x64x8xbf16> to vector<4x64x8xf32>
    %cst = arith.constant 0.353553385 : f32
    %3 = vector.broadcast %cst : f32 to vector<4x64x8xf32>
    %4 = arith.mulf %2, %3 : vector<4x64x8xf32>
    %5 = vector.extract_strided_slice %4 {offsets = [0, 0, 0], sizes = [1, 64, 8], strides = [1, 1, 1]} : vector<4x64x8xf32> to vector<1x64x8xf32>
    %6 = vector.shape_cast %5 : vector<1x64x8xf32> to vector<64x8xf32>
    %7 = arith.truncf %6 : vector<64x8xf32> to vector<64x8xbf16>
    %c0_3 = arith.constant 0 : index
    %c0_4 = arith.constant 0 : index
    %c0_5 = arith.constant 0 : index
    %c0_6 = arith.constant 0 : index
    %8 = vector.load %arg3[%c0_3, %c0_4, %c0_5, %c0_6] : memref<1x4x64x8xbf16, #tpu.memory_space<vmem>>, vector<1x1x64x8xbf16>
    %9 = vector.shape_cast %8 : vector<1x1x64x8xbf16> to vector<64x8xbf16>
    %c0_7 = arith.constant 0 : index
    %c0_8 = arith.constant 0 : index
    %c0_9 = arith.constant 0 : index
    %c0_10 = arith.constant 0 : index
    %10 = vector.load %arg4[%c0_7, %c0_8, %c0_9, %c0_10] : memref<1x4x64x8xbf16, #tpu.memory_space<vmem>>, vector<1x1x64x8xbf16>
    %11 = vector.shape_cast %10 : vector<1x1x64x8xbf16> to vector<64x8xbf16>
    %cst_11 = arith.constant dense<0.000000e+00> : vector<64x64xf32>
    %12 = tpu.matmul %7, %9, %cst_11 {dimension_numbers = #tpu.dot_dimension_numbers<[1], [1], [0], [0], [0, 0, 1, 0], [], []>} : vector<64x8xbf16>, vector<64x8xbf16>, vector<64x64xf32> -> vector<64x64xf32>
    %cst_12 = arith.constant dense<0xFF800000> : vector<64xf32>
    %13 = vector.multi_reduction <maximumf>, %12, %cst_12 [1] : vector<64x64xf32> to vector<64xf32>
    %14 = vector.shape_cast %13 : vector<64xf32> to vector<64x1xf32>
    %15 = vector.broadcast %14 : vector<64x1xf32> to vector<64x64xf32>
    %16 = arith.subf %12, %15 : vector<64x64xf32>
    %17 = math.exp %16 : vector<64x64xf32>
    %cst_13 = arith.constant dense<0.000000e+00> : vector<64xf32>
    %18 = vector.multi_reduction <add>, %17, %cst_13 [1] : vector<64x64xf32> to vector<64xf32>
    %19 = vector.shape_cast %18 : vector<64xf32> to vector<64x1xf32>
    %20 = arith.truncf %17 : vector<64x64xf32> to vector<64x64xbf16>
    %cst_14 = arith.constant dense<0.000000e+00> : vector<64x8xf32>
    %21 = tpu.matmul %20, %11, %cst_14 {dimension_numbers = #tpu.dot_dimension_numbers<[1], [0], [0], [1], [0, 0, 1, 1], [], []>} : vector<64x64xbf16>, vector<64x8xbf16>, vector<64x8xf32> -> vector<64x8xf32>
    %22 = vector.broadcast %19 : vector<64x1xf32> to vector<64x8xf32>
    %23 = arith.divf %21, %22 : vector<64x8xf32>
    %24 = arith.truncf %23 : vector<64x8xf32> to vector<64x8xbf16>
    %c0_15 = arith.constant 0 : index
    %c0_16 = arith.constant 0 : index
    %c0_17 = arith.constant 0 : index
    %25 = vector.load %arg5[%c0_15, %c0_16, %c0_17] : memref<1x64x32xbf16, #tpu.memory_space<vmem>>, vector<1x64x8xbf16>
    %26 = vector.shape_cast %25 : vector<1x64x8xbf16> to vector<64x8xbf16>
    %27 = vector.shape_cast %24 : vector<64x8xbf16> to vector<1x64x8xbf16>
    tpu.vector_store %arg5[%c0_15, %c0_16, %c0_17], %27 {strides = array<i32>} : memref<1x64x32xbf16, #tpu.memory_space<vmem>>, vector<1x64x8xbf16>,
    %28 = vector.extract_strided_slice %4 {offsets = [1, 0, 0], sizes = [1, 64, 8], strides = [1, 1, 1]} : vector<4x64x8xf32> to vector<1x64x8xf32>
    %29 = vector.shape_cast %28 : vector<1x64x8xf32> to vector<64x8xf32>
    %30 = arith.truncf %29 : vector<64x8xf32> to vector<64x8xbf16>
    %c0_18 = arith.constant 0 : index
    %c1 = arith.constant 1 : index
    %c0_19 = arith.constant 0 : index
    %c0_20 = arith.constant 0 : index
    %31 = vector.load %arg3[%c0_18, %c1, %c0_19, %c0_20] : memref<1x4x64x8xbf16, #tpu.memory_space<vmem>>, vector<1x1x64x8xbf16>
    %32 = vector.shape_cast %31 : vector<1x1x64x8xbf16> to vector<64x8xbf16>
    %c0_21 = arith.constant 0 : index
    %c1_22 = arith.constant 1 : index
    %c0_23 = arith.constant 0 : index
    %c0_24 = arith.constant 0 : index
    %33 = vector.load %arg4[%c0_21, %c1_22, %c0_23, %c0_24] : memref<1x4x64x8xbf16, #tpu.memory_space<vmem>>, vector<1x1x64x8xbf16>
    %34 = vector.shape_cast %33 : vector<1x1x64x8xbf16> to vector<64x8xbf16>
    %cst_25 = arith.constant dense<0.000000e+00> : vector<64x64xf32>
    %35 = tpu.matmul %30, %32, %cst_25 {dimension_numbers = #tpu.dot_dimension_numbers<[1], [1], [0], [0], [0, 0, 1, 0], [], []>} : vector<64x8xbf16>, vector<64x8xbf16>, vector<64x64xf32> -> vector<64x64xf32>
    %cst_26 = arith.constant dense<0xFF800000> : vector<64xf32>
    %36 = vector.multi_reduction <maximumf>, %35, %cst_26 [1] : vector<64x64xf32> to vector<64xf32>
    %37 = vector.shape_cast %36 : vector<64xf32> to vector<64x1xf32>
    %38 = vector.broadcast %37 : vector<64x1xf32> to vector<64x64xf32>
    %39 = arith.subf %35, %38 : vector<64x64xf32>
    %40 = math.exp %39 : vector<64x64xf32>
    %cst_27 = arith.constant dense<0.000000e+00> : vector<64xf32>
    %41 = vector.multi_reduction <add>, %40, %cst_27 [1] : vector<64x64xf32> to vector<64xf32>
    %42 = vector.shape_cast %41 : vector<64xf32> to vector<64x1xf32>
    %43 = arith.truncf %40 : vector<64x64xf32> to vector<64x64xbf16>
    %cst_28 = arith.constant dense<0.000000e+00> : vector<64x8xf32>
    %44 = tpu.matmul %43, %34, %cst_28 {dimension_numbers = #tpu.dot_dimension_numbers<[1], [0], [0], [1], [0, 0, 1, 1], [], []>} : vector<64x64xbf16>, vector<64x8xbf16>, vector<64x8xf32> -> vector<64x8xf32>
    %45 = vector.broadcast %42 : vector<64x1xf32> to vector<64x8xf32>
    %46 = arith.divf %44, %45 : vector<64x8xf32>
    %47 = arith.truncf %46 : vector<64x8xf32> to vector<64x8xbf16>
    %c0_29 = arith.constant 0 : index
    %c0_30 = arith.constant 0 : index
    %c8 = arith.constant 8 : index
    %48 = vector.load %arg5[%c0_29, %c0_30, %c8] : memref<1x64x32xbf16, #tpu.memory_space<vmem>>, vector<1x64x8xbf16>
    %49 = vector.shape_cast %48 : vector<1x64x8xbf16> to vector<64x8xbf16>
    %50 = vector.shape_cast %47 : vector<64x8xbf16> to vector<1x64x8xbf16>
    tpu.vector_store %arg5[%c0_29, %c0_30, %c8], %50 {strides = array<i32>} : memref<1x64x32xbf16, #tpu.memory_space<vmem>>, vector<1x64x8xbf16>,
    %51 = vector.extract_strided_slice %4 {offsets = [2, 0, 0], sizes = [1, 64, 8], strides = [1, 1, 1]} : vector<4x64x8xf32> to vector<1x64x8xf32>
    %52 = vector.shape_cast %51 : vector<1x64x8xf32> to vector<64x8xf32>
    %53 = arith.truncf %52 : vector<64x8xf32> to vector<64x8xbf16>
    %c0_31 = arith.constant 0 : index
    %c2 = arith.constant 2 : index
    %c0_32 = arith.constant 0 : index
    %c0_33 = arith.constant 0 : index
    %54 = vector.load %arg3[%c0_31, %c2, %c0_32, %c0_33] : memref<1x4x64x8xbf16, #tpu.memory_space<vmem>>, vector<1x1x64x8xbf16>
    %55 = vector.shape_cast %54 : vector<1x1x64x8xbf16> to vector<64x8xbf16>
    %c0_34 = arith.constant 0 : index
    %c2_35 = arith.constant 2 : index
    %c0_36 = arith.constant 0 : index
    %c0_37 = arith.constant 0 : index
    %56 = vector.load %arg4[%c0_34, %c2_35, %c0_36, %c0_37] : memref<1x4x64x8xbf16, #tpu.memory_space<vmem>>, vector<1x1x64x8xbf16>
    %57 = vector.shape_cast %56 : vector<1x1x64x8xbf16> to vector<64x8xbf16>
    %cst_38 = arith.constant dense<0.000000e+00> : vector<64x64xf32>
    %58 = tpu.matmul %53, %55, %cst_38 {dimension_numbers = #tpu.dot_dimension_numbers<[1], [1], [0], [0], [0, 0, 1, 0], [], []>} : vector<64x8xbf16>, vector<64x8xbf16>, vector<64x64xf32> -> vector<64x64xf32>
    %cst_39 = arith.constant dense<0xFF800000> : vector<64xf32>
    %59 = vector.multi_reduction <maximumf>, %58, %cst_39 [1] : vector<64x64xf32> to vector<64xf32>
    %60 = vector.shape_cast %59 : vector<64xf32> to vector<64x1xf32>
    %61 = vector.broadcast %60 : vector<64x1xf32> to vector<64x64xf32>
    %62 = arith.subf %58, %61 : vector<64x64xf32>
    %63 = math.exp %62 : vector<64x64xf32>
    %cst_40 = arith.constant dense<0.000000e+00> : vector<64xf32>
    %64 = vector.multi_reduction <add>, %63, %cst_40 [1] : vector<64x64xf32> to vector<64xf32>
    %65 = vector.shape_cast %64 : vector<64xf32> to vector<64x1xf32>
    %66 = arith.truncf %63 : vector<64x64xf32> to vector<64x64xbf16>
    %cst_41 = arith.constant dense<0.000000e+00> : vector<64x8xf32>
    %67 = tpu.matmul %66, %57, %cst_41 {dimension_numbers = #tpu.dot_dimension_numbers<[1], [0], [0], [1], [0, 0, 1, 1], [], []>} : vector<64x64xbf16>, vector<64x8xbf16>, vector<64x8xf32> -> vector<64x8xf32>
    %68 = vector.broadcast %65 : vector<64x1xf32> to vector<64x8xf32>
    %69 = arith.divf %67, %68 : vector<64x8xf32>
    %70 = arith.truncf %69 : vector<64x8xf32> to vector<64x8xbf16>
    %c0_42 = arith.constant 0 : index
    %c0_43 = arith.constant 0 : index
    %c16 = arith.constant 16 : index
    %71 = vector.load %arg5[%c0_42, %c0_43, %c16] : memref<1x64x32xbf16, #tpu.memory_space<vmem>>, vector<1x64x8xbf16>
    %72 = vector.shape_cast %71 : vector<1x64x8xbf16> to vector<64x8xbf16>
    %73 = vector.shape_cast %70 : vector<64x8xbf16> to vector<1x64x8xbf16>
    tpu.vector_store %arg5[%c0_42, %c0_43, %c16], %73 {strides = array<i32>} : memref<1x64x32xbf16, #tpu.memory_space<vmem>>, vector<1x64x8xbf16>,
    %74 = vector.extract_strided_slice %4 {offsets = [3, 0, 0], sizes = [1, 64, 8], strides = [1, 1, 1]} : vector<4x64x8xf32> to vector<1x64x8xf32>
    %75 = vector.shape_cast %74 : vector<1x64x8xf32> to vector<64x8xf32>
    %76 = arith.truncf %75 : vector<64x8xf32> to vector<64x8xbf16>
    %c0_44 = arith.constant 0 : index
    %c3 = arith.constant 3 : index
    %c0_45 = arith.constant 0 : index
    %c0_46 = arith.constant 0 : index
    %77 = vector.load %arg3[%c0_44, %c3, %c0_45, %c0_46] : memref<1x4x64x8xbf16, #tpu.memory_space<vmem>>, vector<1x1x64x8xbf16>
    %78 = vector.shape_cast %77 : vector<1x1x64x8xbf16> to vector<64x8xbf16>
    %c0_47 = arith.constant 0 : index
    %c3_48 = arith.constant 3 : index
    %c0_49 = arith.constant 0 : index
    %c0_50 = arith.constant 0 : index
    %79 = vector.load %arg4[%c0_47, %c3_48, %c0_49, %c0_50] : memref<1x4x64x8xbf16, #tpu.memory_space<vmem>>, vector<1x1x64x8xbf16>
    %80 = vector.shape_cast %79 : vector<1x1x64x8xbf16> to vector<64x8xbf16>
    %cst_51 = arith.constant dense<0.000000e+00> : vector<64x64xf32>
    %81 = tpu.matmul %76, %78, %cst_51 {dimension_numbers = #tpu.dot_dimension_numbers<[1], [1], [0], [0], [0, 0, 1, 0], [], []>} : vector<64x8xbf16>, vector<64x8xbf16>, vector<64x64xf32> -> vector<64x64xf32>
    %cst_52 = arith.constant dense<0xFF800000> : vector<64xf32>
    %82 = vector.multi_reduction <maximumf>, %81, %cst_52 [1] : vector<64x64xf32> to vector<64xf32>
    %83 = vector.shape_cast %82 : vector<64xf32> to vector<64x1xf32>
    %84 = vector.broadcast %83 : vector<64x1xf32> to vector<64x64xf32>
    %85 = arith.subf %81, %84 : vector<64x64xf32>
    %86 = math.exp %85 : vector<64x64xf32>
    %cst_53 = arith.constant dense<0.000000e+00> : vector<64xf32>
    %87 = vector.multi_reduction <add>, %86, %cst_53 [1] : vector<64x64xf32> to vector<64xf32>
    %88 = vector.shape_cast %87 : vector<64xf32> to vector<64x1xf32>
    %89 = arith.truncf %86 : vector<64x64xf32> to vector<64x64xbf16>
    %cst_54 = arith.constant dense<0.000000e+00> : vector<64x8xf32>
    %90 = tpu.matmul %89, %80, %cst_54 {dimension_numbers = #tpu.dot_dimension_numbers<[1], [0], [0], [1], [0, 0, 1, 1], [], []>} : vector<64x64xbf16>, vector<64x8xbf16>, vector<64x8xf32> -> vector<64x8xf32>
    %91 = vector.broadcast %88 : vector<64x1xf32> to vector<64x8xf32>
    %92 = arith.divf %90, %91 : vector<64x8xf32>
    %93 = arith.truncf %92 : vector<64x8xf32> to vector<64x8xbf16>
    %c0_55 = arith.constant 0 : index
    %c0_56 = arith.constant 0 : index
    %c24 = arith.constant 24 : index
    %94 = vector.load %arg5[%c0_55, %c0_56, %c24] : memref<1x64x32xbf16, #tpu.memory_space<vmem>>, vector<1x64x8xbf16>
    %95 = vector.shape_cast %94 : vector<1x64x8xbf16> to vector<64x8xbf16>
    %96 = vector.shape_cast %93 : vector<64x8xbf16> to vector<1x64x8xbf16>
    tpu.vector_store %arg5[%c0_55, %c0_56, %c24], %96 {strides = array<i32>} : memref<1x64x32xbf16, #tpu.memory_space<vmem>>, vector<1x64x8xbf16>,
    return
  }
  func.func @transform_0(%arg0: i32, %arg1: i32) -> (i32, i32, i32, i32) {
    %c0_i32 = arith.constant 0 : i32
    %c0_i32_0 = arith.constant 0 : i32
    %c0_i32_1 = arith.constant 0 : i32
    return %arg0, %c0_i32, %arg1, %c0_i32_0 : i32, i32, i32, i32
  }
  func.func @transform_1(%arg0: i32, %arg1: i32) -> (i32, i32, i32, i32) {
    %c0_i32 = arith.constant 0 : i32
    %c0_i32_0 = arith.constant 0 : i32
    %c0_i32_1 = arith.constant 0 : i32
    %c0_i32_2 = arith.constant 0 : i32
    return %arg0, %c0_i32, %c0_i32_0, %c0_i32_1 : i32, i32, i32, i32
  }
  func.func @transform_2(%arg0: i32, %arg1: i32) -> (i32, i32, i32, i32) {
    %c0_i32 = arith.constant 0 : i32
    %c0_i32_0 = arith.constant 0 : i32
    %c0_i32_1 = arith.constant 0 : i32
    %c0_i32_2 = arith.constant 0 : i32
    return %arg0, %c0_i32, %c0_i32_0, %c0_i32_1 : i32, i32, i32, i32
  }
  func.func @transform_3(%arg0: i32, %arg1: i32) -> (i32, i32, i32) {
    %c0_i32 = arith.constant 0 : i32
    %c0_i32_0 = arith.constant 0 : i32
    return %arg0, %arg1, %c0_i32 : i32, i32, i32
  }
}

module attributes {stable_mosaic.version = 11 : i64} {
  func.func @kernel(%arg0: i32, %arg1: i32, %arg2: memref<128x32xf32, #tpu.memory_space<vmem>>, %arg3: memref<1x32xf32, #tpu.memory_space<vmem>>, %arg4: memref<1x32xf32, #tpu.memory_space<vmem>>, %arg5: memref<32x32xbf16, #tpu.memory_space<vmem>>, %arg6: memref<128x32xbf16, #tpu.memory_space<vmem>>, %arg7: memref<128x32xbf16, #tpu.memory_space<vmem>>) attributes {dimension_semantics = [#tpu.dimension_semantics<parallel>, #tpu.dimension_semantics<arbitrary>], iteration_bounds = array<i64: 1, 1>, scalar_prefetch = 0 : i64, scratch_operands = 1 : i64, tpu.core_type = #tpu.core_type<tc>, window_params = [{transform_indices = @transform_0, window_bounds = array<i64: 128, 32>}, {pipeline_mode = #tpu.pipeline_mode<synchronous>, transform_indices = @transform_1, window_bounds = array<i64: 1, 32>}, {pipeline_mode = #tpu.pipeline_mode<synchronous>, transform_indices = @transform_2, window_bounds = array<i64: 1, 32>}, {transform_indices = @transform_3, window_bounds = array<i64: 32, 32>}, {transform_indices = @transform_4, window_bounds = array<i64: 128, 32>}]} {
    %c0_i32 = arith.constant 0 : i32
    %0 = arith.cmpi eq, %arg1, %c0_i32 : i32
    %1 = arith.extui %0 : i1 to i32
    %c0_i32_0 = arith.constant 0 : i32
    %2 = arith.cmpi ne, %1, %c0_i32_0 : i32
    scf.if %2 {
      %c0_6 = arith.constant 0 : index
      %c0_7 = arith.constant 0 : index
      %8 = vector.load %arg2[%c0_6, %c0_7] : memref<128x32xf32, #tpu.memory_space<vmem>>, vector<128x32xf32>
      %cst_8 = arith.constant dense<0.000000e+00> : vector<128xf32>
      %9 = vector.multi_reduction <add>, %8, %cst_8 [1] : vector<128x32xf32> to vector<128xf32>
      %10 = vector.shape_cast %9 : vector<128xf32> to vector<128x1xf32>
      %cst_9 = arith.constant 3.200000e+01 : f32
      %11 = vector.broadcast %cst_9 : f32 to vector<128x1xf32>
      %12 = arith.divf %10, %11 : vector<128x1xf32>
      %13 = vector.broadcast %12 : vector<128x1xf32> to vector<128x32xf32>
      %14 = arith.subf %8, %13 : vector<128x32xf32>
      %15 = arith.mulf %14, %14 : vector<128x32xf32>
      %cst_10 = arith.constant dense<0.000000e+00> : vector<128xf32>
      %16 = vector.multi_reduction <add>, %15, %cst_10 [1] : vector<128x32xf32> to vector<128xf32>
      %17 = vector.shape_cast %16 : vector<128xf32> to vector<128x1xf32>
      %cst_11 = arith.constant 3.200000e+01 : f32
      %18 = vector.broadcast %cst_11 : f32 to vector<128x1xf32>
      %19 = arith.divf %17, %18 : vector<128x1xf32>
      %cst_12 = arith.constant 9.99999974E-6 : f32
      %20 = vector.broadcast %cst_12 : f32 to vector<128x1xf32>
      %21 = arith.addf %19, %20 : vector<128x1xf32>
      %22 = math.rsqrt %21 : vector<128x1xf32>
      %23 = vector.broadcast %22 : vector<128x1xf32> to vector<128x32xf32>
      %24 = arith.mulf %14, %23 : vector<128x32xf32>
      %c0_13 = arith.constant 0 : index
      %c0_14 = arith.constant 0 : index
      %25 = vector.load %arg3[%c0_13, %c0_14] : memref<1x32xf32, #tpu.memory_space<vmem>>, vector<1x32xf32>
      %26 = vector.broadcast %25 : vector<1x32xf32> to vector<128x32xf32>
      %27 = arith.mulf %24, %26 : vector<128x32xf32>
      %c0_15 = arith.constant 0 : index
      %c0_16 = arith.constant 0 : index
      %28 = vector.load %arg4[%c0_15, %c0_16] : memref<1x32xf32, #tpu.memory_space<vmem>>, vector<1x32xf32>
      %29 = vector.broadcast %28 : vector<1x32xf32> to vector<128x32xf32>
      %30 = arith.addf %27, %29 : vector<128x32xf32>
      %31 = arith.truncf %30 : vector<128x32xf32> to vector<128x32xbf16>
      %c0_17 = arith.constant 0 : index
      %c0_18 = arith.constant 0 : index
      %32 = vector.load %arg7[%c0_17, %c0_18] : memref<128x32xbf16, #tpu.memory_space<vmem>>, vector<128x32xbf16>
      tpu.vector_store %arg7[%c0_17, %c0_18], %31 {strides = array<i32>} : memref<128x32xbf16, #tpu.memory_space<vmem>>, vector<128x32xbf16>,
    } else {
    }
    %c0 = arith.constant 0 : index
    %c0_1 = arith.constant 0 : index
    %3 = vector.load %arg7[%c0, %c0_1] : memref<128x32xbf16, #tpu.memory_space<vmem>>, vector<128x32xbf16>
    %c0_2 = arith.constant 0 : index
    %c0_3 = arith.constant 0 : index
    %4 = vector.load %arg5[%c0_2, %c0_3] : memref<32x32xbf16, #tpu.memory_space<vmem>>, vector<32x32xbf16>
    %cst = arith.constant dense<0.000000e+00> : vector<128x32xf32>
    %5 = tpu.matmul %3, %4, %cst {dimension_numbers = #tpu.dot_dimension_numbers<[1], [0], [0], [1], [0, 0, 1, 1], [], []>} : vector<128x32xbf16>, vector<32x32xbf16>, vector<128x32xf32> -> vector<128x32xf32>
    %6 = arith.truncf %5 : vector<128x32xf32> to vector<128x32xbf16>
    %c0_4 = arith.constant 0 : index
    %c0_5 = arith.constant 0 : index
    %7 = vector.load %arg6[%c0_4, %c0_5] : memref<128x32xbf16, #tpu.memory_space<vmem>>, vector<128x32xbf16>
    tpu.vector_store %arg6[%c0_4, %c0_5], %6 {strides = array<i32>} : memref<128x32xbf16, #tpu.memory_space<vmem>>, vector<128x32xbf16>,
    return
  }
  func.func @transform_0(%arg0: i32, %arg1: i32) -> (i32, i32) {
    %c0_i32 = arith.constant 0 : i32
    %c0_i32_0 = arith.constant 0 : i32
    return %arg0, %c0_i32 : i32, i32
  }
  func.func @transform_1(%arg0: i32, %arg1: i32) -> (i32, i32) {
    %c0_i32 = arith.constant 0 : i32
    %c0_i32_0 = arith.constant 0 : i32
    %c0_i32_1 = arith.constant 0 : i32
    return %c0_i32, %c0_i32_0 : i32, i32
  }
  func.func @transform_2(%arg0: i32, %arg1: i32) -> (i32, i32) {
    %c0_i32 = arith.constant 0 : i32
    %c0_i32_0 = arith.constant 0 : i32
    %c0_i32_1 = arith.constant 0 : i32
    return %c0_i32, %c0_i32_0 : i32, i32
  }
  func.func @transform_3(%arg0: i32, %arg1: i32) -> (i32, i32) {
    %c0_i32 = arith.constant 0 : i32
    %c0_i32_0 = arith.constant 0 : i32
    return %c0_i32, %arg1 : i32, i32
  }
  func.func @transform_4(%arg0: i32, %arg1: i32) -> (i32, i32) {
    %c0_i32 = arith.constant 0 : i32
    return %arg0, %arg1 : i32, i32
  }
}

module attributes {stable_mosaic.version = 11 : i64} {
  func.func @kernel(%arg0: i32, %arg1: i32, %arg2: i32, %arg3: memref<16x32xf32, #tpu.memory_space<vmem>>, %arg4: memref<32x64xbf16, #tpu.memory_space<vmem>>, %arg5: memref<16x64xbf16, #tpu.memory_space<vmem>>, %arg6: memref<16x64xf32, #tpu.memory_space<vmem>>) attributes {dimension_semantics = [#tpu.dimension_semantics<parallel>, #tpu.dimension_semantics<parallel>, #tpu.dimension_semantics<arbitrary>], iteration_bounds = array<i64: 1, 1, 1>, scalar_prefetch = 0 : i64, scratch_operands = 1 : i64, tpu.core_type = #tpu.core_type<tc>, window_params = [{transform_indices = @transform_0, window_bounds = array<i64: 16, 32>}, {transform_indices = @transform_1, window_bounds = array<i64: 32, 64>}, {transform_indices = @transform_2, window_bounds = array<i64: 16, 64>}]} {
    %c0_i32 = arith.constant 0 : i32
    %0 = arith.cmpi eq, %arg2, %c0_i32 : i32
    %1 = arith.extui %0 : i1 to i32
    %c0_i32_0 = arith.constant 0 : i32
    %2 = arith.cmpi ne, %1, %c0_i32_0 : i32
    scf.if %2 {
      %cst_10 = arith.constant 0.000000e+00 : f32
      %13 = vector.broadcast %cst_10 : f32 to vector<16x64xf32>
      %c0_11 = arith.constant 0 : index
      %c0_12 = arith.constant 0 : index
      %14 = vector.load %arg6[%c0_11, %c0_12] : memref<16x64xf32, #tpu.memory_space<vmem>>, vector<16x64xf32>
      tpu.vector_store %arg6[%c0_11, %c0_12], %13 {strides = array<i32>} : memref<16x64xf32, #tpu.memory_space<vmem>>, vector<16x64xf32>,
    } else {
    }
    %c0 = arith.constant 0 : index
    %c0_1 = arith.constant 0 : index
    %3 = vector.load %arg6[%c0, %c0_1] : memref<16x64xf32, #tpu.memory_space<vmem>>, vector<16x64xf32>
    %c0_2 = arith.constant 0 : index
    %c0_3 = arith.constant 0 : index
    %4 = vector.load %arg3[%c0_2, %c0_3] : memref<16x32xf32, #tpu.memory_space<vmem>>, vector<16x32xf32>
    %5 = arith.truncf %4 : vector<16x32xf32> to vector<16x32xbf16>
    %c0_4 = arith.constant 0 : index
    %c0_5 = arith.constant 0 : index
    %6 = vector.load %arg4[%c0_4, %c0_5] : memref<32x64xbf16, #tpu.memory_space<vmem>>, vector<32x64xbf16>
    %cst = arith.constant dense<0.000000e+00> : vector<16x64xf32>
    %7 = tpu.matmul %5, %6, %cst {dimension_numbers = #tpu.dot_dimension_numbers<[1], [0], [0], [1], [0, 0, 1, 1], [], []>} : vector<16x32xbf16>, vector<32x64xbf16>, vector<16x64xf32> -> vector<16x64xf32>
    %8 = arith.addf %3, %7 : vector<16x64xf32>
    %c0_6 = arith.constant 0 : index
    %c0_7 = arith.constant 0 : index
    %9 = vector.load %arg6[%c0_6, %c0_7] : memref<16x64xf32, #tpu.memory_space<vmem>>, vector<16x64xf32>
    tpu.vector_store %arg6[%c0_6, %c0_7], %8 {strides = array<i32>} : memref<16x64xf32, #tpu.memory_space<vmem>>, vector<16x64xf32>,
    %c0_i32_8 = arith.constant 0 : i32
    %10 = arith.cmpi eq, %arg2, %c0_i32_8 : i32
    %11 = arith.extui %10 : i1 to i32
    %c0_i32_9 = arith.constant 0 : i32
    %12 = arith.cmpi ne, %11, %c0_i32_9 : i32
    scf.if %12 {
      %c0_10 = arith.constant 0 : index
      %c0_11 = arith.constant 0 : index
      %13 = vector.load %arg6[%c0_10, %c0_11] : memref<16x64xf32, #tpu.memory_space<vmem>>, vector<16x64xf32>
      %14 = arith.truncf %13 : vector<16x64xf32> to vector<16x64xbf16>
      %c0_12 = arith.constant 0 : index
      %c0_13 = arith.constant 0 : index
      %15 = vector.load %arg5[%c0_12, %c0_13] : memref<16x64xbf16, #tpu.memory_space<vmem>>, vector<16x64xbf16>
      tpu.vector_store %arg5[%c0_12, %c0_13], %14 {strides = array<i32>} : memref<16x64xbf16, #tpu.memory_space<vmem>>, vector<16x64xbf16>,
    } else {
    }
    return
  }
  func.func @transform_0(%arg0: i32, %arg1: i32, %arg2: i32) -> (i32, i32) {
    %c0_i32 = arith.constant 0 : i32
    return %arg0, %arg2 : i32, i32
  }
  func.func @transform_1(%arg0: i32, %arg1: i32, %arg2: i32) -> (i32, i32) {
    %c0_i32 = arith.constant 0 : i32
    return %arg2, %arg1 : i32, i32
  }
  func.func @transform_2(%arg0: i32, %arg1: i32, %arg2: i32) -> (i32, i32) {
    %c0_i32 = arith.constant 0 : i32
    return %arg0, %arg1 : i32, i32
  }
}

module attributes {stable_mosaic.version = 11 : i64} {
  func.func @kernel(%arg0: i32, %arg1: i32, %arg2: memref<128x32xf32, #tpu.memory_space<vmem>>, %arg3: memref<1x32xf32, #tpu.memory_space<vmem>>, %arg4: memref<1x32xf32, #tpu.memory_space<vmem>>, %arg5: memref<32x128xbf16, #tpu.memory_space<vmem>>, %arg6: memref<1x128xf32, #tpu.memory_space<vmem>>, %arg7: memref<32x128xbf16, #tpu.memory_space<vmem>>, %arg8: memref<1x128xf32, #tpu.memory_space<vmem>>, %arg9: memref<128x128xbf16, #tpu.memory_space<vmem>>, %arg10: memref<128x32xbf16, #tpu.memory_space<vmem>>) attributes {dimension_semantics = [#tpu.dimension_semantics<parallel>, #tpu.dimension_semantics<arbitrary>], iteration_bounds = array<i64: 1, 1>, scalar_prefetch = 0 : i64, scratch_operands = 1 : i64, tpu.core_type = #tpu.core_type<tc>, window_params = [{transform_indices = @transform_0, window_bounds = array<i64: 128, 32>}, {pipeline_mode = #tpu.pipeline_mode<synchronous>, transform_indices = @transform_1, window_bounds = array<i64: 1, 32>}, {pipeline_mode = #tpu.pipeline_mode<synchronous>, transform_indices = @transform_2, window_bounds = array<i64: 1, 32>}, {transform_indices = @transform_3, window_bounds = array<i64: 32, 128>}, {transform_indices = @transform_4, window_bounds = array<i64: 1, 128>}, {transform_indices = @transform_5, window_bounds = array<i64: 32, 128>}, {transform_indices = @transform_6, window_bounds = array<i64: 1, 128>}, {transform_indices = @transform_7, window_bounds = array<i64: 128, 128>}]} {
    %c0_i32 = arith.constant 0 : i32
    %0 = arith.cmpi eq, %arg1, %c0_i32 : i32
    %1 = arith.extui %0 : i1 to i32
    %c0_i32_0 = arith.constant 0 : i32
    %2 = arith.cmpi ne, %1, %c0_i32_0 : i32
    scf.if %2 {
      %c0_16 = arith.constant 0 : index
      %c0_17 = arith.constant 0 : index
      %25 = vector.load %arg2[%c0_16, %c0_17] : memref<128x32xf32, #tpu.memory_space<vmem>>, vector<128x32xf32>
      %cst_18 = arith.constant dense<0.000000e+00> : vector<128xf32>
      %26 = vector.multi_reduction <add>, %25, %cst_18 [1] : vector<128x32xf32> to vector<128xf32>
      %27 = vector.shape_cast %26 : vector<128xf32> to vector<128x1xf32>
      %cst_19 = arith.constant 3.200000e+01 : f32
      %28 = vector.broadcast %cst_19 : f32 to vector<128x1xf32>
      %29 = arith.divf %27, %28 : vector<128x1xf32>
      %30 = vector.broadcast %29 : vector<128x1xf32> to vector<128x32xf32>
      %31 = arith.subf %25, %30 : vector<128x32xf32>
      %32 = arith.mulf %31, %31 : vector<128x32xf32>
      %cst_20 = arith.constant dense<0.000000e+00> : vector<128xf32>
      %33 = vector.multi_reduction <add>, %32, %cst_20 [1] : vector<128x32xf32> to vector<128xf32>
      %34 = vector.shape_cast %33 : vector<128xf32> to vector<128x1xf32>
      %cst_21 = arith.constant 3.200000e+01 : f32
      %35 = vector.broadcast %cst_21 : f32 to vector<128x1xf32>
      %36 = arith.divf %34, %35 : vector<128x1xf32>
      %cst_22 = arith.constant 9.99999974E-6 : f32
      %37 = vector.broadcast %cst_22 : f32 to vector<128x1xf32>
      %38 = arith.addf %36, %37 : vector<128x1xf32>
      %39 = math.rsqrt %38 : vector<128x1xf32>
      %40 = vector.broadcast %39 : vector<128x1xf32> to vector<128x32xf32>
      %41 = arith.mulf %31, %40 : vector<128x32xf32>
      %c0_23 = arith.constant 0 : index
      %c0_24 = arith.constant 0 : index
      %42 = vector.load %arg3[%c0_23, %c0_24] : memref<1x32xf32, #tpu.memory_space<vmem>>, vector<1x32xf32>
      %43 = vector.broadcast %42 : vector<1x32xf32> to vector<128x32xf32>
      %44 = arith.mulf %41, %43 : vector<128x32xf32>
      %c0_25 = arith.constant 0 : index
      %c0_26 = arith.constant 0 : index
      %45 = vector.load %arg4[%c0_25, %c0_26] : memref<1x32xf32, #tpu.memory_space<vmem>>, vector<1x32xf32>
      %46 = vector.broadcast %45 : vector<1x32xf32> to vector<128x32xf32>
      %47 = arith.addf %44, %46 : vector<128x32xf32>
      %48 = arith.truncf %47 : vector<128x32xf32> to vector<128x32xbf16>
      %c0_27 = arith.constant 0 : index
      %c0_28 = arith.constant 0 : index
      %49 = vector.load %arg10[%c0_27, %c0_28] : memref<128x32xbf16, #tpu.memory_space<vmem>>, vector<128x32xbf16>
      tpu.vector_store %arg10[%c0_27, %c0_28], %48 {strides = array<i32>} : memref<128x32xbf16, #tpu.memory_space<vmem>>, vector<128x32xbf16>,
    } else {
    }
    %c0 = arith.constant 0 : index
    %c0_1 = arith.constant 0 : index
    %3 = vector.load %arg10[%c0, %c0_1] : memref<128x32xbf16, #tpu.memory_space<vmem>>, vector<128x32xbf16>
    %c0_2 = arith.constant 0 : index
    %c0_3 = arith.constant 0 : index
    %4 = vector.load %arg5[%c0_2, %c0_3] : memref<32x128xbf16, #tpu.memory_space<vmem>>, vector<32x128xbf16>
    %cst = arith.constant dense<0.000000e+00> : vector<128x128xf32>
    %5 = tpu.matmul %3, %4, %cst {dimension_numbers = #tpu.dot_dimension_numbers<[1], [0], [0], [1], [0, 0, 1, 1], [], []>} : vector<128x32xbf16>, vector<32x128xbf16>, vector<128x128xf32> -> vector<128x128xf32>
    %c0_4 = arith.constant 0 : index
    %c0_5 = arith.constant 0 : index
    %6 = vector.load %arg6[%c0_4, %c0_5] : memref<1x128xf32, #tpu.memory_space<vmem>>, vector<1x128xf32>
    %7 = vector.broadcast %6 : vector<1x128xf32> to vector<128x128xf32>
    %8 = arith.addf %5, %7 : vector<128x128xf32>
    %c0_6 = arith.constant 0 : index
    %c0_7 = arith.constant 0 : index
    %9 = vector.load %arg7[%c0_6, %c0_7] : memref<32x128xbf16, #tpu.memory_space<vmem>>, vector<32x128xbf16>
    %cst_8 = arith.constant dense<0.000000e+00> : vector<128x128xf32>
    %10 = tpu.matmul %3, %9, %cst_8 {dimension_numbers = #tpu.dot_dimension_numbers<[1], [0], [0], [1], [0, 0, 1, 1], [], []>} : vector<128x32xbf16>, vector<32x128xbf16>, vector<128x128xf32> -> vector<128x128xf32>
    %c0_9 = arith.constant 0 : index
    %c0_10 = arith.constant 0 : index
    %11 = vector.load %arg8[%c0_9, %c0_10] : memref<1x128xf32, #tpu.memory_space<vmem>>, vector<1x128xf32>
    %12 = vector.broadcast %11 : vector<1x128xf32> to vector<128x128xf32>
    %13 = arith.addf %10, %12 : vector<128x128xf32>
    %cst_11 = arith.constant 5.000000e-01 : f32
    %14 = vector.broadcast %cst_11 : f32 to vector<128x128xf32>
    %15 = arith.mulf %14, %13 : vector<128x128xf32>
    %cst_12 = arith.constant 0.707106769 : f32
    %16 = vector.broadcast %cst_12 : f32 to vector<128x128xf32>
    %17 = arith.mulf %13, %16 : vector<128x128xf32>
    %18 = math.erf %17 : vector<128x128xf32>
    %cst_13 = arith.constant 1.000000e+00 : f32
    %19 = vector.broadcast %cst_13 : f32 to vector<128x128xf32>
    %20 = arith.addf %19, %18 : vector<128x128xf32>
    %21 = arith.mulf %15, %20 : vector<128x128xf32>
    %22 = arith.mulf %8, %21 : vector<128x128xf32>
    %23 = arith.truncf %22 : vector<128x128xf32> to vector<128x128xbf16>
    %c0_14 = arith.constant 0 : index
    %c0_15 = arith.constant 0 : index
    %24 = vector.load %arg9[%c0_14, %c0_15] : memref<128x128xbf16, #tpu.memory_space<vmem>>, vector<128x128xbf16>
    tpu.vector_store %arg9[%c0_14, %c0_15], %23 {strides = array<i32>} : memref<128x128xbf16, #tpu.memory_space<vmem>>, vector<128x128xbf16>,
    return
  }
  func.func @transform_0(%arg0: i32, %arg1: i32) -> (i32, i32) {
    %c0_i32 = arith.constant 0 : i32
    %c0_i32_0 = arith.constant 0 : i32
    return %arg0, %c0_i32 : i32, i32
  }
  func.func @transform_1(%arg0: i32, %arg1: i32) -> (i32, i32) {
    %c0_i32 = arith.constant 0 : i32
    %c0_i32_0 = arith.constant 0 : i32
    %c0_i32_1 = arith.constant 0 : i32
    return %c0_i32, %c0_i32_0 : i32, i32
  }
  func.func @transform_2(%arg0: i32, %arg1: i32) -> (i32, i32) {
    %c0_i32 = arith.constant 0 : i32
    %c0_i32_0 = arith.constant 0 : i32
    %c0_i32_1 = arith.constant 0 : i32
    return %c0_i32, %c0_i32_0 : i32, i32
  }
  func.func @transform_3(%arg0: i32, %arg1: i32) -> (i32, i32) {
    %c0_i32 = arith.constant 0 : i32
    %c0_i32_0 = arith.constant 0 : i32
    return %c0_i32, %arg1 : i32, i32
  }
  func.func @transform_4(%arg0: i32, %arg1: i32) -> (i32, i32) {
    %c0_i32 = arith.constant 0 : i32
    %c0_i32_0 = arith.constant 0 : i32
    return %c0_i32, %arg1 : i32, i32
  }
  func.func @transform_5(%arg0: i32, %arg1: i32) -> (i32, i32) {
    %c0_i32 = arith.constant 0 : i32
    %c0_i32_0 = arith.constant 0 : i32
    return %c0_i32, %arg1 : i32, i32
  }
  func.func @transform_6(%arg0: i32, %arg1: i32) -> (i32, i32) {
    %c0_i32 = arith.constant 0 : i32
    %c0_i32_0 = arith.constant 0 : i32
    return %c0_i32, %arg1 : i32, i32
  }
  func.func @transform_7(%arg0: i32, %arg1: i32) -> (i32, i32) {
    %c0_i32 = arith.constant 0 : i32
    return %arg0, %arg1 : i32, i32
  }
}

module attributes {stable_mosaic.version = 11 : i64} {
  func.func @kernel(%arg0: i32, %arg1: i32, %arg2: i32, %arg3: memref<128x128xbf16, #tpu.memory_space<vmem>>, %arg4: memref<128x32xbf16, #tpu.memory_space<vmem>>, %arg5: memref<1x32xf32, #tpu.memory_space<vmem>>, %arg6: memref<128x32xf32, #tpu.memory_space<vmem>>, %arg7: memref<128x32xf32, #tpu.memory_space<vmem>>, %arg8: memref<128x32xf32, #tpu.memory_space<vmem>>) attributes {dimension_semantics = [#tpu.dimension_semantics<parallel>, #tpu.dimension_semantics<parallel>, #tpu.dimension_semantics<arbitrary>], iteration_bounds = array<i64: 1, 1, 1>, scalar_prefetch = 0 : i64, scratch_operands = 1 : i64, tpu.core_type = #tpu.core_type<tc>, window_params = [{transform_indices = @transform_0, window_bounds = array<i64: 128, 128>}, {transform_indices = @transform_1, window_bounds = array<i64: 128, 32>}, {transform_indices = @transform_2, window_bounds = array<i64: 1, 32>}, {transform_indices = @transform_3, window_bounds = array<i64: 128, 32>}, {transform_indices = @transform_4, window_bounds = array<i64: 128, 32>}]} {
    %c0_i32 = arith.constant 0 : i32
    %0 = arith.cmpi eq, %arg2, %c0_i32 : i32
    %1 = arith.extui %0 : i1 to i32
    %c0_i32_0 = arith.constant 0 : i32
    %2 = arith.cmpi ne, %1, %c0_i32_0 : i32
    scf.if %2 {
      %cst_10 = arith.constant 0.000000e+00 : f32
      %12 = vector.broadcast %cst_10 : f32 to vector<128x32xf32>
      %c0_11 = arith.constant 0 : index
      %c0_12 = arith.constant 0 : index
      %13 = vector.load %arg8[%c0_11, %c0_12] : memref<128x32xf32, #tpu.memory_space<vmem>>, vector<128x32xf32>
      tpu.vector_store %arg8[%c0_11, %c0_12], %12 {strides = array<i32>} : memref<128x32xf32, #tpu.memory_space<vmem>>, vector<128x32xf32>,
    } else {
    }
    %c0 = arith.constant 0 : index
    %c0_1 = arith.constant 0 : index
    %3 = vector.load %arg8[%c0, %c0_1] : memref<128x32xf32, #tpu.memory_space<vmem>>, vector<128x32xf32>
    %c0_2 = arith.constant 0 : index
    %c0_3 = arith.constant 0 : index
    %4 = vector.load %arg3[%c0_2, %c0_3] : memref<128x128xbf16, #tpu.memory_space<vmem>>, vector<128x128xbf16>
    %c0_4 = arith.constant 0 : index
    %c0_5 = arith.constant 0 : index
    %5 = vector.load %arg4[%c0_4, %c0_5] : memref<128x32xbf16, #tpu.memory_space<vmem>>, vector<128x32xbf16>
    %cst = arith.constant dense<0.000000e+00> : vector<128x32xf32>
    %6 = tpu.matmul %4, %5, %cst {dimension_numbers = #tpu.dot_dimension_numbers<[1], [0], [0], [1], [0, 0, 1, 1], [], []>} : vector<128x128xbf16>, vector<128x32xbf16>, vector<128x32xf32> -> vector<128x32xf32>
    %7 = arith.addf %3, %6 : vector<128x32xf32>
    %c0_6 = arith.constant 0 : index
    %c0_7 = arith.constant 0 : index
    %8 = vector.load %arg8[%c0_6, %c0_7] : memref<128x32xf32, #tpu.memory_space<vmem>>, vector<128x32xf32>
    tpu.vector_store %arg8[%c0_6, %c0_7], %7 {strides = array<i32>} : memref<128x32xf32, #tpu.memory_space<vmem>>, vector<128x32xf32>,
    %c0_i32_8 = arith.constant 0 : i32
    %9 = arith.cmpi eq, %arg2, %c0_i32_8 : i32
    %10 = arith.extui %9 : i1 to i32
    %c0_i32_9 = arith.constant 0 : i32
    %11 = arith.cmpi ne, %10, %c0_i32_9 : i32
    scf.if %11 {
      %c0_10 = arith.constant 0 : index
      %c0_11 = arith.constant 0 : index
      %12 = vector.load %arg8[%c0_10, %c0_11] : memref<128x32xf32, #tpu.memory_space<vmem>>, vector<128x32xf32>
      %c0_12 = arith.constant 0 : index
      %c0_13 = arith.constant 0 : index
      %13 = vector.load %arg5[%c0_12, %c0_13] : memref<1x32xf32, #tpu.memory_space<vmem>>, vector<1x32xf32>
      %14 = vector.broadcast %13 : vector<1x32xf32> to vector<128x32xf32>
      %15 = arith.addf %12, %14 : vector<128x32xf32>
      %c0_14 = arith.constant 0 : index
      %c0_15 = arith.constant 0 : index
      %16 = vector.load %arg6[%c0_14, %c0_15] : memref<128x32xf32, #tpu.memory_space<vmem>>, vector<128x32xf32>
      %17 = arith.addf %15, %16 : vector<128x32xf32>
      %c0_16 = arith.constant 0 : index
      %c0_17 = arith.constant 0 : index
      %18 = vector.load %arg7[%c0_16, %c0_17] : memref<128x32xf32, #tpu.memory_space<vmem>>, vector<128x32xf32>
      tpu.vector_store %arg7[%c0_16, %c0_17], %17 {strides = array<i32>} : memref<128x32xf32, #tpu.memory_space<vmem>>, vector<128x32xf32>,
    } else {
    }
    return
  }
  func.func @transform_0(%arg0: i32, %arg1: i32, %arg2: i32) -> (i32, i32) {
    %c0_i32 = arith.constant 0 : i32
    return %arg0, %arg2 : i32, i32
  }
  func.func @transform_1(%arg0: i32, %arg1: i32, %arg2: i32) -> (i32, i32) {
    %c0_i32 = arith.constant 0 : i32
    return %arg2, %arg1 : i32, i32
  }
  func.func @transform_2(%arg0: i32, %arg1: i32, %arg2: i32) -> (i32, i32) {
    %c0_i32 = arith.constant 0 : i32
    %c0_i32_0 = arith.constant 0 : i32
    return %c0_i32, %arg1 : i32, i32
  }
  func.func @transform_3(%arg0: i32, %arg1: i32, %arg2: i32) -> (i32, i32) {
    %c0_i32 = arith.constant 0 : i32
    return %arg0, %arg1 : i32, i32
  }
  func.func @transform_4(%arg0: i32, %arg1: i32, %arg2: i32) -> (i32, i32) {
    %c0_i32 = arith.constant 0 : i32
    return %arg0, %arg1 : i32, i32
  }
}

module attributes {stable_mosaic.version = 11 : i64} {
  func.func @kernel(%arg0: i32, %arg1: i32, %arg2: memref<1x4x64x8xbf16, #tpu.memory_space<vmem>>, %arg3: memref<1x4x8x8xbf16, #tpu.memory_space<vmem>>, %arg4: memref<1x4x8x8xbf16, #tpu.memory_space<vmem>>, %arg5: memref<1x64x32xbf16, #tpu.memory_space<vmem>>) attributes {dimension_semantics = [#tpu.dimension_semantics<parallel>, #tpu.dimension_semantics<parallel>], iteration_bounds = array<i64: 2, 1>, scalar_prefetch = 0 : i64, scratch_operands = 0 : i64, tpu.core_type = #tpu.core_type<tc>, window_params = [{transform_indices = @transform_0, window_bounds = array<i64: 1, 4, 64, 8>}, {transform_indices = @transform_1, window_bounds = array<i64: 1, 4, 8, 8>}, {transform_indices = @transform_2, window_bounds = array<i64: 1, 4, 8, 8>}, {transform_indices = @transform_3, window_bounds = array<i64: 1, 64, 32>}]} {
    %c0 = arith.constant 0 : index
    %c0_0 = arith.constant 0 : index
    %c0_1 = arith.constant 0 : index
    %c0_2 = arith.constant 0 : index
    %0 = vector.load %arg2[%c0, %c0_0, %c0_1, %c0_2] : memref<1x4x64x8xbf16, #tpu.memory_space<vmem>>, vector<1x4x64x8xbf16>
    %1 = vector.shape_cast %0 : vector<1x4x64x8xbf16> to vector<4x64x8xbf16>
    %2 = arith.extf %1 : vector<4x64x8xbf16> to vector<4x64x8xf32>
    %cst = arith.constant 0.353553385 : f32
    %3 = vector.broadcast %cst : f32 to vector<4x64x8xf32>
    %4 = arith.mulf %2, %3 : vector<4x64x8xf32>
    %5 = vector.extract_strided_slice %4 {offsets = [0, 0, 0], sizes = [1, 64, 8], strides = [1, 1, 1]} : vector<4x64x8xf32> to vector<1x64x8xf32>
    %6 = vector.shape_cast %5 : vector<1x64x8xf32> to vector<64x8xf32>
    %7 = arith.truncf %6 : vector<64x8xf32> to vector<64x8xbf16>
    %c0_3 = arith.constant 0 : index
    %c0_4 = arith.constant 0 : index
    %c0_5 = arith.constant 0 : index
    %c0_6 = arith.constant 0 : index
    %8 = vector.load %arg3[%c0_3, %c0_4, %c0_5, %c0_6] : memref<1x4x8x8xbf16, #tpu.memory_space<vmem>>, vector<1x1x8x8xbf16>
    %9 = vector.shape_cast %8 : vector<1x1x8x8xbf16> to vector<8x8xbf16>
    %c0_7 = arith.constant 0 : index
    %c0_8 = arith.constant 0 : index
    %c0_9 = arith.constant 0 : index
    %c0_10 = arith.constant 0 : index
    %10 = vector.load %arg4[%c0_7, %c0_8, %c0_9, %c0_10] : memref<1x4x8x8xbf16, #tpu.memory_space<vmem>>, vector<1x1x8x8xbf16>
    %11 = vector.shape_cast %10 : vector<1x1x8x8xbf16> to vector<8x8xbf16>
    %cst_11 = arith.constant dense<0.000000e+00> : vector<64x8xf32>
    %12 = tpu.matmul %7, %9, %cst_11 {dimension_numbers = #tpu.dot_dimension_numbers<[1], [1], [0], [0], [0, 0, 1, 0], [], []>} : vector<64x8xbf16>, vector<8x8xbf16>, vector<64x8xf32> -> vector<64x8xf32>
    %cst_12 = arith.constant dense<0xFF800000> : vector<64xf32>
    %13 = vector.multi_reduction <maximumf>, %12, %cst_12 [1] : vector<64x8xf32> to vector<64xf32>
    %14 = vector.shape_cast %13 : vector<64xf32> to vector<64x1xf32>
    %15 = vector.broadcast %14 : vector<64x1xf32> to vector<64x8xf32>
    %16 = arith.subf %12, %15 : vector<64x8xf32>
    %17 = math.exp %16 : vector<64x8xf32>
    %cst_13 = arith.constant dense<0.000000e+00> : vector<64xf32>
    %18 = vector.multi_reduction <add>, %17, %cst_13 [1] : vector<64x8xf32> to vector<64xf32>
    %19 = vector.shape_cast %18 : vector<64xf32> to vector<64x1xf32>
    %20 = arith.truncf %17 : vector<64x8xf32> to vector<64x8xbf16>
    %cst_14 = arith.constant dense<0.000000e+00> : vector<64x8xf32>
    %21 = tpu.matmul %20, %11, %cst_14 {dimension_numbers = #tpu.dot_dimension_numbers<[1], [0], [0], [1], [0, 0, 1, 1], [], []>} : vector<64x8xbf16>, vector<8x8xbf16>, vector<64x8xf32> -> vector<64x8xf32>
    %22 = vector.broadcast %19 : vector<64x1xf32> to vector<64x8xf32>
    %23 = arith.divf %21, %22 : vector<64x8xf32>
    %24 = arith.truncf %23 : vector<64x8xf32> to vector<64x8xbf16>
    %c0_15 = arith.constant 0 : index
    %c0_16 = arith.constant 0 : index
    %c0_17 = arith.constant 0 : index
    %25 = vector.load %arg5[%c0_15, %c0_16, %c0_17] : memref<1x64x32xbf16, #tpu.memory_space<vmem>>, vector<1x64x8xbf16>
    %26 = vector.shape_cast %25 : vector<1x64x8xbf16> to vector<64x8xbf16>
    %27 = vector.shape_cast %24 : vector<64x8xbf16> to vector<1x64x8xbf16>
    tpu.vector_store %arg5[%c0_15, %c0_16, %c0_17], %27 {strides = array<i32>} : memref<1x64x32xbf16, #tpu.memory_space<vmem>>, vector<1x64x8xbf16>,
    %28 = vector.extract_strided_slice %4 {offsets = [1, 0, 0], sizes = [1, 64, 8], strides = [1, 1, 1]} : vector<4x64x8xf32> to vector<1x64x8xf32>
    %29 = vector.shape_cast %28 : vector<1x64x8xf32> to vector<64x8xf32>
    %30 = arith.truncf %29 : vector<64x8xf32> to vector<64x8xbf16>
    %c0_18 = arith.constant 0 : index
    %c1 = arith.constant 1 : index
    %c0_19 = arith.constant 0 : index
    %c0_20 = arith.constant 0 : index
    %31 = vector.load %arg3[%c0_18, %c1, %c0_19, %c0_20] : memref<1x4x8x8xbf16, #tpu.memory_space<vmem>>, vector<1x1x8x8xbf16>
    %32 = vector.shape_cast %31 : vector<1x1x8x8xbf16> to vector<8x8xbf16>
    %c0_21 = arith.constant 0 : index
    %c1_22 = arith.constant 1 : index
    %c0_23 = arith.constant 0 : index
    %c0_24 = arith.constant 0 : index
    %33 = vector.load %arg4[%c0_21, %c1_22, %c0_23, %c0_24] : memref<1x4x8x8xbf16, #tpu.memory_space<vmem>>, vector<1x1x8x8xbf16>
    %34 = vector.shape_cast %33 : vector<1x1x8x8xbf16> to vector<8x8xbf16>
    %cst_25 = arith.constant dense<0.000000e+00> : vector<64x8xf32>
    %35 = tpu.matmul %30, %32, %cst_25 {dimension_numbers = #tpu.dot_dimension_numbers<[1], [1], [0], [0], [0, 0, 1, 0], [], []>} : vector<64x8xbf16>, vector<8x8xbf16>, vector<64x8xf32> -> vector<64x8xf32>
    %cst_26 = arith.constant dense<0xFF800000> : vector<64xf32>
    %36 = vector.multi_reduction <maximumf>, %35, %cst_26 [1] : vector<64x8xf32> to vector<64xf32>
    %37 = vector.shape_cast %36 : vector<64xf32> to vector<64x1xf32>
    %38 = vector.broadcast %37 : vector<64x1xf32> to vector<64x8xf32>
    %39 = arith.subf %35, %38 : vector<64x8xf32>
    %40 = math.exp %39 : vector<64x8xf32>
    %cst_27 = arith.constant dense<0.000000e+00> : vector<64xf32>
    %41 = vector.multi_reduction <add>, %40, %cst_27 [1] : vector<64x8xf32> to vector<64xf32>
    %42 = vector.shape_cast %41 : vector<64xf32> to vector<64x1xf32>
    %43 = arith.truncf %40 : vector<64x8xf32> to vector<64x8xbf16>
    %cst_28 = arith.constant dense<0.000000e+00> : vector<64x8xf32>
    %44 = tpu.matmul %43, %34, %cst_28 {dimension_numbers = #tpu.dot_dimension_numbers<[1], [0], [0], [1], [0, 0, 1, 1], [], []>} : vector<64x8xbf16>, vector<8x8xbf16>, vector<64x8xf32> -> vector<64x8xf32>
    %45 = vector.broadcast %42 : vector<64x1xf32> to vector<64x8xf32>
    %46 = arith.divf %44, %45 : vector<64x8xf32>
    %47 = arith.truncf %46 : vector<64x8xf32> to vector<64x8xbf16>
    %c0_29 = arith.constant 0 : index
    %c0_30 = arith.constant 0 : index
    %c8 = arith.constant 8 : index
    %48 = vector.load %arg5[%c0_29, %c0_30, %c8] : memref<1x64x32xbf16, #tpu.memory_space<vmem>>, vector<1x64x8xbf16>
    %49 = vector.shape_cast %48 : vector<1x64x8xbf16> to vector<64x8xbf16>
    %50 = vector.shape_cast %47 : vector<64x8xbf16> to vector<1x64x8xbf16>
    tpu.vector_store %arg5[%c0_29, %c0_30, %c8], %50 {strides = array<i32>} : memref<1x64x32xbf16, #tpu.memory_space<vmem>>, vector<1x64x8xbf16>,
    %51 = vector.extract_strided_slice %4 {offsets = [2, 0, 0], sizes = [1, 64, 8], strides = [1, 1, 1]} : vector<4x64x8xf32> to vector<1x64x8xf32>
    %52 = vector.shape_cast %51 : vector<1x64x8xf32> to vector<64x8xf32>
    %53 = arith.truncf %52 : vector<64x8xf32> to vector<64x8xbf16>
    %c0_31 = arith.constant 0 : index
    %c2 = arith.constant 2 : index
    %c0_32 = arith.constant 0 : index
    %c0_33 = arith.constant 0 : index
    %54 = vector.load %arg3[%c0_31, %c2, %c0_32, %c0_33] : memref<1x4x8x8xbf16, #tpu.memory_space<vmem>>, vector<1x1x8x8xbf16>
    %55 = vector.shape_cast %54 : vector<1x1x8x8xbf16> to vector<8x8xbf16>
    %c0_34 = arith.constant 0 : index
    %c2_35 = arith.constant 2 : index
    %c0_36 = arith.constant 0 : index
    %c0_37 = arith.constant 0 : index
    %56 = vector.load %arg4[%c0_34, %c2_35, %c0_36, %c0_37] : memref<1x4x8x8xbf16, #tpu.memory_space<vmem>>, vector<1x1x8x8xbf16>
    %57 = vector.shape_cast %56 : vector<1x1x8x8xbf16> to vector<8x8xbf16>
    %cst_38 = arith.constant dense<0.000000e+00> : vector<64x8xf32>
    %58 = tpu.matmul %53, %55, %cst_38 {dimension_numbers = #tpu.dot_dimension_numbers<[1], [1], [0], [0], [0, 0, 1, 0], [], []>} : vector<64x8xbf16>, vector<8x8xbf16>, vector<64x8xf32> -> vector<64x8xf32>
    %cst_39 = arith.constant dense<0xFF800000> : vector<64xf32>
    %59 = vector.multi_reduction <maximumf>, %58, %cst_39 [1] : vector<64x8xf32> to vector<64xf32>
    %60 = vector.shape_cast %59 : vector<64xf32> to vector<64x1xf32>
    %61 = vector.broadcast %60 : vector<64x1xf32> to vector<64x8xf32>
    %62 = arith.subf %58, %61 : vector<64x8xf32>
    %63 = math.exp %62 : vector<64x8xf32>
    %cst_40 = arith.constant dense<0.000000e+00> : vector<64xf32>
    %64 = vector.multi_reduction <add>, %63, %cst_40 [1] : vector<64x8xf32> to vector<64xf32>
    %65 = vector.shape_cast %64 : vector<64xf32> to vector<64x1xf32>
    %66 = arith.truncf %63 : vector<64x8xf32> to vector<64x8xbf16>
    %cst_41 = arith.constant dense<0.000000e+00> : vector<64x8xf32>
    %67 = tpu.matmul %66, %57, %cst_41 {dimension_numbers = #tpu.dot_dimension_numbers<[1], [0], [0], [1], [0, 0, 1, 1], [], []>} : vector<64x8xbf16>, vector<8x8xbf16>, vector<64x8xf32> -> vector<64x8xf32>
    %68 = vector.broadcast %65 : vector<64x1xf32> to vector<64x8xf32>
    %69 = arith.divf %67, %68 : vector<64x8xf32>
    %70 = arith.truncf %69 : vector<64x8xf32> to vector<64x8xbf16>
    %c0_42 = arith.constant 0 : index
    %c0_43 = arith.constant 0 : index
    %c16 = arith.constant 16 : index
    %71 = vector.load %arg5[%c0_42, %c0_43, %c16] : memref<1x64x32xbf16, #tpu.memory_space<vmem>>, vector<1x64x8xbf16>
    %72 = vector.shape_cast %71 : vector<1x64x8xbf16> to vector<64x8xbf16>
    %73 = vector.shape_cast %70 : vector<64x8xbf16> to vector<1x64x8xbf16>
    tpu.vector_store %arg5[%c0_42, %c0_43, %c16], %73 {strides = array<i32>} : memref<1x64x32xbf16, #tpu.memory_space<vmem>>, vector<1x64x8xbf16>,
    %74 = vector.extract_strided_slice %4 {offsets = [3, 0, 0], sizes = [1, 64, 8], strides = [1, 1, 1]} : vector<4x64x8xf32> to vector<1x64x8xf32>
    %75 = vector.shape_cast %74 : vector<1x64x8xf32> to vector<64x8xf32>
    %76 = arith.truncf %75 : vector<64x8xf32> to vector<64x8xbf16>
    %c0_44 = arith.constant 0 : index
    %c3 = arith.constant 3 : index
    %c0_45 = arith.constant 0 : index
    %c0_46 = arith.constant 0 : index
    %77 = vector.load %arg3[%c0_44, %c3, %c0_45, %c0_46] : memref<1x4x8x8xbf16, #tpu.memory_space<vmem>>, vector<1x1x8x8xbf16>
    %78 = vector.shape_cast %77 : vector<1x1x8x8xbf16> to vector<8x8xbf16>
    %c0_47 = arith.constant 0 : index
    %c3_48 = arith.constant 3 : index
    %c0_49 = arith.constant 0 : index
    %c0_50 = arith.constant 0 : index
    %79 = vector.load %arg4[%c0_47, %c3_48, %c0_49, %c0_50] : memref<1x4x8x8xbf16, #tpu.memory_space<vmem>>, vector<1x1x8x8xbf16>
    %80 = vector.shape_cast %79 : vector<1x1x8x8xbf16> to vector<8x8xbf16>
    %cst_51 = arith.constant dense<0.000000e+00> : vector<64x8xf32>
    %81 = tpu.matmul %76, %78, %cst_51 {dimension_numbers = #tpu.dot_dimension_numbers<[1], [1], [0], [0], [0, 0, 1, 0], [], []>} : vector<64x8xbf16>, vector<8x8xbf16>, vector<64x8xf32> -> vector<64x8xf32>
    %cst_52 = arith.constant dense<0xFF800000> : vector<64xf32>
    %82 = vector.multi_reduction <maximumf>, %81, %cst_52 [1] : vector<64x8xf32> to vector<64xf32>
    %83 = vector.shape_cast %82 : vector<64xf32> to vector<64x1xf32>
    %84 = vector.broadcast %83 : vector<64x1xf32> to vector<64x8xf32>
    %85 = arith.subf %81, %84 : vector<64x8xf32>
    %86 = math.exp %85 : vector<64x8xf32>
    %cst_53 = arith.constant dense<0.000000e+00> : vector<64xf32>
    %87 = vector.multi_reduction <add>, %86, %cst_53 [1] : vector<64x8xf32> to vector<64xf32>
    %88 = vector.shape_cast %87 : vector<64xf32> to vector<64x1xf32>
    %89 = arith.truncf %86 : vector<64x8xf32> to vector<64x8xbf16>
    %cst_54 = arith.constant dense<0.000000e+00> : vector<64x8xf32>
    %90 = tpu.matmul %89, %80, %cst_54 {dimension_numbers = #tpu.dot_dimension_numbers<[1], [0], [0], [1], [0, 0, 1, 1], [], []>} : vector<64x8xbf16>, vector<8x8xbf16>, vector<64x8xf32> -> vector<64x8xf32>
    %91 = vector.broadcast %88 : vector<64x1xf32> to vector<64x8xf32>
    %92 = arith.divf %90, %91 : vector<64x8xf32>
    %93 = arith.truncf %92 : vector<64x8xf32> to vector<64x8xbf16>
    %c0_55 = arith.constant 0 : index
    %c0_56 = arith.constant 0 : index
    %c24 = arith.constant 24 : index
    %94 = vector.load %arg5[%c0_55, %c0_56, %c24] : memref<1x64x32xbf16, #tpu.memory_space<vmem>>, vector<1x64x8xbf16>
    %95 = vector.shape_cast %94 : vector<1x64x8xbf16> to vector<64x8xbf16>
    %96 = vector.shape_cast %93 : vector<64x8xbf16> to vector<1x64x8xbf16>
    tpu.vector_store %arg5[%c0_55, %c0_56, %c24], %96 {strides = array<i32>} : memref<1x64x32xbf16, #tpu.memory_space<vmem>>, vector<1x64x8xbf16>,
    return
  }
  func.func @transform_0(%arg0: i32, %arg1: i32) -> (i32, i32, i32, i32) {
    %c0_i32 = arith.constant 0 : i32
    %c0_i32_0 = arith.constant 0 : i32
    %c0_i32_1 = arith.constant 0 : i32
    return %arg0, %c0_i32, %arg1, %c0_i32_0 : i32, i32, i32, i32
  }
  func.func @transform_1(%arg0: i32, %arg1: i32) -> (i32, i32, i32, i32) {
    %c0_i32 = arith.constant 0 : i32
    %c0_i32_0 = arith.constant 0 : i32
    %c0_i32_1 = arith.constant 0 : i32
    %c0_i32_2 = arith.constant 0 : i32
    return %arg0, %c0_i32, %c0_i32_0, %c0_i32_1 : i32, i32, i32, i32
  }
  func.func @transform_2(%arg0: i32, %arg1: i32) -> (i32, i32, i32, i32) {
    %c0_i32 = arith.constant 0 : i32
    %c0_i32_0 = arith.constant 0 : i32
    %c0_i32_1 = arith.constant 0 : i32
    %c0_i32_2 = arith.constant 0 : i32
    return %arg0, %c0_i32, %c0_i32_0, %c0_i32_1 : i32, i32, i32, i32
  }
  func.func @transform_3(%arg0: i32, %arg1: i32) -> (i32, i32, i32) {
    %c0_i32 = arith.constant 0 : i32
    %c0_i32_0 = arith.constant 0 : i32
    return %arg0, %arg1, %c0_i32 : i32, i32, i32
  }
}

module attributes {stable_mosaic.version = 11 : i64} {
  func.func @kernel(%arg0: i32, %arg1: i32, %arg2: i32, %arg3: memref<128x32xf32, #tpu.memory_space<vmem>>, %arg4: memref<32x32xbf16, #tpu.memory_space<vmem>>, %arg5: memref<1x32xf32, #tpu.memory_space<vmem>>, %arg6: memref<128x32xf32, #tpu.memory_space<vmem>>, %arg7: memref<128x32xf32, #tpu.memory_space<vmem>>, %arg8: memref<128x32xf32, #tpu.memory_space<vmem>>) attributes {dimension_semantics = [#tpu.dimension_semantics<parallel>, #tpu.dimension_semantics<parallel>, #tpu.dimension_semantics<arbitrary>], iteration_bounds = array<i64: 1, 1, 1>, scalar_prefetch = 0 : i64, scratch_operands = 1 : i64, tpu.core_type = #tpu.core_type<tc>, window_params = [{transform_indices = @transform_0, window_bounds = array<i64: 128, 32>}, {transform_indices = @transform_1, window_bounds = array<i64: 32, 32>}, {transform_indices = @transform_2, window_bounds = array<i64: 1, 32>}, {transform_indices = @transform_3, window_bounds = array<i64: 128, 32>}, {transform_indices = @transform_4, window_bounds = array<i64: 128, 32>}]} {
    %c0_i32 = arith.constant 0 : i32
    %0 = arith.cmpi eq, %arg2, %c0_i32 : i32
    %1 = arith.extui %0 : i1 to i32
    %c0_i32_0 = arith.constant 0 : i32
    %2 = arith.cmpi ne, %1, %c0_i32_0 : i32
    scf.if %2 {
      %cst_10 = arith.constant 0.000000e+00 : f32
      %13 = vector.broadcast %cst_10 : f32 to vector<128x32xf32>
      %c0_11 = arith.constant 0 : index
      %c0_12 = arith.constant 0 : index
      %14 = vector.load %arg8[%c0_11, %c0_12] : memref<128x32xf32, #tpu.memory_space<vmem>>, vector<128x32xf32>
      tpu.vector_store %arg8[%c0_11, %c0_12], %13 {strides = array<i32>} : memref<128x32xf32, #tpu.memory_space<vmem>>, vector<128x32xf32>,
    } else {
    }
    %c0 = arith.constant 0 : index
    %c0_1 = arith.constant 0 : index
    %3 = vector.load %arg8[%c0, %c0_1] : memref<128x32xf32, #tpu.memory_space<vmem>>, vector<128x32xf32>
    %c0_2 = arith.constant 0 : index
    %c0_3 = arith.constant 0 : index
    %4 = vector.load %arg3[%c0_2, %c0_3] : memref<128x32xf32, #tpu.memory_space<vmem>>, vector<128x32xf32>
    %5 = arith.truncf %4 : vector<128x32xf32> to vector<128x32xbf16>
    %c0_4 = arith.constant 0 : index
    %c0_5 = arith.constant 0 : index
    %6 = vector.load %arg4[%c0_4, %c0_5] : memref<32x32xbf16, #tpu.memory_space<vmem>>, vector<32x32xbf16>
    %cst = arith.constant dense<0.000000e+00> : vector<128x32xf32>
    %7 = tpu.matmul %5, %6, %cst {dimension_numbers = #tpu.dot_dimension_numbers<[1], [0], [0], [1], [0, 0, 1, 1], [], []>} : vector<128x32xbf16>, vector<32x32xbf16>, vector<128x32xf32> -> vector<128x32xf32>
    %8 = arith.addf %3, %7 : vector<128x32xf32>
    %c0_6 = arith.constant 0 : index
    %c0_7 = arith.constant 0 : index
    %9 = vector.load %arg8[%c0_6, %c0_7] : memref<128x32xf32, #tpu.memory_space<vmem>>, vector<128x32xf32>
    tpu.vector_store %arg8[%c0_6, %c0_7], %8 {strides = array<i32>} : memref<128x32xf32, #tpu.memory_space<vmem>>, vector<128x32xf32>,
    %c0_i32_8 = arith.constant 0 : i32
    %10 = arith.cmpi eq, %arg2, %c0_i32_8 : i32
    %11 = arith.extui %10 : i1 to i32
    %c0_i32_9 = arith.constant 0 : i32
    %12 = arith.cmpi ne, %11, %c0_i32_9 : i32
    scf.if %12 {
      %c0_10 = arith.constant 0 : index
      %c0_11 = arith.constant 0 : index
      %13 = vector.load %arg8[%c0_10, %c0_11] : memref<128x32xf32, #tpu.memory_space<vmem>>, vector<128x32xf32>
      %c0_12 = arith.constant 0 : index
      %c0_13 = arith.constant 0 : index
      %14 = vector.load %arg5[%c0_12, %c0_13] : memref<1x32xf32, #tpu.memory_space<vmem>>, vector<1x32xf32>
      %15 = vector.broadcast %14 : vector<1x32xf32> to vector<128x32xf32>
      %16 = arith.addf %13, %15 : vector<128x32xf32>
      %c0_14 = arith.constant 0 : index
      %c0_15 = arith.constant 0 : index
      %17 = vector.load %arg6[%c0_14, %c0_15] : memref<128x32xf32, #tpu.memory_space<vmem>>, vector<128x32xf32>
      %18 = arith.addf %16, %17 : vector<128x32xf32>
      %c0_16 = arith.constant 0 : index
      %c0_17 = arith.constant 0 : index
      %19 = vector.load %arg7[%c0_16, %c0_17] : memref<128x32xf32, #tpu.memory_space<vmem>>, vector<128x32xf32>
      tpu.vector_store %arg7[%c0_16, %c0_17], %18 {strides = array<i32>} : memref<128x32xf32, #tpu.memory_space<vmem>>, vector<128x32xf32>,
    } else {
    }
    return
  }
  func.func @transform_0(%arg0: i32, %arg1: i32, %arg2: i32) -> (i32, i32) {
    %c0_i32 = arith.constant 0 : i32
    return %arg0, %arg2 : i32, i32
  }
  func.func @transform_1(%arg0: i32, %arg1: i32, %arg2: i32) -> (i32, i32) {
    %c0_i32 = arith.constant 0 : i32
    return %arg2, %arg1 : i32, i32
  }
  func.func @transform_2(%arg0: i32, %arg1: i32, %arg2: i32) -> (i32, i32) {
    %c0_i32 = arith.constant 0 : i32
    %c0_i32_0 = arith.constant 0 : i32
    return %c0_i32, %arg1 : i32, i32
  }
  func.func @transform_3(%arg0: i32, %arg1: i32, %arg2: i32) -> (i32, i32) {
    %c0_i32 = arith.constant 0 : i32
    return %arg0, %arg1 : i32, i32
  }
  func.func @transform_4(%arg0: i32, %arg1: i32, %arg2: i32) -> (i32, i32) {
    %c0_i32 = arith.constant 0 : i32
    return %arg0, %arg1 : i32, i32
  }
}

</mosaic_0001>

<llo_original>
// kernel: _lambda_.12
$region0: #{_lambda_.12}
  #allocation0 [shape = 'u32[]', space=smem, size = 0x4, offset = 0x4, fixed_abs, tag = 'smem constant byte address 0x4 - core index']
  #allocation1 [shape = 'u32[144,128]{1,0:T(1,128)}', space=vmem, size = 0x12000, scoped, tag = 'internal scratch']
  %s0 = inlined_call_operand.hbm [shape: f32[2,64,32], index: 0, kind: input, shape index: {}]
  %s1 = inlined_call_operand.vmem [shape: f32[2,2,32], index: 1, kind: output, shape index: {}]
  %s2 = sld [smem:[#allocation0]]
  $region49: #{_lambda_.12} parent=0
    _
  %s4 = ssub.s32 1, %s2
  %s5 = scalar_select 0, %s4, %s2
  $region1: #{_lambda_.12} parent=0
    #allocation2 [shape = 'u8[65536]{0}', space=vmem, size = 0x10000, scoped, tag = 'input window, operand 0']
    #allocation3 [shape = 's32[2]{0}', space=sflag, size = 0x8, scoped, tag = 'scoped memory for _lambda_.12']
    %6 = vsyncpa [#allocation3], 0
    %s7 = scalar_lea.sflag [#allocation3], 1
    %8 = vsyncpa %s7, 0
    loop: start=0, step=1, limit=4
    $region2: #{_lambda_.12} parent=1 // loop_pre_header
      _
    $region3: #{_lambda_.12} parent=1 // loop_header
      %s10 = sphi 0, %s14
      %p11 = scmp.ge.s32.totalorder %s10, 4
      %s17 = sphi 0, %s29
      %s18 = sphi 0, %s25
      %s19 = sphi 0, %s17
      %s20 = sphi 0, %s18
      %s21 = sphi 0, %s19
      %s22 = sphi 0, %s20
      %s34 = sphi 0, %s36
      %s37 = sphi 0, %s34
      %s38 = sphi 0, %s37
      %s54 = sphi 0, %s38
      %s60 = sphi 0, %s62
      %s63 = sphi 0, %s60
      %s64 = sphi 0, %s63
      %s80 = sphi 0, %s64
    $region4: #{_lambda_.12} parent=1 // loop_header_branch
      %13 = sbr.rel (%p11) target = $region8
    $region5: #{_lambda_.12} parent=1 // loop_body
      %s15 = ssub.s32 %s10, 1
      %s16 = ssub.s32 %s10, 2
      %s23 = sadd.s32 1, %s18
      %p24 = scmp.ge.s32.totalorder %s23, 1
      %s25 = scalar_select %p24, 0, %s23
      %s26 = sadd.s32 1, %s17
      %s27 = scalar_select %p24, %s26, %s17
      %p28 = scmp.ge.s32.totalorder %s27, 2
      %s29 = scalar_select %p28, 0, %s27
      %s30 = ssub.s32 %s17, %s29
      %s31 = ssub.s32 %s18, %s25
      %s32 = sor.u32 %s30, %s31
      %p33 = scmp.eq.s32.totalorder %s32, 0
      %s35 = sadd.s32 %s34, 1
      %s36 = scalar_select %p33, %s34, %s35
      %p39 = pneg %p33
      %p40 = scmp.eq.s32.totalorder %s10, 1
      %p41 = por %p39, %p40
      %p42 = scmp.ne.s32.totalorder %s34, %s37
      %p43 = scmp.eq.s32.totalorder %s10, 0
      %p44 = por %p42, %p43
      %p45 = scmp.ne.s32.totalorder %s34, %s37
      %p46 = scmp.eq.s32.totalorder %s15, 1
      %p47 = por %p45, %p46
      %p48 = scmp.ne.s32.totalorder %s37, %s38
      %p49 = scmp.eq.s32.totalorder %s15, 0
      %p50 = por %p48, %p49
      %p51 = scmp.ne.s32.totalorder %s37, %s38
      %p52 = scmp.eq.s32.totalorder %s16, 1
      %p53 = por %p51, %p52
      %p55 = scmp.ne.s32.totalorder %s38, %s54
      %p56 = scmp.eq.s32.totalorder %s16, 0
      %p57 = por %p55, %p56
      %s58 = ssub.s32 %s17, %s29
      %p59 = scmp.eq.s32.totalorder %s58, 0
      %s61 = sadd.s32 %s60, 1
      %s62 = scalar_select %p59, %s60, %s61
      %p65 = pneg %p59
      %p66 = scmp.eq.s32.totalorder %s10, 1
      %p67 = por %p65, %p66
      %p68 = scmp.ne.s32.totalorder %s60, %s63
      %p69 = scmp.eq.s32.totalorder %s10, 0
      %p70 = por %p68, %p69
      %p71 = scmp.ne.s32.totalorder %s60, %s63
      %p72 = scmp.eq.s32.totalorder %s15, 1
      %p73 = por %p71, %p72
      %p74 = scmp.ne.s32.totalorder %s63, %s64
      %p75 = scmp.eq.s32.totalorder %s15, 0
      %p76 = por %p74, %p75
      %p77 = scmp.ne.s32.totalorder %s63, %s64
      %p78 = scmp.eq.s32.totalorder %s16, 1
      %p79 = por %p77, %p78
      %p81 = scmp.ne.s32.totalorder %s64, %s80
      %p82 = scmp.eq.s32.totalorder %s16, 0
      %p83 = por %p81, %p82
      %p84 = scmp.le.s32.totalorder 1, %s10
      %p85 = scmp.lt.s32.totalorder %s10, 3
      %p86 = pnand %p84, %p85
      %p87 = pneg %p86
      // Predicated region
      $region9: #{_lambda_.12} parent=5 // pred_check
        _
      $region10: #{_lambda_.12} parent=5 // pred_check_branch
        %89 = sbr.rel (%p86) target = $region12
      $region11: #{_lambda_.12} parent=5 // pred_region
        %s90 = ssub.s32 %s10, 1
      $region12: #{_lambda_.12} parent=5 // pred_fallthru
        _
      %p91 = scmp.lt.s32.totalorder %s10, 2
      // Predicated region
      $region13: #{_lambda_.12} parent=5 // pred_check
        %p92 = pneg %p91
      $region14: #{_lambda_.12} parent=5 // pred_check_branch
        %94 = sbr.rel (%p92) target = $region16
      $region15: #{_lambda_.12} parent=5 // pred_region
        // Predicated region
        $region17: #{_lambda_.12} parent=15 // pred_check
          %p95 = pneg %p44
        $region18: #{_lambda_.12} parent=15 // pred_check_branch
          %97 = sbr.rel (%p95) target = $region20
        $region19: #{_lambda_.12} parent=15 // pred_region
          %s98 = sand.u32 %s34, 1
          %s99 = scalar_lea.sflag [#allocation3], %s98
          %s100 = sand.u32 %s34, 1
          %s101 = smul.addr %s100, 64
          %s102 = scalar_lea.vmem [#allocation2], %s101
          %s103 = smul.u32 8, %s18
          %s105 = ssub.s32 1024, 1024
          %106 = vsyncadd %s99, %s105
          %s107 = smul.addr %s17, 8
          %s108 = sadd.s32 %s103, %s107
          %s109 = smul.addr %s108, 128
          %s110 = scalar_lea.hbm %s0, %s109
          %s111 = sshll.u32 %s102, 4
          %s112 = int_to_ptr.vmem [resolvable:$true] %s111
          %117 = dma.hbm_to_vmem [thread:$0]  %s110, 1024, %s112, %s99, 128, 128, 8
        $region20: #{_lambda_.12} parent=15 // pred_fallthru
          _
      $region16: #{_lambda_.12} parent=5 // pred_fallthru
        _
      %p118 = scmp.le.s32.totalorder 1, %s10
      %p119 = scmp.lt.s32.totalorder %s10, 3
      %p120 = pnand %p118, %p119
      %p121 = pneg %p120
      // Predicated region
      $region21: #{_lambda_.12} parent=5 // pred_check
        _
      $region22: #{_lambda_.12} parent=5 // pred_check_branch
        %123 = sbr.rel (%p120) target = $region24
      $region23: #{_lambda_.12} parent=5 // pred_region
        %s124 = ssub.s32 %s10, 1
        %s125 = sand.u32 %s37, 1
        %s126 = scalar_lea.sflag [#allocation3], %s125
        %s127 = sand.u32 %s37, 1
        %s128 = smul.addr %s127, 64
        %s129 = scalar_lea.vmem [#allocation2], %s128
        // Predicated region
        $region25: #{_lambda_.12} parent=23 // pred_check
          %p130 = pneg %p50
        $region26: #{_lambda_.12} parent=23 // pred_check_branch
          %132 = sbr.rel (%p130) target = $region28
        $region27: #{_lambda_.12} parent=23 // pred_region
          %133 = dma.done %s126, 1024
        $region28: #{_lambda_.12} parent=23 // pred_fallthru
          _
        %s134 = sand.u32 %s37, 1
        %s135 = scalar_lea.sflag [#allocation3], %s134
        %s136 = sand.u32 %s37, 1
        %s137 = smul.addr %s136, 64
        %s138 = scalar_lea.vmem [#allocation2], %s137
        %p139 = pneg %p50
        %p140 = pneg %p47
        %p141 = pneg %p76
        %p142 = pneg %p73
        %p143 = scmp.lt.s32.totalorder %s19, 1
        %s144 = scalar_select %p143, %s19, 1
        %s145 = smul.addr %s144, 2
        %s146 = scalar_lea.vmem %s1, %s145
        %s147 = smul.u32 8, %s20
        %p148 = scmp.lt.s32.totalorder %s19, 1
        %s149 = scalar_select %p148, %s19, 1
        %s150 = smul.addr %s149, 2
        %s151 = scalar_lea.vmem %s1, %s150
        %v152 = vld [vmem:[%s129] sm:$0xff]
        %v153 = vld [vmem:[%s129 + $0x8] sm:$0xff]
        %v154 = vld [vmem:[%s129 + $0x10] sm:$0xff]
        %v155 = vld [vmem:[%s129 + $0x18] sm:$0xff]
        %v156 = vld [vmem:[%s129 + $0x20] sm:$0xff]
        %v157 = vld [vmem:[%s129 + $0x28] sm:$0xff]
        %v158 = vld [vmem:[%s129 + $0x30] sm:$0xff]
        %v159 = vld [vmem:[%s129 + $0x38] sm:$0xff]
        %vm160 = vcmask 261120
        %v161 = vsel %vm160, %v152, 0.0
        %v162 = vsel %vm160, %v153, 0.0
        %v163 = vadd.f32 %v161, %v162
        %v164 = vsel %vm160, %v154, 0.0
        %v165 = vadd.f32 %v163, %v164
        %v166 = vsel %vm160, %v155, 0.0
        %v167 = vadd.f32 %v165, %v166
        %v168 = vsel %vm160, %v156, 0.0
        %v169 = vadd.f32 %v167, %v168
        %v170 = vsel %vm160, %v157, 0.0
        %v171 = vadd.f32 %v169, %v170
        %v172 = vsel %vm160, %v158, 0.0
        %v173 = vadd.f32 %v171, %v172
        %v174 = vsel %vm160, %v159, 0.0
        %v175 = vadd.f32 %v173, %v174
        %v176 = vrot.slane %v175, 4
        %v177 = vadd.f32 %v175, %v176
        %v178 = vrot.slane %v177, 2
        %v179 = vadd.f32 %v177, %v178
        %v180 = vrot.slane %v179, 1
        %v181 = vadd.f32 %v179, %v180
        %v182 = vmul.f32 %v152, %v152
        %v183 = vmul.f32 %v153, %v153
        %v184 = vmul.f32 %v154, %v154
        %v185 = vmul.f32 %v155, %v155
        %v186 = vmul.f32 %v156, %v156
        %v187 = vmul.f32 %v157, %v157
        %v188 = vmul.f32 %v158, %v158
        %v189 = vmul.f32 %v159, %v159
        %v190 = vsel %vm160, %v182, 0.0
        %v191 = vsel %vm160, %v183, 0.0
        %v192 = vadd.f32 %v190, %v191
        %v193 = vsel %vm160, %v184, 0.0
        %v194 = vadd.f32 %v192, %v193
        %v195 = vsel %vm160, %v185, 0.0
        %v196 = vadd.f32 %v194, %v195
        %v197 = vsel %vm160, %v186, 0.0
        %v198 = vadd.f32 %v196, %v197
        %v199 = vsel %vm160, %v187, 0.0
        %v200 = vadd.f32 %v198, %v199
        %v201 = vsel %vm160, %v188, 0.0
        %v202 = vadd.f32 %v200, %v201
        %v203 = vsel %vm160, %v189, 0.0
        %v204 = vadd.f32 %v202, %v203
        %v205 = vrot.slane %v204, 4
        %v206 = vadd.f32 %v204, %v205
        %v207 = vrot.slane %v206, 2
        %v208 = vadd.f32 %v206, %v207
        %v209 = vrot.slane %v208, 1
        %v210 = vadd.f32 %v208, %v209
        %vm211 = vcmask 1040384
        %v212 = vsel %vm211, %v181, %v210
        %p213 = scmp.eq.s32.totalorder %s20, 0
        // Predicated region
        $region29: #{_lambda_.12} parent=23 // pred_check
          %p214 = pneg %p213
        $region30: #{_lambda_.12} parent=23 // pred_check_branch
          %216 = sbr.rel (%p214) target = $region32
        $region31: #{_lambda_.12} parent=23 // pred_region
          %vm217 = vcmask 254976
          %218 = vst.msk [vmem:[%s151] sm:$0x3] %vm217, %v212
        $region32: #{_lambda_.12} parent=23 // pred_fallthru
          _
        %p219 = scmp.ne.s32.totalorder %s20, 0
        // Predicated region
        $region33: #{_lambda_.12} parent=23 // pred_check
          %p220 = pneg %p219
        $region34: #{_lambda_.12} parent=23 // pred_check_branch
          %222 = sbr.rel (%p220) target = $region36
        $region35: #{_lambda_.12} parent=23 // pred_region
          %v223 = vld [vmem:[%s151] sm:$0x3]
          %v224 = vadd.f32 %v223, %v212
          %vm225 = vcmask 254976
          %226 = vst.msk [vmem:[%s151] sm:$0x3] %vm225, %v224
        $region36: #{_lambda_.12} parent=23 // pred_fallthru
          _
        %p227 = scmp.lt.s32.totalorder %s19, 1
        %s228 = scalar_select %p227, %s19, 1
        %s229 = smul.addr %s228, 2
        %s230 = scalar_lea.vmem %s1, %s229
        // Predicated region
        $region37: #{_lambda_.12} parent=23 // pred_check
          %p231 = pneg %p73
        $region38: #{_lambda_.12} parent=23 // pred_check_branch
          %233 = sbr.rel (%p231) target = $region40
        $region39: #{_lambda_.12} parent=23 // pred_region
          _
        $region40: #{_lambda_.12} parent=23 // pred_fallthru
          _
      $region24: #{_lambda_.12} parent=5 // pred_fallthru
        _
      %p234 = scmp.le.s32.totalorder 2, %s10
      // Predicated region
      $region41: #{_lambda_.12} parent=5 // pred_check
        %p235 = pneg %p234
      $region42: #{_lambda_.12} parent=5 // pred_check_branch
        %237 = sbr.rel (%p235) target = $region44
      $region43: #{_lambda_.12} parent=5 // pred_region
        %s238 = ssub.s32 %s10, 2
        // Predicated region
        $region45: #{_lambda_.12} parent=43 // pred_check
          %p239 = pneg %p79
        $region46: #{_lambda_.12} parent=43 // pred_check_branch
          %241 = sbr.rel (%p239) target = $region48
        $region47: #{_lambda_.12} parent=43 // pred_region
          %p242 = scmp.lt.s32.totalorder %s21, 1
          %s243 = scalar_select %p242, %s21, 1
          %s244 = smul.addr %s243, 2
          %s245 = scalar_lea.vmem %s1, %s244
        $region48: #{_lambda_.12} parent=43 // pred_fallthru
          _
      $region44: #{_lambda_.12} parent=5 // pred_fallthru
        _
    $region6: #{_lambda_.12} parent=1 // loop_footer
      %s14 = sadd.s32 1, %s10
    $region7: #{_lambda_.12} parent=1 // loop_footer_branch
      %9 = sbr.rel target = $region3
    $region8: #{_lambda_.12} parent=1 // loop_exit
      _
    %246 = vsyncpa [#allocation3], 1
    %s247 = scalar_lea.sflag [#allocation3], 1
    %248 = vsyncpa %s247, 1

// kernel: _lambda_.13
$region0: #{_lambda_.13}
  #allocation0 [shape = 'u32[]', space=smem, size = 0x4, offset = 0x4, fixed_abs, tag = 'smem constant byte address 0x4 - core index']
  #allocation1 [shape = 'u32[144,128]{1,0:T(1,128)}', space=vmem, size = 0x12000, scoped, tag = 'internal scratch']
  %s0 = inlined_call_operand.vmem [shape: f32[2,64,32], index: 0, kind: input, shape index: {}]
  %s1 = inlined_call_operand.vmem [shape: f32[2,2,32], index: 1, kind: input, shape index: {}]
  %s2 = inlined_call_operand.vmem [shape: f32[1,32], index: 2, kind: input, shape index: {}]
  %s3 = inlined_call_operand.vmem [shape: f32[1,32], index: 3, kind: input, shape index: {}]
  %s4 = inlined_call_operand.vmem [shape: bf16[32,32], index: 4, kind: input, shape index: {}]
  %s5 = inlined_call_operand.vmem [shape: f32[1,32], index: 5, kind: input, shape index: {}]
  %s6 = inlined_call_operand.vmem [shape: f32[2,64,32], index: 6, kind: output, shape index: {}]
  %s7 = sld [smem:[#allocation0]]
  $region57: #{_lambda_.13} parent=0
    _
  %s9 = ssub.s32 1, %s7
  %s10 = scalar_select 0, %s9, %s7
  loop: start=0, step=1, limit=4
  $region2: #{_lambda_.13} parent=0 // loop_pre_header
    _
  $region3: #{_lambda_.13} parent=0 // loop_header
    %s12 = sphi 0, %s16
    %p13 = scmp.ge.s32.totalorder %s12, 4
    %s19 = sphi 0, %s31
    %s20 = sphi 0, %s27
    %s21 = sphi 0, %s19
    %s22 = sphi 0, %s20
    %s23 = sphi 0, %s21
    %s24 = sphi 0, %s22
    %s36 = sphi 0, %s38
    %s39 = sphi 0, %s36
    %s40 = sphi 0, %s39
    %s56 = sphi 0, %s40
    %s62 = sphi 0, %s64
    %s65 = sphi 0, %s62
    %s66 = sphi 0, %s65
    %s82 = sphi 0, %s66
    %s86 = sphi 0, %s86
    %s88 = sphi 0, %s86
    %s89 = sphi 0, %s88
    %s103 = sphi 0, %s89
    %s107 = sphi 0, %s107
    %s109 = sphi 0, %s107
    %s110 = sphi 0, %s109
    %s124 = sphi 0, %s110
    %s128 = sphi 0, %s128
    %s130 = sphi 0, %s128
    %s131 = sphi 0, %s130
    %s145 = sphi 0, %s131
    %s149 = sphi 0, %s149
    %s151 = sphi 0, %s149
    %s152 = sphi 0, %s151
    %s166 = sphi 0, %s152
    %s174 = sphi 0, %s176
    %s177 = sphi 0, %s174
    %s178 = sphi 0, %s177
    %s194 = sphi 0, %s178
  $region4: #{_lambda_.13} parent=0 // loop_header_branch
    %15 = sbr.rel (%p13) target = $region8
  $region5: #{_lambda_.13} parent=0 // loop_body
    %s17 = ssub.s32 %s12, 1
    %s18 = ssub.s32 %s12, 2
    %s25 = sadd.s32 1, %s20
    %p26 = scmp.ge.s32.totalorder %s25, 1
    %s27 = scalar_select %p26, 0, %s25
    %s28 = sadd.s32 1, %s19
    %s29 = scalar_select %p26, %s28, %s19
    %p30 = scmp.ge.s32.totalorder %s29, 2
    %s31 = scalar_select %p30, 0, %s29
    %s32 = ssub.s32 %s19, %s31
    %s33 = ssub.s32 %s20, %s27
    %s34 = sor.u32 %s32, %s33
    %p35 = scmp.eq.s32.totalorder %s34, 0
    %s37 = sadd.s32 %s36, 1
    %s38 = scalar_select %p35, %s36, %s37
    %p41 = pneg %p35
    %p42 = scmp.eq.s32.totalorder %s12, 1
    %p43 = por %p41, %p42
    %p44 = scmp.ne.s32.totalorder %s36, %s39
    %p45 = scmp.eq.s32.totalorder %s12, 0
    %p46 = por %p44, %p45
    %p47 = scmp.ne.s32.totalorder %s36, %s39
    %p48 = scmp.eq.s32.totalorder %s17, 1
    %p49 = por %p47, %p48
    %p50 = scmp.ne.s32.totalorder %s39, %s40
    %p51 = scmp.eq.s32.totalorder %s17, 0
    %p52 = por %p50, %p51
    %p53 = scmp.ne.s32.totalorder %s39, %s40
    %p54 = scmp.eq.s32.totalorder %s18, 1
    %p55 = por %p53, %p54
    %p57 = scmp.ne.s32.totalorder %s40, %s56
    %p58 = scmp.eq.s32.totalorder %s18, 0
    %p59 = por %p57, %p58
    %s60 = ssub.s32 %s19, %s31
    %p61 = scmp.eq.s32.totalorder %s60, 0
    %s63 = sadd.s32 %s62, 1
    %s64 = scalar_select %p61, %s62, %s63
    %p67 = pneg %p61
    %p68 = scmp.eq.s32.totalorder %s12, 1
    %p69 = por %p67, %p68
    %p70 = scmp.ne.s32.totalorder %s62, %s65
    %p71 = scmp.eq.s32.totalorder %s12, 0
    %p72 = por %p70, %p71
    %p73 = scmp.ne.s32.totalorder %s62, %s65
    %p74 = scmp.eq.s32.totalorder %s17, 1
    %p75 = por %p73, %p74
    %p76 = scmp.ne.s32.totalorder %s65, %s66
    %p77 = scmp.eq.s32.totalorder %s17, 0
    %p78 = por %p76, %p77
    %p79 = scmp.ne.s32.totalorder %s65, %s66
    %p80 = scmp.eq.s32.totalorder %s18, 1
    %p81 = por %p79, %p80
    %p83 = scmp.ne.s32.totalorder %s66, %s82
    %p84 = scmp.eq.s32.totalorder %s18, 0
    %p85 = por %p83, %p84
    %s87 = sadd.s32 %s86, 1
    %p90 = scmp.eq.s32.totalorder %s12, 1
    %p91 = scmp.ne.s32.totalorder %s86, %s88
    %p92 = scmp.eq.s32.totalorder %s12, 0
    %p93 = por %p91, %p92
    %p94 = scmp.ne.s32.totalorder %s86, %s88
    %p95 = scmp.eq.s32.totalorder %s17, 1
    %p96 = por %p94, %p95
    %p97 = scmp.ne.s32.totalorder %s88, %s89
    %p98 = scmp.eq.s32.totalorder %s17, 0
    %p99 = por %p97, %p98
    %p100 = scmp.ne.s32.totalorder %s88, %s89
    %p101 = scmp.eq.s32.totalorder %s18, 1
    %p102 = por %p100, %p101
    %p104 = scmp.ne.s32.totalorder %s89, %s103
    %p105 = scmp.eq.s32.totalorder %s18, 0
    %p106 = por %p104, %p105
    %s108 = sadd.s32 %s107, 1
    %p111 = scmp.eq.s32.totalorder %s12, 1
    %p112 = scmp.ne.s32.totalorder %s107, %s109
    %p113 = scmp.eq.s32.totalorder %s12, 0
    %p114 = por %p112, %p113
    %p115 = scmp.ne.s32.totalorder %s107, %s109
    %p116 = scmp.eq.s32.totalorder %s17, 1
    %p117 = por %p115, %p116
    %p118 = scmp.ne.s32.totalorder %s109, %s110
    %p119 = scmp.eq.s32.totalorder %s17, 0
    %p120 = por %p118, %p119
    %p121 = scmp.ne.s32.totalorder %s109, %s110
    %p122 = scmp.eq.s32.totalorder %s18, 1
    %p123 = por %p121, %p122
    %p125 = scmp.ne.s32.totalorder %s110, %s124
    %p126 = scmp.eq.s32.totalorder %s18, 0
    %p127 = por %p125, %p126
    %s129 = sadd.s32 %s128, 1
    %p132 = scmp.eq.s32.totalorder %s12, 1
    %p133 = scmp.ne.s32.totalorder %s128, %s130
    %p134 = scmp.eq.s32.totalorder %s12, 0
    %p135 = por %p133, %p134
    %p136 = scmp.ne.s32.totalorder %s128, %s130
    %p137 = scmp.eq.s32.totalorder %s17, 1
    %p138 = por %p136, %p137
    %p139 = scmp.ne.s32.totalorder %s130, %s131
    %p140 = scmp.eq.s32.totalorder %s17, 0
    %p141 = por %p139, %p140
    %p142 = scmp.ne.s32.totalorder %s130, %s131
    %p143 = scmp.eq.s32.totalorder %s18, 1
    %p144 = por %p142, %p143
    %p146 = scmp.ne.s32.totalorder %s131, %s145
    %p147 = scmp.eq.s32.totalorder %s18, 0
    %p148 = por %p146, %p147
    %s150 = sadd.s32 %s149, 1
    %p153 = scmp.eq.s32.totalorder %s12, 1
    %p154 = scmp.ne.s32.totalorder %s149, %s151
    %p155 = scmp.eq.s32.totalorder %s12, 0
    %p156 = por %p154, %p155
    %p157 = scmp.ne.s32.totalorder %s149, %s151
    %p158 = scmp.eq.s32.totalorder %s17, 1
    %p159 = por %p157, %p158
    %p160 = scmp.ne.s32.totalorder %s151, %s152
    %p161 = scmp.eq.s32.totalorder %s17, 0
    %p162 = por %p160, %p161
    %p163 = scmp.ne.s32.totalorder %s151, %s152
    %p164 = scmp.eq.s32.totalorder %s18, 1
    %p165 = por %p163, %p164
    %p167 = scmp.ne.s32.totalorder %s152, %s166
    %p168 = scmp.eq.s32.totalorder %s18, 0
    %p169 = por %p167, %p168
    %s170 = ssub.s32 %s19, %s31
    %s171 = ssub.s32 %s20, %s27
    %s172 = sor.u32 %s170, %s171
    %p173 = scmp.eq.s32.totalorder %s172, 0
    %s175 = sadd.s32 %s174, 1
    %s176 = scalar_select %p173, %s174, %s175
    %p179 = pneg %p173
    %p180 = scmp.eq.s32.totalorder %s12, 1
    %p181 = por %p179, %p180
    %p182 = scmp.ne.s32.totalorder %s174, %s177
    %p183 = scmp.eq.s32.totalorder %s12, 0
    %p184 = por %p182, %p183
    %p185 = scmp.ne.s32.totalorder %s174, %s177
    %p186 = scmp.eq.s32.totalorder %s17, 1
    %p187 = por %p185, %p186
    %p188 = scmp.ne.s32.totalorder %s177, %s178
    %p189 = scmp.eq.s32.totalorder %s17, 0
    %p190 = por %p188, %p189
    %p191 = scmp.ne.s32.totalorder %s177, %s178
    %p192 = scmp.eq.s32.totalorder %s18, 1
    %p193 = por %p191, %p192
    %p195 = scmp.ne.s32.totalorder %s178, %s194
    %p196 = scmp.eq.s32.totalorder %s18, 0
    %p197 = por %p195, %p196
    %p198 = scmp.le.s32.totalorder 1, %s12
    %p199 = scmp.lt.s32.totalorder %s12, 3
    %p200 = pnand %p198, %p199
    %p201 = pneg %p200
    // Predicated region
    $region9: #{_lambda_.13} parent=5 // pred_check
      _
    $region10: #{_lambda_.13} parent=5 // pred_check_branch
      %203 = sbr.rel (%p200) target = $region12
    $region11: #{_lambda_.13} parent=5 // pred_region
      %s204 = ssub.s32 %s12, 1
      // Predicated region
      $region13: #{_lambda_.13} parent=11 // pred_check
        %p205 = pneg %p99
      $region14: #{_lambda_.13} parent=11 // pred_check_branch
        %207 = sbr.rel (%p205) target = $region16
      $region15: #{_lambda_.13} parent=11 // pred_region
        _
      $region16: #{_lambda_.13} parent=11 // pred_fallthru
        _
      // Predicated region
      $region17: #{_lambda_.13} parent=11 // pred_check
        %p208 = pneg %p120
      $region18: #{_lambda_.13} parent=11 // pred_check_branch
        %210 = sbr.rel (%p208) target = $region20
      $region19: #{_lambda_.13} parent=11 // pred_region
        _
      $region20: #{_lambda_.13} parent=11 // pred_fallthru
        _
      // Predicated region
      $region21: #{_lambda_.13} parent=11 // pred_check
        %p211 = pneg %p141
      $region22: #{_lambda_.13} parent=11 // pred_check_branch
        %213 = sbr.rel (%p211) target = $region24
      $region23: #{_lambda_.13} parent=11 // pred_region
        _
      $region24: #{_lambda_.13} parent=11 // pred_fallthru
        _
      // Predicated region
      $region25: #{_lambda_.13} parent=11 // pred_check
        %p214 = pneg %p162
      $region26: #{_lambda_.13} parent=11 // pred_check_branch
        %216 = sbr.rel (%p214) target = $region28
      $region27: #{_lambda_.13} parent=11 // pred_region
        _
      $region28: #{_lambda_.13} parent=11 // pred_fallthru
        _
    $region12: #{_lambda_.13} parent=5 // pred_fallthru
      _
    %p217 = scmp.lt.s32.totalorder %s12, 2
    // Predicated region
    $region29: #{_lambda_.13} parent=5 // pred_check
      %p218 = pneg %p217
    $region30: #{_lambda_.13} parent=5 // pred_check_branch
      %220 = sbr.rel (%p218) target = $region32
    $region31: #{_lambda_.13} parent=5 // pred_region
      // Predicated region
      $region33: #{_lambda_.13} parent=31 // pred_check
        %p221 = pneg %p46
      $region34: #{_lambda_.13} parent=31 // pred_check_branch
        %223 = sbr.rel (%p221) target = $region36
      $region35: #{_lambda_.13} parent=31 // pred_region
        %s224 = smul.u32 8, %s20
        %p225 = scmp.lt.s32.totalorder %s19, 1
        %s226 = scalar_select %p225, %s19, 1
        %p227 = scmp.lt.s32.totalorder %s224, 7
        %s228 = scalar_select %p227, %s224, 7
        %s229 = smul.addr %s226, 8
        %s230 = sadd.s32 %s228, %s229
        %s231 = smul.addr %s230, 8
        %s232 = scalar_lea.vmem %s0, %s231
        %s233 = smul.u32 8, %s20
      $region36: #{_lambda_.13} parent=31 // pred_fallthru
        _
      // Predicated region
      $region37: #{_lambda_.13} parent=31 // pred_check
        %p234 = pneg %p72
      $region38: #{_lambda_.13} parent=31 // pred_check_branch
        %236 = sbr.rel (%p234) target = $region40
      $region39: #{_lambda_.13} parent=31 // pred_region
        %p237 = scmp.lt.s32.totalorder %s19, 1
        %s238 = scalar_select %p237, %s19, 1
        %s239 = smul.addr %s238, 2
        %s240 = scalar_lea.vmem %s1, %s239
      $region40: #{_lambda_.13} parent=31 // pred_fallthru
        _
    $region32: #{_lambda_.13} parent=5 // pred_fallthru
      _
    %p241 = scmp.le.s32.totalorder 1, %s12
    %p242 = scmp.lt.s32.totalorder %s12, 3
    %p243 = pnand %p241, %p242
    %p244 = pneg %p243
    // Predicated region
    $region41: #{_lambda_.13} parent=5 // pred_check
      _
    $region42: #{_lambda_.13} parent=5 // pred_check_branch
      %246 = sbr.rel (%p243) target = $region44
    $region43: #{_lambda_.13} parent=5 // pred_region
      %s247 = ssub.s32 %s12, 1
      %s248 = smul.u32 8, %s22
      %p249 = scmp.lt.s32.totalorder %s21, 1
      %s250 = scalar_select %p249, %s21, 1
      %p251 = scmp.lt.s32.totalorder %s248, 7
      %s252 = scalar_select %p251, %s248, 7
      %s253 = smul.addr %s250, 8
      %s254 = sadd.s32 %s252, %s253
      %s255 = smul.addr %s254, 8
      %s256 = scalar_lea.vmem %s0, %s255
      %p257 = pneg %p52
      %p258 = pneg %p49
      %p259 = scmp.lt.s32.totalorder %s21, 1
      %s260 = scalar_select %p259, %s21, 1
      %s261 = smul.addr %s260, 2
      %s262 = scalar_lea.vmem %s1, %s261
      %p263 = pneg %p78
      %p264 = pneg %p75
      %p265 = pneg %p99
      %p266 = pneg %p96
      %p267 = pneg %p120
      %p268 = pneg %p117
      %p269 = pneg %p141
      %p270 = pneg %p138
      %p271 = pneg %p162
      %p272 = pneg %p159
      %p273 = pneg %p190
      %p274 = pneg %p187
      %s275 = smul.u32 8, %s22
      %p276 = scmp.lt.s32.totalorder %s21, 1
      %s277 = scalar_select %p276, %s21, 1
      %p278 = scmp.lt.s32.totalorder %s275, 7
      %s279 = scalar_select %p278, %s275, 7
      %s280 = smul.addr %s277, 8
      %s281 = sadd.s32 %s279, %s280
      %s282 = smul.addr %s281, 8
      %s283 = scalar_lea.vmem %s6, %s282
      %s284 = smul.u32 8, %s22
      %p285 = scmp.lt.s32.totalorder %s21, 1
      %s286 = scalar_select %p285, %s21, 1
      %p287 = scmp.lt.s32.totalorder %s284, 7
      %s288 = scalar_select %p287, %s284, 7
      %s289 = smul.addr %s286, 8
      %s290 = sadd.s32 %s288, %s289
      %s291 = smul.addr %s290, 8
      %s292 = scalar_lea.vmem %s0, %s291
      %s293 = smul.u32 8, %s22
      %p294 = scmp.lt.s32.totalorder %s21, 1
      %s295 = scalar_select %p294, %s21, 1
      %s296 = smul.addr %s295, 2
      %s297 = scalar_lea.vmem %s1, %s296
      %s298 = smul.u32 8, %s22
      %p299 = scmp.lt.s32.totalorder %s21, 1
      %s300 = scalar_select %p299, %s21, 1
      %p301 = scmp.lt.s32.totalorder %s298, 7
      %s302 = scalar_select %p301, %s298, 7
      %s303 = smul.addr %s300, 8
      %s304 = sadd.s32 %s302, %s303
      %s305 = smul.addr %s304, 8
      %s306 = scalar_lea.vmem %s6, %s305
      %s307 = smul.u32 8, %s22
      %v309 = vld [vmem:[%s292] sm:$0xff]
      %v310 = vld [vmem:[%s292 + $0x8] sm:$0xff]
      %v311 = vld [vmem:[%s292 + $0x10] sm:$0xff]
      %v312 = vld [vmem:[%s292 + $0x18] sm:$0xff]
      %v313 = vld [vmem:[%s292 + $0x20] sm:$0xff]
      %v314 = vld [vmem:[%s292 + $0x28] sm:$0xff]
      %v315 = vld [vmem:[%s292 + $0x30] sm:$0xff]
      %v316 = vld [vmem:[%s292 + $0x38] sm:$0xff]
      %v317 = vld [vmem:[%s297] sm:$0x1]
      %v318 = vld [vmem:[%s297 + $0x1] sm:$0x1]
      %v319 = vrcp.pop 64.0
      %v320 = vmul.f32 %v317, %v319
      %v321 = vmul.f32 %v318, %v319
      %v322 = vmul.f32 %v320, %v320
      %v323 = vsub.f32 %v321, %v322
      %v324 = vlaneseq
      %v325 = vshrl.u32 %v324, 7
      %v326 = vsub.s32 0, %v325
      %v327 = vrot.slane %v320, %v326
      %v328 = vsub.f32 %v309, %v327
      %v329 = vsub.f32 %v310, %v327
      %v330 = vsub.f32 %v311, %v327
      %v331 = vsub.f32 %v312, %v327
      %v332 = vsub.f32 %v313, %v327
      %v333 = vsub.f32 %v314, %v327
      %v334 = vsub.f32 %v315, %v327
      %v335 = vsub.f32 %v316, %v327
      %v336 = vadd.f32 %v323, 1e-06
      %v337 = vrsqrt.pop %v336
      %v338 = vlaneseq
      %v339 = vshrl.u32 %v338, 7
      %v340 = vsub.s32 0, %v339
      %v341 = vrot.slane %v337, %v340
      %v342 = vmul.f32 %v328, %v341
      %v343 = vmul.f32 %v329, %v341
      %v344 = vmul.f32 %v330, %v341
      %v345 = vmul.f32 %v331, %v341
      %v346 = vmul.f32 %v332, %v341
      %v347 = vmul.f32 %v333, %v341
      %v348 = vmul.f32 %v334, %v341
      %v349 = vmul.f32 %v335, %v341
      %v350 = vld [vmem:[%s2] sm:$0x1]
      %v352 = vlaneseq
      %v353 = vshrl.u32 %v352, 7
      %v354 = vsub.s32 0, %v353
      %v355 = vrot.slane %v350, %v354
      %v357 = vmul.f32 %v342, %v355
      %v358 = vmul.f32 %v343, %v355
      %v359 = vmul.f32 %v344, %v355
      %v360 = vmul.f32 %v345, %v355
      %v361 = vmul.f32 %v346, %v355
      %v362 = vmul.f32 %v347, %v355
      %v363 = vmul.f32 %v348, %v355
      %v364 = vmul.f32 %v349, %v355
      %v365 = vld [vmem:[%s3] sm:$0x1]
      %v367 = vlaneseq
      %v368 = vshrl.u32 %v367, 7
      %v369 = vsub.s32 0, %v368
      %v370 = vrot.slane %v365, %v369
      %v372 = vadd.f32 %v357, %v370
      %v373 = vadd.f32 %v358, %v370
      %v374 = vadd.f32 %v359, %v370
      %v375 = vadd.f32 %v360, %v370
      %v376 = vadd.f32 %v361, %v370
      %v377 = vadd.f32 %v362, %v370
      %v378 = vadd.f32 %v363, %v370
      %v379 = vadd.f32 %v364, %v370
      %v380 = vpack.c.bf16 %v373, %v372
      %v381 = vpack.c.bf16 %v375, %v374
      %v382 = vpack.c.bf16 %v377, %v376
      %v383 = vpack.c.bf16 %v379, %v378
      %v384 = vld [vmem:[%s4] sm:$0xf]
      %v385 = vld [vmem:[%s4 + $0x4] sm:$0xf]
      %v386 = vld [vmem:[%s4 + $0x8] sm:$0xf]
      %v387 = vld [vmem:[%s4 + $0xc] sm:$0xf]
      %v388 = vld [vmem:[%s5] sm:$0x1]
      %v390 = vlaneseq
      %v391 = vshrl.u32 %v390, 7
      %v392 = vsub.s32 0, %v391
      %v393 = vrot.slane %v388, %v392
      %v399 = vunpack.c.l.b16 %v384
      %v400 = vunpack.c.l.b16 %v385
      %v401 = vunpack.c.l.b16 %v386
      %v402 = vunpack.c.l.b16 %v387
      %v403 = vpack.c.b16 %v400, %v399
      %v404 = vpack.c.b16 %v402, %v401
      %vm407 = vcmask 261120
      %v409 = vsel %vm407, %v380, 0
      %v412 = vsel %vm407, %v381, 0
      %v415 = vsel %vm407, %v382, 0
      %v418 = vsel %vm407, %v383, 0
      %420 = vmatprep.subr.bf16.mxu0 0
      %421 = vmatpush1.bf16.msra.mxu0 0
      %422 = vmatprep.subr.bf16.mxu0 0
      %423 = vmatpush1.bf16.msra.mxu0 0
      %424 = vmatprep.subr.bf16.mxu0 0
      %425 = vmatpush1.bf16.msra.mxu0 0
      %426 = vmatprep.subr.bf16.mxu0 0
      %427 = vmatpush1.bf16.msra.mxu0 0
      %428 = vmatprep.subr.bf16.mxu0 0
      %429 = vmatpush1.bf16.msra.mxu0 0
      %430 = vmatprep.subr.bf16.mxu0 0
      %431 = vmatpush1.bf16.msra.mxu0 0
      %432 = vmatprep.subr.bf16.mxu0 0
      %433 = vmatpush1.bf16.msra.mxu0 %v404
      %434 = vmatprep.subr.bf16.mxu0 0
      %435 = vmatpush1.bf16.msra.mxu0 %v403
      %436 = vmatprep.subr.bf16.mxu0 0
      %437 = vmatpush2.bf16.msra.mxu0 0
      %438 = vmatprep.subr.bf16.mxu0 0
      %439 = vmatpush2.bf16.msra.mxu0 0
      %440 = vmatprep.subr.bf16.mxu0 0
      %441 = vmatpush2.bf16.msra.mxu0 0
      %442 = vmatprep.subr.bf16.mxu0 0
      %443 = vmatpush2.bf16.msra.mxu0 0
      %444 = vmatprep.subr.bf16.mxu0 0
      %445 = vmatpush2.bf16.msra.mxu0 0
      %446 = vmatprep.subr.bf16.mxu0 0
      %447 = vmatpush2.bf16.msra.mxu0 0
      %448 = vmatprep.subr.bf16.mxu0 0
      %449 = vmatpush2.bf16.msra.mxu0 0
      %450 = vmatprep.subr.bf16.mxu0 0
      %451 = vmatpush2.bf16.msra.mxu0 0
      %452 = vmatprep.mubr.bf16.mxu0 0
      %453 = vmatmul.mubr.bf16.gmra.mxu0 %v409
      %v454 = vpop.f32.mrf.mxu0
      %v455 = vadd.f32 %v393, %v454
      %v456 = vpop.f32.mrf.mxu0
      %v457 = vpop.f32.mrf.mxu0
      %v458 = vadd.f32 %v393, %v457
      %v459 = vpop.f32.mrf.mxu0
      %460 = vmatprep.mubr.bf16.mxu0 0
      %461 = vmatmul.mubr.bf16.gmra.mxu0 %v412
      %v462 = vpop.f32.mrf.mxu0
      %v463 = vadd.f32 %v393, %v462
      %v464 = vpop.f32.mrf.mxu0
      %v465 = vpop.f32.mrf.mxu0
      %v466 = vadd.f32 %v393, %v465
      %v467 = vpop.f32.mrf.mxu0
      %468 = vmatprep.mubr.bf16.mxu0 0
      %469 = vmatmul.mubr.bf16.gmra.mxu0 %v415
      %v470 = vpop.f32.mrf.mxu0
      %v471 = vadd.f32 %v393, %v470
      %v472 = vpop.f32.mrf.mxu0
      %v473 = vpop.f32.mrf.mxu0
      %v474 = vadd.f32 %v393, %v473
      %v475 = vpop.f32.mrf.mxu0
      %476 = vmatprep.mubr.bf16.mxu0 0
      %477 = vmatmul.mubr.bf16.gmra.mxu0 %v418
      %v478 = vpop.f32.mrf.mxu0
      %v479 = vadd.f32 %v393, %v478
      %v480 = vpop.f32.mrf.mxu0
      %v481 = vpop.f32.mrf.mxu0
      %v482 = vadd.f32 %v393, %v481
      %v483 = vpop.f32.mrf.mxu0
      %484 = vdwg.mxu0
      %485 = vst.msk [vmem:[%s306] sm:$0xff] %vm407, %v455
      %486 = vst.msk [vmem:[%s306 + $0x8] sm:$0xff] %vm407, %v458
      %487 = vst.msk [vmem:[%s306 + $0x10] sm:$0xff] %vm407, %v463
      %488 = vst.msk [vmem:[%s306 + $0x18] sm:$0xff] %vm407, %v466
      %489 = vst.msk [vmem:[%s306 + $0x20] sm:$0xff] %vm407, %v471
      %490 = vst.msk [vmem:[%s306 + $0x28] sm:$0xff] %vm407, %v474
      %491 = vst.msk [vmem:[%s306 + $0x30] sm:$0xff] %vm407, %v479
      %492 = vst.msk [vmem:[%s306 + $0x38] sm:$0xff] %vm407, %v482
      %s493 = smul.u32 8, %s22
      %p494 = scmp.lt.s32.totalorder %s21, 1
      %s495 = scalar_select %p494, %s21, 1
      %p496 = scmp.lt.s32.totalorder %s493, 7
      %s497 = scalar_select %p496, %s493, 7
      %s498 = smul.addr %s495, 8
      %s499 = sadd.s32 %s497, %s498
      %s500 = smul.addr %s499, 8
      %s501 = scalar_lea.vmem %s6, %s500
      // Predicated region
      $region45: #{_lambda_.13} parent=43 // pred_check
        %p502 = pneg %p187
      $region46: #{_lambda_.13} parent=43 // pred_check_branch
        %504 = sbr.rel (%p502) target = $region48
      $region47: #{_lambda_.13} parent=43 // pred_region
        %s505 = smul.u32 8, %s22
      $region48: #{_lambda_.13} parent=43 // pred_fallthru
        _
    $region44: #{_lambda_.13} parent=5 // pred_fallthru
      _
    %p506 = scmp.le.s32.totalorder 2, %s12
    // Predicated region
    $region49: #{_lambda_.13} parent=5 // pred_check
      %p507 = pneg %p506
    $region50: #{_lambda_.13} parent=5 // pred_check_branch
      %509 = sbr.rel (%p507) target = $region52
    $region51: #{_lambda_.13} parent=5 // pred_region
      %s510 = ssub.s32 %s12, 2
      // Predicated region
      $region53: #{_lambda_.13} parent=51 // pred_check
        %p511 = pneg %p193
      $region54: #{_lambda_.13} parent=51 // pred_check_branch
        %513 = sbr.rel (%p511) target = $region56
      $region55: #{_lambda_.13} parent=51 // pred_region
        %s514 = smul.u32 8, %s24
        %p515 = scmp.lt.s32.totalorder %s23, 1
        %s516 = scalar_select %p515, %s23, 1
        %p517 = scmp.lt.s32.totalorder %s514, 7
        %s518 = scalar_select %p517, %s514, 7
        %s519 = smul.addr %s516, 8
        %s520 = sadd.s32 %s518, %s519
        %s521 = smul.addr %s520, 8
        %s522 = scalar_lea.vmem %s6, %s521
      $region56: #{_lambda_.13} parent=51 // pred_fallthru
        _
    $region52: #{_lambda_.13} parent=5 // pred_fallthru
      _
  $region6: #{_lambda_.13} parent=0 // loop_footer
    %s16 = sadd.s32 1, %s12
  $region7: #{_lambda_.13} parent=0 // loop_footer_branch
    %11 = sbr.rel target = $region3
  $region8: #{_lambda_.13} parent=0 // loop_exit
    _

// kernel: _lambda_.14
$region0: #{_lambda_.14}
  #allocation0 [shape = 'u32[]', space=smem, size = 0x4, offset = 0x4, fixed_abs, tag = 'smem constant byte address 0x4 - core index']
  #allocation1 [shape = 'u32[144,128]{1,0:T(1,128)}', space=vmem, size = 0x12000, scoped, tag = 'internal scratch']
  #allocation2 [shape = 'bf16[128,32]{1,0:T(8,128)(2,1)}', space=vmem, size = 0x8000, scoped, tag = 'scratch operand']
  %s0 = inlined_call_operand.vmem [shape: f32[128,32], index: 0, kind: input, shape index: {}]
  %s1 = inlined_call_operand.vmem [shape: f32[1,32], index: 1, kind: input, shape index: {}]
  %s2 = inlined_call_operand.vmem [shape: f32[1,32], index: 2, kind: input, shape index: {}]
  %s3 = inlined_call_operand.vmem [shape: bf16[32,96], index: 3, kind: input, shape index: {}]
  %s4 = inlined_call_operand.vmem [shape: bf16[128,96], index: 4, kind: output, shape index: {}]
  %s5 = sld [smem:[#allocation0]]
  $region30: #{_lambda_.14} parent=0
    _
  %s7 = ssub.s32 1, %s5
  %s8 = scalar_select 0, %s7, %s5
  // Predicated region
  $region2: #{_lambda_.14} parent=0 // pred_check
    _
  $region3: #{_lambda_.14} parent=0 // pred_check_branch
    %10 = sbr.rel (0) target = $region5
  $region4: #{_lambda_.14} parent=0 // pred_region
    _
  $region5: #{_lambda_.14} parent=0 // pred_fallthru
    _
  // Predicated region
  $region6: #{_lambda_.14} parent=0 // pred_check
    _
  $region7: #{_lambda_.14} parent=0 // pred_check_branch
    %12 = sbr.rel (0) target = $region9
  $region8: #{_lambda_.14} parent=0 // pred_region
    _
  $region9: #{_lambda_.14} parent=0 // pred_fallthru
    _
  // Predicated region
  $region10: #{_lambda_.14} parent=0 // pred_check
    _
  $region11: #{_lambda_.14} parent=0 // pred_check_branch
    %14 = sbr.rel (0) target = $region13
  $region12: #{_lambda_.14} parent=0 // pred_region
    _
  $region13: #{_lambda_.14} parent=0 // pred_fallthru
    _
  // Predicated region
  $region14: #{_lambda_.14} parent=0 // pred_check
    _
  $region15: #{_lambda_.14} parent=0 // pred_check_branch
    %16 = sbr.rel (0) target = $region17
  $region16: #{_lambda_.14} parent=0 // pred_region
    _
  $region17: #{_lambda_.14} parent=0 // pred_fallthru
    _
  %p18 = scmp.eq.s32.totalorder 0, 0
  // Predicated region
  $region18: #{_lambda_.14} parent=0 // pred_check
    %p19 = pneg %p18
  $region19: #{_lambda_.14} parent=0 // pred_check_branch
    %21 = sbr.rel (%p19) target = $region21
  $region20: #{_lambda_.14} parent=0 // pred_region
    %v22 = vld [vmem:[%s0] sm:$0xff]
    %v23 = vld [vmem:[%s0 + $0x8] sm:$0xff]
    %v24 = vld [vmem:[%s0 + $0x10] sm:$0xff]
    %v25 = vld [vmem:[%s0 + $0x18] sm:$0xff]
    %v26 = vld [vmem:[%s0 + $0x20] sm:$0xff]
    %v27 = vld [vmem:[%s0 + $0x28] sm:$0xff]
    %v28 = vld [vmem:[%s0 + $0x30] sm:$0xff]
    %v29 = vld [vmem:[%s0 + $0x38] sm:$0xff]
    %v30 = vld [vmem:[%s0 + $0x40] sm:$0xff]
    %v31 = vld [vmem:[%s0 + $0x48] sm:$0xff]
    %v32 = vld [vmem:[%s0 + $0x50] sm:$0xff]
    %v33 = vld [vmem:[%s0 + $0x58] sm:$0xff]
    %v34 = vld [vmem:[%s0 + $0x60] sm:$0xff]
    %v35 = vld [vmem:[%s0 + $0x68] sm:$0xff]
    %v36 = vld [vmem:[%s0 + $0x70] sm:$0xff]
    %v37 = vld [vmem:[%s0 + $0x78] sm:$0xff]
    %vm38 = vcmask 261120
    %v39 = vsel %vm38, %v22, 0.0
    %40 = vadd.xlane.f32.xlu0 %v39
    %v41 = vpop.xlane.xlu0 %40
    %v42 = vsel %vm38, %v23, 0.0
    %43 = vadd.xlane.f32.xlu0 %v42
    %v44 = vpop.xlane.xlu0 %43
    %v45 = vsel %vm38, %v24, 0.0
    %46 = vadd.xlane.f32.xlu0 %v45
    %v47 = vpop.xlane.xlu0 %46
    %v48 = vsel %vm38, %v25, 0.0
    %49 = vadd.xlane.f32.xlu0 %v48
    %v50 = vpop.xlane.xlu0 %49
    %v51 = vsel %vm38, %v26, 0.0
    %52 = vadd.xlane.f32.xlu0 %v51
    %v53 = vpop.xlane.xlu0 %52
    %v54 = vsel %vm38, %v27, 0.0
    %55 = vadd.xlane.f32.xlu0 %v54
    %v56 = vpop.xlane.xlu0 %55
    %v57 = vsel %vm38, %v28, 0.0
    %58 = vadd.xlane.f32.xlu0 %v57
    %v59 = vpop.xlane.xlu0 %58
    %v60 = vsel %vm38, %v29, 0.0
    %61 = vadd.xlane.f32.xlu0 %v60
    %v62 = vpop.xlane.xlu0 %61
    %v63 = vsel %vm38, %v30, 0.0
    %64 = vadd.xlane.f32.xlu0 %v63
    %v65 = vpop.xlane.xlu0 %64
    %v66 = vsel %vm38, %v31, 0.0
    %67 = vadd.xlane.f32.xlu0 %v66
    %v68 = vpop.xlane.xlu0 %67
    %v69 = vsel %vm38, %v32, 0.0
    %70 = vadd.xlane.f32.xlu0 %v69
    %v71 = vpop.xlane.xlu0 %70
    %v72 = vsel %vm38, %v33, 0.0
    %73 = vadd.xlane.f32.xlu0 %v72
    %v74 = vpop.xlane.xlu0 %73
    %v75 = vsel %vm38, %v34, 0.0
    %76 = vadd.xlane.f32.xlu0 %v75
    %v77 = vpop.xlane.xlu0 %76
    %v78 = vsel %vm38, %v35, 0.0
    %79 = vadd.xlane.f32.xlu0 %v78
    %v80 = vpop.xlane.xlu0 %79
    %v81 = vsel %vm38, %v36, 0.0
    %82 = vadd.xlane.f32.xlu0 %v81
    %v83 = vpop.xlane.xlu0 %82
    %v84 = vsel %vm38, %v37, 0.0
    %85 = vadd.xlane.f32.xlu0 %v84
    %v86 = vpop.xlane.xlu0 %85
    %v87 = vrcp.pop 32.0
    %v88 = vmul.f32 %v41, %v87
    %v89 = vmul.f32 %v44, %v87
    %v90 = vmul.f32 %v47, %v87
    %v91 = vmul.f32 %v50, %v87
    %v92 = vmul.f32 %v53, %v87
    %v93 = vmul.f32 %v56, %v87
    %v94 = vmul.f32 %v59, %v87
    %v95 = vmul.f32 %v62, %v87
    %v96 = vmul.f32 %v65, %v87
    %v97 = vmul.f32 %v68, %v87
    %v98 = vmul.f32 %v71, %v87
    %v99 = vmul.f32 %v74, %v87
    %v100 = vmul.f32 %v77, %v87
    %v101 = vmul.f32 %v80, %v87
    %v102 = vmul.f32 %v83, %v87
    %v103 = vmul.f32 %v86, %v87
    %v104 = vsub.f32 %v22, %v88
    %v105 = vsub.f32 %v23, %v89
    %v106 = vsub.f32 %v24, %v90
    %v107 = vsub.f32 %v25, %v91
    %v108 = vsub.f32 %v26, %v92
    %v109 = vsub.f32 %v27, %v93
    %v110 = vsub.f32 %v28, %v94
    %v111 = vsub.f32 %v29, %v95
    %v112 = vsub.f32 %v30, %v96
    %v113 = vsub.f32 %v31, %v97
    %v114 = vsub.f32 %v32, %v98
    %v115 = vsub.f32 %v33, %v99
    %v116 = vsub.f32 %v34, %v100
    %v117 = vsub.f32 %v35, %v101
    %v118 = vsub.f32 %v36, %v102
    %v119 = vsub.f32 %v37, %v103
    %v120 = vmul.f32 %v104, %v104
    %v121 = vmul.f32 %v105, %v105
    %v122 = vmul.f32 %v106, %v106
    %v123 = vmul.f32 %v107, %v107
    %v124 = vmul.f32 %v108, %v108
    %v125 = vmul.f32 %v109, %v109
    %v126 = vmul.f32 %v110, %v110
    %v127 = vmul.f32 %v111, %v111
    %v128 = vmul.f32 %v112, %v112
    %v129 = vmul.f32 %v113, %v113
    %v130 = vmul.f32 %v114, %v114
    %v131 = vmul.f32 %v115, %v115
    %v132 = vmul.f32 %v116, %v116
    %v133 = vmul.f32 %v117, %v117
    %v134 = vmul.f32 %v118, %v118
    %v135 = vmul.f32 %v119, %v119
    %v136 = vsel %vm38, %v120, 0.0
    %137 = vadd.xlane.f32.xlu0 %v136
    %v138 = vpop.xlane.xlu0 %137
    %v139 = vsel %vm38, %v121, 0.0
    %140 = vadd.xlane.f32.xlu0 %v139
    %v141 = vpop.xlane.xlu0 %140
    %v142 = vsel %vm38, %v122, 0.0
    %143 = vadd.xlane.f32.xlu0 %v142
    %v144 = vpop.xlane.xlu0 %143
    %v145 = vsel %vm38, %v123, 0.0
    %146 = vadd.xlane.f32.xlu0 %v145
    %v147 = vpop.xlane.xlu0 %146
    %v148 = vsel %vm38, %v124, 0.0
    %149 = vadd.xlane.f32.xlu0 %v148
    %v150 = vpop.xlane.xlu0 %149
    %v151 = vsel %vm38, %v125, 0.0
    %152 = vadd.xlane.f32.xlu0 %v151
    %v153 = vpop.xlane.xlu0 %152
    %v154 = vsel %vm38, %v126, 0.0
    %155 = vadd.xlane.f32.xlu0 %v154
    %v156 = vpop.xlane.xlu0 %155
    %v157 = vsel %vm38, %v127, 0.0
    %158 = vadd.xlane.f32.xlu0 %v157
    %v159 = vpop.xlane.xlu0 %158
    %v160 = vsel %vm38, %v128, 0.0
    %161 = vadd.xlane.f32.xlu0 %v160
    %v162 = vpop.xlane.xlu0 %161
    %v163 = vsel %vm38, %v129, 0.0
    %164 = vadd.xlane.f32.xlu0 %v163
    %v165 = vpop.xlane.xlu0 %164
    %v166 = vsel %vm38, %v130, 0.0
    %167 = vadd.xlane.f32.xlu0 %v166
    %v168 = vpop.xlane.xlu0 %167
    %v169 = vsel %vm38, %v131, 0.0
    %170 = vadd.xlane.f32.xlu0 %v169
    %v171 = vpop.xlane.xlu0 %170
    %v172 = vsel %vm38, %v132, 0.0
    %173 = vadd.xlane.f32.xlu0 %v172
    %v174 = vpop.xlane.xlu0 %173
    %v175 = vsel %vm38, %v133, 0.0
    %176 = vadd.xlane.f32.xlu0 %v175
    %v177 = vpop.xlane.xlu0 %176
    %v178 = vsel %vm38, %v134, 0.0
    %179 = vadd.xlane.f32.xlu0 %v178
    %v180 = vpop.xlane.xlu0 %179
    %v181 = vsel %vm38, %v135, 0.0
    %182 = vadd.xlane.f32.xlu0 %v181
    %v183 = vpop.xlane.xlu0 %182
    %v184 = vmul.f32 %v138, %v87
    %v185 = vmul.f32 %v141, %v87
    %v186 = vmul.f32 %v144, %v87
    %v187 = vmul.f32 %v147, %v87
    %v188 = vmul.f32 %v150, %v87
    %v189 = vmul.f32 %v153, %v87
    %v190 = vmul.f32 %v156, %v87
    %v191 = vmul.f32 %v159, %v87
    %v192 = vmul.f32 %v162, %v87
    %v193 = vmul.f32 %v165, %v87
    %v194 = vmul.f32 %v168, %v87
    %v195 = vmul.f32 %v171, %v87
    %v196 = vmul.f32 %v174, %v87
    %v197 = vmul.f32 %v177, %v87
    %v198 = vmul.f32 %v180, %v87
    %v199 = vmul.f32 %v183, %v87
    %v200 = vadd.f32 %v184, 1e-05
    %v201 = vadd.f32 %v185, 1e-05
    %v202 = vadd.f32 %v186, 1e-05
    %v203 = vadd.f32 %v187, 1e-05
    %v204 = vadd.f32 %v188, 1e-05
    %v205 = vadd.f32 %v189, 1e-05
    %v206 = vadd.f32 %v190, 1e-05
    %v207 = vadd.f32 %v191, 1e-05
    %v208 = vadd.f32 %v192, 1e-05
    %v209 = vadd.f32 %v193, 1e-05
    %v210 = vadd.f32 %v194, 1e-05
    %v211 = vadd.f32 %v195, 1e-05
    %v212 = vadd.f32 %v196, 1e-05
    %v213 = vadd.f32 %v197, 1e-05
    %v214 = vadd.f32 %v198, 1e-05
    %v215 = vadd.f32 %v199, 1e-05
    %v216 = vrsqrt.pop %v200
    %v217 = vrsqrt.pop %v201
    %v218 = vrsqrt.pop %v202
    %v219 = vrsqrt.pop %v203
    %v220 = vrsqrt.pop %v204
    %v221 = vrsqrt.pop %v205
    %v222 = vrsqrt.pop %v206
    %v223 = vrsqrt.pop %v207
    %v224 = vrsqrt.pop %v208
    %v225 = vrsqrt.pop %v209
    %v226 = vrsqrt.pop %v210
    %v227 = vrsqrt.pop %v211
    %v228 = vrsqrt.pop %v212
    %v229 = vrsqrt.pop %v213
    %v230 = vrsqrt.pop %v214
    %v231 = vrsqrt.pop %v215
    %v232 = vmul.f32 %v104, %v216
    %v233 = vmul.f32 %v105, %v217
    %v234 = vmul.f32 %v106, %v218
    %v235 = vmul.f32 %v107, %v219
    %v236 = vmul.f32 %v108, %v220
    %v237 = vmul.f32 %v109, %v221
    %v238 = vmul.f32 %v110, %v222
    %v239 = vmul.f32 %v111, %v223
    %v240 = vmul.f32 %v112, %v224
    %v241 = vmul.f32 %v113, %v225
    %v242 = vmul.f32 %v114, %v226
    %v243 = vmul.f32 %v115, %v227
    %v244 = vmul.f32 %v116, %v228
    %v245 = vmul.f32 %v117, %v229
    %v246 = vmul.f32 %v118, %v230
    %v247 = vmul.f32 %v119, %v231
    %v248 = vld [vmem:[%s1] sm:$0x1]
    %v250 = vlaneseq
    %v251 = vshrl.u32 %v250, 7
    %v252 = vsub.s32 0, %v251
    %v253 = vrot.slane %v248, %v252
    %v255 = vmul.f32 %v232, %v253
    %v256 = vmul.f32 %v233, %v253
    %v257 = vmul.f32 %v234, %v253
    %v258 = vmul.f32 %v235, %v253
    %v259 = vmul.f32 %v236, %v253
    %v260 = vmul.f32 %v237, %v253
    %v261 = vmul.f32 %v238, %v253
    %v262 = vmul.f32 %v239, %v253
    %v263 = vmul.f32 %v240, %v253
    %v264 = vmul.f32 %v241, %v253
    %v265 = vmul.f32 %v242, %v253
    %v266 = vmul.f32 %v243, %v253
    %v267 = vmul.f32 %v244, %v253
    %v268 = vmul.f32 %v245, %v253
    %v269 = vmul.f32 %v246, %v253
    %v270 = vmul.f32 %v247, %v253
    %v271 = vld [vmem:[%s2] sm:$0x1]
    %v273 = vlaneseq
    %v274 = vshrl.u32 %v273, 7
    %v275 = vsub.s32 0, %v274
    %v276 = vrot.slane %v271, %v275
    %v278 = vadd.f32 %v255, %v276
    %v279 = vadd.f32 %v256, %v276
    %v280 = vadd.f32 %v257, %v276
    %v281 = vadd.f32 %v258, %v276
    %v282 = vadd.f32 %v259, %v276
    %v283 = vadd.f32 %v260, %v276
    %v284 = vadd.f32 %v261, %v276
    %v285 = vadd.f32 %v262, %v276
    %v286 = vadd.f32 %v263, %v276
    %v287 = vadd.f32 %v264, %v276
    %v288 = vadd.f32 %v265, %v276
    %v289 = vadd.f32 %v266, %v276
    %v290 = vadd.f32 %v267, %v276
    %v291 = vadd.f32 %v268, %v276
    %v292 = vadd.f32 %v269, %v276
    %v293 = vadd.f32 %v270, %v276
    %v294 = vpack.c.bf16 %v279, %v278
    %v295 = vpack.c.bf16 %v281, %v280
    %v296 = vpack.c.bf16 %v283, %v282
    %v297 = vpack.c.bf16 %v285, %v284
    %v298 = vpack.c.bf16 %v287, %v286
    %v299 = vpack.c.bf16 %v289, %v288
    %v300 = vpack.c.bf16 %v291, %v290
    %v301 = vpack.c.bf16 %v293, %v292
    %v310 = vunpack.c.l.b16 %v294
    %v311 = vunpack.c.h.b16 %v294
    %v312 = vunpack.c.l.b16 %v295
    %v313 = vunpack.c.h.b16 %v295
    %v314 = vunpack.c.l.b16 %v296
    %v315 = vunpack.c.h.b16 %v296
    %v316 = vunpack.c.l.b16 %v297
    %v317 = vunpack.c.h.b16 %v297
    %v318 = vunpack.c.l.b16 %v298
    %v319 = vunpack.c.h.b16 %v298
    %v320 = vunpack.c.l.b16 %v299
    %v321 = vunpack.c.h.b16 %v299
    %v322 = vunpack.c.l.b16 %v300
    %v323 = vunpack.c.h.b16 %v300
    %v324 = vunpack.c.l.b16 %v301
    %v325 = vunpack.c.h.b16 %v301
    %v326 = vpack.c.b16 %v310, %v310
    %v327 = vpack.c.b16 %v311, %v311
    %v328 = vpack.c.b16 %v312, %v312
    %v329 = vpack.c.b16 %v313, %v313
    %v330 = vpack.c.b16 %v314, %v314
    %v331 = vpack.c.b16 %v315, %v315
    %v332 = vpack.c.b16 %v316, %v316
    %v333 = vpack.c.b16 %v317, %v317
    %v334 = vpack.c.b16 %v318, %v318
    %v335 = vpack.c.b16 %v319, %v319
    %v336 = vpack.c.b16 %v320, %v320
    %v337 = vpack.c.b16 %v321, %v321
    %v338 = vpack.c.b16 %v322, %v322
    %v339 = vpack.c.b16 %v323, %v323
    %v340 = vpack.c.b16 %v324, %v324
    %v341 = vpack.c.b16 %v325, %v325
    %vm358 = vcmask 257024
    %359 = vst.msk [vmem:[#allocation2] sm:$0xf] %vm358, %v326
    %360 = vst.msk [vmem:[#allocation2 + $0x4] sm:$0xf] %vm358, %v327
    %361 = vst.msk [vmem:[#allocation2 + $0x8] sm:$0xf] %vm358, %v328
    %362 = vst.msk [vmem:[#allocation2 + $0xc] sm:$0xf] %vm358, %v329
    %363 = vst.msk [vmem:[#allocation2 + $0x10] sm:$0xf] %vm358, %v330
    %364 = vst.msk [vmem:[#allocation2 + $0x14] sm:$0xf] %vm358, %v331
    %365 = vst.msk [vmem:[#allocation2 + $0x18] sm:$0xf] %vm358, %v332
    %366 = vst.msk [vmem:[#allocation2 + $0x1c] sm:$0xf] %vm358, %v333
    %367 = vst.msk [vmem:[#allocation2 + $0x20] sm:$0xf] %vm358, %v334
    %368 = vst.msk [vmem:[#allocation2 + $0x24] sm:$0xf] %vm358, %v335
    %369 = vst.msk [vmem:[#allocation2 + $0x28] sm:$0xf] %vm358, %v336
    %370 = vst.msk [vmem:[#allocation2 + $0x2c] sm:$0xf] %vm358, %v337
    %371 = vst.msk [vmem:[#allocation2 + $0x30] sm:$0xf] %vm358, %v338
    %372 = vst.msk [vmem:[#allocation2 + $0x34] sm:$0xf] %vm358, %v339
    %373 = vst.msk [vmem:[#allocation2 + $0x38] sm:$0xf] %vm358, %v340
    %374 = vst.msk [vmem:[#allocation2 + $0x3c] sm:$0xf] %vm358, %v341
  $region21: #{_lambda_.14} parent=0 // pred_fallthru
    _
  %v375 = vld [vmem:[#allocation2] sm:$0xf]
  %v376 = vld [vmem:[#allocation2 + $0x4] sm:$0xf]
  %v377 = vld [vmem:[#allocation2 + $0x8] sm:$0xf]
  %v378 = vld [vmem:[#allocation2 + $0xc] sm:$0xf]
  %v379 = vld [vmem:[#allocation2 + $0x10] sm:$0xf]
  %v380 = vld [vmem:[#allocation2 + $0x14] sm:$0xf]
  %v381 = vld [vmem:[#allocation2 + $0x18] sm:$0xf]
  %v382 = vld [vmem:[#allocation2 + $0x1c] sm:$0xf]
  %v383 = vld [vmem:[#allocation2 + $0x20] sm:$0xf]
  %v384 = vld [vmem:[#allocation2 + $0x24] sm:$0xf]
  %v385 = vld [vmem:[#allocation2 + $0x28] sm:$0xf]
  %v386 = vld [vmem:[#allocation2 + $0x2c] sm:$0xf]
  %v387 = vld [vmem:[#allocation2 + $0x30] sm:$0xf]
  %v388 = vld [vmem:[#allocation2 + $0x34] sm:$0xf]
  %v389 = vld [vmem:[#allocation2 + $0x38] sm:$0xf]
  %v390 = vld [vmem:[#allocation2 + $0x3c] sm:$0xf]
  %v391 = vld [vmem:[%s3] sm:$0xf]
  %v392 = vld [vmem:[%s3 + $0x4] sm:$0xf]
  %v393 = vld [vmem:[%s3 + $0x8] sm:$0xf]
  %v394 = vld [vmem:[%s3 + $0xc] sm:$0xf]
  %v411 = vunpack.c.l.b16 %v375
  %v412 = vunpack.c.l.b16 %v376
  %v413 = vunpack.c.l.b16 %v377
  %v414 = vunpack.c.l.b16 %v378
  %v415 = vunpack.c.l.b16 %v379
  %v416 = vunpack.c.l.b16 %v380
  %v417 = vunpack.c.l.b16 %v381
  %v418 = vunpack.c.l.b16 %v382
  %v419 = vunpack.c.l.b16 %v383
  %v420 = vunpack.c.l.b16 %v384
  %v421 = vunpack.c.l.b16 %v385
  %v422 = vunpack.c.l.b16 %v386
  %v423 = vunpack.c.l.b16 %v387
  %v424 = vunpack.c.l.b16 %v388
  %v425 = vunpack.c.l.b16 %v389
  %v426 = vunpack.c.l.b16 %v390
  %v427 = vpack.c.b16 %v412, %v411
  %v428 = vpack.c.b16 %v414, %v413
  %v429 = vpack.c.b16 %v416, %v415
  %v430 = vpack.c.b16 %v418, %v417
  %v431 = vpack.c.b16 %v420, %v419
  %v432 = vpack.c.b16 %v422, %v421
  %v433 = vpack.c.b16 %v424, %v423
  %v434 = vpack.c.b16 %v426, %v425
  %v439 = vunpack.c.l.b16 %v391
  %v440 = vunpack.c.l.b16 %v392
  %v441 = vunpack.c.l.b16 %v393
  %v442 = vunpack.c.l.b16 %v394
  %v443 = vpack.c.b16 %v440, %v439
  %v444 = vpack.c.b16 %v442, %v441
  %vm447 = vcmask 261120
  %v449 = vsel %vm447, %v427, 0
  %v452 = vsel %vm447, %v428, 0
  %v455 = vsel %vm447, %v429, 0
  %v458 = vsel %vm447, %v430, 0
  %v461 = vsel %vm447, %v431, 0
  %v464 = vsel %vm447, %v432, 0
  %v467 = vsel %vm447, %v433, 0
  %v470 = vsel %vm447, %v434, 0
  %472 = vmatprep.subr.bf16.mxu0 0
  %473 = vmatpush1.bf16.msra.mxu0 0
  %474 = vmatprep.subr.bf16.mxu0 0
  %475 = vmatpush1.bf16.msra.mxu0 0
  %476 = vmatprep.subr.bf16.mxu0 0
  %477 = vmatpush1.bf16.msra.mxu0 0
  %478 = vmatprep.subr.bf16.mxu0 0
  %479 = vmatpush1.bf16.msra.mxu0 0
  %480 = vmatprep.subr.bf16.mxu0 0
  %481 = vmatpush1.bf16.msra.mxu0 0
  %482 = vmatprep.subr.bf16.mxu0 0
  %483 = vmatpush1.bf16.msra.mxu0 0
  %484 = vmatprep.subr.bf16.mxu0 0
  %485 = vmatpush1.bf16.msra.mxu0 %v444
  %486 = vmatprep.subr.bf16.mxu0 0
  %487 = vmatpush1.bf16.msra.mxu0 %v443
  %488 = vmatprep.subr.bf16.mxu0 0
  %489 = vmatpush2.bf16.msra.mxu0 0
  %490 = vmatprep.subr.bf16.mxu0 0
  %491 = vmatpush2.bf16.msra.mxu0 0
  %492 = vmatprep.subr.bf16.mxu0 0
  %493 = vmatpush2.bf16.msra.mxu0 0
  %494 = vmatprep.subr.bf16.mxu0 0
  %495 = vmatpush2.bf16.msra.mxu0 0
  %496 = vmatprep.subr.bf16.mxu0 0
  %497 = vmatpush2.bf16.msra.mxu0 0
  %498 = vmatprep.subr.bf16.mxu0 0
  %499 = vmatpush2.bf16.msra.mxu0 0
  %500 = vmatprep.subr.bf16.mxu0 0
  %501 = vmatpush2.bf16.msra.mxu0 0
  %502 = vmatprep.subr.bf16.mxu0 0
  %503 = vmatpush2.bf16.msra.mxu0 0
  %504 = vmatprep.mubr.bf16.mxu0 0
  %505 = vmatmul.mubr.bf16.gmra.mxu0 %v449
  %v506 = vpop.f32.mrf.mxu0
  %v507 = vadd.f32 0.0, %v506
  %v508 = vpop.f32.mrf.mxu0
  %v509 = vpop.f32.mrf.mxu0
  %v510 = vadd.f32 0.0, %v509
  %v511 = vpop.f32.mrf.mxu0
  %512 = vmatprep.mubr.bf16.mxu0 0
  %513 = vmatmul.mubr.bf16.gmra.mxu0 %v452
  %v514 = vpop.f32.mrf.mxu0
  %v515 = vadd.f32 0.0, %v514
  %v516 = vpop.f32.mrf.mxu0
  %v517 = vpop.f32.mrf.mxu0
  %v518 = vadd.f32 0.0, %v517
  %v519 = vpop.f32.mrf.mxu0
  %520 = vmatprep.mubr.bf16.mxu0 0
  %521 = vmatmul.mubr.bf16.gmra.mxu0 %v455
  %v522 = vpop.f32.mrf.mxu0
  %v523 = vadd.f32 0.0, %v522
  %v524 = vpop.f32.mrf.mxu0
  %v525 = vpop.f32.mrf.mxu0
  %v526 = vadd.f32 0.0, %v525
  %v527 = vpop.f32.mrf.mxu0
  %528 = vmatprep.mubr.bf16.mxu0 0
  %529 = vmatmul.mubr.bf16.gmra.mxu0 %v458
  %v530 = vpop.f32.mrf.mxu0
  %v531 = vadd.f32 0.0, %v530
  %v532 = vpop.f32.mrf.mxu0
  %v533 = vpop.f32.mrf.mxu0
  %v534 = vadd.f32 0.0, %v533
  %v535 = vpop.f32.mrf.mxu0
  %536 = vmatprep.mubr.bf16.mxu0 0
  %537 = vmatmul.mubr.bf16.gmra.mxu0 %v461
  %v538 = vpop.f32.mrf.mxu0
  %v539 = vadd.f32 0.0, %v538
  %v540 = vpop.f32.mrf.mxu0
  %v541 = vpop.f32.mrf.mxu0
  %v542 = vadd.f32 0.0, %v541
  %v543 = vpop.f32.mrf.mxu0
  %544 = vmatprep.mubr.bf16.mxu0 0
  %545 = vmatmul.mubr.bf16.gmra.mxu0 %v464
  %v546 = vpop.f32.mrf.mxu0
  %v547 = vadd.f32 0.0, %v546
  %v548 = vpop.f32.mrf.mxu0
  %v549 = vpop.f32.mrf.mxu0
  %v550 = vadd.f32 0.0, %v549
  %v551 = vpop.f32.mrf.mxu0
  %552 = vmatprep.mubr.bf16.mxu0 0
  %553 = vmatmul.mubr.bf16.gmra.mxu0 %v467
  %v554 = vpop.f32.mrf.mxu0
  %v555 = vadd.f32 0.0, %v554
  %v556 = vpop.f32.mrf.mxu0
  %v557 = vpop.f32.mrf.mxu0
  %v558 = vadd.f32 0.0, %v557
  %v559 = vpop.f32.mrf.mxu0
  %560 = vmatprep.mubr.bf16.mxu0 0
  %561 = vmatmul.mubr.bf16.gmra.mxu0 %v470
  %v562 = vpop.f32.mrf.mxu0
  %v563 = vadd.f32 0.0, %v562
  %v564 = vpop.f32.mrf.mxu0
  %v565 = vpop.f32.mrf.mxu0
  %v566 = vadd.f32 0.0, %v565
  %v567 = vpop.f32.mrf.mxu0
  %568 = vdwg.mxu0
  %v569 = vpack.c.bf16 %v510, %v507
  %v570 = vpack.c.bf16 %v518, %v515
  %v571 = vpack.c.bf16 %v526, %v523
  %v572 = vpack.c.bf16 %v534, %v531
  %v573 = vpack.c.bf16 %v542, %v539
  %v574 = vpack.c.bf16 %v550, %v547
  %v575 = vpack.c.bf16 %v558, %v555
  %v576 = vpack.c.bf16 %v566, %v563
  %v585 = vunpack.c.l.b16 %v569
  %v586 = vunpack.c.h.b16 %v569
  %v587 = vunpack.c.l.b16 %v570
  %v588 = vunpack.c.h.b16 %v570
  %v589 = vunpack.c.l.b16 %v571
  %v590 = vunpack.c.h.b16 %v571
  %v591 = vunpack.c.l.b16 %v572
  %v592 = vunpack.c.h.b16 %v572
  %v593 = vunpack.c.l.b16 %v573
  %v594 = vunpack.c.h.b16 %v573
  %v595 = vunpack.c.l.b16 %v574
  %v596 = vunpack.c.h.b16 %v574
  %v597 = vunpack.c.l.b16 %v575
  %v598 = vunpack.c.h.b16 %v575
  %v599 = vunpack.c.l.b16 %v576
  %v600 = vunpack.c.h.b16 %v576
  %v601 = vpack.c.b16 %v585, %v585
  %v602 = vpack.c.b16 %v586, %v586
  %v603 = vpack.c.b16 %v587, %v587
  %v604 = vpack.c.b16 %v588, %v588
  %v605 = vpack.c.b16 %v589, %v589
  %v606 = vpack.c.b16 %v590, %v590
  %v607 = vpack.c.b16 %v591, %v591
  %v608 = vpack.c.b16 %v592, %v592
  %v609 = vpack.c.b16 %v593, %v593
  %v610 = vpack.c.b16 %v594, %v594
  %v611 = vpack.c.b16 %v595, %v595
  %v612 = vpack.c.b16 %v596, %v596
  %v613 = vpack.c.b16 %v597, %v597
  %v614 = vpack.c.b16 %v598, %v598
  %v615 = vpack.c.b16 %v599, %v599
  %v616 = vpack.c.b16 %v600, %v600
  %vm633 = vcmask 781312
  %634 = vst.msk [vmem:[%s4] sm:$0xf] %vm633, %v601
  %635 = vst.msk [vmem:[%s4 + $0x4] sm:$0xf] %vm633, %v602
  %636 = vst.msk [vmem:[%s4 + $0x8] sm:$0xf] %vm633, %v603
  %637 = vst.msk [vmem:[%s4 + $0xc] sm:$0xf] %vm633, %v604
  %638 = vst.msk [vmem:[%s4 + $0x10] sm:$0xf] %vm633, %v605
  %639 = vst.msk [vmem:[%s4 + $0x14] sm:$0xf] %vm633, %v606
  %640 = vst.msk [vmem:[%s4 + $0x18] sm:$0xf] %vm633, %v607
  %641 = vst.msk [vmem:[%s4 + $0x1c] sm:$0xf] %vm633, %v608
  %642 = vst.msk [vmem:[%s4 + $0x20] sm:$0xf] %vm633, %v609
  %643 = vst.msk [vmem:[%s4 + $0x24] sm:$0xf] %vm633, %v610
  %644 = vst.msk [vmem:[%s4 + $0x28] sm:$0xf] %vm633, %v611
  %645 = vst.msk [vmem:[%s4 + $0x2c] sm:$0xf] %vm633, %v612
  %646 = vst.msk [vmem:[%s4 + $0x30] sm:$0xf] %vm633, %v613
  %647 = vst.msk [vmem:[%s4 + $0x34] sm:$0xf] %vm633, %v614
  %648 = vst.msk [vmem:[%s4 + $0x38] sm:$0xf] %vm633, %v615
  %649 = vst.msk [vmem:[%s4 + $0x3c] sm:$0xf] %vm633, %v616
  // Predicated region
  $region22: #{_lambda_.14} parent=0 // pred_check
    _
  $region23: #{_lambda_.14} parent=0 // pred_check_branch
    %651 = sbr.rel (0) target = $region25
  $region24: #{_lambda_.14} parent=0 // pred_region
    _
  $region25: #{_lambda_.14} parent=0 // pred_fallthru
    _
  // Predicated region
  $region26: #{_lambda_.14} parent=0 // pred_check
    _
  $region27: #{_lambda_.14} parent=0 // pred_check_branch
    %653 = sbr.rel (0) target = $region29
  $region28: #{_lambda_.14} parent=0 // pred_region
    _
  $region29: #{_lambda_.14} parent=0 // pred_fallthru
    _

// kernel: _lambda_.16
$region0: #{_lambda_.16}
  #allocation0 [shape = 'u32[]', space=smem, size = 0x4, offset = 0x4, fixed_abs, tag = 'smem constant byte address 0x4 - core index']
  #allocation1 [shape = 'u32[144,128]{1,0:T(1,128)}', space=vmem, size = 0x12000, scoped, tag = 'internal scratch']
  #allocation2 [shape = 'f32[128,32]{1,0:T(8,128)}', space=vmem, size = 0x10000, scoped, tag = 'scratch operand']
  %s0 = inlined_call_operand.vmem [shape: bf16[128,32], index: 0, kind: input, shape index: {}]
  %s1 = inlined_call_operand.vmem [shape: bf16[32,32], index: 1, kind: input, shape index: {}]
  %s2 = inlined_call_operand.vmem [shape: f32[1,32], index: 2, kind: input, shape index: {}]
  %s3 = inlined_call_operand.vmem [shape: f32[128,32], index: 3, kind: input, shape index: {}]
  %s4 = inlined_call_operand.vmem [shape: f32[128,32], index: 4, kind: output, shape index: {}]
  %s5 = sld [smem:[#allocation0]]
  $region34: #{_lambda_.16} parent=0
    _
  %s7 = ssub.s32 1, %s5
  %s8 = scalar_select 0, %s7, %s5
  // Predicated region
  $region2: #{_lambda_.16} parent=0 // pred_check
    _
  $region3: #{_lambda_.16} parent=0 // pred_check_branch
    %10 = sbr.rel (0) target = $region5
  $region4: #{_lambda_.16} parent=0 // pred_region
    _
  $region5: #{_lambda_.16} parent=0 // pred_fallthru
    _
  // Predicated region
  $region6: #{_lambda_.16} parent=0 // pred_check
    _
  $region7: #{_lambda_.16} parent=0 // pred_check_branch
    %12 = sbr.rel (0) target = $region9
  $region8: #{_lambda_.16} parent=0 // pred_region
    _
  $region9: #{_lambda_.16} parent=0 // pred_fallthru
    _
  // Predicated region
  $region10: #{_lambda_.16} parent=0 // pred_check
    _
  $region11: #{_lambda_.16} parent=0 // pred_check_branch
    %14 = sbr.rel (0) target = $region13
  $region12: #{_lambda_.16} parent=0 // pred_region
    _
  $region13: #{_lambda_.16} parent=0 // pred_fallthru
    _
  // Predicated region
  $region14: #{_lambda_.16} parent=0 // pred_check
    _
  $region15: #{_lambda_.16} parent=0 // pred_check_branch
    %16 = sbr.rel (0) target = $region17
  $region16: #{_lambda_.16} parent=0 // pred_region
    _
  $region17: #{_lambda_.16} parent=0 // pred_fallthru
    _
  %p18 = scmp.eq.s32.totalorder 0, 0
  // Predicated region
  $region18: #{_lambda_.16} parent=0 // pred_check
    %p19 = pneg %p18
  $region19: #{_lambda_.16} parent=0 // pred_check_branch
    %21 = sbr.rel (%p19) target = $region21
  $region20: #{_lambda_.16} parent=0 // pred_region
    %vm22 = vcmask 261120
    %23 = vst.msk [vmem:[#allocation2] sm:$0xff] %vm22, 0.0
    %24 = vst.msk [vmem:[#allocation2 + $0x8] sm:$0xff] %vm22, 0.0
    %25 = vst.msk [vmem:[#allocation2 + $0x10] sm:$0xff] %vm22, 0.0
    %26 = vst.msk [vmem:[#allocation2 + $0x18] sm:$0xff] %vm22, 0.0
    %27 = vst.msk [vmem:[#allocation2 + $0x20] sm:$0xff] %vm22, 0.0
    %28 = vst.msk [vmem:[#allocation2 + $0x28] sm:$0xff] %vm22, 0.0
    %29 = vst.msk [vmem:[#allocation2 + $0x30] sm:$0xff] %vm22, 0.0
    %30 = vst.msk [vmem:[#allocation2 + $0x38] sm:$0xff] %vm22, 0.0
    %31 = vst.msk [vmem:[#allocation2 + $0x40] sm:$0xff] %vm22, 0.0
    %32 = vst.msk [vmem:[#allocation2 + $0x48] sm:$0xff] %vm22, 0.0
    %33 = vst.msk [vmem:[#allocation2 + $0x50] sm:$0xff] %vm22, 0.0
    %34 = vst.msk [vmem:[#allocation2 + $0x58] sm:$0xff] %vm22, 0.0
    %35 = vst.msk [vmem:[#allocation2 + $0x60] sm:$0xff] %vm22, 0.0
    %36 = vst.msk [vmem:[#allocation2 + $0x68] sm:$0xff] %vm22, 0.0
    %37 = vst.msk [vmem:[#allocation2 + $0x70] sm:$0xff] %vm22, 0.0
    %38 = vst.msk [vmem:[#allocation2 + $0x78] sm:$0xff] %vm22, 0.0
  $region21: #{_lambda_.16} parent=0 // pred_fallthru
    _
  %v39 = vld [vmem:[#allocation2] sm:$0xff]
  %v40 = vld [vmem:[#allocation2 + $0x8] sm:$0xff]
  %v41 = vld [vmem:[#allocation2 + $0x10] sm:$0xff]
  %v42 = vld [vmem:[#allocation2 + $0x18] sm:$0xff]
  %v43 = vld [vmem:[#allocation2 + $0x20] sm:$0xff]
  %v44 = vld [vmem:[#allocation2 + $0x28] sm:$0xff]
  %v45 = vld [vmem:[#allocation2 + $0x30] sm:$0xff]
  %v46 = vld [vmem:[#allocation2 + $0x38] sm:$0xff]
  %v47 = vld [vmem:[#allocation2 + $0x40] sm:$0xff]
  %v48 = vld [vmem:[#allocation2 + $0x48] sm:$0xff]
  %v49 = vld [vmem:[#allocation2 + $0x50] sm:$0xff]
  %v50 = vld [vmem:[#allocation2 + $0x58] sm:$0xff]
  %v51 = vld [vmem:[#allocation2 + $0x60] sm:$0xff]
  %v52 = vld [vmem:[#allocation2 + $0x68] sm:$0xff]
  %v53 = vld [vmem:[#allocation2 + $0x70] sm:$0xff]
  %v54 = vld [vmem:[#allocation2 + $0x78] sm:$0xff]
  %v55 = vld [vmem:[%s0] sm:$0xf]
  %v56 = vld [vmem:[%s0 + $0x4] sm:$0xf]
  %v57 = vld [vmem:[%s0 + $0x8] sm:$0xf]
  %v58 = vld [vmem:[%s0 + $0xc] sm:$0xf]
  %v59 = vld [vmem:[%s0 + $0x10] sm:$0xf]
  %v60 = vld [vmem:[%s0 + $0x14] sm:$0xf]
  %v61 = vld [vmem:[%s0 + $0x18] sm:$0xf]
  %v62 = vld [vmem:[%s0 + $0x1c] sm:$0xf]
  %v63 = vld [vmem:[%s0 + $0x20] sm:$0xf]
  %v64 = vld [vmem:[%s0 + $0x24] sm:$0xf]
  %v65 = vld [vmem:[%s0 + $0x28] sm:$0xf]
  %v66 = vld [vmem:[%s0 + $0x2c] sm:$0xf]
  %v67 = vld [vmem:[%s0 + $0x30] sm:$0xf]
  %v68 = vld [vmem:[%s0 + $0x34] sm:$0xf]
  %v69 = vld [vmem:[%s0 + $0x38] sm:$0xf]
  %v70 = vld [vmem:[%s0 + $0x3c] sm:$0xf]
  %v71 = vld [vmem:[%s1] sm:$0xf]
  %v72 = vld [vmem:[%s1 + $0x4] sm:$0xf]
  %v73 = vld [vmem:[%s1 + $0x8] sm:$0xf]
  %v74 = vld [vmem:[%s1 + $0xc] sm:$0xf]
  %v91 = vunpack.c.l.b16 %v55
  %v92 = vunpack.c.l.b16 %v56
  %v93 = vunpack.c.l.b16 %v57
  %v94 = vunpack.c.l.b16 %v58
  %v95 = vunpack.c.l.b16 %v59
  %v96 = vunpack.c.l.b16 %v60
  %v97 = vunpack.c.l.b16 %v61
  %v98 = vunpack.c.l.b16 %v62
  %v99 = vunpack.c.l.b16 %v63
  %v100 = vunpack.c.l.b16 %v64
  %v101 = vunpack.c.l.b16 %v65
  %v102 = vunpack.c.l.b16 %v66
  %v103 = vunpack.c.l.b16 %v67
  %v104 = vunpack.c.l.b16 %v68
  %v105 = vunpack.c.l.b16 %v69
  %v106 = vunpack.c.l.b16 %v70
  %v107 = vpack.c.b16 %v92, %v91
  %v108 = vpack.c.b16 %v94, %v93
  %v109 = vpack.c.b16 %v96, %v95
  %v110 = vpack.c.b16 %v98, %v97
  %v111 = vpack.c.b16 %v100, %v99
  %v112 = vpack.c.b16 %v102, %v101
  %v113 = vpack.c.b16 %v104, %v103
  %v114 = vpack.c.b16 %v106, %v105
  %v119 = vunpack.c.l.b16 %v71
  %v120 = vunpack.c.l.b16 %v72
  %v121 = vunpack.c.l.b16 %v73
  %v122 = vunpack.c.l.b16 %v74
  %v123 = vpack.c.b16 %v120, %v119
  %v124 = vpack.c.b16 %v122, %v121
  %vm127 = vcmask 261120
  %v129 = vsel %vm127, %v107, 0
  %v132 = vsel %vm127, %v108, 0
  %v135 = vsel %vm127, %v109, 0
  %v138 = vsel %vm127, %v110, 0
  %v141 = vsel %vm127, %v111, 0
  %v144 = vsel %vm127, %v112, 0
  %v147 = vsel %vm127, %v113, 0
  %v150 = vsel %vm127, %v114, 0
  %152 = vmatprep.subr.bf16.mxu0 0
  %153 = vmatpush1.bf16.msra.mxu0 0
  %154 = vmatprep.subr.bf16.mxu0 0
  %155 = vmatpush1.bf16.msra.mxu0 0
  %156 = vmatprep.subr.bf16.mxu0 0
  %157 = vmatpush1.bf16.msra.mxu0 0
  %158 = vmatprep.subr.bf16.mxu0 0
  %159 = vmatpush1.bf16.msra.mxu0 0
  %160 = vmatprep.subr.bf16.mxu0 0
  %161 = vmatpush1.bf16.msra.mxu0 0
  %162 = vmatprep.subr.bf16.mxu0 0
  %163 = vmatpush1.bf16.msra.mxu0 0
  %164 = vmatprep.subr.bf16.mxu0 0
  %165 = vmatpush1.bf16.msra.mxu0 %v124
  %166 = vmatprep.subr.bf16.mxu0 0
  %167 = vmatpush1.bf16.msra.mxu0 %v123
  %168 = vmatprep.subr.bf16.mxu0 0
  %169 = vmatpush2.bf16.msra.mxu0 0
  %170 = vmatprep.subr.bf16.mxu0 0
  %171 = vmatpush2.bf16.msra.mxu0 0
  %172 = vmatprep.subr.bf16.mxu0 0
  %173 = vmatpush2.bf16.msra.mxu0 0
  %174 = vmatprep.subr.bf16.mxu0 0
  %175 = vmatpush2.bf16.msra.mxu0 0
  %176 = vmatprep.subr.bf16.mxu0 0
  %177 = vmatpush2.bf16.msra.mxu0 0
  %178 = vmatprep.subr.bf16.mxu0 0
  %179 = vmatpush2.bf16.msra.mxu0 0
  %180 = vmatprep.subr.bf16.mxu0 0
  %181 = vmatpush2.bf16.msra.mxu0 0
  %182 = vmatprep.subr.bf16.mxu0 0
  %183 = vmatpush2.bf16.msra.mxu0 0
  %184 = vmatprep.mubr.bf16.mxu0 0
  %185 = vmatmul.mubr.bf16.gmra.mxu0 %v129
  %v186 = vpop.f32.mrf.mxu0
  %v187 = vadd.f32 0.0, %v186
  %v188 = vpop.f32.mrf.mxu0
  %v189 = vpop.f32.mrf.mxu0
  %v190 = vadd.f32 0.0, %v189
  %v191 = vpop.f32.mrf.mxu0
  %192 = vmatprep.mubr.bf16.mxu0 0
  %193 = vmatmul.mubr.bf16.gmra.mxu0 %v132
  %v194 = vpop.f32.mrf.mxu0
  %v195 = vadd.f32 0.0, %v194
  %v196 = vpop.f32.mrf.mxu0
  %v197 = vpop.f32.mrf.mxu0
  %v198 = vadd.f32 0.0, %v197
  %v199 = vpop.f32.mrf.mxu0
  %200 = vmatprep.mubr.bf16.mxu0 0
  %201 = vmatmul.mubr.bf16.gmra.mxu0 %v135
  %v202 = vpop.f32.mrf.mxu0
  %v203 = vadd.f32 0.0, %v202
  %v204 = vpop.f32.mrf.mxu0
  %v205 = vpop.f32.mrf.mxu0
  %v206 = vadd.f32 0.0, %v205
  %v207 = vpop.f32.mrf.mxu0
  %208 = vmatprep.mubr.bf16.mxu0 0
  %209 = vmatmul.mubr.bf16.gmra.mxu0 %v138
  %v210 = vpop.f32.mrf.mxu0
  %v211 = vadd.f32 0.0, %v210
  %v212 = vpop.f32.mrf.mxu0
  %v213 = vpop.f32.mrf.mxu0
  %v214 = vadd.f32 0.0, %v213
  %v215 = vpop.f32.mrf.mxu0
  %216 = vmatprep.mubr.bf16.mxu0 0
  %217 = vmatmul.mubr.bf16.gmra.mxu0 %v141
  %v218 = vpop.f32.mrf.mxu0
  %v219 = vadd.f32 0.0, %v218
  %v220 = vpop.f32.mrf.mxu0
  %v221 = vpop.f32.mrf.mxu0
  %v222 = vadd.f32 0.0, %v221
  %v223 = vpop.f32.mrf.mxu0
  %224 = vmatprep.mubr.bf16.mxu0 0
  %225 = vmatmul.mubr.bf16.gmra.mxu0 %v144
  %v226 = vpop.f32.mrf.mxu0
  %v227 = vadd.f32 0.0, %v226
  %v228 = vpop.f32.mrf.mxu0
  %v229 = vpop.f32.mrf.mxu0
  %v230 = vadd.f32 0.0, %v229
  %v231 = vpop.f32.mrf.mxu0
  %232 = vmatprep.mubr.bf16.mxu0 0
  %233 = vmatmul.mubr.bf16.gmra.mxu0 %v147
  %v234 = vpop.f32.mrf.mxu0
  %v235 = vadd.f32 0.0, %v234
  %v236 = vpop.f32.mrf.mxu0
  %v237 = vpop.f32.mrf.mxu0
  %v238 = vadd.f32 0.0, %v237
  %v239 = vpop.f32.mrf.mxu0
  %240 = vmatprep.mubr.bf16.mxu0 0
  %241 = vmatmul.mubr.bf16.gmra.mxu0 %v150
  %v242 = vpop.f32.mrf.mxu0
  %v243 = vadd.f32 0.0, %v242
  %v244 = vpop.f32.mrf.mxu0
  %v245 = vpop.f32.mrf.mxu0
  %v246 = vadd.f32 0.0, %v245
  %v247 = vpop.f32.mrf.mxu0
  %248 = vdwg.mxu0
  %v249 = vadd.f32 %v39, %v187
  %v250 = vadd.f32 %v40, %v190
  %v251 = vadd.f32 %v41, %v195
  %v252 = vadd.f32 %v42, %v198
  %v253 = vadd.f32 %v43, %v203
  %v254 = vadd.f32 %v44, %v206
  %v255 = vadd.f32 %v45, %v211
  %v256 = vadd.f32 %v46, %v214
  %v257 = vadd.f32 %v47, %v219
  %v258 = vadd.f32 %v48, %v222
  %v259 = vadd.f32 %v49, %v227
  %v260 = vadd.f32 %v50, %v230
  %v261 = vadd.f32 %v51, %v235
  %v262 = vadd.f32 %v52, %v238
  %v263 = vadd.f32 %v53, %v243
  %v264 = vadd.f32 %v54, %v246
  %265 = vst.msk [vmem:[#allocation2] sm:$0xff] %vm127, %v249
  %266 = vst.msk [vmem:[#allocation2 + $0x8] sm:$0xff] %vm127, %v250
  %267 = vst.msk [vmem:[#allocation2 + $0x10] sm:$0xff] %vm127, %v251
  %268 = vst.msk [vmem:[#allocation2 + $0x18] sm:$0xff] %vm127, %v252
  %269 = vst.msk [vmem:[#allocation2 + $0x20] sm:$0xff] %vm127, %v253
  %270 = vst.msk [vmem:[#allocation2 + $0x28] sm:$0xff] %vm127, %v254
  %271 = vst.msk [vmem:[#allocation2 + $0x30] sm:$0xff] %vm127, %v255
  %272 = vst.msk [vmem:[#allocation2 + $0x38] sm:$0xff] %vm127, %v256
  %273 = vst.msk [vmem:[#allocation2 + $0x40] sm:$0xff] %vm127, %v257
  %274 = vst.msk [vmem:[#allocation2 + $0x48] sm:$0xff] %vm127, %v258
  %275 = vst.msk [vmem:[#allocation2 + $0x50] sm:$0xff] %vm127, %v259
  %276 = vst.msk [vmem:[#allocation2 + $0x58] sm:$0xff] %vm127, %v260
  %277 = vst.msk [vmem:[#allocation2 + $0x60] sm:$0xff] %vm127, %v261
  %278 = vst.msk [vmem:[#allocation2 + $0x68] sm:$0xff] %vm127, %v262
  %279 = vst.msk [vmem:[#allocation2 + $0x70] sm:$0xff] %vm127, %v263
  %280 = vst.msk [vmem:[#allocation2 + $0x78] sm:$0xff] %vm127, %v264
  // Predicated region
  $region22: #{_lambda_.16} parent=0 // pred_check
    %p281 = pneg %p18
  $region23: #{_lambda_.16} parent=0 // pred_check_branch
    %283 = sbr.rel (%p281) target = $region25
  $region24: #{_lambda_.16} parent=0 // pred_region
    %v284 = vld [vmem:[#allocation2] sm:$0xff]
    %v285 = vld [vmem:[#allocation2 + $0x8] sm:$0xff]
    %v286 = vld [vmem:[#allocation2 + $0x10] sm:$0xff]
    %v287 = vld [vmem:[#allocation2 + $0x18] sm:$0xff]
    %v288 = vld [vmem:[#allocation2 + $0x20] sm:$0xff]
    %v289 = vld [vmem:[#allocation2 + $0x28] sm:$0xff]
    %v290 = vld [vmem:[#allocation2 + $0x30] sm:$0xff]
    %v291 = vld [vmem:[#allocation2 + $0x38] sm:$0xff]
    %v292 = vld [vmem:[#allocation2 + $0x40] sm:$0xff]
    %v293 = vld [vmem:[#allocation2 + $0x48] sm:$0xff]
    %v294 = vld [vmem:[#allocation2 + $0x50] sm:$0xff]
    %v295 = vld [vmem:[#allocation2 + $0x58] sm:$0xff]
    %v296 = vld [vmem:[#allocation2 + $0x60] sm:$0xff]
    %v297 = vld [vmem:[#allocation2 + $0x68] sm:$0xff]
    %v298 = vld [vmem:[#allocation2 + $0x70] sm:$0xff]
    %v299 = vld [vmem:[#allocation2 + $0x78] sm:$0xff]
    %v300 = vld [vmem:[%s2] sm:$0x1]
    %v302 = vlaneseq
    %v303 = vshrl.u32 %v302, 7
    %v304 = vsub.s32 0, %v303
    %v305 = vrot.slane %v300, %v304
    %v307 = vadd.f32 %v284, %v305
    %v308 = vadd.f32 %v285, %v305
    %v309 = vadd.f32 %v286, %v305
    %v310 = vadd.f32 %v287, %v305
    %v311 = vadd.f32 %v288, %v305
    %v312 = vadd.f32 %v289, %v305
    %v313 = vadd.f32 %v290, %v305
    %v314 = vadd.f32 %v291, %v305
    %v315 = vadd.f32 %v292, %v305
    %v316 = vadd.f32 %v293, %v305
    %v317 = vadd.f32 %v294, %v305
    %v318 = vadd.f32 %v295, %v305
    %v319 = vadd.f32 %v296, %v305
    %v320 = vadd.f32 %v297, %v305
    %v321 = vadd.f32 %v298, %v305
    %v322 = vadd.f32 %v299, %v305
    %v323 = vld [vmem:[%s3] sm:$0xff]
    %v324 = vld [vmem:[%s3 + $0x8] sm:$0xff]
    %v325 = vld [vmem:[%s3 + $0x10] sm:$0xff]
    %v326 = vld [vmem:[%s3 + $0x18] sm:$0xff]
    %v327 = vld [vmem:[%s3 + $0x20] sm:$0xff]
    %v328 = vld [vmem:[%s3 + $0x28] sm:$0xff]
    %v329 = vld [vmem:[%s3 + $0x30] sm:$0xff]
    %v330 = vld [vmem:[%s3 + $0x38] sm:$0xff]
    %v331 = vld [vmem:[%s3 + $0x40] sm:$0xff]
    %v332 = vld [vmem:[%s3 + $0x48] sm:$0xff]
    %v333 = vld [vmem:[%s3 + $0x50] sm:$0xff]
    %v334 = vld [vmem:[%s3 + $0x58] sm:$0xff]
    %v335 = vld [vmem:[%s3 + $0x60] sm:$0xff]
    %v336 = vld [vmem:[%s3 + $0x68] sm:$0xff]
    %v337 = vld [vmem:[%s3 + $0x70] sm:$0xff]
    %v338 = vld [vmem:[%s3 + $0x78] sm:$0xff]
    %v339 = vadd.f32 %v307, %v323
    %v340 = vadd.f32 %v308, %v324
    %v341 = vadd.f32 %v309, %v325
    %v342 = vadd.f32 %v310, %v326
    %v343 = vadd.f32 %v311, %v327
    %v344 = vadd.f32 %v312, %v328
    %v345 = vadd.f32 %v313, %v329
    %v346 = vadd.f32 %v314, %v330
    %v347 = vadd.f32 %v315, %v331
    %v348 = vadd.f32 %v316, %v332
    %v349 = vadd.f32 %v317, %v333
    %v350 = vadd.f32 %v318, %v334
    %v351 = vadd.f32 %v319, %v335
    %v352 = vadd.f32 %v320, %v336
    %v353 = vadd.f32 %v321, %v337
    %v354 = vadd.f32 %v322, %v338
    %355 = vst.msk [vmem:[%s4] sm:$0xff] %vm127, %v339
    %356 = vst.msk [vmem:[%s4 + $0x8] sm:$0xff] %vm127, %v340
    %357 = vst.msk [vmem:[%s4 + $0x10] sm:$0xff] %vm127, %v341
    %358 = vst.msk [vmem:[%s4 + $0x18] sm:$0xff] %vm127, %v342
    %359 = vst.msk [vmem:[%s4 + $0x20] sm:$0xff] %vm127, %v343
    %360 = vst.msk [vmem:[%s4 + $0x28] sm:$0xff] %vm127, %v344
    %361 = vst.msk [vmem:[%s4 + $0x30] sm:$0xff] %vm127, %v345
    %362 = vst.msk [vmem:[%s4 + $0x38] sm:$0xff] %vm127, %v346
    %363 = vst.msk [vmem:[%s4 + $0x40] sm:$0xff] %vm127, %v347
    %364 = vst.msk [vmem:[%s4 + $0x48] sm:$0xff] %vm127, %v348
    %365 = vst.msk [vmem:[%s4 + $0x50] sm:$0xff] %vm127, %v349
    %366 = vst.msk [vmem:[%s4 + $0x58] sm:$0xff] %vm127, %v350
    %367 = vst.msk [vmem:[%s4 + $0x60] sm:$0xff] %vm127, %v351
    %368 = vst.msk [vmem:[%s4 + $0x68] sm:$0xff] %vm127, %v352
    %369 = vst.msk [vmem:[%s4 + $0x70] sm:$0xff] %vm127, %v353
    %370 = vst.msk [vmem:[%s4 + $0x78] sm:$0xff] %vm127, %v354
  $region25: #{_lambda_.16} parent=0 // pred_fallthru
    _
  // Predicated region
  $region26: #{_lambda_.16} parent=0 // pred_check
    _
  $region27: #{_lambda_.16} parent=0 // pred_check_branch
    %372 = sbr.rel (0) target = $region29
  $region28: #{_lambda_.16} parent=0 // pred_region
    _
  $region29: #{_lambda_.16} parent=0 // pred_fallthru
    _
  // Predicated region
  $region30: #{_lambda_.16} parent=0 // pred_check
    _
  $region31: #{_lambda_.16} parent=0 // pred_check_branch
    %374 = sbr.rel (0) target = $region33
  $region32: #{_lambda_.16} parent=0 // pred_region
    _
  $region33: #{_lambda_.16} parent=0 // pred_fallthru
    _

// kernel: _lambda_.18
$region0: #{_lambda_.18}
  #allocation0 [shape = 'u32[]', space=smem, size = 0x4, offset = 0x4, fixed_abs, tag = 'smem constant byte address 0x4 - core index']
  #allocation1 [shape = 'u32[144,128]{1,0:T(1,128)}', space=vmem, size = 0x12000, scoped, tag = 'internal scratch']
  #allocation2 [shape = 'f32[16,64]{1,0:T(8,128)}', space=vmem, size = 0x2000, scoped, tag = 'scratch operand']
  %s0 = inlined_call_operand.vmem [shape: f32[16,32], index: 0, kind: input, shape index: {}]
  %s1 = inlined_call_operand.vmem [shape: bf16[32,64], index: 1, kind: input, shape index: {}]
  %s2 = inlined_call_operand.vmem [shape: bf16[16,64], index: 2, kind: output, shape index: {}]
  %s3 = sld [smem:[#allocation0]]
  $region26: #{_lambda_.18} parent=0
    _
  %s5 = ssub.s32 1, %s3
  %s6 = scalar_select 0, %s5, %s3
  // Predicated region
  $region2: #{_lambda_.18} parent=0 // pred_check
    _
  $region3: #{_lambda_.18} parent=0 // pred_check_branch
    %8 = sbr.rel (0) target = $region5
  $region4: #{_lambda_.18} parent=0 // pred_region
    _
  $region5: #{_lambda_.18} parent=0 // pred_fallthru
    _
  // Predicated region
  $region6: #{_lambda_.18} parent=0 // pred_check
    _
  $region7: #{_lambda_.18} parent=0 // pred_check_branch
    %10 = sbr.rel (0) target = $region9
  $region8: #{_lambda_.18} parent=0 // pred_region
    _
  $region9: #{_lambda_.18} parent=0 // pred_fallthru
    _
  %p12 = scmp.eq.s32.totalorder 0, 0
  // Predicated region
  $region10: #{_lambda_.18} parent=0 // pred_check
    %p13 = pneg %p12
  $region11: #{_lambda_.18} parent=0 // pred_check_branch
    %15 = sbr.rel (%p13) target = $region13
  $region12: #{_lambda_.18} parent=0 // pred_region
    %vm16 = vcmask 523264
    %17 = vst.msk [vmem:[#allocation2] sm:$0xff] %vm16, 0.0
    %18 = vst.msk [vmem:[#allocation2 + $0x8] sm:$0xff] %vm16, 0.0
  $region13: #{_lambda_.18} parent=0 // pred_fallthru
    _
  %v19 = vld [vmem:[#allocation2] sm:$0xff]
  %v20 = vld [vmem:[#allocation2 + $0x8] sm:$0xff]
  %v21 = vld [vmem:[%s0] sm:$0xff]
  %v22 = vld [vmem:[%s0 + $0x8] sm:$0xff]
  %v23 = vpack.c.bf16 %v22, %v21
  %v24 = vld [vmem:[%s1] sm:$0xf]
  %v25 = vld [vmem:[%s1 + $0x4] sm:$0xf]
  %v26 = vld [vmem:[%s1 + $0x8] sm:$0xf]
  %v27 = vld [vmem:[%s1 + $0xc] sm:$0xf]
  %v32 = vunpack.c.l.b16 %v24
  %v33 = vunpack.c.l.b16 %v25
  %v34 = vunpack.c.l.b16 %v26
  %v35 = vunpack.c.l.b16 %v27
  %v36 = vpack.c.b16 %v33, %v32
  %v37 = vpack.c.b16 %v35, %v34
  %vm40 = vcmask 261120
  %v42 = vsel %vm40, %v23, 0
  %44 = vmatprep.subr.bf16.mxu0 0
  %45 = vmatpush1.bf16.msra.mxu0 0
  %46 = vmatprep.subr.bf16.mxu0 0
  %47 = vmatpush1.bf16.msra.mxu0 0
  %48 = vmatprep.subr.bf16.mxu0 0
  %49 = vmatpush1.bf16.msra.mxu0 0
  %50 = vmatprep.subr.bf16.mxu0 0
  %51 = vmatpush1.bf16.msra.mxu0 0
  %52 = vmatprep.subr.bf16.mxu0 0
  %53 = vmatpush1.bf16.msra.mxu0 0
  %54 = vmatprep.subr.bf16.mxu0 0
  %55 = vmatpush1.bf16.msra.mxu0 0
  %56 = vmatprep.subr.bf16.mxu0 0
  %57 = vmatpush1.bf16.msra.mxu0 %v37
  %58 = vmatprep.subr.bf16.mxu0 0
  %59 = vmatpush1.bf16.msra.mxu0 %v36
  %60 = vmatprep.subr.bf16.mxu0 0
  %61 = vmatpush2.bf16.msra.mxu0 0
  %62 = vmatprep.subr.bf16.mxu0 0
  %63 = vmatpush2.bf16.msra.mxu0 0
  %64 = vmatprep.subr.bf16.mxu0 0
  %65 = vmatpush2.bf16.msra.mxu0 0
  %66 = vmatprep.subr.bf16.mxu0 0
  %67 = vmatpush2.bf16.msra.mxu0 0
  %68 = vmatprep.subr.bf16.mxu0 0
  %69 = vmatpush2.bf16.msra.mxu0 0
  %70 = vmatprep.subr.bf16.mxu0 0
  %71 = vmatpush2.bf16.msra.mxu0 0
  %72 = vmatprep.subr.bf16.mxu0 0
  %73 = vmatpush2.bf16.msra.mxu0 0
  %74 = vmatprep.subr.bf16.mxu0 0
  %75 = vmatpush2.bf16.msra.mxu0 0
  %76 = vmatprep.mubr.bf16.mxu0 0
  %77 = vmatmul.mubr.bf16.gmra.mxu0 %v42
  %v78 = vpop.f32.mrf.mxu0
  %v79 = vadd.f32 0.0, %v78
  %v80 = vpop.f32.mrf.mxu0
  %v81 = vpop.f32.mrf.mxu0
  %v82 = vadd.f32 0.0, %v81
  %v83 = vpop.f32.mrf.mxu0
  %84 = vdwg.mxu0
  %v85 = vadd.f32 %v19, %v79
  %v86 = vadd.f32 %v20, %v82
  %vm87 = vcmask 523264
  %88 = vst.msk [vmem:[#allocation2] sm:$0xff] %vm87, %v85
  %89 = vst.msk [vmem:[#allocation2 + $0x8] sm:$0xff] %vm87, %v86
  // Predicated region
  $region14: #{_lambda_.18} parent=0 // pred_check
    %p90 = pneg %p12
  $region15: #{_lambda_.18} parent=0 // pred_check_branch
    %92 = sbr.rel (%p90) target = $region17
  $region16: #{_lambda_.18} parent=0 // pred_region
    %v93 = vld [vmem:[#allocation2] sm:$0xff]
    %v94 = vld [vmem:[#allocation2 + $0x8] sm:$0xff]
    %v95 = vpack.c.bf16 %v94, %v93
    %v97 = vunpack.c.l.b16 %v95
    %v98 = vunpack.c.h.b16 %v95
    %v99 = vpack.c.b16 %v97, %v97
    %v100 = vpack.c.b16 %v98, %v98
    %vm103 = vcmask 519168
    %104 = vst.msk [vmem:[%s2] sm:$0xf] %vm103, %v99
    %105 = vst.msk [vmem:[%s2 + $0x4] sm:$0xf] %vm103, %v100
  $region17: #{_lambda_.18} parent=0 // pred_fallthru
    _
  // Predicated region
  $region18: #{_lambda_.18} parent=0 // pred_check
    _
  $region19: #{_lambda_.18} parent=0 // pred_check_branch
    %107 = sbr.rel (0) target = $region21
  $region20: #{_lambda_.18} parent=0 // pred_region
    _
  $region21: #{_lambda_.18} parent=0 // pred_fallthru
    _
  // Predicated region
  $region22: #{_lambda_.18} parent=0 // pred_check
    _
  $region23: #{_lambda_.18} parent=0 // pred_check_branch
    %109 = sbr.rel (0) target = $region25
  $region24: #{_lambda_.18} parent=0 // pred_region
    _
  $region25: #{_lambda_.18} parent=0 // pred_fallthru
    _

// kernel: _lambda_.17
$region0: #{_lambda_.17}
  #allocation0 [shape = 'u32[]', space=smem, size = 0x4, offset = 0x4, fixed_abs, tag = 'smem constant byte address 0x4 - core index']
  #allocation1 [shape = 'u32[144,128]{1,0:T(1,128)}', space=vmem, size = 0x12000, scoped, tag = 'internal scratch']
  #allocation2 [shape = 'bf16[128,32]{1,0:T(8,128)(2,1)}', space=vmem, size = 0x8000, scoped, tag = 'scratch operand']
  %s0 = inlined_call_operand.vmem [shape: f32[128,32], index: 0, kind: input, shape index: {}]
  %s1 = inlined_call_operand.vmem [shape: f32[1,32], index: 1, kind: input, shape index: {}]
  %s2 = inlined_call_operand.vmem [shape: f32[1,32], index: 2, kind: input, shape index: {}]
  %s3 = inlined_call_operand.vmem [shape: bf16[32,32], index: 3, kind: input, shape index: {}]
  %s4 = inlined_call_operand.vmem [shape: bf16[128,32], index: 4, kind: output, shape index: {}]
  %s5 = sld [smem:[#allocation0]]
  $region30: #{_lambda_.17} parent=0
    _
  %s7 = ssub.s32 1, %s5
  %s8 = scalar_select 0, %s7, %s5
  // Predicated region
  $region2: #{_lambda_.17} parent=0 // pred_check
    _
  $region3: #{_lambda_.17} parent=0 // pred_check_branch
    %10 = sbr.rel (0) target = $region5
  $region4: #{_lambda_.17} parent=0 // pred_region
    _
  $region5: #{_lambda_.17} parent=0 // pred_fallthru
    _
  // Predicated region
  $region6: #{_lambda_.17} parent=0 // pred_check
    _
  $region7: #{_lambda_.17} parent=0 // pred_check_branch
    %12 = sbr.rel (0) target = $region9
  $region8: #{_lambda_.17} parent=0 // pred_region
    _
  $region9: #{_lambda_.17} parent=0 // pred_fallthru
    _
  // Predicated region
  $region10: #{_lambda_.17} parent=0 // pred_check
    _
  $region11: #{_lambda_.17} parent=0 // pred_check_branch
    %14 = sbr.rel (0) target = $region13
  $region12: #{_lambda_.17} parent=0 // pred_region
    _
  $region13: #{_lambda_.17} parent=0 // pred_fallthru
    _
  // Predicated region
  $region14: #{_lambda_.17} parent=0 // pred_check
    _
  $region15: #{_lambda_.17} parent=0 // pred_check_branch
    %16 = sbr.rel (0) target = $region17
  $region16: #{_lambda_.17} parent=0 // pred_region
    _
  $region17: #{_lambda_.17} parent=0 // pred_fallthru
    _
  %p18 = scmp.eq.s32.totalorder 0, 0
  // Predicated region
  $region18: #{_lambda_.17} parent=0 // pred_check
    %p19 = pneg %p18
  $region19: #{_lambda_.17} parent=0 // pred_check_branch
    %21 = sbr.rel (%p19) target = $region21
  $region20: #{_lambda_.17} parent=0 // pred_region
    %v22 = vld [vmem:[%s0] sm:$0xff]
    %v23 = vld [vmem:[%s0 + $0x8] sm:$0xff]
    %v24 = vld [vmem:[%s0 + $0x10] sm:$0xff]
    %v25 = vld [vmem:[%s0 + $0x18] sm:$0xff]
    %v26 = vld [vmem:[%s0 + $0x20] sm:$0xff]
    %v27 = vld [vmem:[%s0 + $0x28] sm:$0xff]
    %v28 = vld [vmem:[%s0 + $0x30] sm:$0xff]
    %v29 = vld [vmem:[%s0 + $0x38] sm:$0xff]
    %v30 = vld [vmem:[%s0 + $0x40] sm:$0xff]
    %v31 = vld [vmem:[%s0 + $0x48] sm:$0xff]
    %v32 = vld [vmem:[%s0 + $0x50] sm:$0xff]
    %v33 = vld [vmem:[%s0 + $0x58] sm:$0xff]
    %v34 = vld [vmem:[%s0 + $0x60] sm:$0xff]
    %v35 = vld [vmem:[%s0 + $0x68] sm:$0xff]
    %v36 = vld [vmem:[%s0 + $0x70] sm:$0xff]
    %v37 = vld [vmem:[%s0 + $0x78] sm:$0xff]
    %vm38 = vcmask 261120
    %v39 = vsel %vm38, %v22, 0.0
    %40 = vadd.xlane.f32.xlu0 %v39
    %v41 = vpop.xlane.xlu0 %40
    %v42 = vsel %vm38, %v23, 0.0
    %43 = vadd.xlane.f32.xlu0 %v42
    %v44 = vpop.xlane.xlu0 %43
    %v45 = vsel %vm38, %v24, 0.0
    %46 = vadd.xlane.f32.xlu0 %v45
    %v47 = vpop.xlane.xlu0 %46
    %v48 = vsel %vm38, %v25, 0.0
    %49 = vadd.xlane.f32.xlu0 %v48
    %v50 = vpop.xlane.xlu0 %49
    %v51 = vsel %vm38, %v26, 0.0
    %52 = vadd.xlane.f32.xlu0 %v51
    %v53 = vpop.xlane.xlu0 %52
    %v54 = vsel %vm38, %v27, 0.0
    %55 = vadd.xlane.f32.xlu0 %v54
    %v56 = vpop.xlane.xlu0 %55
    %v57 = vsel %vm38, %v28, 0.0
    %58 = vadd.xlane.f32.xlu0 %v57
    %v59 = vpop.xlane.xlu0 %58
    %v60 = vsel %vm38, %v29, 0.0
    %61 = vadd.xlane.f32.xlu0 %v60
    %v62 = vpop.xlane.xlu0 %61
    %v63 = vsel %vm38, %v30, 0.0
    %64 = vadd.xlane.f32.xlu0 %v63
    %v65 = vpop.xlane.xlu0 %64
    %v66 = vsel %vm38, %v31, 0.0
    %67 = vadd.xlane.f32.xlu0 %v66
    %v68 = vpop.xlane.xlu0 %67
    %v69 = vsel %vm38, %v32, 0.0
    %70 = vadd.xlane.f32.xlu0 %v69
    %v71 = vpop.xlane.xlu0 %70
    %v72 = vsel %vm38, %v33, 0.0
    %73 = vadd.xlane.f32.xlu0 %v72
    %v74 = vpop.xlane.xlu0 %73
    %v75 = vsel %vm38, %v34, 0.0
    %76 = vadd.xlane.f32.xlu0 %v75
    %v77 = vpop.xlane.xlu0 %76
    %v78 = vsel %vm38, %v35, 0.0
    %79 = vadd.xlane.f32.xlu0 %v78
    %v80 = vpop.xlane.xlu0 %79
    %v81 = vsel %vm38, %v36, 0.0
    %82 = vadd.xlane.f32.xlu0 %v81
    %v83 = vpop.xlane.xlu0 %82
    %v84 = vsel %vm38, %v37, 0.0
    %85 = vadd.xlane.f32.xlu0 %v84
    %v86 = vpop.xlane.xlu0 %85
    %v87 = vrcp.pop 32.0
    %v88 = vmul.f32 %v41, %v87
    %v89 = vmul.f32 %v44, %v87
    %v90 = vmul.f32 %v47, %v87
    %v91 = vmul.f32 %v50, %v87
    %v92 = vmul.f32 %v53, %v87
    %v93 = vmul.f32 %v56, %v87
    %v94 = vmul.f32 %v59, %v87
    %v95 = vmul.f32 %v62, %v87
    %v96 = vmul.f32 %v65, %v87
    %v97 = vmul.f32 %v68, %v87
    %v98 = vmul.f32 %v71, %v87
    %v99 = vmul.f32 %v74, %v87
    %v100 = vmul.f32 %v77, %v87
    %v101 = vmul.f32 %v80, %v87
    %v102 = vmul.f32 %v83, %v87
    %v103 = vmul.f32 %v86, %v87
    %v104 = vsub.f32 %v22, %v88
    %v105 = vsub.f32 %v23, %v89
    %v106 = vsub.f32 %v24, %v90
    %v107 = vsub.f32 %v25, %v91
    %v108 = vsub.f32 %v26, %v92
    %v109 = vsub.f32 %v27, %v93
    %v110 = vsub.f32 %v28, %v94
    %v111 = vsub.f32 %v29, %v95
    %v112 = vsub.f32 %v30, %v96
    %v113 = vsub.f32 %v31, %v97
    %v114 = vsub.f32 %v32, %v98
    %v115 = vsub.f32 %v33, %v99
    %v116 = vsub.f32 %v34, %v100
    %v117 = vsub.f32 %v35, %v101
    %v118 = vsub.f32 %v36, %v102
    %v119 = vsub.f32 %v37, %v103
    %v120 = vmul.f32 %v104, %v104
    %v121 = vmul.f32 %v105, %v105
    %v122 = vmul.f32 %v106, %v106
    %v123 = vmul.f32 %v107, %v107
    %v124 = vmul.f32 %v108, %v108
    %v125 = vmul.f32 %v109, %v109
    %v126 = vmul.f32 %v110, %v110
    %v127 = vmul.f32 %v111, %v111
    %v128 = vmul.f32 %v112, %v112
    %v129 = vmul.f32 %v113, %v113
    %v130 = vmul.f32 %v114, %v114
    %v131 = vmul.f32 %v115, %v115
    %v132 = vmul.f32 %v116, %v116
    %v133 = vmul.f32 %v117, %v117
    %v134 = vmul.f32 %v118, %v118
    %v135 = vmul.f32 %v119, %v119
    %v136 = vsel %vm38, %v120, 0.0
    %137 = vadd.xlane.f32.xlu0 %v136
    %v138 = vpop.xlane.xlu0 %137
    %v139 = vsel %vm38, %v121, 0.0
    %140 = vadd.xlane.f32.xlu0 %v139
    %v141 = vpop.xlane.xlu0 %140
    %v142 = vsel %vm38, %v122, 0.0
    %143 = vadd.xlane.f32.xlu0 %v142
    %v144 = vpop.xlane.xlu0 %143
    %v145 = vsel %vm38, %v123, 0.0
    %146 = vadd.xlane.f32.xlu0 %v145
    %v147 = vpop.xlane.xlu0 %146
    %v148 = vsel %vm38, %v124, 0.0
    %149 = vadd.xlane.f32.xlu0 %v148
    %v150 = vpop.xlane.xlu0 %149
    %v151 = vsel %vm38, %v125, 0.0
    %152 = vadd.xlane.f32.xlu0 %v151
    %v153 = vpop.xlane.xlu0 %152
    %v154 = vsel %vm38, %v126, 0.0
    %155 = vadd.xlane.f32.xlu0 %v154
    %v156 = vpop.xlane.xlu0 %155
    %v157 = vsel %vm38, %v127, 0.0
    %158 = vadd.xlane.f32.xlu0 %v157
    %v159 = vpop.xlane.xlu0 %158
    %v160 = vsel %vm38, %v128, 0.0
    %161 = vadd.xlane.f32.xlu0 %v160
    %v162 = vpop.xlane.xlu0 %161
    %v163 = vsel %vm38, %v129, 0.0
    %164 = vadd.xlane.f32.xlu0 %v163
    %v165 = vpop.xlane.xlu0 %164
    %v166 = vsel %vm38, %v130, 0.0
    %167 = vadd.xlane.f32.xlu0 %v166
    %v168 = vpop.xlane.xlu0 %167
    %v169 = vsel %vm38, %v131, 0.0
    %170 = vadd.xlane.f32.xlu0 %v169
    %v171 = vpop.xlane.xlu0 %170
    %v172 = vsel %vm38, %v132, 0.0
    %173 = vadd.xlane.f32.xlu0 %v172
    %v174 = vpop.xlane.xlu0 %173
    %v175 = vsel %vm38, %v133, 0.0
    %176 = vadd.xlane.f32.xlu0 %v175
    %v177 = vpop.xlane.xlu0 %176
    %v178 = vsel %vm38, %v134, 0.0
    %179 = vadd.xlane.f32.xlu0 %v178
    %v180 = vpop.xlane.xlu0 %179
    %v181 = vsel %vm38, %v135, 0.0
    %182 = vadd.xlane.f32.xlu0 %v181
    %v183 = vpop.xlane.xlu0 %182
    %v184 = vmul.f32 %v138, %v87
    %v185 = vmul.f32 %v141, %v87
    %v186 = vmul.f32 %v144, %v87
    %v187 = vmul.f32 %v147, %v87
    %v188 = vmul.f32 %v150, %v87
    %v189 = vmul.f32 %v153, %v87
    %v190 = vmul.f32 %v156, %v87
    %v191 = vmul.f32 %v159, %v87
    %v192 = vmul.f32 %v162, %v87
    %v193 = vmul.f32 %v165, %v87
    %v194 = vmul.f32 %v168, %v87
    %v195 = vmul.f32 %v171, %v87
    %v196 = vmul.f32 %v174, %v87
    %v197 = vmul.f32 %v177, %v87
    %v198 = vmul.f32 %v180, %v87
    %v199 = vmul.f32 %v183, %v87
    %v200 = vadd.f32 %v184, 1e-05
    %v201 = vadd.f32 %v185, 1e-05
    %v202 = vadd.f32 %v186, 1e-05
    %v203 = vadd.f32 %v187, 1e-05
    %v204 = vadd.f32 %v188, 1e-05
    %v205 = vadd.f32 %v189, 1e-05
    %v206 = vadd.f32 %v190, 1e-05
    %v207 = vadd.f32 %v191, 1e-05
    %v208 = vadd.f32 %v192, 1e-05
    %v209 = vadd.f32 %v193, 1e-05
    %v210 = vadd.f32 %v194, 1e-05
    %v211 = vadd.f32 %v195, 1e-05
    %v212 = vadd.f32 %v196, 1e-05
    %v213 = vadd.f32 %v197, 1e-05
    %v214 = vadd.f32 %v198, 1e-05
    %v215 = vadd.f32 %v199, 1e-05
    %v216 = vrsqrt.pop %v200
    %v217 = vrsqrt.pop %v201
    %v218 = vrsqrt.pop %v202
    %v219 = vrsqrt.pop %v203
    %v220 = vrsqrt.pop %v204
    %v221 = vrsqrt.pop %v205
    %v222 = vrsqrt.pop %v206
    %v223 = vrsqrt.pop %v207
    %v224 = vrsqrt.pop %v208
    %v225 = vrsqrt.pop %v209
    %v226 = vrsqrt.pop %v210
    %v227 = vrsqrt.pop %v211
    %v228 = vrsqrt.pop %v212
    %v229 = vrsqrt.pop %v213
    %v230 = vrsqrt.pop %v214
    %v231 = vrsqrt.pop %v215
    %v232 = vmul.f32 %v104, %v216
    %v233 = vmul.f32 %v105, %v217
    %v234 = vmul.f32 %v106, %v218
    %v235 = vmul.f32 %v107, %v219
    %v236 = vmul.f32 %v108, %v220
    %v237 = vmul.f32 %v109, %v221
    %v238 = vmul.f32 %v110, %v222
    %v239 = vmul.f32 %v111, %v223
    %v240 = vmul.f32 %v112, %v224
    %v241 = vmul.f32 %v113, %v225
    %v242 = vmul.f32 %v114, %v226
    %v243 = vmul.f32 %v115, %v227
    %v244 = vmul.f32 %v116, %v228
    %v245 = vmul.f32 %v117, %v229
    %v246 = vmul.f32 %v118, %v230
    %v247 = vmul.f32 %v119, %v231
    %v248 = vld [vmem:[%s1] sm:$0x1]
    %v250 = vlaneseq
    %v251 = vshrl.u32 %v250, 7
    %v252 = vsub.s32 0, %v251
    %v253 = vrot.slane %v248, %v252
    %v255 = vmul.f32 %v232, %v253
    %v256 = vmul.f32 %v233, %v253
    %v257 = vmul.f32 %v234, %v253
    %v258 = vmul.f32 %v235, %v253
    %v259 = vmul.f32 %v236, %v253
    %v260 = vmul.f32 %v237, %v253
    %v261 = vmul.f32 %v238, %v253
    %v262 = vmul.f32 %v239, %v253
    %v263 = vmul.f32 %v240, %v253
    %v264 = vmul.f32 %v241, %v253
    %v265 = vmul.f32 %v242, %v253
    %v266 = vmul.f32 %v243, %v253
    %v267 = vmul.f32 %v244, %v253
    %v268 = vmul.f32 %v245, %v253
    %v269 = vmul.f32 %v246, %v253
    %v270 = vmul.f32 %v247, %v253
    %v271 = vld [vmem:[%s2] sm:$0x1]
    %v273 = vlaneseq
    %v274 = vshrl.u32 %v273, 7
    %v275 = vsub.s32 0, %v274
    %v276 = vrot.slane %v271, %v275
    %v278 = vadd.f32 %v255, %v276
    %v279 = vadd.f32 %v256, %v276
    %v280 = vadd.f32 %v257, %v276
    %v281 = vadd.f32 %v258, %v276
    %v282 = vadd.f32 %v259, %v276
    %v283 = vadd.f32 %v260, %v276
    %v284 = vadd.f32 %v261, %v276
    %v285 = vadd.f32 %v262, %v276
    %v286 = vadd.f32 %v263, %v276
    %v287 = vadd.f32 %v264, %v276
    %v288 = vadd.f32 %v265, %v276
    %v289 = vadd.f32 %v266, %v276
    %v290 = vadd.f32 %v267, %v276
    %v291 = vadd.f32 %v268, %v276
    %v292 = vadd.f32 %v269, %v276
    %v293 = vadd.f32 %v270, %v276
    %v294 = vpack.c.bf16 %v279, %v278
    %v295 = vpack.c.bf16 %v281, %v280
    %v296 = vpack.c.bf16 %v283, %v282
    %v297 = vpack.c.bf16 %v285, %v284
    %v298 = vpack.c.bf16 %v287, %v286
    %v299 = vpack.c.bf16 %v289, %v288
    %v300 = vpack.c.bf16 %v291, %v290
    %v301 = vpack.c.bf16 %v293, %v292
    %v310 = vunpack.c.l.b16 %v294
    %v311 = vunpack.c.h.b16 %v294
    %v312 = vunpack.c.l.b16 %v295
    %v313 = vunpack.c.h.b16 %v295
    %v314 = vunpack.c.l.b16 %v296
    %v315 = vunpack.c.h.b16 %v296
    %v316 = vunpack.c.l.b16 %v297
    %v317 = vunpack.c.h.b16 %v297
    %v318 = vunpack.c.l.b16 %v298
    %v319 = vunpack.c.h.b16 %v298
    %v320 = vunpack.c.l.b16 %v299
    %v321 = vunpack.c.h.b16 %v299
    %v322 = vunpack.c.l.b16 %v300
    %v323 = vunpack.c.h.b16 %v300
    %v324 = vunpack.c.l.b16 %v301
    %v325 = vunpack.c.h.b16 %v301
    %v326 = vpack.c.b16 %v310, %v310
    %v327 = vpack.c.b16 %v311, %v311
    %v328 = vpack.c.b16 %v312, %v312
    %v329 = vpack.c.b16 %v313, %v313
    %v330 = vpack.c.b16 %v314, %v314
    %v331 = vpack.c.b16 %v315, %v315
    %v332 = vpack.c.b16 %v316, %v316
    %v333 = vpack.c.b16 %v317, %v317
    %v334 = vpack.c.b16 %v318, %v318
    %v335 = vpack.c.b16 %v319, %v319
    %v336 = vpack.c.b16 %v320, %v320
    %v337 = vpack.c.b16 %v321, %v321
    %v338 = vpack.c.b16 %v322, %v322
    %v339 = vpack.c.b16 %v323, %v323
    %v340 = vpack.c.b16 %v324, %v324
    %v341 = vpack.c.b16 %v325, %v325
    %vm358 = vcmask 257024
    %359 = vst.msk [vmem:[#allocation2] sm:$0xf] %vm358, %v326
    %360 = vst.msk [vmem:[#allocation2 + $0x4] sm:$0xf] %vm358, %v327
    %361 = vst.msk [vmem:[#allocation2 + $0x8] sm:$0xf] %vm358, %v328
    %362 = vst.msk [vmem:[#allocation2 + $0xc] sm:$0xf] %vm358, %v329
    %363 = vst.msk [vmem:[#allocation2 + $0x10] sm:$0xf] %vm358, %v330
    %364 = vst.msk [vmem:[#allocation2 + $0x14] sm:$0xf] %vm358, %v331
    %365 = vst.msk [vmem:[#allocation2 + $0x18] sm:$0xf] %vm358, %v332
    %366 = vst.msk [vmem:[#allocation2 + $0x1c] sm:$0xf] %vm358, %v333
    %367 = vst.msk [vmem:[#allocation2 + $0x20] sm:$0xf] %vm358, %v334
    %368 = vst.msk [vmem:[#allocation2 + $0x24] sm:$0xf] %vm358, %v335
    %369 = vst.msk [vmem:[#allocation2 + $0x28] sm:$0xf] %vm358, %v336
    %370 = vst.msk [vmem:[#allocation2 + $0x2c] sm:$0xf] %vm358, %v337
    %371 = vst.msk [vmem:[#allocation2 + $0x30] sm:$0xf] %vm358, %v338
    %372 = vst.msk [vmem:[#allocation2 + $0x34] sm:$0xf] %vm358, %v339
    %373 = vst.msk [vmem:[#allocation2 + $0x38] sm:$0xf] %vm358, %v340
    %374 = vst.msk [vmem:[#allocation2 + $0x3c] sm:$0xf] %vm358, %v341
  $region21: #{_lambda_.17} parent=0 // pred_fallthru
    _
  %v375 = vld [vmem:[#allocation2] sm:$0xf]
  %v376 = vld [vmem:[#allocation2 + $0x4] sm:$0xf]
  %v377 = vld [vmem:[#allocation2 + $0x8] sm:$0xf]
  %v378 = vld [vmem:[#allocation2 + $0xc] sm:$0xf]
  %v379 = vld [vmem:[#allocation2 + $0x10] sm:$0xf]
  %v380 = vld [vmem:[#allocation2 + $0x14] sm:$0xf]
  %v381 = vld [vmem:[#allocation2 + $0x18] sm:$0xf]
  %v382 = vld [vmem:[#allocation2 + $0x1c] sm:$0xf]
  %v383 = vld [vmem:[#allocation2 + $0x20] sm:$0xf]
  %v384 = vld [vmem:[#allocation2 + $0x24] sm:$0xf]
  %v385 = vld [vmem:[#allocation2 + $0x28] sm:$0xf]
  %v386 = vld [vmem:[#allocation2 + $0x2c] sm:$0xf]
  %v387 = vld [vmem:[#allocation2 + $0x30] sm:$0xf]
  %v388 = vld [vmem:[#allocation2 + $0x34] sm:$0xf]
  %v389 = vld [vmem:[#allocation2 + $0x38] sm:$0xf]
  %v390 = vld [vmem:[#allocation2 + $0x3c] sm:$0xf]
  %v391 = vld [vmem:[%s3] sm:$0xf]
  %v392 = vld [vmem:[%s3 + $0x4] sm:$0xf]
  %v393 = vld [vmem:[%s3 + $0x8] sm:$0xf]
  %v394 = vld [vmem:[%s3 + $0xc] sm:$0xf]
  %v411 = vunpack.c.l.b16 %v375
  %v412 = vunpack.c.l.b16 %v376
  %v413 = vunpack.c.l.b16 %v377
  %v414 = vunpack.c.l.b16 %v378
  %v415 = vunpack.c.l.b16 %v379
  %v416 = vunpack.c.l.b16 %v380
  %v417 = vunpack.c.l.b16 %v381
  %v418 = vunpack.c.l.b16 %v382
  %v419 = vunpack.c.l.b16 %v383
  %v420 = vunpack.c.l.b16 %v384
  %v421 = vunpack.c.l.b16 %v385
  %v422 = vunpack.c.l.b16 %v386
  %v423 = vunpack.c.l.b16 %v387
  %v424 = vunpack.c.l.b16 %v388
  %v425 = vunpack.c.l.b16 %v389
  %v426 = vunpack.c.l.b16 %v390
  %v427 = vpack.c.b16 %v412, %v411
  %v428 = vpack.c.b16 %v414, %v413
  %v429 = vpack.c.b16 %v416, %v415
  %v430 = vpack.c.b16 %v418, %v417
  %v431 = vpack.c.b16 %v420, %v419
  %v432 = vpack.c.b16 %v422, %v421
  %v433 = vpack.c.b16 %v424, %v423
  %v434 = vpack.c.b16 %v426, %v425
  %v439 = vunpack.c.l.b16 %v391
  %v440 = vunpack.c.l.b16 %v392
  %v441 = vunpack.c.l.b16 %v393
  %v442 = vunpack.c.l.b16 %v394
  %v443 = vpack.c.b16 %v440, %v439
  %v444 = vpack.c.b16 %v442, %v441
  %vm447 = vcmask 261120
  %v449 = vsel %vm447, %v427, 0
  %v452 = vsel %vm447, %v428, 0
  %v455 = vsel %vm447, %v429, 0
  %v458 = vsel %vm447, %v430, 0
  %v461 = vsel %vm447, %v431, 0
  %v464 = vsel %vm447, %v432, 0
  %v467 = vsel %vm447, %v433, 0
  %v470 = vsel %vm447, %v434, 0
  %472 = vmatprep.subr.bf16.mxu0 0
  %473 = vmatpush1.bf16.msra.mxu0 0
  %474 = vmatprep.subr.bf16.mxu0 0
  %475 = vmatpush1.bf16.msra.mxu0 0
  %476 = vmatprep.subr.bf16.mxu0 0
  %477 = vmatpush1.bf16.msra.mxu0 0
  %478 = vmatprep.subr.bf16.mxu0 0
  %479 = vmatpush1.bf16.msra.mxu0 0
  %480 = vmatprep.subr.bf16.mxu0 0
  %481 = vmatpush1.bf16.msra.mxu0 0
  %482 = vmatprep.subr.bf16.mxu0 0
  %483 = vmatpush1.bf16.msra.mxu0 0
  %484 = vmatprep.subr.bf16.mxu0 0
  %485 = vmatpush1.bf16.msra.mxu0 %v444
  %486 = vmatprep.subr.bf16.mxu0 0
  %487 = vmatpush1.bf16.msra.mxu0 %v443
  %488 = vmatprep.subr.bf16.mxu0 0
  %489 = vmatpush2.bf16.msra.mxu0 0
  %490 = vmatprep.subr.bf16.mxu0 0
  %491 = vmatpush2.bf16.msra.mxu0 0
  %492 = vmatprep.subr.bf16.mxu0 0
  %493 = vmatpush2.bf16.msra.mxu0 0
  %494 = vmatprep.subr.bf16.mxu0 0
  %495 = vmatpush2.bf16.msra.mxu0 0
  %496 = vmatprep.subr.bf16.mxu0 0
  %497 = vmatpush2.bf16.msra.mxu0 0
  %498 = vmatprep.subr.bf16.mxu0 0
  %499 = vmatpush2.bf16.msra.mxu0 0
  %500 = vmatprep.subr.bf16.mxu0 0
  %501 = vmatpush2.bf16.msra.mxu0 0
  %502 = vmatprep.subr.bf16.mxu0 0
  %503 = vmatpush2.bf16.msra.mxu0 0
  %504 = vmatprep.mubr.bf16.mxu0 0
  %505 = vmatmul.mubr.bf16.gmra.mxu0 %v449
  %v506 = vpop.f32.mrf.mxu0
  %v507 = vadd.f32 0.0, %v506
  %v508 = vpop.f32.mrf.mxu0
  %v509 = vpop.f32.mrf.mxu0
  %v510 = vadd.f32 0.0, %v509
  %v511 = vpop.f32.mrf.mxu0
  %512 = vmatprep.mubr.bf16.mxu0 0
  %513 = vmatmul.mubr.bf16.gmra.mxu0 %v452
  %v514 = vpop.f32.mrf.mxu0
  %v515 = vadd.f32 0.0, %v514
  %v516 = vpop.f32.mrf.mxu0
  %v517 = vpop.f32.mrf.mxu0
  %v518 = vadd.f32 0.0, %v517
  %v519 = vpop.f32.mrf.mxu0
  %520 = vmatprep.mubr.bf16.mxu0 0
  %521 = vmatmul.mubr.bf16.gmra.mxu0 %v455
  %v522 = vpop.f32.mrf.mxu0
  %v523 = vadd.f32 0.0, %v522
  %v524 = vpop.f32.mrf.mxu0
  %v525 = vpop.f32.mrf.mxu0
  %v526 = vadd.f32 0.0, %v525
  %v527 = vpop.f32.mrf.mxu0
  %528 = vmatprep.mubr.bf16.mxu0 0
  %529 = vmatmul.mubr.bf16.gmra.mxu0 %v458
  %v530 = vpop.f32.mrf.mxu0
  %v531 = vadd.f32 0.0, %v530
  %v532 = vpop.f32.mrf.mxu0
  %v533 = vpop.f32.mrf.mxu0
  %v534 = vadd.f32 0.0, %v533
  %v535 = vpop.f32.mrf.mxu0
  %536 = vmatprep.mubr.bf16.mxu0 0
  %537 = vmatmul.mubr.bf16.gmra.mxu0 %v461
  %v538 = vpop.f32.mrf.mxu0
  %v539 = vadd.f32 0.0, %v538
  %v540 = vpop.f32.mrf.mxu0
  %v541 = vpop.f32.mrf.mxu0
  %v542 = vadd.f32 0.0, %v541
  %v543 = vpop.f32.mrf.mxu0
  %544 = vmatprep.mubr.bf16.mxu0 0
  %545 = vmatmul.mubr.bf16.gmra.mxu0 %v464
  %v546 = vpop.f32.mrf.mxu0
  %v547 = vadd.f32 0.0, %v546
  %v548 = vpop.f32.mrf.mxu0
  %v549 = vpop.f32.mrf.mxu0
  %v550 = vadd.f32 0.0, %v549
  %v551 = vpop.f32.mrf.mxu0
  %552 = vmatprep.mubr.bf16.mxu0 0
  %553 = vmatmul.mubr.bf16.gmra.mxu0 %v467
  %v554 = vpop.f32.mrf.mxu0
  %v555 = vadd.f32 0.0, %v554
  %v556 = vpop.f32.mrf.mxu0
  %v557 = vpop.f32.mrf.mxu0
  %v558 = vadd.f32 0.0, %v557
  %v559 = vpop.f32.mrf.mxu0
  %560 = vmatprep.mubr.bf16.mxu0 0
  %561 = vmatmul.mubr.bf16.gmra.mxu0 %v470
  %v562 = vpop.f32.mrf.mxu0
  %v563 = vadd.f32 0.0, %v562
  %v564 = vpop.f32.mrf.mxu0
  %v565 = vpop.f32.mrf.mxu0
  %v566 = vadd.f32 0.0, %v565
  %v567 = vpop.f32.mrf.mxu0
  %568 = vdwg.mxu0
  %v569 = vpack.c.bf16 %v510, %v507
  %v570 = vpack.c.bf16 %v518, %v515
  %v571 = vpack.c.bf16 %v526, %v523
  %v572 = vpack.c.bf16 %v534, %v531
  %v573 = vpack.c.bf16 %v542, %v539
  %v574 = vpack.c.bf16 %v550, %v547
  %v575 = vpack.c.bf16 %v558, %v555
  %v576 = vpack.c.bf16 %v566, %v563
  %v585 = vunpack.c.l.b16 %v569
  %v586 = vunpack.c.h.b16 %v569
  %v587 = vunpack.c.l.b16 %v570
  %v588 = vunpack.c.h.b16 %v570
  %v589 = vunpack.c.l.b16 %v571
  %v590 = vunpack.c.h.b16 %v571
  %v591 = vunpack.c.l.b16 %v572
  %v592 = vunpack.c.h.b16 %v572
  %v593 = vunpack.c.l.b16 %v573
  %v594 = vunpack.c.h.b16 %v573
  %v595 = vunpack.c.l.b16 %v574
  %v596 = vunpack.c.h.b16 %v574
  %v597 = vunpack.c.l.b16 %v575
  %v598 = vunpack.c.h.b16 %v575
  %v599 = vunpack.c.l.b16 %v576
  %v600 = vunpack.c.h.b16 %v576
  %v601 = vpack.c.b16 %v585, %v585
  %v602 = vpack.c.b16 %v586, %v586
  %v603 = vpack.c.b16 %v587, %v587
  %v604 = vpack.c.b16 %v588, %v588
  %v605 = vpack.c.b16 %v589, %v589
  %v606 = vpack.c.b16 %v590, %v590
  %v607 = vpack.c.b16 %v591, %v591
  %v608 = vpack.c.b16 %v592, %v592
  %v609 = vpack.c.b16 %v593, %v593
  %v610 = vpack.c.b16 %v594, %v594
  %v611 = vpack.c.b16 %v595, %v595
  %v612 = vpack.c.b16 %v596, %v596
  %v613 = vpack.c.b16 %v597, %v597
  %v614 = vpack.c.b16 %v598, %v598
  %v615 = vpack.c.b16 %v599, %v599
  %v616 = vpack.c.b16 %v600, %v600
  %vm633 = vcmask 257024
  %634 = vst.msk [vmem:[%s4] sm:$0xf] %vm633, %v601
  %635 = vst.msk [vmem:[%s4 + $0x4] sm:$0xf] %vm633, %v602
  %636 = vst.msk [vmem:[%s4 + $0x8] sm:$0xf] %vm633, %v603
  %637 = vst.msk [vmem:[%s4 + $0xc] sm:$0xf] %vm633, %v604
  %638 = vst.msk [vmem:[%s4 + $0x10] sm:$0xf] %vm633, %v605
  %639 = vst.msk [vmem:[%s4 + $0x14] sm:$0xf] %vm633, %v606
  %640 = vst.msk [vmem:[%s4 + $0x18] sm:$0xf] %vm633, %v607
  %641 = vst.msk [vmem:[%s4 + $0x1c] sm:$0xf] %vm633, %v608
  %642 = vst.msk [vmem:[%s4 + $0x20] sm:$0xf] %vm633, %v609
  %643 = vst.msk [vmem:[%s4 + $0x24] sm:$0xf] %vm633, %v610
  %644 = vst.msk [vmem:[%s4 + $0x28] sm:$0xf] %vm633, %v611
  %645 = vst.msk [vmem:[%s4 + $0x2c] sm:$0xf] %vm633, %v612
  %646 = vst.msk [vmem:[%s4 + $0x30] sm:$0xf] %vm633, %v613
  %647 = vst.msk [vmem:[%s4 + $0x34] sm:$0xf] %vm633, %v614
  %648 = vst.msk [vmem:[%s4 + $0x38] sm:$0xf] %vm633, %v615
  %649 = vst.msk [vmem:[%s4 + $0x3c] sm:$0xf] %vm633, %v616
  // Predicated region
  $region22: #{_lambda_.17} parent=0 // pred_check
    _
  $region23: #{_lambda_.17} parent=0 // pred_check_branch
    %651 = sbr.rel (0) target = $region25
  $region24: #{_lambda_.17} parent=0 // pred_region
    _
  $region25: #{_lambda_.17} parent=0 // pred_fallthru
    _
  // Predicated region
  $region26: #{_lambda_.17} parent=0 // pred_check
    _
  $region27: #{_lambda_.17} parent=0 // pred_check_branch
    %653 = sbr.rel (0) target = $region29
  $region28: #{_lambda_.17} parent=0 // pred_region
    _
  $region29: #{_lambda_.17} parent=0 // pred_fallthru
    _

// kernel: _lambda_.15
$region0: #{_lambda_.15}
  #allocation0 [shape = 'u32[]', space=smem, size = 0x4, offset = 0x4, fixed_abs, tag = 'smem constant byte address 0x4 - core index']
  #allocation1 [shape = 'u32[144,128]{1,0:T(1,128)}', space=vmem, size = 0x12000, scoped, tag = 'internal scratch']
  %s0 = inlined_call_operand.vmem [shape: bf16[2,4,64,8], index: 0, kind: input, shape index: {}]
  %s1 = inlined_call_operand.vmem [shape: bf16[2,4,64,8], index: 1, kind: input, shape index: {}]
  %s2 = inlined_call_operand.vmem [shape: bf16[2,4,64,8], index: 2, kind: input, shape index: {}]
  %s3 = inlined_call_operand.vmem [shape: bf16[2,64,32], index: 3, kind: output, shape index: {}]
  %s4 = sld [smem:[#allocation0]]
  $region45: #{_lambda_.15} parent=0
    _
  %s6 = ssub.s32 1, %s4
  %s7 = scalar_select 0, %s6, %s4
  loop: start=0, step=1, limit=4
  $region2: #{_lambda_.15} parent=0 // loop_pre_header
    _
  $region3: #{_lambda_.15} parent=0 // loop_header
    %s9 = sphi 0, %s13
    %p10 = scmp.ge.s32.totalorder %s9, 4
    %s16 = sphi 0, %s28
    %s17 = sphi 0, %s24
    %s18 = sphi 0, %s16
    %s19 = sphi 0, %s17
    %s20 = sphi 0, %s18
    %s21 = sphi 0, %s19
    %s33 = sphi 0, %s35
    %s36 = sphi 0, %s33
    %s37 = sphi 0, %s36
    %s53 = sphi 0, %s37
    %s59 = sphi 0, %s61
    %s62 = sphi 0, %s59
    %s63 = sphi 0, %s62
    %s79 = sphi 0, %s63
    %s85 = sphi 0, %s87
    %s88 = sphi 0, %s85
    %s89 = sphi 0, %s88
    %s105 = sphi 0, %s89
    %s113 = sphi 0, %s115
    %s116 = sphi 0, %s113
    %s117 = sphi 0, %s116
    %s133 = sphi 0, %s117
  $region4: #{_lambda_.15} parent=0 // loop_header_branch
    %12 = sbr.rel (%p10) target = $region8
  $region5: #{_lambda_.15} parent=0 // loop_body
    %s14 = ssub.s32 %s9, 1
    %s15 = ssub.s32 %s9, 2
    %s22 = sadd.s32 1, %s17
    %p23 = scmp.ge.s32.totalorder %s22, 1
    %s24 = scalar_select %p23, 0, %s22
    %s25 = sadd.s32 1, %s16
    %s26 = scalar_select %p23, %s25, %s16
    %p27 = scmp.ge.s32.totalorder %s26, 2
    %s28 = scalar_select %p27, 0, %s26
    %s29 = ssub.s32 %s16, %s28
    %s30 = ssub.s32 %s17, %s24
    %s31 = sor.u32 %s29, %s30
    %p32 = scmp.eq.s32.totalorder %s31, 0
    %s34 = sadd.s32 %s33, 1
    %s35 = scalar_select %p32, %s33, %s34
    %p38 = pneg %p32
    %p39 = scmp.eq.s32.totalorder %s9, 1
    %p40 = por %p38, %p39
    %p41 = scmp.ne.s32.totalorder %s33, %s36
    %p42 = scmp.eq.s32.totalorder %s9, 0
    %p43 = por %p41, %p42
    %p44 = scmp.ne.s32.totalorder %s33, %s36
    %p45 = scmp.eq.s32.totalorder %s14, 1
    %p46 = por %p44, %p45
    %p47 = scmp.ne.s32.totalorder %s36, %s37
    %p48 = scmp.eq.s32.totalorder %s14, 0
    %p49 = por %p47, %p48
    %p50 = scmp.ne.s32.totalorder %s36, %s37
    %p51 = scmp.eq.s32.totalorder %s15, 1
    %p52 = por %p50, %p51
    %p54 = scmp.ne.s32.totalorder %s37, %s53
    %p55 = scmp.eq.s32.totalorder %s15, 0
    %p56 = por %p54, %p55
    %s57 = ssub.s32 %s16, %s28
    %p58 = scmp.eq.s32.totalorder %s57, 0
    %s60 = sadd.s32 %s59, 1
    %s61 = scalar_select %p58, %s59, %s60
    %p64 = pneg %p58
    %p65 = scmp.eq.s32.totalorder %s9, 1
    %p66 = por %p64, %p65
    %p67 = scmp.ne.s32.totalorder %s59, %s62
    %p68 = scmp.eq.s32.totalorder %s9, 0
    %p69 = por %p67, %p68
    %p70 = scmp.ne.s32.totalorder %s59, %s62
    %p71 = scmp.eq.s32.totalorder %s14, 1
    %p72 = por %p70, %p71
    %p73 = scmp.ne.s32.totalorder %s62, %s63
    %p74 = scmp.eq.s32.totalorder %s14, 0
    %p75 = por %p73, %p74
    %p76 = scmp.ne.s32.totalorder %s62, %s63
    %p77 = scmp.eq.s32.totalorder %s15, 1
    %p78 = por %p76, %p77
    %p80 = scmp.ne.s32.totalorder %s63, %s79
    %p81 = scmp.eq.s32.totalorder %s15, 0
    %p82 = por %p80, %p81
    %s83 = ssub.s32 %s16, %s28
    %p84 = scmp.eq.s32.totalorder %s83, 0
    %s86 = sadd.s32 %s85, 1
    %s87 = scalar_select %p84, %s85, %s86
    %p90 = pneg %p84
    %p91 = scmp.eq.s32.totalorder %s9, 1
    %p92 = por %p90, %p91
    %p93 = scmp.ne.s32.totalorder %s85, %s88
    %p94 = scmp.eq.s32.totalorder %s9, 0
    %p95 = por %p93, %p94
    %p96 = scmp.ne.s32.totalorder %s85, %s88
    %p97 = scmp.eq.s32.totalorder %s14, 1
    %p98 = por %p96, %p97
    %p99 = scmp.ne.s32.totalorder %s88, %s89
    %p100 = scmp.eq.s32.totalorder %s14, 0
    %p101 = por %p99, %p100
    %p102 = scmp.ne.s32.totalorder %s88, %s89
    %p103 = scmp.eq.s32.totalorder %s15, 1
    %p104 = por %p102, %p103
    %p106 = scmp.ne.s32.totalorder %s89, %s105
    %p107 = scmp.eq.s32.totalorder %s15, 0
    %p108 = por %p106, %p107
    %s109 = ssub.s32 %s16, %s28
    %s110 = ssub.s32 %s17, %s24
    %s111 = sor.u32 %s109, %s110
    %p112 = scmp.eq.s32.totalorder %s111, 0
    %s114 = sadd.s32 %s113, 1
    %s115 = scalar_select %p112, %s113, %s114
    %p118 = pneg %p112
    %p119 = scmp.eq.s32.totalorder %s9, 1
    %p120 = por %p118, %p119
    %p121 = scmp.ne.s32.totalorder %s113, %s116
    %p122 = scmp.eq.s32.totalorder %s9, 0
    %p123 = por %p121, %p122
    %p124 = scmp.ne.s32.totalorder %s113, %s116
    %p125 = scmp.eq.s32.totalorder %s14, 1
    %p126 = por %p124, %p125
    %p127 = scmp.ne.s32.totalorder %s116, %s117
    %p128 = scmp.eq.s32.totalorder %s14, 0
    %p129 = por %p127, %p128
    %p130 = scmp.ne.s32.totalorder %s116, %s117
    %p131 = scmp.eq.s32.totalorder %s15, 1
    %p132 = por %p130, %p131
    %p134 = scmp.ne.s32.totalorder %s117, %s133
    %p135 = scmp.eq.s32.totalorder %s15, 0
    %p136 = por %p134, %p135
    %p137 = scmp.le.s32.totalorder 1, %s9
    %p138 = scmp.lt.s32.totalorder %s9, 3
    %p139 = pnand %p137, %p138
    %p140 = pneg %p139
    // Predicated region
    $region9: #{_lambda_.15} parent=5 // pred_check
      _
    $region10: #{_lambda_.15} parent=5 // pred_check_branch
      %142 = sbr.rel (%p139) target = $region12
    $region11: #{_lambda_.15} parent=5 // pred_region
      %s143 = ssub.s32 %s9, 1
    $region12: #{_lambda_.15} parent=5 // pred_fallthru
      _
    %p144 = scmp.lt.s32.totalorder %s9, 2
    // Predicated region
    $region13: #{_lambda_.15} parent=5 // pred_check
      %p145 = pneg %p144
    $region14: #{_lambda_.15} parent=5 // pred_check_branch
      %147 = sbr.rel (%p145) target = $region16
    $region15: #{_lambda_.15} parent=5 // pred_region
      // Predicated region
      $region17: #{_lambda_.15} parent=15 // pred_check
        %p148 = pneg %p43
      $region18: #{_lambda_.15} parent=15 // pred_check_branch
        %150 = sbr.rel (%p148) target = $region20
      $region19: #{_lambda_.15} parent=15 // pred_region
        %s151 = smul.u32 8, %s17
        %p152 = scmp.lt.s32.totalorder %s16, 1
        %s153 = scalar_select %p152, %s16, 1
        %p154 = scmp.lt.s32.totalorder %s151, 7
        %s155 = scalar_select %p154, %s151, 7
        %s156 = smul.addr %s153, 32
        %s157 = sadd.s32 %s155, %s156
        %s158 = smul.addr %s157, 4
        %s159 = scalar_lea.vmem %s0, %s158
        %s160 = smul.u32 8, %s17
      $region20: #{_lambda_.15} parent=15 // pred_fallthru
        _
      // Predicated region
      $region21: #{_lambda_.15} parent=15 // pred_check
        %p161 = pneg %p69
      $region22: #{_lambda_.15} parent=15 // pred_check_branch
        %163 = sbr.rel (%p161) target = $region24
      $region23: #{_lambda_.15} parent=15 // pred_region
        %p164 = scmp.lt.s32.totalorder %s16, 1
        %s165 = scalar_select %p164, %s16, 1
        %s166 = smul.addr %s165, 32
        %s167 = smul.addr %s166, 4
        %s168 = scalar_lea.vmem %s1, %s167
      $region24: #{_lambda_.15} parent=15 // pred_fallthru
        _
      // Predicated region
      $region25: #{_lambda_.15} parent=15 // pred_check
        %p169 = pneg %p95
      $region26: #{_lambda_.15} parent=15 // pred_check_branch
        %171 = sbr.rel (%p169) target = $region28
      $region27: #{_lambda_.15} parent=15 // pred_region
        %p172 = scmp.lt.s32.totalorder %s16, 1
        %s173 = scalar_select %p172, %s16, 1
        %s174 = smul.addr %s173, 32
        %s175 = smul.addr %s174, 4
        %s176 = scalar_lea.vmem %s2, %s175
      $region28: #{_lambda_.15} parent=15 // pred_fallthru
        _
    $region16: #{_lambda_.15} parent=5 // pred_fallthru
      _
    %p177 = scmp.le.s32.totalorder 1, %s9
    %p178 = scmp.lt.s32.totalorder %s9, 3
    %p179 = pnand %p177, %p178
    %p180 = pneg %p179
    // Predicated region
    $region29: #{_lambda_.15} parent=5 // pred_check
      _
    $region30: #{_lambda_.15} parent=5 // pred_check_branch
      %182 = sbr.rel (%p179) target = $region32
    $region31: #{_lambda_.15} parent=5 // pred_region
      %s183 = ssub.s32 %s9, 1
      %s184 = smul.u32 8, %s19
      %p185 = scmp.lt.s32.totalorder %s18, 1
      %s186 = scalar_select %p185, %s18, 1
      %p187 = scmp.lt.s32.totalorder %s184, 7
      %s188 = scalar_select %p187, %s184, 7
      %s189 = smul.addr %s186, 32
      %s190 = sadd.s32 %s188, %s189
      %s191 = smul.addr %s190, 4
      %s192 = scalar_lea.vmem %s0, %s191
      %p193 = pneg %p49
      %p194 = pneg %p46
      %p195 = scmp.lt.s32.totalorder %s18, 1
      %s196 = scalar_select %p195, %s18, 1
      %s197 = smul.addr %s196, 32
      %s198 = smul.addr %s197, 4
      %s199 = scalar_lea.vmem %s1, %s198
      %p200 = pneg %p75
      %p201 = pneg %p72
      %p202 = scmp.lt.s32.totalorder %s18, 1
      %s203 = scalar_select %p202, %s18, 1
      %s204 = smul.addr %s203, 32
      %s205 = smul.addr %s204, 4
      %s206 = scalar_lea.vmem %s2, %s205
      %p207 = pneg %p101
      %p208 = pneg %p98
      %p209 = pneg %p129
      %p210 = pneg %p126
      %s211 = smul.u32 8, %s19
      %p212 = scmp.lt.s32.totalorder %s18, 1
      %s213 = scalar_select %p212, %s18, 1
      %p214 = scmp.lt.s32.totalorder %s211, 7
      %s215 = scalar_select %p214, %s211, 7
      %s216 = smul.addr %s213, 8
      %s217 = sadd.s32 %s215, %s216
      %s218 = smul.addr %s217, 4
      %s219 = scalar_lea.vmem %s3, %s218
      %s220 = smul.u32 8, %s19
      %p221 = scmp.lt.s32.totalorder %s18, 1
      %s222 = scalar_select %p221, %s18, 1
      %p223 = scmp.lt.s32.totalorder %s220, 7
      %s224 = scalar_select %p223, %s220, 7
      %s225 = smul.addr %s222, 32
      %s226 = sadd.s32 %s224, %s225
      %s227 = smul.addr %s226, 4
      %s228 = scalar_lea.vmem %s0, %s227
      %s229 = smul.u32 8, %s19
      %p230 = scmp.lt.s32.totalorder %s18, 1
      %s231 = scalar_select %p230, %s18, 1
      %s232 = smul.addr %s231, 32
      %s233 = smul.addr %s232, 4
      %s234 = scalar_lea.vmem %s1, %s233
      %p235 = scmp.lt.s32.totalorder %s18, 1
      %s236 = scalar_select %p235, %s18, 1
      %s237 = smul.addr %s236, 32
      %s238 = smul.addr %s237, 4
      %s239 = scalar_lea.vmem %s2, %s238
      %s240 = smul.u32 8, %s19
      %p241 = scmp.lt.s32.totalorder %s18, 1
      %s242 = scalar_select %p241, %s18, 1
      %p243 = scmp.lt.s32.totalorder %s240, 7
      %s244 = scalar_select %p243, %s240, 7
      %s245 = smul.addr %s242, 8
      %s246 = sadd.s32 %s244, %s245
      %s247 = smul.addr %s246, 4
      %s248 = scalar_lea.vmem %s3, %s247
      %s249 = smul.u32 8, %s19
      %v251 = vld [vmem:[%s228] sm:$0xf]
      %v252 = vld [vmem:[%s228 + $0x4] sm:$0xf]
      %v253 = vld [vmem:[%s228 + $0x8] sm:$0xf]
      %v254 = vld [vmem:[%s228 + $0xc] sm:$0xf]
      %v255 = vld [vmem:[%s228 + $0x10] sm:$0xf]
      %v256 = vld [vmem:[%s228 + $0x14] sm:$0xf]
      %v257 = vld [vmem:[%s228 + $0x18] sm:$0xf]
      %v258 = vld [vmem:[%s228 + $0x1c] sm:$0xf]
      %v259 = vld [vmem:[%s228 + $0x20] sm:$0xf]
      %v260 = vld [vmem:[%s228 + $0x24] sm:$0xf]
      %v261 = vld [vmem:[%s228 + $0x28] sm:$0xf]
      %v262 = vld [vmem:[%s228 + $0x2c] sm:$0xf]
      %v263 = vld [vmem:[%s228 + $0x30] sm:$0xf]
      %v264 = vld [vmem:[%s228 + $0x34] sm:$0xf]
      %v265 = vld [vmem:[%s228 + $0x38] sm:$0xf]
      %v266 = vld [vmem:[%s228 + $0x3c] sm:$0xf]
      %v267 = vld [vmem:[%s228 + $0x40] sm:$0xf]
      %v268 = vld [vmem:[%s228 + $0x44] sm:$0xf]
      %v269 = vld [vmem:[%s228 + $0x48] sm:$0xf]
      %v270 = vld [vmem:[%s228 + $0x4c] sm:$0xf]
      %v271 = vld [vmem:[%s228 + $0x50] sm:$0xf]
      %v272 = vld [vmem:[%s228 + $0x54] sm:$0xf]
      %v273 = vld [vmem:[%s228 + $0x58] sm:$0xf]
      %v274 = vld [vmem:[%s228 + $0x5c] sm:$0xf]
      %v275 = vld [vmem:[%s228 + $0x60] sm:$0xf]
      %v276 = vld [vmem:[%s228 + $0x64] sm:$0xf]
      %v277 = vld [vmem:[%s228 + $0x68] sm:$0xf]
      %v278 = vld [vmem:[%s228 + $0x6c] sm:$0xf]
      %v279 = vld [vmem:[%s228 + $0x70] sm:$0xf]
      %v280 = vld [vmem:[%s228 + $0x74] sm:$0xf]
      %v281 = vld [vmem:[%s228 + $0x78] sm:$0xf]
      %v282 = vld [vmem:[%s228 + $0x7c] sm:$0xf]
      %v283 = vunpack.c.l.bf16 %v251
      %v284 = vunpack.c.l.bf16 %v252
      %v285 = vunpack.c.l.bf16 %v253
      %v286 = vunpack.c.l.bf16 %v254
      %v287 = vunpack.c.l.bf16 %v255
      %v288 = vunpack.c.l.bf16 %v256
      %v289 = vunpack.c.l.bf16 %v257
      %v290 = vunpack.c.l.bf16 %v258
      %v291 = vunpack.c.l.bf16 %v259
      %v292 = vunpack.c.l.bf16 %v260
      %v293 = vunpack.c.l.bf16 %v261
      %v294 = vunpack.c.l.bf16 %v262
      %v295 = vunpack.c.l.bf16 %v263
      %v296 = vunpack.c.l.bf16 %v264
      %v297 = vunpack.c.l.bf16 %v265
      %v298 = vunpack.c.l.bf16 %v266
      %v299 = vunpack.c.l.bf16 %v267
      %v300 = vunpack.c.l.bf16 %v268
      %v301 = vunpack.c.l.bf16 %v269
      %v302 = vunpack.c.l.bf16 %v270
      %v303 = vunpack.c.l.bf16 %v271
      %v304 = vunpack.c.l.bf16 %v272
      %v305 = vunpack.c.l.bf16 %v273
      %v306 = vunpack.c.l.bf16 %v274
      %v307 = vunpack.c.l.bf16 %v275
      %v308 = vunpack.c.l.bf16 %v276
      %v309 = vunpack.c.l.bf16 %v277
      %v310 = vunpack.c.l.bf16 %v278
      %v311 = vunpack.c.l.bf16 %v279
      %v312 = vunpack.c.l.bf16 %v280
      %v313 = vunpack.c.l.bf16 %v281
      %v314 = vunpack.c.l.bf16 %v282
      %v315 = vmul.f32 %v283, 0.35355338
      %v316 = vmul.f32 %v284, 0.35355338
      %v317 = vmul.f32 %v285, 0.35355338
      %v318 = vmul.f32 %v286, 0.35355338
      %v319 = vmul.f32 %v287, 0.35355338
      %v320 = vmul.f32 %v288, 0.35355338
      %v321 = vmul.f32 %v289, 0.35355338
      %v322 = vmul.f32 %v290, 0.35355338
      %v323 = vmul.f32 %v291, 0.35355338
      %v324 = vmul.f32 %v292, 0.35355338
      %v325 = vmul.f32 %v293, 0.35355338
      %v326 = vmul.f32 %v294, 0.35355338
      %v327 = vmul.f32 %v295, 0.35355338
      %v328 = vmul.f32 %v296, 0.35355338
      %v329 = vmul.f32 %v297, 0.35355338
      %v330 = vmul.f32 %v298, 0.35355338
      %v331 = vmul.f32 %v299, 0.35355338
      %v332 = vmul.f32 %v300, 0.35355338
      %v333 = vmul.f32 %v301, 0.35355338
      %v334 = vmul.f32 %v302, 0.35355338
      %v335 = vmul.f32 %v303, 0.35355338
      %v336 = vmul.f32 %v304, 0.35355338
      %v337 = vmul.f32 %v305, 0.35355338
      %v338 = vmul.f32 %v306, 0.35355338
      %v339 = vmul.f32 %v307, 0.35355338
      %v340 = vmul.f32 %v308, 0.35355338
      %v341 = vmul.f32 %v309, 0.35355338
      %v342 = vmul.f32 %v310, 0.35355338
      %v343 = vmul.f32 %v311, 0.35355338
      %v344 = vmul.f32 %v312, 0.35355338
      %v345 = vmul.f32 %v313, 0.35355338
      %v346 = vmul.f32 %v314, 0.35355338
      %v347 = vpack.c.bf16 %v316, %v315
      %v348 = vpack.c.bf16 %v318, %v317
      %v349 = vpack.c.bf16 %v320, %v319
      %v350 = vpack.c.bf16 %v322, %v321
      %v351 = vld [vmem:[%s234] sm:$0xf]
      %v352 = vld [vmem:[%s234 + $0x4] sm:$0xf]
      %v353 = vld [vmem:[%s234 + $0x8] sm:$0xf]
      %v354 = vld [vmem:[%s234 + $0xc] sm:$0xf]
      %v355 = vld [vmem:[%s234 + $0x10] sm:$0xf]
      %v356 = vld [vmem:[%s234 + $0x14] sm:$0xf]
      %v357 = vld [vmem:[%s234 + $0x18] sm:$0xf]
      %v358 = vld [vmem:[%s234 + $0x1c] sm:$0xf]
      %v359 = vld [vmem:[%s239] sm:$0xf]
      %v360 = vld [vmem:[%s239 + $0x4] sm:$0xf]
      %v361 = vld [vmem:[%s239 + $0x8] sm:$0xf]
      %v362 = vld [vmem:[%s239 + $0xc] sm:$0xf]
      %v363 = vld [vmem:[%s239 + $0x10] sm:$0xf]
      %v364 = vld [vmem:[%s239 + $0x14] sm:$0xf]
      %v365 = vld [vmem:[%s239 + $0x18] sm:$0xf]
      %v366 = vld [vmem:[%s239 + $0x1c] sm:$0xf]
      %v375 = vunpack.c.l.b16 %v351
      %v376 = vunpack.c.l.b16 %v352
      %v377 = vunpack.c.l.b16 %v353
      %v378 = vunpack.c.l.b16 %v354
      %v379 = vunpack.c.l.b16 %v355
      %v380 = vunpack.c.l.b16 %v356
      %v381 = vunpack.c.l.b16 %v357
      %v382 = vunpack.c.l.b16 %v358
      %v383 = vpack.c.b16 %v376, %v375
      %v384 = vpack.c.b16 %v378, %v377
      %v385 = vpack.c.b16 %v380, %v379
      %v386 = vpack.c.b16 %v382, %v381
      %vm387 = vcmask 64512
      %v389 = vsel %vm387, %v347, 0
      %v392 = vsel %vm387, %v348, 0
      %v395 = vsel %vm387, %v349, 0
      %v398 = vsel %vm387, %v350, 0
      %v401 = vsel %vm387, %v383, 0
      %v404 = vsel %vm387, %v384, 0
      %v407 = vsel %vm387, %v385, 0
      %v410 = vsel %vm387, %v386, 0
      %412 = vmatprep.subr.bf16.mxu0 0
      %413 = vmatpush1.bf16.xpose.msra.mxu0 0
      %414 = vmatprep.subr.bf16.mxu0 0
      %415 = vmatpush1.bf16.xpose.msra.mxu0 0
      %416 = vmatprep.subr.bf16.mxu0 0
      %417 = vmatpush1.bf16.xpose.msra.mxu0 0
      %418 = vmatprep.subr.bf16.mxu0 0
      %419 = vmatpush1.bf16.xpose.msra.mxu0 0
      %420 = vmatprep.subr.bf16.mxu0 0
      %421 = vmatpush1.bf16.xpose.msra.mxu0 %v410
      %422 = vmatprep.subr.bf16.mxu0 0
      %423 = vmatpush1.bf16.xpose.msra.mxu0 %v407
      %424 = vmatprep.subr.bf16.mxu0 0
      %425 = vmatpush1.bf16.xpose.msra.mxu0 %v404
      %426 = vmatprep.subr.bf16.mxu0 0
      %427 = vmatpush1.bf16.xpose.msra.mxu0 %v401
      %428 = vmatprep.subr.bf16.mxu0 0
      %429 = vmatpush2.bf16.xpose.msra.mxu0 0
      %430 = vmatprep.subr.bf16.mxu0 0
      %431 = vmatpush2.bf16.xpose.msra.mxu0 0
      %432 = vmatprep.subr.bf16.mxu0 0
      %433 = vmatpush2.bf16.xpose.msra.mxu0 0
      %434 = vmatprep.subr.bf16.mxu0 0
      %435 = vmatpush2.bf16.xpose.msra.mxu0 0
      %436 = vmatprep.subr.bf16.mxu0 0
      %437 = vmatpush2.bf16.xpose.msra.mxu0 0
      %438 = vmatprep.subr.bf16.mxu0 0
      %439 = vmatpush2.bf16.xpose.msra.mxu0 0
      %440 = vmatprep.subr.bf16.mxu0 0
      %441 = vmatpush2.bf16.xpose.msra.mxu0 0
      %442 = vmatprep.subr.bf16.mxu0 0
      %443 = vmatpush2.bf16.xpose.msra.mxu0 0
      %444 = vmatprep.mubr.bf16.mxu0 0
      %445 = vmatmul.mubr.bf16.gmra.mxu0 %v389
      %v446 = vpop.f32.mrf.mxu0
      %v447 = vadd.f32 0.0, %v446
      %v448 = vpop.f32.mrf.mxu0
      %v449 = vpop.f32.mrf.mxu0
      %v450 = vadd.f32 0.0, %v449
      %v451 = vpop.f32.mrf.mxu0
      %452 = vmatprep.mubr.bf16.mxu0 0
      %453 = vmatmul.mubr.bf16.gmra.mxu0 %v392
      %v454 = vpop.f32.mrf.mxu0
      %v455 = vadd.f32 0.0, %v454
      %v456 = vpop.f32.mrf.mxu0
      %v457 = vpop.f32.mrf.mxu0
      %v458 = vadd.f32 0.0, %v457
      %v459 = vpop.f32.mrf.mxu0
      %460 = vmatprep.mubr.bf16.mxu0 0
      %461 = vmatmul.mubr.bf16.gmra.mxu0 %v395
      %v462 = vpop.f32.mrf.mxu0
      %v463 = vadd.f32 0.0, %v462
      %v464 = vpop.f32.mrf.mxu0
      %v465 = vpop.f32.mrf.mxu0
      %v466 = vadd.f32 0.0, %v465
      %v467 = vpop.f32.mrf.mxu0
      %468 = vmatprep.mubr.bf16.mxu0 0
      %469 = vmatmul.mubr.bf16.gmra.mxu0 %v398
      %v470 = vpop.f32.mrf.mxu0
      %v471 = vadd.f32 0.0, %v470
      %v472 = vpop.f32.mrf.mxu0
      %v473 = vpop.f32.mrf.mxu0
      %v474 = vadd.f32 0.0, %v473
      %v475 = vpop.f32.mrf.mxu0
      %476 = vdwg.mxu0
      %vm477 = vcmask 523264
      %v478 = vsel %vm477, %v447, -inf
      %479 = vmax.xlane.f32.xlu0 %v478
      %v480 = vpop.xlane.xlu0 %479
      %v481 = vsel %vm477, %v450, -inf
      %482 = vmax.xlane.f32.xlu0 %v481
      %v483 = vpop.xlane.xlu0 %482
      %v484 = vsel %vm477, %v455, -inf
      %485 = vmax.xlane.f32.xlu0 %v484
      %v486 = vpop.xlane.xlu0 %485
      %v487 = vsel %vm477, %v458, -inf
      %488 = vmax.xlane.f32.xlu0 %v487
      %v489 = vpop.xlane.xlu0 %488
      %v490 = vsel %vm477, %v463, -inf
      %491 = vmax.xlane.f32.xlu0 %v490
      %v492 = vpop.xlane.xlu0 %491
      %v493 = vsel %vm477, %v466, -inf
      %494 = vmax.xlane.f32.xlu0 %v493
      %v495 = vpop.xlane.xlu0 %494
      %v496 = vsel %vm477, %v471, -inf
      %497 = vmax.xlane.f32.xlu0 %v496
      %v498 = vpop.xlane.xlu0 %497
      %v499 = vsel %vm477, %v474, -inf
      %500 = vmax.xlane.f32.xlu0 %v499
      %v501 = vpop.xlane.xlu0 %500
      %v502 = vsub.f32 %v447, %v480
      %v503 = vsub.f32 %v450, %v483
      %v504 = vsub.f32 %v455, %v486
      %v505 = vsub.f32 %v458, %v489
      %v506 = vsub.f32 %v463, %v492
      %v507 = vsub.f32 %v466, %v495
      %v508 = vsub.f32 %v471, %v498
      %v509 = vsub.f32 %v474, %v501
      %v510 = vmul.f32 %v502, 1.442695
      %v511 = vpow.pop %v510
      %v512 = vmul.f32 %v503, 1.442695
      %v513 = vpow.pop %v512
      %v514 = vmul.f32 %v504, 1.442695
      %v515 = vpow.pop %v514
      %v516 = vmul.f32 %v505, 1.442695
      %v517 = vpow.pop %v516
      %v518 = vmul.f32 %v506, 1.442695
      %v519 = vpow.pop %v518
      %v520 = vmul.f32 %v507, 1.442695
      %v521 = vpow.pop %v520
      %v522 = vmul.f32 %v508, 1.442695
      %v523 = vpow.pop %v522
      %v524 = vmul.f32 %v509, 1.442695
      %v525 = vpow.pop %v524
      %v526 = vsel %vm477, %v511, 0.0
      %527 = vadd.xlane.f32.xlu0 %v526
      %v528 = vpop.xlane.xlu0 %527
      %v529 = vsel %vm477, %v513, 0.0
      %530 = vadd.xlane.f32.xlu0 %v529
      %v531 = vpop.xlane.xlu0 %530
      %v532 = vsel %vm477, %v515, 0.0
      %533 = vadd.xlane.f32.xlu0 %v532
      %v534 = vpop.xlane.xlu0 %533
      %v535 = vsel %vm477, %v517, 0.0
      %536 = vadd.xlane.f32.xlu0 %v535
      %v537 = vpop.xlane.xlu0 %536
      %v538 = vsel %vm477, %v519, 0.0
      %539 = vadd.xlane.f32.xlu0 %v538
      %v540 = vpop.xlane.xlu0 %539
      %v541 = vsel %vm477, %v521, 0.0
      %542 = vadd.xlane.f32.xlu0 %v541
      %v543 = vpop.xlane.xlu0 %542
      %v544 = vsel %vm477, %v523, 0.0
      %545 = vadd.xlane.f32.xlu0 %v544
      %v546 = vpop.xlane.xlu0 %545
      %v547 = vsel %vm477, %v525, 0.0
      %548 = vadd.xlane.f32.xlu0 %v547
      %v549 = vpop.xlane.xlu0 %548
      %v550 = vpack.c.bf16 %v513, %v511
      %v551 = vpack.c.bf16 %v517, %v515
      %v552 = vpack.c.bf16 %v521, %v519
      %v553 = vpack.c.bf16 %v525, %v523
      %v562 = vunpack.c.l.b16 %v359
      %v563 = vunpack.c.l.b16 %v360
      %v564 = vunpack.c.l.b16 %v361
      %v565 = vunpack.c.l.b16 %v362
      %v566 = vunpack.c.l.b16 %v363
      %v567 = vunpack.c.l.b16 %v364
      %v568 = vunpack.c.l.b16 %v365
      %v569 = vunpack.c.l.b16 %v366
      %v570 = vpack.c.b16 %v563, %v562
      %v571 = vpack.c.b16 %v565, %v564
      %v572 = vpack.c.b16 %v567, %v566
      %v573 = vpack.c.b16 %v569, %v568
      %v579 = vsel %vm477, %v550, 0
      %v582 = vsel %vm477, %v551, 0
      %v585 = vsel %vm477, %v552, 0
      %v588 = vsel %vm477, %v553, 0
      %590 = vmatprep.subr.bf16.mxu0 0
      %591 = vmatpush1.bf16.msra.mxu0 0
      %592 = vmatprep.subr.bf16.mxu0 0
      %593 = vmatpush1.bf16.msra.mxu0 0
      %594 = vmatprep.subr.bf16.mxu0 0
      %595 = vmatpush1.bf16.msra.mxu0 0
      %596 = vmatprep.subr.bf16.mxu0 0
      %597 = vmatpush1.bf16.msra.mxu0 0
      %598 = vmatprep.subr.bf16.mxu0 0
      %599 = vmatpush1.bf16.msra.mxu0 %v573
      %600 = vmatprep.subr.bf16.mxu0 0
      %601 = vmatpush1.bf16.msra.mxu0 %v572
      %602 = vmatprep.subr.bf16.mxu0 0
      %603 = vmatpush1.bf16.msra.mxu0 %v571
      %604 = vmatprep.subr.bf16.mxu0 0
      %605 = vmatpush1.bf16.msra.mxu0 %v570
      %606 = vmatprep.subr.bf16.mxu0 0
      %607 = vmatpush2.bf16.msra.mxu0 0
      %608 = vmatprep.subr.bf16.mxu0 0
      %609 = vmatpush2.bf16.msra.mxu0 0
      %610 = vmatprep.subr.bf16.mxu0 0
      %611 = vmatpush2.bf16.msra.mxu0 0
      %612 = vmatprep.subr.bf16.mxu0 0
      %613 = vmatpush2.bf16.msra.mxu0 0
      %614 = vmatprep.subr.bf16.mxu0 0
      %615 = vmatpush2.bf16.msra.mxu0 0
      %616 = vmatprep.subr.bf16.mxu0 0
      %617 = vmatpush2.bf16.msra.mxu0 0
      %618 = vmatprep.subr.bf16.mxu0 0
      %619 = vmatpush2.bf16.msra.mxu0 0
      %620 = vmatprep.subr.bf16.mxu0 0
      %621 = vmatpush2.bf16.msra.mxu0 0
      %622 = vmatprep.mubr.bf16.mxu0 0
      %623 = vmatmul.mubr.bf16.gmra.mxu0 %v579
      %v624 = vpop.f32.mrf.mxu0
      %v625 = vadd.f32 0.0, %v624
      %v626 = vpop.f32.mrf.mxu0
      %v627 = vpop.f32.mrf.mxu0
      %v628 = vadd.f32 0.0, %v627
      %v629 = vpop.f32.mrf.mxu0
      %630 = vmatprep.mubr.bf16.mxu0 0
      %631 = vmatmul.mubr.bf16.gmra.mxu0 %v582
      %v632 = vpop.f32.mrf.mxu0
      %v633 = vadd.f32 0.0, %v632
      %v634 = vpop.f32.mrf.mxu0
      %v635 = vpop.f32.mrf.mxu0
      %v636 = vadd.f32 0.0, %v635
      %v637 = vpop.f32.mrf.mxu0
      %638 = vmatprep.mubr.bf16.mxu0 0
      %639 = vmatmul.mubr.bf16.gmra.mxu0 %v585
      %v640 = vpop.f32.mrf.mxu0
      %v641 = vadd.f32 0.0, %v640
      %v642 = vpop.f32.mrf.mxu0
      %v643 = vpop.f32.mrf.mxu0
      %v644 = vadd.f32 0.0, %v643
      %v645 = vpop.f32.mrf.mxu0
      %646 = vmatprep.mubr.bf16.mxu0 0
      %647 = vmatmul.mubr.bf16.gmra.mxu0 %v588
      %v648 = vpop.f32.mrf.mxu0
      %v649 = vadd.f32 0.0, %v648
      %v650 = vpop.f32.mrf.mxu0
      %v651 = vpop.f32.mrf.mxu0
      %v652 = vadd.f32 0.0, %v651
      %v653 = vpop.f32.mrf.mxu0
      %654 = vdwg.mxu0
      %v655 = vrcp.pop %v528
      %v656 = vmul.f32 %v625, %v655
      %v657 = vrcp.pop %v531
      %v658 = vmul.f32 %v628, %v657
      %v659 = vrcp.pop %v534
      %v660 = vmul.f32 %v633, %v659
      %v661 = vrcp.pop %v537
      %v662 = vmul.f32 %v636, %v661
      %v663 = vrcp.pop %v540
      %v664 = vmul.f32 %v641, %v663
      %v665 = vrcp.pop %v543
      %v666 = vmul.f32 %v644, %v665
      %v667 = vrcp.pop %v546
      %v668 = vmul.f32 %v649, %v667
      %v669 = vrcp.pop %v549
      %v670 = vmul.f32 %v652, %v669
      %v671 = vpack.c.bf16 %v658, %v656
      %v672 = vpack.c.bf16 %v662, %v660
      %v673 = vpack.c.bf16 %v666, %v664
      %v674 = vpack.c.bf16 %v670, %v668
      %v679 = vunpack.c.l.b16 %v671
      %v680 = vunpack.c.h.b16 %v671
      %v681 = vunpack.c.l.b16 %v672
      %v682 = vunpack.c.h.b16 %v672
      %v683 = vunpack.c.l.b16 %v673
      %v684 = vunpack.c.h.b16 %v673
      %v685 = vunpack.c.l.b16 %v674
      %v686 = vunpack.c.h.b16 %v674
      %v687 = vpack.c.b16 %v679, %v679
      %v688 = vpack.c.b16 %v680, %v680
      %v689 = vpack.c.b16 %v681, %v681
      %v690 = vpack.c.b16 %v682, %v682
      %v691 = vpack.c.b16 %v683, %v683
      %v692 = vpack.c.b16 %v684, %v684
      %v693 = vpack.c.b16 %v685, %v685
      %v694 = vpack.c.b16 %v686, %v686
      %vm703 = vcmask 60416
      %704 = vst.msk [vmem:[%s248] sm:$0xf] %vm703, %v687
      %705 = vst.msk [vmem:[%s248 + $0x4] sm:$0xf] %vm703, %v688
      %706 = vst.msk [vmem:[%s248 + $0x8] sm:$0xf] %vm703, %v689
      %707 = vst.msk [vmem:[%s248 + $0xc] sm:$0xf] %vm703, %v690
      %708 = vst.msk [vmem:[%s248 + $0x10] sm:$0xf] %vm703, %v691
      %709 = vst.msk [vmem:[%s248 + $0x14] sm:$0xf] %vm703, %v692
      %710 = vst.msk [vmem:[%s248 + $0x18] sm:$0xf] %vm703, %v693
      %711 = vst.msk [vmem:[%s248 + $0x1c] sm:$0xf] %vm703, %v694
      %v712 = vpack.c.bf16 %v324, %v323
      %v713 = vpack.c.bf16 %v326, %v325
      %v714 = vpack.c.bf16 %v328, %v327
      %v715 = vpack.c.bf16 %v330, %v329
      %s716 = scalar_lea.vmem %s234, 32
      %v717 = vld [vmem:[%s716] sm:$0xf]
      %v718 = vld [vmem:[%s716 + $0x4] sm:$0xf]
      %v719 = vld [vmem:[%s716 + $0x8] sm:$0xf]
      %v720 = vld [vmem:[%s716 + $0xc] sm:$0xf]
      %v721 = vld [vmem:[%s716 + $0x10] sm:$0xf]
      %v722 = vld [vmem:[%s716 + $0x14] sm:$0xf]
      %v723 = vld [vmem:[%s716 + $0x18] sm:$0xf]
      %v724 = vld [vmem:[%s716 + $0x1c] sm:$0xf]
      %s725 = scalar_lea.vmem %s239, 32
      %v726 = vld [vmem:[%s725] sm:$0xf]
      %v727 = vld [vmem:[%s725 + $0x4] sm:$0xf]
      %v728 = vld [vmem:[%s725 + $0x8] sm:$0xf]
      %v729 = vld [vmem:[%s725 + $0xc] sm:$0xf]
      %v730 = vld [vmem:[%s725 + $0x10] sm:$0xf]
      %v731 = vld [vmem:[%s725 + $0x14] sm:$0xf]
      %v732 = vld [vmem:[%s725 + $0x18] sm:$0xf]
      %v733 = vld [vmem:[%s725 + $0x1c] sm:$0xf]
      %v742 = vunpack.c.l.b16 %v717
      %v743 = vunpack.c.l.b16 %v718
      %v744 = vunpack.c.l.b16 %v719
      %v745 = vunpack.c.l.b16 %v720
      %v746 = vunpack.c.l.b16 %v721
      %v747 = vunpack.c.l.b16 %v722
      %v748 = vunpack.c.l.b16 %v723
      %v749 = vunpack.c.l.b16 %v724
      %v750 = vpack.c.b16 %v743, %v742
      %v751 = vpack.c.b16 %v745, %v744
      %v752 = vpack.c.b16 %v747, %v746
      %v753 = vpack.c.b16 %v749, %v748
      %v755 = vsel %vm387, %v712, 0
      %v758 = vsel %vm387, %v713, 0
      %v761 = vsel %vm387, %v714, 0
      %v764 = vsel %vm387, %v715, 0
      %v767 = vsel %vm387, %v750, 0
      %v770 = vsel %vm387, %v751, 0
      %v773 = vsel %vm387, %v752, 0
      %v776 = vsel %vm387, %v753, 0
      %778 = vmatprep.subr.bf16.mxu0 0
      %779 = vmatpush1.bf16.xpose.msra.mxu0 0
      %780 = vmatprep.subr.bf16.mxu0 0
      %781 = vmatpush1.bf16.xpose.msra.mxu0 0
      %782 = vmatprep.subr.bf16.mxu0 0
      %783 = vmatpush1.bf16.xpose.msra.mxu0 0
      %784 = vmatprep.subr.bf16.mxu0 0
      %785 = vmatpush1.bf16.xpose.msra.mxu0 0
      %786 = vmatprep.subr.bf16.mxu0 0
      %787 = vmatpush1.bf16.xpose.msra.mxu0 %v776
      %788 = vmatprep.subr.bf16.mxu0 0
      %789 = vmatpush1.bf16.xpose.msra.mxu0 %v773
      %790 = vmatprep.subr.bf16.mxu0 0
      %791 = vmatpush1.bf16.xpose.msra.mxu0 %v770
      %792 = vmatprep.subr.bf16.mxu0 0
      %793 = vmatpush1.bf16.xpose.msra.mxu0 %v767
      %794 = vmatprep.subr.bf16.mxu0 0
      %795 = vmatpush2.bf16.xpose.msra.mxu0 0
      %796 = vmatprep.subr.bf16.mxu0 0
      %797 = vmatpush2.bf16.xpose.msra.mxu0 0
      %798 = vmatprep.subr.bf16.mxu0 0
      %799 = vmatpush2.bf16.xpose.msra.mxu0 0
      %800 = vmatprep.subr.bf16.mxu0 0
      %801 = vmatpush2.bf16.xpose.msra.mxu0 0
      %802 = vmatprep.subr.bf16.mxu0 0
      %803 = vmatpush2.bf16.xpose.msra.mxu0 0
      %804 = vmatprep.subr.bf16.mxu0 0
      %805 = vmatpush2.bf16.xpose.msra.mxu0 0
      %806 = vmatprep.subr.bf16.mxu0 0
      %807 = vmatpush2.bf16.xpose.msra.mxu0 0
      %808 = vmatprep.subr.bf16.mxu0 0
      %809 = vmatpush2.bf16.xpose.msra.mxu0 0
      %810 = vmatprep.mubr.bf16.mxu0 0
      %811 = vmatmul.mubr.bf16.gmra.mxu0 %v755
      %v812 = vpop.f32.mrf.mxu0
      %v813 = vadd.f32 0.0, %v812
      %v814 = vpop.f32.mrf.mxu0
      %v815 = vpop.f32.mrf.mxu0
      %v816 = vadd.f32 0.0, %v815
      %v817 = vpop.f32.mrf.mxu0
      %818 = vmatprep.mubr.bf16.mxu0 0
      %819 = vmatmul.mubr.bf16.gmra.mxu0 %v758
      %v820 = vpop.f32.mrf.mxu0
      %v821 = vadd.f32 0.0, %v820
      %v822 = vpop.f32.mrf.mxu0
      %v823 = vpop.f32.mrf.mxu0
      %v824 = vadd.f32 0.0, %v823
      %v825 = vpop.f32.mrf.mxu0
      %826 = vmatprep.mubr.bf16.mxu0 0
      %827 = vmatmul.mubr.bf16.gmra.mxu0 %v761
      %v828 = vpop.f32.mrf.mxu0
      %v829 = vadd.f32 0.0, %v828
      %v830 = vpop.f32.mrf.mxu0
      %v831 = vpop.f32.mrf.mxu0
      %v832 = vadd.f32 0.0, %v831
      %v833 = vpop.f32.mrf.mxu0
      %834 = vmatprep.mubr.bf16.mxu0 0
      %835 = vmatmul.mubr.bf16.gmra.mxu0 %v764
      %v836 = vpop.f32.mrf.mxu0
      %v837 = vadd.f32 0.0, %v836
      %v838 = vpop.f32.mrf.mxu0
      %v839 = vpop.f32.mrf.mxu0
      %v840 = vadd.f32 0.0, %v839
      %v841 = vpop.f32.mrf.mxu0
      %842 = vdwg.mxu0
      %v843 = vsel %vm477, %v813, -inf
      %844 = vmax.xlane.f32.xlu0 %v843
      %v845 = vpop.xlane.xlu0 %844
      %v846 = vsel %vm477, %v816, -inf
      %847 = vmax.xlane.f32.xlu0 %v846
      %v848 = vpop.xlane.xlu0 %847
      %v849 = vsel %vm477, %v821, -inf
      %850 = vmax.xlane.f32.xlu0 %v849
      %v851 = vpop.xlane.xlu0 %850
      %v852 = vsel %vm477, %v824, -inf
      %853 = vmax.xlane.f32.xlu0 %v852
      %v854 = vpop.xlane.xlu0 %853
      %v855 = vsel %vm477, %v829, -inf
      %856 = vmax.xlane.f32.xlu0 %v855
      %v857 = vpop.xlane.xlu0 %856
      %v858 = vsel %vm477, %v832, -inf
      %859 = vmax.xlane.f32.xlu0 %v858
      %v860 = vpop.xlane.xlu0 %859
      %v861 = vsel %vm477, %v837, -inf
      %862 = vmax.xlane.f32.xlu0 %v861
      %v863 = vpop.xlane.xlu0 %862
      %v864 = vsel %vm477, %v840, -inf
      %865 = vmax.xlane.f32.xlu0 %v864
      %v866 = vpop.xlane.xlu0 %865
      %v867 = vsub.f32 %v813, %v845
      %v868 = vsub.f32 %v816, %v848
      %v869 = vsub.f32 %v821, %v851
      %v870 = vsub.f32 %v824, %v854
      %v871 = vsub.f32 %v829, %v857
      %v872 = vsub.f32 %v832, %v860
      %v873 = vsub.f32 %v837, %v863
      %v874 = vsub.f32 %v840, %v866
      %v875 = vmul.f32 %v867, 1.442695
      %v876 = vpow.pop %v875
      %v877 = vmul.f32 %v868, 1.442695
      %v878 = vpow.pop %v877
      %v879 = vmul.f32 %v869, 1.442695
      %v880 = vpow.pop %v879
      %v881 = vmul.f32 %v870, 1.442695
      %v882 = vpow.pop %v881
      %v883 = vmul.f32 %v871, 1.442695
      %v884 = vpow.pop %v883
      %v885 = vmul.f32 %v872, 1.442695
      %v886 = vpow.pop %v885
      %v887 = vmul.f32 %v873, 1.442695
      %v888 = vpow.pop %v887
      %v889 = vmul.f32 %v874, 1.442695
      %v890 = vpow.pop %v889
      %v891 = vsel %vm477, %v876, 0.0
      %892 = vadd.xlane.f32.xlu0 %v891
      %v893 = vpop.xlane.xlu0 %892
      %v894 = vsel %vm477, %v878, 0.0
      %895 = vadd.xlane.f32.xlu0 %v894
      %v896 = vpop.xlane.xlu0 %895
      %v897 = vsel %vm477, %v880, 0.0
      %898 = vadd.xlane.f32.xlu0 %v897
      %v899 = vpop.xlane.xlu0 %898
      %v900 = vsel %vm477, %v882, 0.0
      %901 = vadd.xlane.f32.xlu0 %v900
      %v902 = vpop.xlane.xlu0 %901
      %v903 = vsel %vm477, %v884, 0.0
      %904 = vadd.xlane.f32.xlu0 %v903
      %v905 = vpop.xlane.xlu0 %904
      %v906 = vsel %vm477, %v886, 0.0
      %907 = vadd.xlane.f32.xlu0 %v906
      %v908 = vpop.xlane.xlu0 %907
      %v909 = vsel %vm477, %v888, 0.0
      %910 = vadd.xlane.f32.xlu0 %v909
      %v911 = vpop.xlane.xlu0 %910
      %v912 = vsel %vm477, %v890, 0.0
      %913 = vadd.xlane.f32.xlu0 %v912
      %v914 = vpop.xlane.xlu0 %913
      %v915 = vpack.c.bf16 %v878, %v876
      %v916 = vpack.c.bf16 %v882, %v880
      %v917 = vpack.c.bf16 %v886, %v884
      %v918 = vpack.c.bf16 %v890, %v888
      %v927 = vunpack.c.l.b16 %v726
      %v928 = vunpack.c.l.b16 %v727
      %v929 = vunpack.c.l.b16 %v728
      %v930 = vunpack.c.l.b16 %v729
      %v931 = vunpack.c.l.b16 %v730
      %v932 = vunpack.c.l.b16 %v731
      %v933 = vunpack.c.l.b16 %v732
      %v934 = vunpack.c.l.b16 %v733
      %v935 = vpack.c.b16 %v928, %v927
      %v936 = vpack.c.b16 %v930, %v929
      %v937 = vpack.c.b16 %v932, %v931
      %v938 = vpack.c.b16 %v934, %v933
      %v944 = vsel %vm477, %v915, 0
      %v947 = vsel %vm477, %v916, 0
      %v950 = vsel %vm477, %v917, 0
      %v953 = vsel %vm477, %v918, 0
      %955 = vmatprep.subr.bf16.mxu0 0
      %956 = vmatpush1.bf16.msra.mxu0 0
      %957 = vmatprep.subr.bf16.mxu0 0
      %958 = vmatpush1.bf16.msra.mxu0 0
      %959 = vmatprep.subr.bf16.mxu0 0
      %960 = vmatpush1.bf16.msra.mxu0 0
      %961 = vmatprep.subr.bf16.mxu0 0
      %962 = vmatpush1.bf16.msra.mxu0 0
      %963 = vmatprep.subr.bf16.mxu0 0
      %964 = vmatpush1.bf16.msra.mxu0 %v938
      %965 = vmatprep.subr.bf16.mxu0 0
      %966 = vmatpush1.bf16.msra.mxu0 %v937
      %967 = vmatprep.subr.bf16.mxu0 0
      %968 = vmatpush1.bf16.msra.mxu0 %v936
      %969 = vmatprep.subr.bf16.mxu0 0
      %970 = vmatpush1.bf16.msra.mxu0 %v935
      %971 = vmatprep.subr.bf16.mxu0 0
      %972 = vmatpush2.bf16.msra.mxu0 0
      %973 = vmatprep.subr.bf16.mxu0 0
      %974 = vmatpush2.bf16.msra.mxu0 0
      %975 = vmatprep.subr.bf16.mxu0 0
      %976 = vmatpush2.bf16.msra.mxu0 0
      %977 = vmatprep.subr.bf16.mxu0 0
      %978 = vmatpush2.bf16.msra.mxu0 0
      %979 = vmatprep.subr.bf16.mxu0 0
      %980 = vmatpush2.bf16.msra.mxu0 0
      %981 = vmatprep.subr.bf16.mxu0 0
      %982 = vmatpush2.bf16.msra.mxu0 0
      %983 = vmatprep.subr.bf16.mxu0 0
      %984 = vmatpush2.bf16.msra.mxu0 0
      %985 = vmatprep.subr.bf16.mxu0 0
      %986 = vmatpush2.bf16.msra.mxu0 0
      %987 = vmatprep.mubr.bf16.mxu0 0
      %988 = vmatmul.mubr.bf16.gmra.mxu0 %v944
      %v989 = vpop.f32.mrf.mxu0
      %v990 = vadd.f32 0.0, %v989
      %v991 = vpop.f32.mrf.mxu0
      %v992 = vpop.f32.mrf.mxu0
      %v993 = vadd.f32 0.0, %v992
      %v994 = vpop.f32.mrf.mxu0
      %995 = vmatprep.mubr.bf16.mxu0 0
      %996 = vmatmul.mubr.bf16.gmra.mxu0 %v947
      %v997 = vpop.f32.mrf.mxu0
      %v998 = vadd.f32 0.0, %v997
      %v999 = vpop.f32.mrf.mxu0
      %v1000 = vpop.f32.mrf.mxu0
      %v1001 = vadd.f32 0.0, %v1000
      %v1002 = vpop.f32.mrf.mxu0
      %1003 = vmatprep.mubr.bf16.mxu0 0
      %1004 = vmatmul.mubr.bf16.gmra.mxu0 %v950
      %v1005 = vpop.f32.mrf.mxu0
      %v1006 = vadd.f32 0.0, %v1005
      %v1007 = vpop.f32.mrf.mxu0
      %v1008 = vpop.f32.mrf.mxu0
      %v1009 = vadd.f32 0.0, %v1008
      %v1010 = vpop.f32.mrf.mxu0
      %1011 = vmatprep.mubr.bf16.mxu0 0
      %1012 = vmatmul.mubr.bf16.gmra.mxu0 %v953
      %v1013 = vpop.f32.mrf.mxu0
      %v1014 = vadd.f32 0.0, %v1013
      %v1015 = vpop.f32.mrf.mxu0
      %v1016 = vpop.f32.mrf.mxu0
      %v1017 = vadd.f32 0.0, %v1016
      %v1018 = vpop.f32.mrf.mxu0
      %1019 = vdwg.mxu0
      %v1020 = vrcp.pop %v893
      %v1021 = vmul.f32 %v990, %v1020
      %v1022 = vrcp.pop %v896
      %v1023 = vmul.f32 %v993, %v1022
      %v1024 = vrcp.pop %v899
      %v1025 = vmul.f32 %v998, %v1024
      %v1026 = vrcp.pop %v902
      %v1027 = vmul.f32 %v1001, %v1026
      %v1028 = vrcp.pop %v905
      %v1029 = vmul.f32 %v1006, %v1028
      %v1030 = vrcp.pop %v908
      %v1031 = vmul.f32 %v1009, %v1030
      %v1032 = vrcp.pop %v911
      %v1033 = vmul.f32 %v1014, %v1032
      %v1034 = vrcp.pop %v914
      %v1035 = vmul.f32 %v1017, %v1034
      %v1036 = vpack.c.bf16 %v1023, %v1021
      %v1037 = vpack.c.bf16 %v1027, %v1025
      %v1038 = vpack.c.bf16 %v1031, %v1029
      %v1039 = vpack.c.bf16 %v1035, %v1033
      %v1044 = vunpack.c.l.b16 %v1036
      %v1045 = vunpack.c.h.b16 %v1036
      %v1046 = vunpack.c.l.b16 %v1037
      %v1047 = vunpack.c.h.b16 %v1037
      %v1048 = vunpack.c.l.b16 %v1038
      %v1049 = vunpack.c.h.b16 %v1038
      %v1050 = vunpack.c.l.b16 %v1039
      %v1051 = vunpack.c.h.b16 %v1039
      %v1052 = vpack.c.b16 %v1044, %v1044
      %v1053 = vpack.c.b16 %v1045, %v1045
      %v1054 = vpack.c.b16 %v1046, %v1046
      %v1055 = vpack.c.b16 %v1047, %v1047
      %v1056 = vpack.c.b16 %v1048, %v1048
      %v1057 = vpack.c.b16 %v1049, %v1049
      %v1058 = vpack.c.b16 %v1050, %v1050
      %v1059 = vpack.c.b16 %v1051, %v1051
      %1060 = vrot.lane.b32.xlu0 %v1052, 8
      %v1061 = vpop.permute.xlu0 %1060
      %1062 = vrot.lane.b32.xlu0 %v1053, 8
      %v1063 = vpop.permute.xlu0 %1062
      %1064 = vrot.lane.b32.xlu0 %v1054, 8
      %v1065 = vpop.permute.xlu0 %1064
      %1066 = vrot.lane.b32.xlu0 %v1055, 8
      %v1067 = vpop.permute.xlu0 %1066
      %1068 = vrot.lane.b32.xlu0 %v1056, 8
      %v1069 = vpop.permute.xlu0 %1068
      %1070 = vrot.lane.b32.xlu0 %v1057, 8
      %v1071 = vpop.permute.xlu0 %1070
      %1072 = vrot.lane.b32.xlu0 %v1058, 8
      %v1073 = vpop.permute.xlu0 %1072
      %1074 = vrot.lane.b32.xlu0 %v1059, 8
      %v1075 = vpop.permute.xlu0 %1074
      %vm1084 = vcmask 126016
      %1085 = vst.msk [vmem:[%s248] sm:$0xf] %vm1084, %v1061
      %1086 = vst.msk [vmem:[%s248 + $0x4] sm:$0xf] %vm1084, %v1063
      %1087 = vst.msk [vmem:[%s248 + $0x8] sm:$0xf] %vm1084, %v1065
      %1088 = vst.msk [vmem:[%s248 + $0xc] sm:$0xf] %vm1084, %v1067
      %1089 = vst.msk [vmem:[%s248 + $0x10] sm:$0xf] %vm1084, %v1069
      %1090 = vst.msk [vmem:[%s248 + $0x14] sm:$0xf] %vm1084, %v1071
      %1091 = vst.msk [vmem:[%s248 + $0x18] sm:$0xf] %vm1084, %v1073
      %1092 = vst.msk [vmem:[%s248 + $0x1c] sm:$0xf] %vm1084, %v1075
      %v1093 = vpack.c.bf16 %v332, %v331
      %v1094 = vpack.c.bf16 %v334, %v333
      %v1095 = vpack.c.bf16 %v336, %v335
      %v1096 = vpack.c.bf16 %v338, %v337
      %s1097 = scalar_lea.vmem %s234, 64
      %v1098 = vld [vmem:[%s1097] sm:$0xf]
      %v1099 = vld [vmem:[%s1097 + $0x4] sm:$0xf]
      %v1100 = vld [vmem:[%s1097 + $0x8] sm:$0xf]
      %v1101 = vld [vmem:[%s1097 + $0xc] sm:$0xf]
      %v1102 = vld [vmem:[%s1097 + $0x10] sm:$0xf]
      %v1103 = vld [vmem:[%s1097 + $0x14] sm:$0xf]
      %v1104 = vld [vmem:[%s1097 + $0x18] sm:$0xf]
      %v1105 = vld [vmem:[%s1097 + $0x1c] sm:$0xf]
      %s1106 = scalar_lea.vmem %s239, 64
      %v1107 = vld [vmem:[%s1106] sm:$0xf]
      %v1108 = vld [vmem:[%s1106 + $0x4] sm:$0xf]
      %v1109 = vld [vmem:[%s1106 + $0x8] sm:$0xf]
      %v1110 = vld [vmem:[%s1106 + $0xc] sm:$0xf]
      %v1111 = vld [vmem:[%s1106 + $0x10] sm:$0xf]
      %v1112 = vld [vmem:[%s1106 + $0x14] sm:$0xf]
      %v1113 = vld [vmem:[%s1106 + $0x18] sm:$0xf]
      %v1114 = vld [vmem:[%s1106 + $0x1c] sm:$0xf]
      %v1123 = vunpack.c.l.b16 %v1098
      %v1124 = vunpack.c.l.b16 %v1099
      %v1125 = vunpack.c.l.b16 %v1100
      %v1126 = vunpack.c.l.b16 %v1101
      %v1127 = vunpack.c.l.b16 %v1102
      %v1128 = vunpack.c.l.b16 %v1103
      %v1129 = vunpack.c.l.b16 %v1104
      %v1130 = vunpack.c.l.b16 %v1105
      %v1131 = vpack.c.b16 %v1124, %v1123
      %v1132 = vpack.c.b16 %v1126, %v1125
      %v1133 = vpack.c.b16 %v1128, %v1127
      %v1134 = vpack.c.b16 %v1130, %v1129
      %v1136 = vsel %vm387, %v1093, 0
      %v1139 = vsel %vm387, %v1094, 0
      %v1142 = vsel %vm387, %v1095, 0
      %v1145 = vsel %vm387, %v1096, 0
      %v1148 = vsel %vm387, %v1131, 0
      %v1151 = vsel %vm387, %v1132, 0
      %v1154 = vsel %vm387, %v1133, 0
      %v1157 = vsel %vm387, %v1134, 0
      %1159 = vmatprep.subr.bf16.mxu0 0
      %1160 = vmatpush1.bf16.xpose.msra.mxu0 0
      %1161 = vmatprep.subr.bf16.mxu0 0
      %1162 = vmatpush1.bf16.xpose.msra.mxu0 0
      %1163 = vmatprep.subr.bf16.mxu0 0
      %1164 = vmatpush1.bf16.xpose.msra.mxu0 0
      %1165 = vmatprep.subr.bf16.mxu0 0
      %1166 = vmatpush1.bf16.xpose.msra.mxu0 0
      %1167 = vmatprep.subr.bf16.mxu0 0
      %1168 = vmatpush1.bf16.xpose.msra.mxu0 %v1157
      %1169 = vmatprep.subr.bf16.mxu0 0
      %1170 = vmatpush1.bf16.xpose.msra.mxu0 %v1154
      %1171 = vmatprep.subr.bf16.mxu0 0
      %1172 = vmatpush1.bf16.xpose.msra.mxu0 %v1151
      %1173 = vmatprep.subr.bf16.mxu0 0
      %1174 = vmatpush1.bf16.xpose.msra.mxu0 %v1148
      %1175 = vmatprep.subr.bf16.mxu0 0
      %1176 = vmatpush2.bf16.xpose.msra.mxu0 0
      %1177 = vmatprep.subr.bf16.mxu0 0
      %1178 = vmatpush2.bf16.xpose.msra.mxu0 0
      %1179 = vmatprep.subr.bf16.mxu0 0
      %1180 = vmatpush2.bf16.xpose.msra.mxu0 0
      %1181 = vmatprep.subr.bf16.mxu0 0
      %1182 = vmatpush2.bf16.xpose.msra.mxu0 0
      %1183 = vmatprep.subr.bf16.mxu0 0
      %1184 = vmatpush2.bf16.xpose.msra.mxu0 0
      %1185 = vmatprep.subr.bf16.mxu0 0
      %1186 = vmatpush2.bf16.xpose.msra.mxu0 0
      %1187 = vmatprep.subr.bf16.mxu0 0
      %1188 = vmatpush2.bf16.xpose.msra.mxu0 0
      %1189 = vmatprep.subr.bf16.mxu0 0
      %1190 = vmatpush2.bf16.xpose.msra.mxu0 0
      %1191 = vmatprep.mubr.bf16.mxu0 0
      %1192 = vmatmul.mubr.bf16.gmra.mxu0 %v1136
      %v1193 = vpop.f32.mrf.mxu0
      %v1194 = vadd.f32 0.0, %v1193
      %v1195 = vpop.f32.mrf.mxu0
      %v1196 = vpop.f32.mrf.mxu0
      %v1197 = vadd.f32 0.0, %v1196
      %v1198 = vpop.f32.mrf.mxu0
      %1199 = vmatprep.mubr.bf16.mxu0 0
      %1200 = vmatmul.mubr.bf16.gmra.mxu0 %v1139
      %v1201 = vpop.f32.mrf.mxu0
      %v1202 = vadd.f32 0.0, %v1201
      %v1203 = vpop.f32.mrf.mxu0
      %v1204 = vpop.f32.mrf.mxu0
      %v1205 = vadd.f32 0.0, %v1204
      %v1206 = vpop.f32.mrf.mxu0
      %1207 = vmatprep.mubr.bf16.mxu0 0
      %1208 = vmatmul.mubr.bf16.gmra.mxu0 %v1142
      %v1209 = vpop.f32.mrf.mxu0
      %v1210 = vadd.f32 0.0, %v1209
      %v1211 = vpop.f32.mrf.mxu0
      %v1212 = vpop.f32.mrf.mxu0
      %v1213 = vadd.f32 0.0, %v1212
      %v1214 = vpop.f32.mrf.mxu0
      %1215 = vmatprep.mubr.bf16.mxu0 0
      %1216 = vmatmul.mubr.bf16.gmra.mxu0 %v1145
      %v1217 = vpop.f32.mrf.mxu0
      %v1218 = vadd.f32 0.0, %v1217
      %v1219 = vpop.f32.mrf.mxu0
      %v1220 = vpop.f32.mrf.mxu0
      %v1221 = vadd.f32 0.0, %v1220
      %v1222 = vpop.f32.mrf.mxu0
      %1223 = vdwg.mxu0
      %v1224 = vsel %vm477, %v1194, -inf
      %1225 = vmax.xlane.f32.xlu0 %v1224
      %v1226 = vpop.xlane.xlu0 %1225
      %v1227 = vsel %vm477, %v1197, -inf
      %1228 = vmax.xlane.f32.xlu0 %v1227
      %v1229 = vpop.xlane.xlu0 %1228
      %v1230 = vsel %vm477, %v1202, -inf
      %1231 = vmax.xlane.f32.xlu0 %v1230
      %v1232 = vpop.xlane.xlu0 %1231
      %v1233 = vsel %vm477, %v1205, -inf
      %1234 = vmax.xlane.f32.xlu0 %v1233
      %v1235 = vpop.xlane.xlu0 %1234
      %v1236 = vsel %vm477, %v1210, -inf
      %1237 = vmax.xlane.f32.xlu0 %v1236
      %v1238 = vpop.xlane.xlu0 %1237
      %v1239 = vsel %vm477, %v1213, -inf
      %1240 = vmax.xlane.f32.xlu0 %v1239
      %v1241 = vpop.xlane.xlu0 %1240
      %v1242 = vsel %vm477, %v1218, -inf
      %1243 = vmax.xlane.f32.xlu0 %v1242
      %v1244 = vpop.xlane.xlu0 %1243
      %v1245 = vsel %vm477, %v1221, -inf
      %1246 = vmax.xlane.f32.xlu0 %v1245
      %v1247 = vpop.xlane.xlu0 %1246
      %v1248 = vsub.f32 %v1194, %v1226
      %v1249 = vsub.f32 %v1197, %v1229
      %v1250 = vsub.f32 %v1202, %v1232
      %v1251 = vsub.f32 %v1205, %v1235
      %v1252 = vsub.f32 %v1210, %v1238
      %v1253 = vsub.f32 %v1213, %v1241
      %v1254 = vsub.f32 %v1218, %v1244
      %v1255 = vsub.f32 %v1221, %v1247
      %v1256 = vmul.f32 %v1248, 1.442695
      %v1257 = vpow.pop %v1256
      %v1258 = vmul.f32 %v1249, 1.442695
      %v1259 = vpow.pop %v1258
      %v1260 = vmul.f32 %v1250, 1.442695
      %v1261 = vpow.pop %v1260
      %v1262 = vmul.f32 %v1251, 1.442695
      %v1263 = vpow.pop %v1262
      %v1264 = vmul.f32 %v1252, 1.442695
      %v1265 = vpow.pop %v1264
      %v1266 = vmul.f32 %v1253, 1.442695
      %v1267 = vpow.pop %v1266
      %v1268 = vmul.f32 %v1254, 1.442695
      %v1269 = vpow.pop %v1268
      %v1270 = vmul.f32 %v1255, 1.442695
      %v1271 = vpow.pop %v1270
      %v1272 = vsel %vm477, %v1257, 0.0
      %1273 = vadd.xlane.f32.xlu0 %v1272
      %v1274 = vpop.xlane.xlu0 %1273
      %v1275 = vsel %vm477, %v1259, 0.0
      %1276 = vadd.xlane.f32.xlu0 %v1275
      %v1277 = vpop.xlane.xlu0 %1276
      %v1278 = vsel %vm477, %v1261, 0.0
      %1279 = vadd.xlane.f32.xlu0 %v1278
      %v1280 = vpop.xlane.xlu0 %1279
      %v1281 = vsel %vm477, %v1263, 0.0
      %1282 = vadd.xlane.f32.xlu0 %v1281
      %v1283 = vpop.xlane.xlu0 %1282
      %v1284 = vsel %vm477, %v1265, 0.0
      %1285 = vadd.xlane.f32.xlu0 %v1284
      %v1286 = vpop.xlane.xlu0 %1285
      %v1287 = vsel %vm477, %v1267, 0.0
      %1288 = vadd.xlane.f32.xlu0 %v1287
      %v1289 = vpop.xlane.xlu0 %1288
      %v1290 = vsel %vm477, %v1269, 0.0
      %1291 = vadd.xlane.f32.xlu0 %v1290
      %v1292 = vpop.xlane.xlu0 %1291
      %v1293 = vsel %vm477, %v1271, 0.0
      %1294 = vadd.xlane.f32.xlu0 %v1293
      %v1295 = vpop.xlane.xlu0 %1294
      %v1296 = vpack.c.bf16 %v1259, %v1257
      %v1297 = vpack.c.bf16 %v1263, %v1261
      %v1298 = vpack.c.bf16 %v1267, %v1265
      %v1299 = vpack.c.bf16 %v1271, %v1269
      %v1308 = vunpack.c.l.b16 %v1107
      %v1309 = vunpack.c.l.b16 %v1108
      %v1310 = vunpack.c.l.b16 %v1109
      %v1311 = vunpack.c.l.b16 %v1110
      %v1312 = vunpack.c.l.b16 %v1111
      %v1313 = vunpack.c.l.b16 %v1112
      %v1314 = vunpack.c.l.b16 %v1113
      %v1315 = vunpack.c.l.b16 %v1114
      %v1316 = vpack.c.b16 %v1309, %v1308
      %v1317 = vpack.c.b16 %v1311, %v1310
      %v1318 = vpack.c.b16 %v1313, %v1312
      %v1319 = vpack.c.b16 %v1315, %v1314
      %v1325 = vsel %vm477, %v1296, 0
      %v1328 = vsel %vm477, %v1297, 0
      %v1331 = vsel %vm477, %v1298, 0
      %v1334 = vsel %vm477, %v1299, 0
      %1336 = vmatprep.subr.bf16.mxu0 0
      %1337 = vmatpush1.bf16.msra.mxu0 0
      %1338 = vmatprep.subr.bf16.mxu0 0
      %1339 = vmatpush1.bf16.msra.mxu0 0
      %1340 = vmatprep.subr.bf16.mxu0 0
      %1341 = vmatpush1.bf16.msra.mxu0 0
      %1342 = vmatprep.subr.bf16.mxu0 0
      %1343 = vmatpush1.bf16.msra.mxu0 0
      %1344 = vmatprep.subr.bf16.mxu0 0
      %1345 = vmatpush1.bf16.msra.mxu0 %v1319
      %1346 = vmatprep.subr.bf16.mxu0 0
      %1347 = vmatpush1.bf16.msra.mxu0 %v1318
      %1348 = vmatprep.subr.bf16.mxu0 0
      %1349 = vmatpush1.bf16.msra.mxu0 %v1317
      %1350 = vmatprep.subr.bf16.mxu0 0
      %1351 = vmatpush1.bf16.msra.mxu0 %v1316
      %1352 = vmatprep.subr.bf16.mxu0 0
      %1353 = vmatpush2.bf16.msra.mxu0 0
      %1354 = vmatprep.subr.bf16.mxu0 0
      %1355 = vmatpush2.bf16.msra.mxu0 0
      %1356 = vmatprep.subr.bf16.mxu0 0
      %1357 = vmatpush2.bf16.msra.mxu0 0
      %1358 = vmatprep.subr.bf16.mxu0 0
      %1359 = vmatpush2.bf16.msra.mxu0 0
      %1360 = vmatprep.subr.bf16.mxu0 0
      %1361 = vmatpush2.bf16.msra.mxu0 0
      %1362 = vmatprep.subr.bf16.mxu0 0
      %1363 = vmatpush2.bf16.msra.mxu0 0
      %1364 = vmatprep.subr.bf16.mxu0 0
      %1365 = vmatpush2.bf16.msra.mxu0 0
      %1366 = vmatprep.subr.bf16.mxu0 0
      %1367 = vmatpush2.bf16.msra.mxu0 0
      %1368 = vmatprep.mubr.bf16.mxu0 0
      %1369 = vmatmul.mubr.bf16.gmra.mxu0 %v1325
      %v1370 = vpop.f32.mrf.mxu0
      %v1371 = vadd.f32 0.0, %v1370
      %v1372 = vpop.f32.mrf.mxu0
      %v1373 = vpop.f32.mrf.mxu0
      %v1374 = vadd.f32 0.0, %v1373
      %v1375 = vpop.f32.mrf.mxu0
      %1376 = vmatprep.mubr.bf16.mxu0 0
      %1377 = vmatmul.mubr.bf16.gmra.mxu0 %v1328
      %v1378 = vpop.f32.mrf.mxu0
      %v1379 = vadd.f32 0.0, %v1378
      %v1380 = vpop.f32.mrf.mxu0
      %v1381 = vpop.f32.mrf.mxu0
      %v1382 = vadd.f32 0.0, %v1381
      %v1383 = vpop.f32.mrf.mxu0
      %1384 = vmatprep.mubr.bf16.mxu0 0
      %1385 = vmatmul.mubr.bf16.gmra.mxu0 %v1331
      %v1386 = vpop.f32.mrf.mxu0
      %v1387 = vadd.f32 0.0, %v1386
      %v1388 = vpop.f32.mrf.mxu0
      %v1389 = vpop.f32.mrf.mxu0
      %v1390 = vadd.f32 0.0, %v1389
      %v1391 = vpop.f32.mrf.mxu0
      %1392 = vmatprep.mubr.bf16.mxu0 0
      %1393 = vmatmul.mubr.bf16.gmra.mxu0 %v1334
      %v1394 = vpop.f32.mrf.mxu0
      %v1395 = vadd.f32 0.0, %v1394
      %v1396 = vpop.f32.mrf.mxu0
      %v1397 = vpop.f32.mrf.mxu0
      %v1398 = vadd.f32 0.0, %v1397
      %v1399 = vpop.f32.mrf.mxu0
      %1400 = vdwg.mxu0
      %v1401 = vrcp.pop %v1274
      %v1402 = vmul.f32 %v1371, %v1401
      %v1403 = vrcp.pop %v1277
      %v1404 = vmul.f32 %v1374, %v1403
      %v1405 = vrcp.pop %v1280
      %v1406 = vmul.f32 %v1379, %v1405
      %v1407 = vrcp.pop %v1283
      %v1408 = vmul.f32 %v1382, %v1407
      %v1409 = vrcp.pop %v1286
      %v1410 = vmul.f32 %v1387, %v1409
      %v1411 = vrcp.pop %v1289
      %v1412 = vmul.f32 %v1390, %v1411
      %v1413 = vrcp.pop %v1292
      %v1414 = vmul.f32 %v1395, %v1413
      %v1415 = vrcp.pop %v1295
      %v1416 = vmul.f32 %v1398, %v1415
      %v1417 = vpack.c.bf16 %v1404, %v1402
      %v1418 = vpack.c.bf16 %v1408, %v1406
      %v1419 = vpack.c.bf16 %v1412, %v1410
      %v1420 = vpack.c.bf16 %v1416, %v1414
      %v1425 = vunpack.c.l.b16 %v1417
      %v1426 = vunpack.c.h.b16 %v1417
      %v1427 = vunpack.c.l.b16 %v1418
      %v1428 = vunpack.c.h.b16 %v1418
      %v1429 = vunpack.c.l.b16 %v1419
      %v1430 = vunpack.c.h.b16 %v1419
      %v1431 = vunpack.c.l.b16 %v1420
      %v1432 = vunpack.c.h.b16 %v1420
      %v1433 = vpack.c.b16 %v1425, %v1425
      %v1434 = vpack.c.b16 %v1426, %v1426
      %v1435 = vpack.c.b16 %v1427, %v1427
      %v1436 = vpack.c.b16 %v1428, %v1428
      %v1437 = vpack.c.b16 %v1429, %v1429
      %v1438 = vpack.c.b16 %v1430, %v1430
      %v1439 = vpack.c.b16 %v1431, %v1431
      %v1440 = vpack.c.b16 %v1432, %v1432
      %1441 = vrot.lane.b32.xlu0 %v1433, 16
      %v1442 = vpop.permute.xlu0 %1441
      %1443 = vrot.lane.b32.xlu0 %v1434, 16
      %v1444 = vpop.permute.xlu0 %1443
      %1445 = vrot.lane.b32.xlu0 %v1435, 16
      %v1446 = vpop.permute.xlu0 %1445
      %1447 = vrot.lane.b32.xlu0 %v1436, 16
      %v1448 = vpop.permute.xlu0 %1447
      %1449 = vrot.lane.b32.xlu0 %v1437, 16
      %v1450 = vpop.permute.xlu0 %1449
      %1451 = vrot.lane.b32.xlu0 %v1438, 16
      %v1452 = vpop.permute.xlu0 %1451
      %1453 = vrot.lane.b32.xlu0 %v1439, 16
      %v1454 = vpop.permute.xlu0 %1453
      %1455 = vrot.lane.b32.xlu0 %v1440, 16
      %v1456 = vpop.permute.xlu0 %1455
      %vm1465 = vcmask 191616
      %1466 = vst.msk [vmem:[%s248] sm:$0xf] %vm1465, %v1442
      %1467 = vst.msk [vmem:[%s248 + $0x4] sm:$0xf] %vm1465, %v1444
      %1468 = vst.msk [vmem:[%s248 + $0x8] sm:$0xf] %vm1465, %v1446
      %1469 = vst.msk [vmem:[%s248 + $0xc] sm:$0xf] %vm1465, %v1448
      %1470 = vst.msk [vmem:[%s248 + $0x10] sm:$0xf] %vm1465, %v1450
      %1471 = vst.msk [vmem:[%s248 + $0x14] sm:$0xf] %vm1465, %v1452
      %1472 = vst.msk [vmem:[%s248 + $0x18] sm:$0xf] %vm1465, %v1454
      %1473 = vst.msk [vmem:[%s248 + $0x1c] sm:$0xf] %vm1465, %v1456
      %v1474 = vpack.c.bf16 %v340, %v339
      %v1475 = vpack.c.bf16 %v342, %v341
      %v1476 = vpack.c.bf16 %v344, %v343
      %v1477 = vpack.c.bf16 %v346, %v345
      %s1478 = scalar_lea.vmem %s234, 96
      %v1479 = vld [vmem:[%s1478] sm:$0xf]
      %v1480 = vld [vmem:[%s1478 + $0x4] sm:$0xf]
      %v1481 = vld [vmem:[%s1478 + $0x8] sm:$0xf]
      %v1482 = vld [vmem:[%s1478 + $0xc] sm:$0xf]
      %v1483 = vld [vmem:[%s1478 + $0x10] sm:$0xf]
      %v1484 = vld [vmem:[%s1478 + $0x14] sm:$0xf]
      %v1485 = vld [vmem:[%s1478 + $0x18] sm:$0xf]
      %v1486 = vld [vmem:[%s1478 + $0x1c] sm:$0xf]
      %s1487 = scalar_lea.vmem %s239, 96
      %v1488 = vld [vmem:[%s1487] sm:$0xf]
      %v1489 = vld [vmem:[%s1487 + $0x4] sm:$0xf]
      %v1490 = vld [vmem:[%s1487 + $0x8] sm:$0xf]
      %v1491 = vld [vmem:[%s1487 + $0xc] sm:$0xf]
      %v1492 = vld [vmem:[%s1487 + $0x10] sm:$0xf]
      %v1493 = vld [vmem:[%s1487 + $0x14] sm:$0xf]
      %v1494 = vld [vmem:[%s1487 + $0x18] sm:$0xf]
      %v1495 = vld [vmem:[%s1487 + $0x1c] sm:$0xf]
      %v1504 = vunpack.c.l.b16 %v1479
      %v1505 = vunpack.c.l.b16 %v1480
      %v1506 = vunpack.c.l.b16 %v1481
      %v1507 = vunpack.c.l.b16 %v1482
      %v1508 = vunpack.c.l.b16 %v1483
      %v1509 = vunpack.c.l.b16 %v1484
      %v1510 = vunpack.c.l.b16 %v1485
      %v1511 = vunpack.c.l.b16 %v1486
      %v1512 = vpack.c.b16 %v1505, %v1504
      %v1513 = vpack.c.b16 %v1507, %v1506
      %v1514 = vpack.c.b16 %v1509, %v1508
      %v1515 = vpack.c.b16 %v1511, %v1510
      %v1517 = vsel %vm387, %v1474, 0
      %v1520 = vsel %vm387, %v1475, 0
      %v1523 = vsel %vm387, %v1476, 0
      %v1526 = vsel %vm387, %v1477, 0
      %v1529 = vsel %vm387, %v1512, 0
      %v1532 = vsel %vm387, %v1513, 0
      %v1535 = vsel %vm387, %v1514, 0
      %v1538 = vsel %vm387, %v1515, 0
      %1540 = vmatprep.subr.bf16.mxu0 0
      %1541 = vmatpush1.bf16.xpose.msra.mxu0 0
      %1542 = vmatprep.subr.bf16.mxu0 0
      %1543 = vmatpush1.bf16.xpose.msra.mxu0 0
      %1544 = vmatprep.subr.bf16.mxu0 0
      %1545 = vmatpush1.bf16.xpose.msra.mxu0 0
      %1546 = vmatprep.subr.bf16.mxu0 0
      %1547 = vmatpush1.bf16.xpose.msra.mxu0 0
      %1548 = vmatprep.subr.bf16.mxu0 0
      %1549 = vmatpush1.bf16.xpose.msra.mxu0 %v1538
      %1550 = vmatprep.subr.bf16.mxu0 0
      %1551 = vmatpush1.bf16.xpose.msra.mxu0 %v1535
      %1552 = vmatprep.subr.bf16.mxu0 0
      %1553 = vmatpush1.bf16.xpose.msra.mxu0 %v1532
      %1554 = vmatprep.subr.bf16.mxu0 0
      %1555 = vmatpush1.bf16.xpose.msra.mxu0 %v1529
      %1556 = vmatprep.subr.bf16.mxu0 0
      %1557 = vmatpush2.bf16.xpose.msra.mxu0 0
      %1558 = vmatprep.subr.bf16.mxu0 0
      %1559 = vmatpush2.bf16.xpose.msra.mxu0 0
      %1560 = vmatprep.subr.bf16.mxu0 0
      %1561 = vmatpush2.bf16.xpose.msra.mxu0 0
      %1562 = vmatprep.subr.bf16.mxu0 0
      %1563 = vmatpush2.bf16.xpose.msra.mxu0 0
      %1564 = vmatprep.subr.bf16.mxu0 0
      %1565 = vmatpush2.bf16.xpose.msra.mxu0 0
      %1566 = vmatprep.subr.bf16.mxu0 0
      %1567 = vmatpush2.bf16.xpose.msra.mxu0 0
      %1568 = vmatprep.subr.bf16.mxu0 0
      %1569 = vmatpush2.bf16.xpose.msra.mxu0 0
      %1570 = vmatprep.subr.bf16.mxu0 0
      %1571 = vmatpush2.bf16.xpose.msra.mxu0 0
      %1572 = vmatprep.mubr.bf16.mxu0 0
      %1573 = vmatmul.mubr.bf16.gmra.mxu0 %v1517
      %v1574 = vpop.f32.mrf.mxu0
      %v1575 = vadd.f32 0.0, %v1574
      %v1576 = vpop.f32.mrf.mxu0
      %v1577 = vpop.f32.mrf.mxu0
      %v1578 = vadd.f32 0.0, %v1577
      %v1579 = vpop.f32.mrf.mxu0
      %1580 = vmatprep.mubr.bf16.mxu0 0
      %1581 = vmatmul.mubr.bf16.gmra.mxu0 %v1520
      %v1582 = vpop.f32.mrf.mxu0
      %v1583 = vadd.f32 0.0, %v1582
      %v1584 = vpop.f32.mrf.mxu0
      %v1585 = vpop.f32.mrf.mxu0
      %v1586 = vadd.f32 0.0, %v1585
      %v1587 = vpop.f32.mrf.mxu0
      %1588 = vmatprep.mubr.bf16.mxu0 0
      %1589 = vmatmul.mubr.bf16.gmra.mxu0 %v1523
      %v1590 = vpop.f32.mrf.mxu0
      %v1591 = vadd.f32 0.0, %v1590
      %v1592 = vpop.f32.mrf.mxu0
      %v1593 = vpop.f32.mrf.mxu0
      %v1594 = vadd.f32 0.0, %v1593
      %v1595 = vpop.f32.mrf.mxu0
      %1596 = vmatprep.mubr.bf16.mxu0 0
      %1597 = vmatmul.mubr.bf16.gmra.mxu0 %v1526
      %v1598 = vpop.f32.mrf.mxu0
      %v1599 = vadd.f32 0.0, %v1598
      %v1600 = vpop.f32.mrf.mxu0
      %v1601 = vpop.f32.mrf.mxu0
      %v1602 = vadd.f32 0.0, %v1601
      %v1603 = vpop.f32.mrf.mxu0
      %1604 = vdwg.mxu0
      %v1605 = vsel %vm477, %v1575, -inf
      %1606 = vmax.xlane.f32.xlu0 %v1605
      %v1607 = vpop.xlane.xlu0 %1606
      %v1608 = vsel %vm477, %v1578, -inf
      %1609 = vmax.xlane.f32.xlu0 %v1608
      %v1610 = vpop.xlane.xlu0 %1609
      %v1611 = vsel %vm477, %v1583, -inf
      %1612 = vmax.xlane.f32.xlu0 %v1611
      %v1613 = vpop.xlane.xlu0 %1612
      %v1614 = vsel %vm477, %v1586, -inf
      %1615 = vmax.xlane.f32.xlu0 %v1614
      %v1616 = vpop.xlane.xlu0 %1615
      %v1617 = vsel %vm477, %v1591, -inf
      %1618 = vmax.xlane.f32.xlu0 %v1617
      %v1619 = vpop.xlane.xlu0 %1618
      %v1620 = vsel %vm477, %v1594, -inf
      %1621 = vmax.xlane.f32.xlu0 %v1620
      %v1622 = vpop.xlane.xlu0 %1621
      %v1623 = vsel %vm477, %v1599, -inf
      %1624 = vmax.xlane.f32.xlu0 %v1623
      %v1625 = vpop.xlane.xlu0 %1624
      %v1626 = vsel %vm477, %v1602, -inf
      %1627 = vmax.xlane.f32.xlu0 %v1626
      %v1628 = vpop.xlane.xlu0 %1627
      %v1629 = vsub.f32 %v1575, %v1607
      %v1630 = vsub.f32 %v1578, %v1610
      %v1631 = vsub.f32 %v1583, %v1613
      %v1632 = vsub.f32 %v1586, %v1616
      %v1633 = vsub.f32 %v1591, %v1619
      %v1634 = vsub.f32 %v1594, %v1622
      %v1635 = vsub.f32 %v1599, %v1625
      %v1636 = vsub.f32 %v1602, %v1628
      %v1637 = vmul.f32 %v1629, 1.442695
      %v1638 = vpow.pop %v1637
      %v1639 = vmul.f32 %v1630, 1.442695
      %v1640 = vpow.pop %v1639
      %v1641 = vmul.f32 %v1631, 1.442695
      %v1642 = vpow.pop %v1641
      %v1643 = vmul.f32 %v1632, 1.442695
      %v1644 = vpow.pop %v1643
      %v1645 = vmul.f32 %v1633, 1.442695
      %v1646 = vpow.pop %v1645
      %v1647 = vmul.f32 %v1634, 1.442695
      %v1648 = vpow.pop %v1647
      %v1649 = vmul.f32 %v1635, 1.442695
      %v1650 = vpow.pop %v1649
      %v1651 = vmul.f32 %v1636, 1.442695
      %v1652 = vpow.pop %v1651
      %v1653 = vsel %vm477, %v1638, 0.0
      %1654 = vadd.xlane.f32.xlu0 %v1653
      %v1655 = vpop.xlane.xlu0 %1654
      %v1656 = vsel %vm477, %v1640, 0.0
      %1657 = vadd.xlane.f32.xlu0 %v1656
      %v1658 = vpop.xlane.xlu0 %1657
      %v1659 = vsel %vm477, %v1642, 0.0
      %1660 = vadd.xlane.f32.xlu0 %v1659
      %v1661 = vpop.xlane.xlu0 %1660
      %v1662 = vsel %vm477, %v1644, 0.0
      %1663 = vadd.xlane.f32.xlu0 %v1662
      %v1664 = vpop.xlane.xlu0 %1663
      %v1665 = vsel %vm477, %v1646, 0.0
      %1666 = vadd.xlane.f32.xlu0 %v1665
      %v1667 = vpop.xlane.xlu0 %1666
      %v1668 = vsel %vm477, %v1648, 0.0
      %1669 = vadd.xlane.f32.xlu0 %v1668
      %v1670 = vpop.xlane.xlu0 %1669
      %v1671 = vsel %vm477, %v1650, 0.0
      %1672 = vadd.xlane.f32.xlu0 %v1671
      %v1673 = vpop.xlane.xlu0 %1672
      %v1674 = vsel %vm477, %v1652, 0.0
      %1675 = vadd.xlane.f32.xlu0 %v1674
      %v1676 = vpop.xlane.xlu0 %1675
      %v1677 = vpack.c.bf16 %v1640, %v1638
      %v1678 = vpack.c.bf16 %v1644, %v1642
      %v1679 = vpack.c.bf16 %v1648, %v1646
      %v1680 = vpack.c.bf16 %v1652, %v1650
      %v1689 = vunpack.c.l.b16 %v1488
      %v1690 = vunpack.c.l.b16 %v1489
      %v1691 = vunpack.c.l.b16 %v1490
      %v1692 = vunpack.c.l.b16 %v1491
      %v1693 = vunpack.c.l.b16 %v1492
      %v1694 = vunpack.c.l.b16 %v1493
      %v1695 = vunpack.c.l.b16 %v1494
      %v1696 = vunpack.c.l.b16 %v1495
      %v1697 = vpack.c.b16 %v1690, %v1689
      %v1698 = vpack.c.b16 %v1692, %v1691
      %v1699 = vpack.c.b16 %v1694, %v1693
      %v1700 = vpack.c.b16 %v1696, %v1695
      %v1706 = vsel %vm477, %v1677, 0
      %v1709 = vsel %vm477, %v1678, 0
      %v1712 = vsel %vm477, %v1679, 0
      %v1715 = vsel %vm477, %v1680, 0
      %1717 = vmatprep.subr.bf16.mxu0 0
      %1718 = vmatpush1.bf16.msra.mxu0 0
      %1719 = vmatprep.subr.bf16.mxu0 0
      %1720 = vmatpush1.bf16.msra.mxu0 0
      %1721 = vmatprep.subr.bf16.mxu0 0
      %1722 = vmatpush1.bf16.msra.mxu0 0
      %1723 = vmatprep.subr.bf16.mxu0 0
      %1724 = vmatpush1.bf16.msra.mxu0 0
      %1725 = vmatprep.subr.bf16.mxu0 0
      %1726 = vmatpush1.bf16.msra.mxu0 %v1700
      %1727 = vmatprep.subr.bf16.mxu0 0
      %1728 = vmatpush1.bf16.msra.mxu0 %v1699
      %1729 = vmatprep.subr.bf16.mxu0 0
      %1730 = vmatpush1.bf16.msra.mxu0 %v1698
      %1731 = vmatprep.subr.bf16.mxu0 0
      %1732 = vmatpush1.bf16.msra.mxu0 %v1697
      %1733 = vmatprep.subr.bf16.mxu0 0
      %1734 = vmatpush2.bf16.msra.mxu0 0
      %1735 = vmatprep.subr.bf16.mxu0 0
      %1736 = vmatpush2.bf16.msra.mxu0 0
      %1737 = vmatprep.subr.bf16.mxu0 0
      %1738 = vmatpush2.bf16.msra.mxu0 0
      %1739 = vmatprep.subr.bf16.mxu0 0
      %1740 = vmatpush2.bf16.msra.mxu0 0
      %1741 = vmatprep.subr.bf16.mxu0 0
      %1742 = vmatpush2.bf16.msra.mxu0 0
      %1743 = vmatprep.subr.bf16.mxu0 0
      %1744 = vmatpush2.bf16.msra.mxu0 0
      %1745 = vmatprep.subr.bf16.mxu0 0
      %1746 = vmatpush2.bf16.msra.mxu0 0
      %1747 = vmatprep.subr.bf16.mxu0 0
      %1748 = vmatpush2.bf16.msra.mxu0 0
      %1749 = vmatprep.mubr.bf16.mxu0 0
      %1750 = vmatmul.mubr.bf16.gmra.mxu0 %v1706
      %v1751 = vpop.f32.mrf.mxu0
      %v1752 = vadd.f32 0.0, %v1751
      %v1753 = vpop.f32.mrf.mxu0
      %v1754 = vpop.f32.mrf.mxu0
      %v1755 = vadd.f32 0.0, %v1754
      %v1756 = vpop.f32.mrf.mxu0
      %1757 = vmatprep.mubr.bf16.mxu0 0
      %1758 = vmatmul.mubr.bf16.gmra.mxu0 %v1709
      %v1759 = vpop.f32.mrf.mxu0
      %v1760 = vadd.f32 0.0, %v1759
      %v1761 = vpop.f32.mrf.mxu0
      %v1762 = vpop.f32.mrf.mxu0
      %v1763 = vadd.f32 0.0, %v1762
      %v1764 = vpop.f32.mrf.mxu0
      %1765 = vmatprep.mubr.bf16.mxu0 0
      %1766 = vmatmul.mubr.bf16.gmra.mxu0 %v1712
      %v1767 = vpop.f32.mrf.mxu0
      %v1768 = vadd.f32 0.0, %v1767
      %v1769 = vpop.f32.mrf.mxu0
      %v1770 = vpop.f32.mrf.mxu0
      %v1771 = vadd.f32 0.0, %v1770
      %v1772 = vpop.f32.mrf.mxu0
      %1773 = vmatprep.mubr.bf16.mxu0 0
      %1774 = vmatmul.mubr.bf16.gmra.mxu0 %v1715
      %v1775 = vpop.f32.mrf.mxu0
      %v1776 = vadd.f32 0.0, %v1775
      %v1777 = vpop.f32.mrf.mxu0
      %v1778 = vpop.f32.mrf.mxu0
      %v1779 = vadd.f32 0.0, %v1778
      %v1780 = vpop.f32.mrf.mxu0
      %1781 = vdwg.mxu0
      %v1782 = vrcp.pop %v1655
      %v1783 = vmul.f32 %v1752, %v1782
      %v1784 = vrcp.pop %v1658
      %v1785 = vmul.f32 %v1755, %v1784
      %v1786 = vrcp.pop %v1661
      %v1787 = vmul.f32 %v1760, %v1786
      %v1788 = vrcp.pop %v1664
      %v1789 = vmul.f32 %v1763, %v1788
      %v1790 = vrcp.pop %v1667
      %v1791 = vmul.f32 %v1768, %v1790
      %v1792 = vrcp.pop %v1670
      %v1793 = vmul.f32 %v1771, %v1792
      %v1794 = vrcp.pop %v1673
      %v1795 = vmul.f32 %v1776, %v1794
      %v1796 = vrcp.pop %v1676
      %v1797 = vmul.f32 %v1779, %v1796
      %v1798 = vpack.c.bf16 %v1785, %v1783
      %v1799 = vpack.c.bf16 %v1789, %v1787
      %v1800 = vpack.c.bf16 %v1793, %v1791
      %v1801 = vpack.c.bf16 %v1797, %v1795
      %v1806 = vunpack.c.l.b16 %v1798
      %v1807 = vunpack.c.h.b16 %v1798
      %v1808 = vunpack.c.l.b16 %v1799
      %v1809 = vunpack.c.h.b16 %v1799
      %v1810 = vunpack.c.l.b16 %v1800
      %v1811 = vunpack.c.h.b16 %v1800
      %v1812 = vunpack.c.l.b16 %v1801
      %v1813 = vunpack.c.h.b16 %v1801
      %v1814 = vpack.c.b16 %v1806, %v1806
      %v1815 = vpack.c.b16 %v1807, %v1807
      %v1816 = vpack.c.b16 %v1808, %v1808
      %v1817 = vpack.c.b16 %v1809, %v1809
      %v1818 = vpack.c.b16 %v1810, %v1810
      %v1819 = vpack.c.b16 %v1811, %v1811
      %v1820 = vpack.c.b16 %v1812, %v1812
      %v1821 = vpack.c.b16 %v1813, %v1813
      %1822 = vrot.lane.b32.xlu0 %v1814, 24
      %v1823 = vpop.permute.xlu0 %1822
      %1824 = vrot.lane.b32.xlu0 %v1815, 24
      %v1825 = vpop.permute.xlu0 %1824
      %1826 = vrot.lane.b32.xlu0 %v1816, 24
      %v1827 = vpop.permute.xlu0 %1826
      %1828 = vrot.lane.b32.xlu0 %v1817, 24
      %v1829 = vpop.permute.xlu0 %1828
      %1830 = vrot.lane.b32.xlu0 %v1818, 24
      %v1831 = vpop.permute.xlu0 %1830
      %1832 = vrot.lane.b32.xlu0 %v1819, 24
      %v1833 = vpop.permute.xlu0 %1832
      %1834 = vrot.lane.b32.xlu0 %v1820, 24
      %v1835 = vpop.permute.xlu0 %1834
      %1836 = vrot.lane.b32.xlu0 %v1821, 24
      %v1837 = vpop.permute.xlu0 %1836
      %vm1846 = vcmask 257216
      %1847 = vst.msk [vmem:[%s248] sm:$0xf] %vm1846, %v1823
      %1848 = vst.msk [vmem:[%s248 + $0x4] sm:$0xf] %vm1846, %v1825
      %1849 = vst.msk [vmem:[%s248 + $0x8] sm:$0xf] %vm1846, %v1827
      %1850 = vst.msk [vmem:[%s248 + $0xc] sm:$0xf] %vm1846, %v1829
      %1851 = vst.msk [vmem:[%s248 + $0x10] sm:$0xf] %vm1846, %v1831
      %1852 = vst.msk [vmem:[%s248 + $0x14] sm:$0xf] %vm1846, %v1833
      %1853 = vst.msk [vmem:[%s248 + $0x18] sm:$0xf] %vm1846, %v1835
      %1854 = vst.msk [vmem:[%s248 + $0x1c] sm:$0xf] %vm1846, %v1837
      %s1855 = smul.u32 8, %s19
      %p1856 = scmp.lt.s32.totalorder %s18, 1
      %s1857 = scalar_select %p1856, %s18, 1
      %p1858 = scmp.lt.s32.totalorder %s1855, 7
      %s1859 = scalar_select %p1858, %s1855, 7
      %s1860 = smul.addr %s1857, 8
      %s1861 = sadd.s32 %s1859, %s1860
      %s1862 = smul.addr %s1861, 4
      %s1863 = scalar_lea.vmem %s3, %s1862
      // Predicated region
      $region33: #{_lambda_.15} parent=31 // pred_check
        %p1864 = pneg %p126
      $region34: #{_lambda_.15} parent=31 // pred_check_branch
        %1866 = sbr.rel (%p1864) target = $region36
      $region35: #{_lambda_.15} parent=31 // pred_region
        %s1867 = smul.u32 8, %s19
      $region36: #{_lambda_.15} parent=31 // pred_fallthru
        _
    $region32: #{_lambda_.15} parent=5 // pred_fallthru
      _
    %p1868 = scmp.le.s32.totalorder 2, %s9
    // Predicated region
    $region37: #{_lambda_.15} parent=5 // pred_check
      %p1869 = pneg %p1868
    $region38: #{_lambda_.15} parent=5 // pred_check_branch
      %1871 = sbr.rel (%p1869) target = $region40
    $region39: #{_lambda_.15} parent=5 // pred_region
      %s1872 = ssub.s32 %s9, 2
      // Predicated region
      $region41: #{_lambda_.15} parent=39 // pred_check
        %p1873 = pneg %p132
      $region42: #{_lambda_.15} parent=39 // pred_check_branch
        %1875 = sbr.rel (%p1873) target = $region44
      $region43: #{_lambda_.15} parent=39 // pred_region
        %s1876 = smul.u32 8, %s21
        %p1877 = scmp.lt.s32.totalorder %s20, 1
        %s1878 = scalar_select %p1877, %s20, 1
        %p1879 = scmp.lt.s32.totalorder %s1876, 7
        %s1880 = scalar_select %p1879, %s1876, 7
        %s1881 = smul.addr %s1878, 8
        %s1882 = sadd.s32 %s1880, %s1881
        %s1883 = smul.addr %s1882, 4
        %s1884 = scalar_lea.vmem %s3, %s1883
      $region44: #{_lambda_.15} parent=39 // pred_fallthru
        _
    $region40: #{_lambda_.15} parent=5 // pred_fallthru
      _
  $region6: #{_lambda_.15} parent=0 // loop_footer
    %s13 = sadd.s32 1, %s9
  $region7: #{_lambda_.15} parent=0 // loop_footer_branch
    %8 = sbr.rel target = $region3
  $region8: #{_lambda_.15} parent=0 // loop_exit
    _

// kernel: _lambda_.22
$region0: #{_lambda_.22}
  #allocation0 [shape = 'u32[]', space=smem, size = 0x4, offset = 0x4, fixed_abs, tag = 'smem constant byte address 0x4 - core index']
  #allocation1 [shape = 'u32[144,128]{1,0:T(1,128)}', space=vmem, size = 0x12000, scoped, tag = 'internal scratch']
  #allocation2 [shape = 'f32[128,32]{1,0:T(8,128)}', space=vmem, size = 0x10000, scoped, tag = 'scratch operand']
  %s0 = inlined_call_operand.vmem [shape: bf16[128,128], index: 0, kind: input, shape index: {}]
  %s1 = inlined_call_operand.vmem [shape: bf16[128,32], index: 1, kind: input, shape index: {}]
  %s2 = inlined_call_operand.vmem [shape: f32[1,32], index: 2, kind: input, shape index: {}]
  %s3 = inlined_call_operand.vmem [shape: f32[128,32], index: 3, kind: input, shape index: {}]
  %s4 = inlined_call_operand.vmem [shape: f32[128,32], index: 4, kind: output, shape index: {}]
  %s5 = sld [smem:[#allocation0]]
  $region34: #{_lambda_.22} parent=0
    _
  %s7 = ssub.s32 1, %s5
  %s8 = scalar_select 0, %s7, %s5
  // Predicated region
  $region2: #{_lambda_.22} parent=0 // pred_check
    _
  $region3: #{_lambda_.22} parent=0 // pred_check_branch
    %10 = sbr.rel (0) target = $region5
  $region4: #{_lambda_.22} parent=0 // pred_region
    _
  $region5: #{_lambda_.22} parent=0 // pred_fallthru
    _
  // Predicated region
  $region6: #{_lambda_.22} parent=0 // pred_check
    _
  $region7: #{_lambda_.22} parent=0 // pred_check_branch
    %12 = sbr.rel (0) target = $region9
  $region8: #{_lambda_.22} parent=0 // pred_region
    _
  $region9: #{_lambda_.22} parent=0 // pred_fallthru
    _
  // Predicated region
  $region10: #{_lambda_.22} parent=0 // pred_check
    _
  $region11: #{_lambda_.22} parent=0 // pred_check_branch
    %14 = sbr.rel (0) target = $region13
  $region12: #{_lambda_.22} parent=0 // pred_region
    _
  $region13: #{_lambda_.22} parent=0 // pred_fallthru
    _
  // Predicated region
  $region14: #{_lambda_.22} parent=0 // pred_check
    _
  $region15: #{_lambda_.22} parent=0 // pred_check_branch
    %16 = sbr.rel (0) target = $region17
  $region16: #{_lambda_.22} parent=0 // pred_region
    _
  $region17: #{_lambda_.22} parent=0 // pred_fallthru
    _
  %p18 = scmp.eq.s32.totalorder 0, 0
  // Predicated region
  $region18: #{_lambda_.22} parent=0 // pred_check
    %p19 = pneg %p18
  $region19: #{_lambda_.22} parent=0 // pred_check_branch
    %21 = sbr.rel (%p19) target = $region21
  $region20: #{_lambda_.22} parent=0 // pred_region
    %vm22 = vcmask 261120
    %23 = vst.msk [vmem:[#allocation2] sm:$0xff] %vm22, 0.0
    %24 = vst.msk [vmem:[#allocation2 + $0x8] sm:$0xff] %vm22, 0.0
    %25 = vst.msk [vmem:[#allocation2 + $0x10] sm:$0xff] %vm22, 0.0
    %26 = vst.msk [vmem:[#allocation2 + $0x18] sm:$0xff] %vm22, 0.0
    %27 = vst.msk [vmem:[#allocation2 + $0x20] sm:$0xff] %vm22, 0.0
    %28 = vst.msk [vmem:[#allocation2 + $0x28] sm:$0xff] %vm22, 0.0
    %29 = vst.msk [vmem:[#allocation2 + $0x30] sm:$0xff] %vm22, 0.0
    %30 = vst.msk [vmem:[#allocation2 + $0x38] sm:$0xff] %vm22, 0.0
    %31 = vst.msk [vmem:[#allocation2 + $0x40] sm:$0xff] %vm22, 0.0
    %32 = vst.msk [vmem:[#allocation2 + $0x48] sm:$0xff] %vm22, 0.0
    %33 = vst.msk [vmem:[#allocation2 + $0x50] sm:$0xff] %vm22, 0.0
    %34 = vst.msk [vmem:[#allocation2 + $0x58] sm:$0xff] %vm22, 0.0
    %35 = vst.msk [vmem:[#allocation2 + $0x60] sm:$0xff] %vm22, 0.0
    %36 = vst.msk [vmem:[#allocation2 + $0x68] sm:$0xff] %vm22, 0.0
    %37 = vst.msk [vmem:[#allocation2 + $0x70] sm:$0xff] %vm22, 0.0
    %38 = vst.msk [vmem:[#allocation2 + $0x78] sm:$0xff] %vm22, 0.0
  $region21: #{_lambda_.22} parent=0 // pred_fallthru
    _
  %v39 = vld [vmem:[#allocation2] sm:$0xff]
  %v40 = vld [vmem:[#allocation2 + $0x8] sm:$0xff]
  %v41 = vld [vmem:[#allocation2 + $0x10] sm:$0xff]
  %v42 = vld [vmem:[#allocation2 + $0x18] sm:$0xff]
  %v43 = vld [vmem:[#allocation2 + $0x20] sm:$0xff]
  %v44 = vld [vmem:[#allocation2 + $0x28] sm:$0xff]
  %v45 = vld [vmem:[#allocation2 + $0x30] sm:$0xff]
  %v46 = vld [vmem:[#allocation2 + $0x38] sm:$0xff]
  %v47 = vld [vmem:[#allocation2 + $0x40] sm:$0xff]
  %v48 = vld [vmem:[#allocation2 + $0x48] sm:$0xff]
  %v49 = vld [vmem:[#allocation2 + $0x50] sm:$0xff]
  %v50 = vld [vmem:[#allocation2 + $0x58] sm:$0xff]
  %v51 = vld [vmem:[#allocation2 + $0x60] sm:$0xff]
  %v52 = vld [vmem:[#allocation2 + $0x68] sm:$0xff]
  %v53 = vld [vmem:[#allocation2 + $0x70] sm:$0xff]
  %v54 = vld [vmem:[#allocation2 + $0x78] sm:$0xff]
  %v55 = vld [vmem:[%s0] sm:$0xf]
  %v56 = vld [vmem:[%s0 + $0x4] sm:$0xf]
  %v57 = vld [vmem:[%s0 + $0x8] sm:$0xf]
  %v58 = vld [vmem:[%s0 + $0xc] sm:$0xf]
  %v59 = vld [vmem:[%s0 + $0x10] sm:$0xf]
  %v60 = vld [vmem:[%s0 + $0x14] sm:$0xf]
  %v61 = vld [vmem:[%s0 + $0x18] sm:$0xf]
  %v62 = vld [vmem:[%s0 + $0x1c] sm:$0xf]
  %v63 = vld [vmem:[%s0 + $0x20] sm:$0xf]
  %v64 = vld [vmem:[%s0 + $0x24] sm:$0xf]
  %v65 = vld [vmem:[%s0 + $0x28] sm:$0xf]
  %v66 = vld [vmem:[%s0 + $0x2c] sm:$0xf]
  %v67 = vld [vmem:[%s0 + $0x30] sm:$0xf]
  %v68 = vld [vmem:[%s0 + $0x34] sm:$0xf]
  %v69 = vld [vmem:[%s0 + $0x38] sm:$0xf]
  %v70 = vld [vmem:[%s0 + $0x3c] sm:$0xf]
  %v71 = vld [vmem:[%s1] sm:$0xf]
  %v72 = vld [vmem:[%s1 + $0x4] sm:$0xf]
  %v73 = vld [vmem:[%s1 + $0x8] sm:$0xf]
  %v74 = vld [vmem:[%s1 + $0xc] sm:$0xf]
  %v75 = vld [vmem:[%s1 + $0x10] sm:$0xf]
  %v76 = vld [vmem:[%s1 + $0x14] sm:$0xf]
  %v77 = vld [vmem:[%s1 + $0x18] sm:$0xf]
  %v78 = vld [vmem:[%s1 + $0x1c] sm:$0xf]
  %v79 = vld [vmem:[%s1 + $0x20] sm:$0xf]
  %v80 = vld [vmem:[%s1 + $0x24] sm:$0xf]
  %v81 = vld [vmem:[%s1 + $0x28] sm:$0xf]
  %v82 = vld [vmem:[%s1 + $0x2c] sm:$0xf]
  %v83 = vld [vmem:[%s1 + $0x30] sm:$0xf]
  %v84 = vld [vmem:[%s1 + $0x34] sm:$0xf]
  %v85 = vld [vmem:[%s1 + $0x38] sm:$0xf]
  %v86 = vld [vmem:[%s1 + $0x3c] sm:$0xf]
  %v103 = vunpack.c.l.b16 %v55
  %v104 = vunpack.c.l.b16 %v56
  %v105 = vunpack.c.l.b16 %v57
  %v106 = vunpack.c.l.b16 %v58
  %v107 = vunpack.c.l.b16 %v59
  %v108 = vunpack.c.l.b16 %v60
  %v109 = vunpack.c.l.b16 %v61
  %v110 = vunpack.c.l.b16 %v62
  %v111 = vunpack.c.l.b16 %v63
  %v112 = vunpack.c.l.b16 %v64
  %v113 = vunpack.c.l.b16 %v65
  %v114 = vunpack.c.l.b16 %v66
  %v115 = vunpack.c.l.b16 %v67
  %v116 = vunpack.c.l.b16 %v68
  %v117 = vunpack.c.l.b16 %v69
  %v118 = vunpack.c.l.b16 %v70
  %v119 = vpack.c.b16 %v104, %v103
  %v120 = vpack.c.b16 %v106, %v105
  %v121 = vpack.c.b16 %v108, %v107
  %v122 = vpack.c.b16 %v110, %v109
  %v123 = vpack.c.b16 %v112, %v111
  %v124 = vpack.c.b16 %v114, %v113
  %v125 = vpack.c.b16 %v116, %v115
  %v126 = vpack.c.b16 %v118, %v117
  %v151 = vunpack.c.l.b16 %v71
  %v152 = vunpack.c.l.b16 %v72
  %v153 = vunpack.c.l.b16 %v73
  %v154 = vunpack.c.l.b16 %v74
  %v155 = vunpack.c.l.b16 %v75
  %v156 = vunpack.c.l.b16 %v76
  %v157 = vunpack.c.l.b16 %v77
  %v158 = vunpack.c.l.b16 %v78
  %v159 = vunpack.c.l.b16 %v79
  %v160 = vunpack.c.l.b16 %v80
  %v161 = vunpack.c.l.b16 %v81
  %v162 = vunpack.c.l.b16 %v82
  %v163 = vunpack.c.l.b16 %v83
  %v164 = vunpack.c.l.b16 %v84
  %v165 = vunpack.c.l.b16 %v85
  %v166 = vunpack.c.l.b16 %v86
  %v167 = vpack.c.b16 %v152, %v151
  %v168 = vpack.c.b16 %v154, %v153
  %v169 = vpack.c.b16 %v156, %v155
  %v170 = vpack.c.b16 %v158, %v157
  %v171 = vpack.c.b16 %v160, %v159
  %v172 = vpack.c.b16 %v162, %v161
  %v173 = vpack.c.b16 %v164, %v163
  %v174 = vpack.c.b16 %v166, %v165
  %183 = vmatprep.subr.bf16.mxu0 0
  %184 = vmatpush1.bf16.msra.mxu0 %v174
  %185 = vmatprep.subr.bf16.mxu0 0
  %186 = vmatpush1.bf16.msra.mxu0 %v173
  %187 = vmatprep.subr.bf16.mxu0 0
  %188 = vmatpush1.bf16.msra.mxu0 %v172
  %189 = vmatprep.subr.bf16.mxu0 0
  %190 = vmatpush1.bf16.msra.mxu0 %v171
  %191 = vmatprep.subr.bf16.mxu0 0
  %192 = vmatpush1.bf16.msra.mxu0 %v170
  %193 = vmatprep.subr.bf16.mxu0 0
  %194 = vmatpush1.bf16.msra.mxu0 %v169
  %195 = vmatprep.subr.bf16.mxu0 0
  %196 = vmatpush1.bf16.msra.mxu0 %v168
  %197 = vmatprep.subr.bf16.mxu0 0
  %198 = vmatpush1.bf16.msra.mxu0 %v167
  %199 = vmatprep.subr.bf16.mxu0 0
  %200 = vmatpush2.bf16.msra.mxu0 0
  %201 = vmatprep.subr.bf16.mxu0 0
  %202 = vmatpush2.bf16.msra.mxu0 0
  %203 = vmatprep.subr.bf16.mxu0 0
  %204 = vmatpush2.bf16.msra.mxu0 0
  %205 = vmatprep.subr.bf16.mxu0 0
  %206 = vmatpush2.bf16.msra.mxu0 0
  %207 = vmatprep.subr.bf16.mxu0 0
  %208 = vmatpush2.bf16.msra.mxu0 0
  %209 = vmatprep.subr.bf16.mxu0 0
  %210 = vmatpush2.bf16.msra.mxu0 0
  %211 = vmatprep.subr.bf16.mxu0 0
  %212 = vmatpush2.bf16.msra.mxu0 0
  %213 = vmatprep.subr.bf16.mxu0 0
  %214 = vmatpush2.bf16.msra.mxu0 0
  %215 = vmatprep.mubr.bf16.mxu0 0
  %216 = vmatmul.mubr.bf16.gmra.mxu0 %v119
  %v217 = vpop.f32.mrf.mxu0
  %v218 = vadd.f32 0.0, %v217
  %v219 = vpop.f32.mrf.mxu0
  %v220 = vpop.f32.mrf.mxu0
  %v221 = vadd.f32 0.0, %v220
  %v222 = vpop.f32.mrf.mxu0
  %223 = vmatprep.mubr.bf16.mxu0 0
  %224 = vmatmul.mubr.bf16.gmra.mxu0 %v120
  %v225 = vpop.f32.mrf.mxu0
  %v226 = vadd.f32 0.0, %v225
  %v227 = vpop.f32.mrf.mxu0
  %v228 = vpop.f32.mrf.mxu0
  %v229 = vadd.f32 0.0, %v228
  %v230 = vpop.f32.mrf.mxu0
  %231 = vmatprep.mubr.bf16.mxu0 0
  %232 = vmatmul.mubr.bf16.gmra.mxu0 %v121
  %v233 = vpop.f32.mrf.mxu0
  %v234 = vadd.f32 0.0, %v233
  %v235 = vpop.f32.mrf.mxu0
  %v236 = vpop.f32.mrf.mxu0
  %v237 = vadd.f32 0.0, %v236
  %v238 = vpop.f32.mrf.mxu0
  %239 = vmatprep.mubr.bf16.mxu0 0
  %240 = vmatmul.mubr.bf16.gmra.mxu0 %v122
  %v241 = vpop.f32.mrf.mxu0
  %v242 = vadd.f32 0.0, %v241
  %v243 = vpop.f32.mrf.mxu0
  %v244 = vpop.f32.mrf.mxu0
  %v245 = vadd.f32 0.0, %v244
  %v246 = vpop.f32.mrf.mxu0
  %247 = vmatprep.mubr.bf16.mxu0 0
  %248 = vmatmul.mubr.bf16.gmra.mxu0 %v123
  %v249 = vpop.f32.mrf.mxu0
  %v250 = vadd.f32 0.0, %v249
  %v251 = vpop.f32.mrf.mxu0
  %v252 = vpop.f32.mrf.mxu0
  %v253 = vadd.f32 0.0, %v252
  %v254 = vpop.f32.mrf.mxu0
  %255 = vmatprep.mubr.bf16.mxu0 0
  %256 = vmatmul.mubr.bf16.gmra.mxu0 %v124
  %v257 = vpop.f32.mrf.mxu0
  %v258 = vadd.f32 0.0, %v257
  %v259 = vpop.f32.mrf.mxu0
  %v260 = vpop.f32.mrf.mxu0
  %v261 = vadd.f32 0.0, %v260
  %v262 = vpop.f32.mrf.mxu0
  %263 = vmatprep.mubr.bf16.mxu0 0
  %264 = vmatmul.mubr.bf16.gmra.mxu0 %v125
  %v265 = vpop.f32.mrf.mxu0
  %v266 = vadd.f32 0.0, %v265
  %v267 = vpop.f32.mrf.mxu0
  %v268 = vpop.f32.mrf.mxu0
  %v269 = vadd.f32 0.0, %v268
  %v270 = vpop.f32.mrf.mxu0
  %271 = vmatprep.mubr.bf16.mxu0 0
  %272 = vmatmul.mubr.bf16.gmra.mxu0 %v126
  %v273 = vpop.f32.mrf.mxu0
  %v274 = vadd.f32 0.0, %v273
  %v275 = vpop.f32.mrf.mxu0
  %v276 = vpop.f32.mrf.mxu0
  %v277 = vadd.f32 0.0, %v276
  %v278 = vpop.f32.mrf.mxu0
  %279 = vdwg.mxu0
  %v280 = vadd.f32 %v39, %v218
  %v281 = vadd.f32 %v40, %v221
  %v282 = vadd.f32 %v41, %v226
  %v283 = vadd.f32 %v42, %v229
  %v284 = vadd.f32 %v43, %v234
  %v285 = vadd.f32 %v44, %v237
  %v286 = vadd.f32 %v45, %v242
  %v287 = vadd.f32 %v46, %v245
  %v288 = vadd.f32 %v47, %v250
  %v289 = vadd.f32 %v48, %v253
  %v290 = vadd.f32 %v49, %v258
  %v291 = vadd.f32 %v50, %v261
  %v292 = vadd.f32 %v51, %v266
  %v293 = vadd.f32 %v52, %v269
  %v294 = vadd.f32 %v53, %v274
  %v295 = vadd.f32 %v54, %v277
  %vm296 = vcmask 261120
  %297 = vst.msk [vmem:[#allocation2] sm:$0xff] %vm296, %v280
  %298 = vst.msk [vmem:[#allocation2 + $0x8] sm:$0xff] %vm296, %v281
  %299 = vst.msk [vmem:[#allocation2 + $0x10] sm:$0xff] %vm296, %v282
  %300 = vst.msk [vmem:[#allocation2 + $0x18] sm:$0xff] %vm296, %v283
  %301 = vst.msk [vmem:[#allocation2 + $0x20] sm:$0xff] %vm296, %v284
  %302 = vst.msk [vmem:[#allocation2 + $0x28] sm:$0xff] %vm296, %v285
  %303 = vst.msk [vmem:[#allocation2 + $0x30] sm:$0xff] %vm296, %v286
  %304 = vst.msk [vmem:[#allocation2 + $0x38] sm:$0xff] %vm296, %v287
  %305 = vst.msk [vmem:[#allocation2 + $0x40] sm:$0xff] %vm296, %v288
  %306 = vst.msk [vmem:[#allocation2 + $0x48] sm:$0xff] %vm296, %v289
  %307 = vst.msk [vmem:[#allocation2 + $0x50] sm:$0xff] %vm296, %v290
  %308 = vst.msk [vmem:[#allocation2 + $0x58] sm:$0xff] %vm296, %v291
  %309 = vst.msk [vmem:[#allocation2 + $0x60] sm:$0xff] %vm296, %v292
  %310 = vst.msk [vmem:[#allocation2 + $0x68] sm:$0xff] %vm296, %v293
  %311 = vst.msk [vmem:[#allocation2 + $0x70] sm:$0xff] %vm296, %v294
  %312 = vst.msk [vmem:[#allocation2 + $0x78] sm:$0xff] %vm296, %v295
  // Predicated region
  $region22: #{_lambda_.22} parent=0 // pred_check
    %p313 = pneg %p18
  $region23: #{_lambda_.22} parent=0 // pred_check_branch
    %315 = sbr.rel (%p313) target = $region25
  $region24: #{_lambda_.22} parent=0 // pred_region
    %v316 = vld [vmem:[#allocation2] sm:$0xff]
    %v317 = vld [vmem:[#allocation2 + $0x8] sm:$0xff]
    %v318 = vld [vmem:[#allocation2 + $0x10] sm:$0xff]
    %v319 = vld [vmem:[#allocation2 + $0x18] sm:$0xff]
    %v320 = vld [vmem:[#allocation2 + $0x20] sm:$0xff]
    %v321 = vld [vmem:[#allocation2 + $0x28] sm:$0xff]
    %v322 = vld [vmem:[#allocation2 + $0x30] sm:$0xff]
    %v323 = vld [vmem:[#allocation2 + $0x38] sm:$0xff]
    %v324 = vld [vmem:[#allocation2 + $0x40] sm:$0xff]
    %v325 = vld [vmem:[#allocation2 + $0x48] sm:$0xff]
    %v326 = vld [vmem:[#allocation2 + $0x50] sm:$0xff]
    %v327 = vld [vmem:[#allocation2 + $0x58] sm:$0xff]
    %v328 = vld [vmem:[#allocation2 + $0x60] sm:$0xff]
    %v329 = vld [vmem:[#allocation2 + $0x68] sm:$0xff]
    %v330 = vld [vmem:[#allocation2 + $0x70] sm:$0xff]
    %v331 = vld [vmem:[#allocation2 + $0x78] sm:$0xff]
    %v332 = vld [vmem:[%s2] sm:$0x1]
    %v334 = vlaneseq
    %v335 = vshrl.u32 %v334, 7
    %v336 = vsub.s32 0, %v335
    %v337 = vrot.slane %v332, %v336
    %v339 = vadd.f32 %v316, %v337
    %v340 = vadd.f32 %v317, %v337
    %v341 = vadd.f32 %v318, %v337
    %v342 = vadd.f32 %v319, %v337
    %v343 = vadd.f32 %v320, %v337
    %v344 = vadd.f32 %v321, %v337
    %v345 = vadd.f32 %v322, %v337
    %v346 = vadd.f32 %v323, %v337
    %v347 = vadd.f32 %v324, %v337
    %v348 = vadd.f32 %v325, %v337
    %v349 = vadd.f32 %v326, %v337
    %v350 = vadd.f32 %v327, %v337
    %v351 = vadd.f32 %v328, %v337
    %v352 = vadd.f32 %v329, %v337
    %v353 = vadd.f32 %v330, %v337
    %v354 = vadd.f32 %v331, %v337
    %v355 = vld [vmem:[%s3] sm:$0xff]
    %v356 = vld [vmem:[%s3 + $0x8] sm:$0xff]
    %v357 = vld [vmem:[%s3 + $0x10] sm:$0xff]
    %v358 = vld [vmem:[%s3 + $0x18] sm:$0xff]
    %v359 = vld [vmem:[%s3 + $0x20] sm:$0xff]
    %v360 = vld [vmem:[%s3 + $0x28] sm:$0xff]
    %v361 = vld [vmem:[%s3 + $0x30] sm:$0xff]
    %v362 = vld [vmem:[%s3 + $0x38] sm:$0xff]
    %v363 = vld [vmem:[%s3 + $0x40] sm:$0xff]
    %v364 = vld [vmem:[%s3 + $0x48] sm:$0xff]
    %v365 = vld [vmem:[%s3 + $0x50] sm:$0xff]
    %v366 = vld [vmem:[%s3 + $0x58] sm:$0xff]
    %v367 = vld [vmem:[%s3 + $0x60] sm:$0xff]
    %v368 = vld [vmem:[%s3 + $0x68] sm:$0xff]
    %v369 = vld [vmem:[%s3 + $0x70] sm:$0xff]
    %v370 = vld [vmem:[%s3 + $0x78] sm:$0xff]
    %v371 = vadd.f32 %v339, %v355
    %v372 = vadd.f32 %v340, %v356
    %v373 = vadd.f32 %v341, %v357
    %v374 = vadd.f32 %v342, %v358
    %v375 = vadd.f32 %v343, %v359
    %v376 = vadd.f32 %v344, %v360
    %v377 = vadd.f32 %v345, %v361
    %v378 = vadd.f32 %v346, %v362
    %v379 = vadd.f32 %v347, %v363
    %v380 = vadd.f32 %v348, %v364
    %v381 = vadd.f32 %v349, %v365
    %v382 = vadd.f32 %v350, %v366
    %v383 = vadd.f32 %v351, %v367
    %v384 = vadd.f32 %v352, %v368
    %v385 = vadd.f32 %v353, %v369
    %v386 = vadd.f32 %v354, %v370
    %387 = vst.msk [vmem:[%s4] sm:$0xff] %vm296, %v371
    %388 = vst.msk [vmem:[%s4 + $0x8] sm:$0xff] %vm296, %v372
    %389 = vst.msk [vmem:[%s4 + $0x10] sm:$0xff] %vm296, %v373
    %390 = vst.msk [vmem:[%s4 + $0x18] sm:$0xff] %vm296, %v374
    %391 = vst.msk [vmem:[%s4 + $0x20] sm:$0xff] %vm296, %v375
    %392 = vst.msk [vmem:[%s4 + $0x28] sm:$0xff] %vm296, %v376
    %393 = vst.msk [vmem:[%s4 + $0x30] sm:$0xff] %vm296, %v377
    %394 = vst.msk [vmem:[%s4 + $0x38] sm:$0xff] %vm296, %v378
    %395 = vst.msk [vmem:[%s4 + $0x40] sm:$0xff] %vm296, %v379
    %396 = vst.msk [vmem:[%s4 + $0x48] sm:$0xff] %vm296, %v380
    %397 = vst.msk [vmem:[%s4 + $0x50] sm:$0xff] %vm296, %v381
    %398 = vst.msk [vmem:[%s4 + $0x58] sm:$0xff] %vm296, %v382
    %399 = vst.msk [vmem:[%s4 + $0x60] sm:$0xff] %vm296, %v383
    %400 = vst.msk [vmem:[%s4 + $0x68] sm:$0xff] %vm296, %v384
    %401 = vst.msk [vmem:[%s4 + $0x70] sm:$0xff] %vm296, %v385
    %402 = vst.msk [vmem:[%s4 + $0x78] sm:$0xff] %vm296, %v386
  $region25: #{_lambda_.22} parent=0 // pred_fallthru
    _
  // Predicated region
  $region26: #{_lambda_.22} parent=0 // pred_check
    _
  $region27: #{_lambda_.22} parent=0 // pred_check_branch
    %404 = sbr.rel (0) target = $region29
  $region28: #{_lambda_.22} parent=0 // pred_region
    _
  $region29: #{_lambda_.22} parent=0 // pred_fallthru
    _
  // Predicated region
  $region30: #{_lambda_.22} parent=0 // pred_check
    _
  $region31: #{_lambda_.22} parent=0 // pred_check_branch
    %406 = sbr.rel (0) target = $region33
  $region32: #{_lambda_.22} parent=0 // pred_region
    _
  $region33: #{_lambda_.22} parent=0 // pred_fallthru
    _

// kernel: _lambda_.21
$region0: #{_lambda_.21}
  #allocation0 [shape = 'u32[]', space=smem, size = 0x4, offset = 0x4, fixed_abs, tag = 'smem constant byte address 0x4 - core index']
  #allocation1 [shape = 'u32[144,128]{1,0:T(1,128)}', space=vmem, size = 0x12000, scoped, tag = 'internal scratch']
  #allocation2 [shape = 'bf16[128,32]{1,0:T(8,128)(2,1)}', space=vmem, size = 0x8000, scoped, tag = 'scratch operand']
  %s0 = inlined_call_operand.vmem [shape: f32[128,32], index: 0, kind: input, shape index: {}]
  %s1 = inlined_call_operand.vmem [shape: f32[1,32], index: 1, kind: input, shape index: {}]
  %s2 = inlined_call_operand.vmem [shape: f32[1,32], index: 2, kind: input, shape index: {}]
  %s3 = inlined_call_operand.vmem [shape: bf16[32,128], index: 3, kind: input, shape index: {}]
  %s4 = inlined_call_operand.vmem [shape: f32[1,128], index: 4, kind: input, shape index: {}]
  %s5 = inlined_call_operand.vmem [shape: bf16[32,128], index: 5, kind: input, shape index: {}]
  %s6 = inlined_call_operand.vmem [shape: f32[1,128], index: 6, kind: input, shape index: {}]
  %s7 = inlined_call_operand.vmem [shape: bf16[128,128], index: 7, kind: output, shape index: {}]
  %s8 = sld [smem:[#allocation0]]
  $region42: #{_lambda_.21} parent=0
    _
  %s10 = ssub.s32 1, %s8
  %s11 = scalar_select 0, %s10, %s8
  // Predicated region
  $region2: #{_lambda_.21} parent=0 // pred_check
    _
  $region3: #{_lambda_.21} parent=0 // pred_check_branch
    %13 = sbr.rel (0) target = $region5
  $region4: #{_lambda_.21} parent=0 // pred_region
    _
  $region5: #{_lambda_.21} parent=0 // pred_fallthru
    _
  // Predicated region
  $region6: #{_lambda_.21} parent=0 // pred_check
    _
  $region7: #{_lambda_.21} parent=0 // pred_check_branch
    %15 = sbr.rel (0) target = $region9
  $region8: #{_lambda_.21} parent=0 // pred_region
    _
  $region9: #{_lambda_.21} parent=0 // pred_fallthru
    _
  // Predicated region
  $region10: #{_lambda_.21} parent=0 // pred_check
    _
  $region11: #{_lambda_.21} parent=0 // pred_check_branch
    %17 = sbr.rel (0) target = $region13
  $region12: #{_lambda_.21} parent=0 // pred_region
    _
  $region13: #{_lambda_.21} parent=0 // pred_fallthru
    _
  // Predicated region
  $region14: #{_lambda_.21} parent=0 // pred_check
    _
  $region15: #{_lambda_.21} parent=0 // pred_check_branch
    %19 = sbr.rel (0) target = $region17
  $region16: #{_lambda_.21} parent=0 // pred_region
    _
  $region17: #{_lambda_.21} parent=0 // pred_fallthru
    _
  // Predicated region
  $region18: #{_lambda_.21} parent=0 // pred_check
    _
  $region19: #{_lambda_.21} parent=0 // pred_check_branch
    %21 = sbr.rel (0) target = $region21
  $region20: #{_lambda_.21} parent=0 // pred_region
    _
  $region21: #{_lambda_.21} parent=0 // pred_fallthru
    _
  // Predicated region
  $region22: #{_lambda_.21} parent=0 // pred_check
    _
  $region23: #{_lambda_.21} parent=0 // pred_check_branch
    %23 = sbr.rel (0) target = $region25
  $region24: #{_lambda_.21} parent=0 // pred_region
    _
  $region25: #{_lambda_.21} parent=0 // pred_fallthru
    _
  // Predicated region
  $region26: #{_lambda_.21} parent=0 // pred_check
    _
  $region27: #{_lambda_.21} parent=0 // pred_check_branch
    %25 = sbr.rel (0) target = $region29
  $region28: #{_lambda_.21} parent=0 // pred_region
    _
  $region29: #{_lambda_.21} parent=0 // pred_fallthru
    _
  %p27 = scmp.eq.s32.totalorder 0, 0
  // Predicated region
  $region30: #{_lambda_.21} parent=0 // pred_check
    %p28 = pneg %p27
  $region31: #{_lambda_.21} parent=0 // pred_check_branch
    %30 = sbr.rel (%p28) target = $region33
  $region32: #{_lambda_.21} parent=0 // pred_region
    %v31 = vld [vmem:[%s0] sm:$0xff]
    %v32 = vld [vmem:[%s0 + $0x8] sm:$0xff]
    %v33 = vld [vmem:[%s0 + $0x10] sm:$0xff]
    %v34 = vld [vmem:[%s0 + $0x18] sm:$0xff]
    %v35 = vld [vmem:[%s0 + $0x20] sm:$0xff]
    %v36 = vld [vmem:[%s0 + $0x28] sm:$0xff]
    %v37 = vld [vmem:[%s0 + $0x30] sm:$0xff]
    %v38 = vld [vmem:[%s0 + $0x38] sm:$0xff]
    %v39 = vld [vmem:[%s0 + $0x40] sm:$0xff]
    %v40 = vld [vmem:[%s0 + $0x48] sm:$0xff]
    %v41 = vld [vmem:[%s0 + $0x50] sm:$0xff]
    %v42 = vld [vmem:[%s0 + $0x58] sm:$0xff]
    %v43 = vld [vmem:[%s0 + $0x60] sm:$0xff]
    %v44 = vld [vmem:[%s0 + $0x68] sm:$0xff]
    %v45 = vld [vmem:[%s0 + $0x70] sm:$0xff]
    %v46 = vld [vmem:[%s0 + $0x78] sm:$0xff]
    %vm47 = vcmask 261120
    %v48 = vsel %vm47, %v31, 0.0
    %49 = vadd.xlane.f32.xlu0 %v48
    %v50 = vpop.xlane.xlu0 %49
    %v51 = vsel %vm47, %v32, 0.0
    %52 = vadd.xlane.f32.xlu0 %v51
    %v53 = vpop.xlane.xlu0 %52
    %v54 = vsel %vm47, %v33, 0.0
    %55 = vadd.xlane.f32.xlu0 %v54
    %v56 = vpop.xlane.xlu0 %55
    %v57 = vsel %vm47, %v34, 0.0
    %58 = vadd.xlane.f32.xlu0 %v57
    %v59 = vpop.xlane.xlu0 %58
    %v60 = vsel %vm47, %v35, 0.0
    %61 = vadd.xlane.f32.xlu0 %v60
    %v62 = vpop.xlane.xlu0 %61
    %v63 = vsel %vm47, %v36, 0.0
    %64 = vadd.xlane.f32.xlu0 %v63
    %v65 = vpop.xlane.xlu0 %64
    %v66 = vsel %vm47, %v37, 0.0
    %67 = vadd.xlane.f32.xlu0 %v66
    %v68 = vpop.xlane.xlu0 %67
    %v69 = vsel %vm47, %v38, 0.0
    %70 = vadd.xlane.f32.xlu0 %v69
    %v71 = vpop.xlane.xlu0 %70
    %v72 = vsel %vm47, %v39, 0.0
    %73 = vadd.xlane.f32.xlu0 %v72
    %v74 = vpop.xlane.xlu0 %73
    %v75 = vsel %vm47, %v40, 0.0
    %76 = vadd.xlane.f32.xlu0 %v75
    %v77 = vpop.xlane.xlu0 %76
    %v78 = vsel %vm47, %v41, 0.0
    %79 = vadd.xlane.f32.xlu0 %v78
    %v80 = vpop.xlane.xlu0 %79
    %v81 = vsel %vm47, %v42, 0.0
    %82 = vadd.xlane.f32.xlu0 %v81
    %v83 = vpop.xlane.xlu0 %82
    %v84 = vsel %vm47, %v43, 0.0
    %85 = vadd.xlane.f32.xlu0 %v84
    %v86 = vpop.xlane.xlu0 %85
    %v87 = vsel %vm47, %v44, 0.0
    %88 = vadd.xlane.f32.xlu0 %v87
    %v89 = vpop.xlane.xlu0 %88
    %v90 = vsel %vm47, %v45, 0.0
    %91 = vadd.xlane.f32.xlu0 %v90
    %v92 = vpop.xlane.xlu0 %91
    %v93 = vsel %vm47, %v46, 0.0
    %94 = vadd.xlane.f32.xlu0 %v93
    %v95 = vpop.xlane.xlu0 %94
    %v96 = vrcp.pop 32.0
    %v97 = vmul.f32 %v50, %v96
    %v98 = vmul.f32 %v53, %v96
    %v99 = vmul.f32 %v56, %v96
    %v100 = vmul.f32 %v59, %v96
    %v101 = vmul.f32 %v62, %v96
    %v102 = vmul.f32 %v65, %v96
    %v103 = vmul.f32 %v68, %v96
    %v104 = vmul.f32 %v71, %v96
    %v105 = vmul.f32 %v74, %v96
    %v106 = vmul.f32 %v77, %v96
    %v107 = vmul.f32 %v80, %v96
    %v108 = vmul.f32 %v83, %v96
    %v109 = vmul.f32 %v86, %v96
    %v110 = vmul.f32 %v89, %v96
    %v111 = vmul.f32 %v92, %v96
    %v112 = vmul.f32 %v95, %v96
    %v113 = vsub.f32 %v31, %v97
    %v114 = vsub.f32 %v32, %v98
    %v115 = vsub.f32 %v33, %v99
    %v116 = vsub.f32 %v34, %v100
    %v117 = vsub.f32 %v35, %v101
    %v118 = vsub.f32 %v36, %v102
    %v119 = vsub.f32 %v37, %v103
    %v120 = vsub.f32 %v38, %v104
    %v121 = vsub.f32 %v39, %v105
    %v122 = vsub.f32 %v40, %v106
    %v123 = vsub.f32 %v41, %v107
    %v124 = vsub.f32 %v42, %v108
    %v125 = vsub.f32 %v43, %v109
    %v126 = vsub.f32 %v44, %v110
    %v127 = vsub.f32 %v45, %v111
    %v128 = vsub.f32 %v46, %v112
    %v129 = vmul.f32 %v113, %v113
    %v130 = vmul.f32 %v114, %v114
    %v131 = vmul.f32 %v115, %v115
    %v132 = vmul.f32 %v116, %v116
    %v133 = vmul.f32 %v117, %v117
    %v134 = vmul.f32 %v118, %v118
    %v135 = vmul.f32 %v119, %v119
    %v136 = vmul.f32 %v120, %v120
    %v137 = vmul.f32 %v121, %v121
    %v138 = vmul.f32 %v122, %v122
    %v139 = vmul.f32 %v123, %v123
    %v140 = vmul.f32 %v124, %v124
    %v141 = vmul.f32 %v125, %v125
    %v142 = vmul.f32 %v126, %v126
    %v143 = vmul.f32 %v127, %v127
    %v144 = vmul.f32 %v128, %v128
    %v145 = vsel %vm47, %v129, 0.0
    %146 = vadd.xlane.f32.xlu0 %v145
    %v147 = vpop.xlane.xlu0 %146
    %v148 = vsel %vm47, %v130, 0.0
    %149 = vadd.xlane.f32.xlu0 %v148
    %v150 = vpop.xlane.xlu0 %149
    %v151 = vsel %vm47, %v131, 0.0
    %152 = vadd.xlane.f32.xlu0 %v151
    %v153 = vpop.xlane.xlu0 %152
    %v154 = vsel %vm47, %v132, 0.0
    %155 = vadd.xlane.f32.xlu0 %v154
    %v156 = vpop.xlane.xlu0 %155
    %v157 = vsel %vm47, %v133, 0.0
    %158 = vadd.xlane.f32.xlu0 %v157
    %v159 = vpop.xlane.xlu0 %158
    %v160 = vsel %vm47, %v134, 0.0
    %161 = vadd.xlane.f32.xlu0 %v160
    %v162 = vpop.xlane.xlu0 %161
    %v163 = vsel %vm47, %v135, 0.0
    %164 = vadd.xlane.f32.xlu0 %v163
    %v165 = vpop.xlane.xlu0 %164
    %v166 = vsel %vm47, %v136, 0.0
    %167 = vadd.xlane.f32.xlu0 %v166
    %v168 = vpop.xlane.xlu0 %167
    %v169 = vsel %vm47, %v137, 0.0
    %170 = vadd.xlane.f32.xlu0 %v169
    %v171 = vpop.xlane.xlu0 %170
    %v172 = vsel %vm47, %v138, 0.0
    %173 = vadd.xlane.f32.xlu0 %v172
    %v174 = vpop.xlane.xlu0 %173
    %v175 = vsel %vm47, %v139, 0.0
    %176 = vadd.xlane.f32.xlu0 %v175
    %v177 = vpop.xlane.xlu0 %176
    %v178 = vsel %vm47, %v140, 0.0
    %179 = vadd.xlane.f32.xlu0 %v178
    %v180 = vpop.xlane.xlu0 %179
    %v181 = vsel %vm47, %v141, 0.0
    %182 = vadd.xlane.f32.xlu0 %v181
    %v183 = vpop.xlane.xlu0 %182
    %v184 = vsel %vm47, %v142, 0.0
    %185 = vadd.xlane.f32.xlu0 %v184
    %v186 = vpop.xlane.xlu0 %185
    %v187 = vsel %vm47, %v143, 0.0
    %188 = vadd.xlane.f32.xlu0 %v187
    %v189 = vpop.xlane.xlu0 %188
    %v190 = vsel %vm47, %v144, 0.0
    %191 = vadd.xlane.f32.xlu0 %v190
    %v192 = vpop.xlane.xlu0 %191
    %v193 = vmul.f32 %v147, %v96
    %v194 = vmul.f32 %v150, %v96
    %v195 = vmul.f32 %v153, %v96
    %v196 = vmul.f32 %v156, %v96
    %v197 = vmul.f32 %v159, %v96
    %v198 = vmul.f32 %v162, %v96
    %v199 = vmul.f32 %v165, %v96
    %v200 = vmul.f32 %v168, %v96
    %v201 = vmul.f32 %v171, %v96
    %v202 = vmul.f32 %v174, %v96
    %v203 = vmul.f32 %v177, %v96
    %v204 = vmul.f32 %v180, %v96
    %v205 = vmul.f32 %v183, %v96
    %v206 = vmul.f32 %v186, %v96
    %v207 = vmul.f32 %v189, %v96
    %v208 = vmul.f32 %v192, %v96
    %v209 = vadd.f32 %v193, 1e-05
    %v210 = vadd.f32 %v194, 1e-05
    %v211 = vadd.f32 %v195, 1e-05
    %v212 = vadd.f32 %v196, 1e-05
    %v213 = vadd.f32 %v197, 1e-05
    %v214 = vadd.f32 %v198, 1e-05
    %v215 = vadd.f32 %v199, 1e-05
    %v216 = vadd.f32 %v200, 1e-05
    %v217 = vadd.f32 %v201, 1e-05
    %v218 = vadd.f32 %v202, 1e-05
    %v219 = vadd.f32 %v203, 1e-05
    %v220 = vadd.f32 %v204, 1e-05
    %v221 = vadd.f32 %v205, 1e-05
    %v222 = vadd.f32 %v206, 1e-05
    %v223 = vadd.f32 %v207, 1e-05
    %v224 = vadd.f32 %v208, 1e-05
    %v225 = vrsqrt.pop %v209
    %v226 = vrsqrt.pop %v210
    %v227 = vrsqrt.pop %v211
    %v228 = vrsqrt.pop %v212
    %v229 = vrsqrt.pop %v213
    %v230 = vrsqrt.pop %v214
    %v231 = vrsqrt.pop %v215
    %v232 = vrsqrt.pop %v216
    %v233 = vrsqrt.pop %v217
    %v234 = vrsqrt.pop %v218
    %v235 = vrsqrt.pop %v219
    %v236 = vrsqrt.pop %v220
    %v237 = vrsqrt.pop %v221
    %v238 = vrsqrt.pop %v222
    %v239 = vrsqrt.pop %v223
    %v240 = vrsqrt.pop %v224
    %v241 = vmul.f32 %v113, %v225
    %v242 = vmul.f32 %v114, %v226
    %v243 = vmul.f32 %v115, %v227
    %v244 = vmul.f32 %v116, %v228
    %v245 = vmul.f32 %v117, %v229
    %v246 = vmul.f32 %v118, %v230
    %v247 = vmul.f32 %v119, %v231
    %v248 = vmul.f32 %v120, %v232
    %v249 = vmul.f32 %v121, %v233
    %v250 = vmul.f32 %v122, %v234
    %v251 = vmul.f32 %v123, %v235
    %v252 = vmul.f32 %v124, %v236
    %v253 = vmul.f32 %v125, %v237
    %v254 = vmul.f32 %v126, %v238
    %v255 = vmul.f32 %v127, %v239
    %v256 = vmul.f32 %v128, %v240
    %v257 = vld [vmem:[%s1] sm:$0x1]
    %v259 = vlaneseq
    %v260 = vshrl.u32 %v259, 7
    %v261 = vsub.s32 0, %v260
    %v262 = vrot.slane %v257, %v261
    %v264 = vmul.f32 %v241, %v262
    %v265 = vmul.f32 %v242, %v262
    %v266 = vmul.f32 %v243, %v262
    %v267 = vmul.f32 %v244, %v262
    %v268 = vmul.f32 %v245, %v262
    %v269 = vmul.f32 %v246, %v262
    %v270 = vmul.f32 %v247, %v262
    %v271 = vmul.f32 %v248, %v262
    %v272 = vmul.f32 %v249, %v262
    %v273 = vmul.f32 %v250, %v262
    %v274 = vmul.f32 %v251, %v262
    %v275 = vmul.f32 %v252, %v262
    %v276 = vmul.f32 %v253, %v262
    %v277 = vmul.f32 %v254, %v262
    %v278 = vmul.f32 %v255, %v262
    %v279 = vmul.f32 %v256, %v262
    %v280 = vld [vmem:[%s2] sm:$0x1]
    %v282 = vlaneseq
    %v283 = vshrl.u32 %v282, 7
    %v284 = vsub.s32 0, %v283
    %v285 = vrot.slane %v280, %v284
    %v287 = vadd.f32 %v264, %v285
    %v288 = vadd.f32 %v265, %v285
    %v289 = vadd.f32 %v266, %v285
    %v290 = vadd.f32 %v267, %v285
    %v291 = vadd.f32 %v268, %v285
    %v292 = vadd.f32 %v269, %v285
    %v293 = vadd.f32 %v270, %v285
    %v294 = vadd.f32 %v271, %v285
    %v295 = vadd.f32 %v272, %v285
    %v296 = vadd.f32 %v273, %v285
    %v297 = vadd.f32 %v274, %v285
    %v298 = vadd.f32 %v275, %v285
    %v299 = vadd.f32 %v276, %v285
    %v300 = vadd.f32 %v277, %v285
    %v301 = vadd.f32 %v278, %v285
    %v302 = vadd.f32 %v279, %v285
    %v303 = vpack.c.bf16 %v288, %v287
    %v304 = vpack.c.bf16 %v290, %v289
    %v305 = vpack.c.bf16 %v292, %v291
    %v306 = vpack.c.bf16 %v294, %v293
    %v307 = vpack.c.bf16 %v296, %v295
    %v308 = vpack.c.bf16 %v298, %v297
    %v309 = vpack.c.bf16 %v300, %v299
    %v310 = vpack.c.bf16 %v302, %v301
    %v319 = vunpack.c.l.b16 %v303
    %v320 = vunpack.c.h.b16 %v303
    %v321 = vunpack.c.l.b16 %v304
    %v322 = vunpack.c.h.b16 %v304
    %v323 = vunpack.c.l.b16 %v305
    %v324 = vunpack.c.h.b16 %v305
    %v325 = vunpack.c.l.b16 %v306
    %v326 = vunpack.c.h.b16 %v306
    %v327 = vunpack.c.l.b16 %v307
    %v328 = vunpack.c.h.b16 %v307
    %v329 = vunpack.c.l.b16 %v308
    %v330 = vunpack.c.h.b16 %v308
    %v331 = vunpack.c.l.b16 %v309
    %v332 = vunpack.c.h.b16 %v309
    %v333 = vunpack.c.l.b16 %v310
    %v334 = vunpack.c.h.b16 %v310
    %v335 = vpack.c.b16 %v319, %v319
    %v336 = vpack.c.b16 %v320, %v320
    %v337 = vpack.c.b16 %v321, %v321
    %v338 = vpack.c.b16 %v322, %v322
    %v339 = vpack.c.b16 %v323, %v323
    %v340 = vpack.c.b16 %v324, %v324
    %v341 = vpack.c.b16 %v325, %v325
    %v342 = vpack.c.b16 %v326, %v326
    %v343 = vpack.c.b16 %v327, %v327
    %v344 = vpack.c.b16 %v328, %v328
    %v345 = vpack.c.b16 %v329, %v329
    %v346 = vpack.c.b16 %v330, %v330
    %v347 = vpack.c.b16 %v331, %v331
    %v348 = vpack.c.b16 %v332, %v332
    %v349 = vpack.c.b16 %v333, %v333
    %v350 = vpack.c.b16 %v334, %v334
    %vm367 = vcmask 257024
    %368 = vst.msk [vmem:[#allocation2] sm:$0xf] %vm367, %v335
    %369 = vst.msk [vmem:[#allocation2 + $0x4] sm:$0xf] %vm367, %v336
    %370 = vst.msk [vmem:[#allocation2 + $0x8] sm:$0xf] %vm367, %v337
    %371 = vst.msk [vmem:[#allocation2 + $0xc] sm:$0xf] %vm367, %v338
    %372 = vst.msk [vmem:[#allocation2 + $0x10] sm:$0xf] %vm367, %v339
    %373 = vst.msk [vmem:[#allocation2 + $0x14] sm:$0xf] %vm367, %v340
    %374 = vst.msk [vmem:[#allocation2 + $0x18] sm:$0xf] %vm367, %v341
    %375 = vst.msk [vmem:[#allocation2 + $0x1c] sm:$0xf] %vm367, %v342
    %376 = vst.msk [vmem:[#allocation2 + $0x20] sm:$0xf] %vm367, %v343
    %377 = vst.msk [vmem:[#allocation2 + $0x24] sm:$0xf] %vm367, %v344
    %378 = vst.msk [vmem:[#allocation2 + $0x28] sm:$0xf] %vm367, %v345
    %379 = vst.msk [vmem:[#allocation2 + $0x2c] sm:$0xf] %vm367, %v346
    %380 = vst.msk [vmem:[#allocation2 + $0x30] sm:$0xf] %vm367, %v347
    %381 = vst.msk [vmem:[#allocation2 + $0x34] sm:$0xf] %vm367, %v348
    %382 = vst.msk [vmem:[#allocation2 + $0x38] sm:$0xf] %vm367, %v349
    %383 = vst.msk [vmem:[#allocation2 + $0x3c] sm:$0xf] %vm367, %v350
  $region33: #{_lambda_.21} parent=0 // pred_fallthru
    _
  %v384 = vld [vmem:[#allocation2] sm:$0xf]
  %v385 = vld [vmem:[#allocation2 + $0x4] sm:$0xf]
  %v386 = vld [vmem:[#allocation2 + $0x8] sm:$0xf]
  %v387 = vld [vmem:[#allocation2 + $0xc] sm:$0xf]
  %v388 = vld [vmem:[#allocation2 + $0x10] sm:$0xf]
  %v389 = vld [vmem:[#allocation2 + $0x14] sm:$0xf]
  %v390 = vld [vmem:[#allocation2 + $0x18] sm:$0xf]
  %v391 = vld [vmem:[#allocation2 + $0x1c] sm:$0xf]
  %v392 = vld [vmem:[#allocation2 + $0x20] sm:$0xf]
  %v393 = vld [vmem:[#allocation2 + $0x24] sm:$0xf]
  %v394 = vld [vmem:[#allocation2 + $0x28] sm:$0xf]
  %v395 = vld [vmem:[#allocation2 + $0x2c] sm:$0xf]
  %v396 = vld [vmem:[#allocation2 + $0x30] sm:$0xf]
  %v397 = vld [vmem:[#allocation2 + $0x34] sm:$0xf]
  %v398 = vld [vmem:[#allocation2 + $0x38] sm:$0xf]
  %v399 = vld [vmem:[#allocation2 + $0x3c] sm:$0xf]
  %v400 = vld [vmem:[%s3] sm:$0xf]
  %v401 = vld [vmem:[%s3 + $0x4] sm:$0xf]
  %v402 = vld [vmem:[%s3 + $0x8] sm:$0xf]
  %v403 = vld [vmem:[%s3 + $0xc] sm:$0xf]
  %v404 = vld [vmem:[%s4] sm:$0x1]
  %v406 = vlaneseq
  %v407 = vshrl.u32 %v406, 7
  %v408 = vsub.s32 0, %v407
  %v409 = vrot.slane %v404, %v408
  %v427 = vunpack.c.l.b16 %v384
  %v428 = vunpack.c.l.b16 %v385
  %v429 = vunpack.c.l.b16 %v386
  %v430 = vunpack.c.l.b16 %v387
  %v431 = vunpack.c.l.b16 %v388
  %v432 = vunpack.c.l.b16 %v389
  %v433 = vunpack.c.l.b16 %v390
  %v434 = vunpack.c.l.b16 %v391
  %v435 = vunpack.c.l.b16 %v392
  %v436 = vunpack.c.l.b16 %v393
  %v437 = vunpack.c.l.b16 %v394
  %v438 = vunpack.c.l.b16 %v395
  %v439 = vunpack.c.l.b16 %v396
  %v440 = vunpack.c.l.b16 %v397
  %v441 = vunpack.c.l.b16 %v398
  %v442 = vunpack.c.l.b16 %v399
  %v443 = vpack.c.b16 %v428, %v427
  %v444 = vpack.c.b16 %v430, %v429
  %v445 = vpack.c.b16 %v432, %v431
  %v446 = vpack.c.b16 %v434, %v433
  %v447 = vpack.c.b16 %v436, %v435
  %v448 = vpack.c.b16 %v438, %v437
  %v449 = vpack.c.b16 %v440, %v439
  %v450 = vpack.c.b16 %v442, %v441
  %v455 = vunpack.c.l.b16 %v400
  %v456 = vunpack.c.l.b16 %v401
  %v457 = vunpack.c.l.b16 %v402
  %v458 = vunpack.c.l.b16 %v403
  %v459 = vpack.c.b16 %v456, %v455
  %v460 = vpack.c.b16 %v458, %v457
  %vm463 = vcmask 261120
  %v465 = vsel %vm463, %v443, 0
  %v468 = vsel %vm463, %v444, 0
  %v471 = vsel %vm463, %v445, 0
  %v474 = vsel %vm463, %v446, 0
  %v477 = vsel %vm463, %v447, 0
  %v480 = vsel %vm463, %v448, 0
  %v483 = vsel %vm463, %v449, 0
  %v486 = vsel %vm463, %v450, 0
  %488 = vmatprep.subr.bf16.mxu0 0
  %489 = vmatpush1.bf16.msra.mxu0 0
  %490 = vmatprep.subr.bf16.mxu0 0
  %491 = vmatpush1.bf16.msra.mxu0 0
  %492 = vmatprep.subr.bf16.mxu0 0
  %493 = vmatpush1.bf16.msra.mxu0 0
  %494 = vmatprep.subr.bf16.mxu0 0
  %495 = vmatpush1.bf16.msra.mxu0 0
  %496 = vmatprep.subr.bf16.mxu0 0
  %497 = vmatpush1.bf16.msra.mxu0 0
  %498 = vmatprep.subr.bf16.mxu0 0
  %499 = vmatpush1.bf16.msra.mxu0 0
  %500 = vmatprep.subr.bf16.mxu0 0
  %501 = vmatpush1.bf16.msra.mxu0 %v460
  %502 = vmatprep.subr.bf16.mxu0 0
  %503 = vmatpush1.bf16.msra.mxu0 %v459
  %504 = vmatprep.subr.bf16.mxu0 0
  %505 = vmatpush2.bf16.msra.mxu0 0
  %506 = vmatprep.subr.bf16.mxu0 0
  %507 = vmatpush2.bf16.msra.mxu0 0
  %508 = vmatprep.subr.bf16.mxu0 0
  %509 = vmatpush2.bf16.msra.mxu0 0
  %510 = vmatprep.subr.bf16.mxu0 0
  %511 = vmatpush2.bf16.msra.mxu0 0
  %512 = vmatprep.subr.bf16.mxu0 0
  %513 = vmatpush2.bf16.msra.mxu0 0
  %514 = vmatprep.subr.bf16.mxu0 0
  %515 = vmatpush2.bf16.msra.mxu0 0
  %516 = vmatprep.subr.bf16.mxu0 0
  %517 = vmatpush2.bf16.msra.mxu0 0
  %518 = vmatprep.subr.bf16.mxu0 0
  %519 = vmatpush2.bf16.msra.mxu0 0
  %520 = vmatprep.mubr.bf16.mxu0 0
  %521 = vmatmul.mubr.bf16.gmra.mxu0 %v465
  %v522 = vpop.f32.mrf.mxu0
  %v523 = vadd.f32 %v409, %v522
  %v524 = vpop.f32.mrf.mxu0
  %v525 = vpop.f32.mrf.mxu0
  %v526 = vadd.f32 %v409, %v525
  %v527 = vpop.f32.mrf.mxu0
  %528 = vmatprep.mubr.bf16.mxu0 0
  %529 = vmatmul.mubr.bf16.gmra.mxu0 %v468
  %v530 = vpop.f32.mrf.mxu0
  %v531 = vadd.f32 %v409, %v530
  %v532 = vpop.f32.mrf.mxu0
  %v533 = vpop.f32.mrf.mxu0
  %v534 = vadd.f32 %v409, %v533
  %v535 = vpop.f32.mrf.mxu0
  %536 = vmatprep.mubr.bf16.mxu0 0
  %537 = vmatmul.mubr.bf16.gmra.mxu0 %v471
  %v538 = vpop.f32.mrf.mxu0
  %v539 = vadd.f32 %v409, %v538
  %v540 = vpop.f32.mrf.mxu0
  %v541 = vpop.f32.mrf.mxu0
  %v542 = vadd.f32 %v409, %v541
  %v543 = vpop.f32.mrf.mxu0
  %544 = vmatprep.mubr.bf16.mxu0 0
  %545 = vmatmul.mubr.bf16.gmra.mxu0 %v474
  %v546 = vpop.f32.mrf.mxu0
  %v547 = vadd.f32 %v409, %v546
  %v548 = vpop.f32.mrf.mxu0
  %v549 = vpop.f32.mrf.mxu0
  %v550 = vadd.f32 %v409, %v549
  %v551 = vpop.f32.mrf.mxu0
  %552 = vmatprep.mubr.bf16.mxu0 0
  %553 = vmatmul.mubr.bf16.gmra.mxu0 %v477
  %v554 = vpop.f32.mrf.mxu0
  %v555 = vadd.f32 %v409, %v554
  %v556 = vpop.f32.mrf.mxu0
  %v557 = vpop.f32.mrf.mxu0
  %v558 = vadd.f32 %v409, %v557
  %v559 = vpop.f32.mrf.mxu0
  %560 = vmatprep.mubr.bf16.mxu0 0
  %561 = vmatmul.mubr.bf16.gmra.mxu0 %v480
  %v562 = vpop.f32.mrf.mxu0
  %v563 = vadd.f32 %v409, %v562
  %v564 = vpop.f32.mrf.mxu0
  %v565 = vpop.f32.mrf.mxu0
  %v566 = vadd.f32 %v409, %v565
  %v567 = vpop.f32.mrf.mxu0
  %568 = vmatprep.mubr.bf16.mxu0 0
  %569 = vmatmul.mubr.bf16.gmra.mxu0 %v483
  %v570 = vpop.f32.mrf.mxu0
  %v571 = vadd.f32 %v409, %v570
  %v572 = vpop.f32.mrf.mxu0
  %v573 = vpop.f32.mrf.mxu0
  %v574 = vadd.f32 %v409, %v573
  %v575 = vpop.f32.mrf.mxu0
  %576 = vmatprep.mubr.bf16.mxu0 0
  %577 = vmatmul.mubr.bf16.gmra.mxu0 %v486
  %v578 = vpop.f32.mrf.mxu0
  %v579 = vadd.f32 %v409, %v578
  %v580 = vpop.f32.mrf.mxu0
  %v581 = vpop.f32.mrf.mxu0
  %v582 = vadd.f32 %v409, %v581
  %v583 = vpop.f32.mrf.mxu0
  %584 = vdwg.mxu0
  %v585 = vld [vmem:[%s5] sm:$0xf]
  %v586 = vld [vmem:[%s5 + $0x4] sm:$0xf]
  %v587 = vld [vmem:[%s5 + $0x8] sm:$0xf]
  %v588 = vld [vmem:[%s5 + $0xc] sm:$0xf]
  %v589 = vld [vmem:[%s6] sm:$0x1]
  %v591 = vlaneseq
  %v592 = vshrl.u32 %v591, 7
  %v593 = vsub.s32 0, %v592
  %v594 = vrot.slane %v589, %v593
  %v600 = vunpack.c.l.b16 %v585
  %v601 = vunpack.c.l.b16 %v586
  %v602 = vunpack.c.l.b16 %v587
  %v603 = vunpack.c.l.b16 %v588
  %v604 = vpack.c.b16 %v601, %v600
  %v605 = vpack.c.b16 %v603, %v602
  %608 = vmatprep.subr.bf16.mxu0 0
  %609 = vmatpush1.bf16.msra.mxu0 0
  %610 = vmatprep.subr.bf16.mxu0 0
  %611 = vmatpush1.bf16.msra.mxu0 0
  %612 = vmatprep.subr.bf16.mxu0 0
  %613 = vmatpush1.bf16.msra.mxu0 0
  %614 = vmatprep.subr.bf16.mxu0 0
  %615 = vmatpush1.bf16.msra.mxu0 0
  %616 = vmatprep.subr.bf16.mxu0 0
  %617 = vmatpush1.bf16.msra.mxu0 0
  %618 = vmatprep.subr.bf16.mxu0 0
  %619 = vmatpush1.bf16.msra.mxu0 0
  %620 = vmatprep.subr.bf16.mxu0 0
  %621 = vmatpush1.bf16.msra.mxu0 %v605
  %622 = vmatprep.subr.bf16.mxu0 0
  %623 = vmatpush1.bf16.msra.mxu0 %v604
  %624 = vmatprep.subr.bf16.mxu0 0
  %625 = vmatpush2.bf16.msra.mxu0 0
  %626 = vmatprep.subr.bf16.mxu0 0
  %627 = vmatpush2.bf16.msra.mxu0 0
  %628 = vmatprep.subr.bf16.mxu0 0
  %629 = vmatpush2.bf16.msra.mxu0 0
  %630 = vmatprep.subr.bf16.mxu0 0
  %631 = vmatpush2.bf16.msra.mxu0 0
  %632 = vmatprep.subr.bf16.mxu0 0
  %633 = vmatpush2.bf16.msra.mxu0 0
  %634 = vmatprep.subr.bf16.mxu0 0
  %635 = vmatpush2.bf16.msra.mxu0 0
  %636 = vmatprep.subr.bf16.mxu0 0
  %637 = vmatpush2.bf16.msra.mxu0 0
  %638 = vmatprep.subr.bf16.mxu0 0
  %639 = vmatpush2.bf16.msra.mxu0 0
  %640 = vmatprep.mubr.bf16.mxu0 0
  %641 = vmatmul.mubr.bf16.gmra.mxu0 %v465
  %v642 = vpop.f32.mrf.mxu0
  %v643 = vadd.f32 %v594, %v642
  %v644 = vpop.f32.mrf.mxu0
  %v645 = vpop.f32.mrf.mxu0
  %v646 = vadd.f32 %v594, %v645
  %v647 = vpop.f32.mrf.mxu0
  %648 = vmatprep.mubr.bf16.mxu0 0
  %649 = vmatmul.mubr.bf16.gmra.mxu0 %v468
  %v650 = vpop.f32.mrf.mxu0
  %v651 = vadd.f32 %v594, %v650
  %v652 = vpop.f32.mrf.mxu0
  %v653 = vpop.f32.mrf.mxu0
  %v654 = vadd.f32 %v594, %v653
  %v655 = vpop.f32.mrf.mxu0
  %656 = vmatprep.mubr.bf16.mxu0 0
  %657 = vmatmul.mubr.bf16.gmra.mxu0 %v471
  %v658 = vpop.f32.mrf.mxu0
  %v659 = vadd.f32 %v594, %v658
  %v660 = vpop.f32.mrf.mxu0
  %v661 = vpop.f32.mrf.mxu0
  %v662 = vadd.f32 %v594, %v661
  %v663 = vpop.f32.mrf.mxu0
  %664 = vmatprep.mubr.bf16.mxu0 0
  %665 = vmatmul.mubr.bf16.gmra.mxu0 %v474
  %v666 = vpop.f32.mrf.mxu0
  %v667 = vadd.f32 %v594, %v666
  %v668 = vpop.f32.mrf.mxu0
  %v669 = vpop.f32.mrf.mxu0
  %v670 = vadd.f32 %v594, %v669
  %v671 = vpop.f32.mrf.mxu0
  %672 = vmatprep.mubr.bf16.mxu0 0
  %673 = vmatmul.mubr.bf16.gmra.mxu0 %v477
  %v674 = vpop.f32.mrf.mxu0
  %v675 = vadd.f32 %v594, %v674
  %v676 = vpop.f32.mrf.mxu0
  %v677 = vpop.f32.mrf.mxu0
  %v678 = vadd.f32 %v594, %v677
  %v679 = vpop.f32.mrf.mxu0
  %680 = vmatprep.mubr.bf16.mxu0 0
  %681 = vmatmul.mubr.bf16.gmra.mxu0 %v480
  %v682 = vpop.f32.mrf.mxu0
  %v683 = vadd.f32 %v594, %v682
  %v684 = vpop.f32.mrf.mxu0
  %v685 = vpop.f32.mrf.mxu0
  %v686 = vadd.f32 %v594, %v685
  %v687 = vpop.f32.mrf.mxu0
  %688 = vmatprep.mubr.bf16.mxu0 0
  %689 = vmatmul.mubr.bf16.gmra.mxu0 %v483
  %v690 = vpop.f32.mrf.mxu0
  %v691 = vadd.f32 %v594, %v690
  %v692 = vpop.f32.mrf.mxu0
  %v693 = vpop.f32.mrf.mxu0
  %v694 = vadd.f32 %v594, %v693
  %v695 = vpop.f32.mrf.mxu0
  %696 = vmatprep.mubr.bf16.mxu0 0
  %697 = vmatmul.mubr.bf16.gmra.mxu0 %v486
  %v698 = vpop.f32.mrf.mxu0
  %v699 = vadd.f32 %v594, %v698
  %v700 = vpop.f32.mrf.mxu0
  %v701 = vpop.f32.mrf.mxu0
  %v702 = vadd.f32 %v594, %v701
  %v703 = vpop.f32.mrf.mxu0
  %704 = vdwg.mxu0
  %v705 = vmul.f32 %v643, 0.5
  %v706 = vmul.f32 %v646, 0.5
  %v707 = vmul.f32 %v651, 0.5
  %v708 = vmul.f32 %v654, 0.5
  %v709 = vmul.f32 %v659, 0.5
  %v710 = vmul.f32 %v662, 0.5
  %v711 = vmul.f32 %v667, 0.5
  %v712 = vmul.f32 %v670, 0.5
  %v713 = vmul.f32 %v675, 0.5
  %v714 = vmul.f32 %v678, 0.5
  %v715 = vmul.f32 %v683, 0.5
  %v716 = vmul.f32 %v686, 0.5
  %v717 = vmul.f32 %v691, 0.5
  %v718 = vmul.f32 %v694, 0.5
  %v719 = vmul.f32 %v699, 0.5
  %v720 = vmul.f32 %v702, 0.5
  %v721 = vmul.f32 %v643, 0.70710677
  %v722 = vmul.f32 %v646, 0.70710677
  %v723 = vmul.f32 %v651, 0.70710677
  %v724 = vmul.f32 %v654, 0.70710677
  %v725 = vmul.f32 %v659, 0.70710677
  %v726 = vmul.f32 %v662, 0.70710677
  %v727 = vmul.f32 %v667, 0.70710677
  %v728 = vmul.f32 %v670, 0.70710677
  %v729 = vmul.f32 %v675, 0.70710677
  %v730 = vmul.f32 %v678, 0.70710677
  %v731 = vmul.f32 %v683, 0.70710677
  %v732 = vmul.f32 %v686, 0.70710677
  %v733 = vmul.f32 %v691, 0.70710677
  %v734 = vmul.f32 %v694, 0.70710677
  %v735 = vmul.f32 %v699, 0.70710677
  %v736 = vmul.f32 %v702, 0.70710677
  %v737 = verf.f32.pop %v721
  %v738 = verf.f32.pop %v722
  %v739 = verf.f32.pop %v723
  %v740 = verf.f32.pop %v724
  %v741 = verf.f32.pop %v725
  %v742 = verf.f32.pop %v726
  %v743 = verf.f32.pop %v727
  %v744 = verf.f32.pop %v728
  %v745 = verf.f32.pop %v729
  %v746 = verf.f32.pop %v730
  %v747 = verf.f32.pop %v731
  %v748 = verf.f32.pop %v732
  %v749 = verf.f32.pop %v733
  %v750 = verf.f32.pop %v734
  %v751 = verf.f32.pop %v735
  %v752 = verf.f32.pop %v736
  %v753 = vadd.f32 %v737, 1.0
  %v754 = vadd.f32 %v738, 1.0
  %v755 = vadd.f32 %v739, 1.0
  %v756 = vadd.f32 %v740, 1.0
  %v757 = vadd.f32 %v741, 1.0
  %v758 = vadd.f32 %v742, 1.0
  %v759 = vadd.f32 %v743, 1.0
  %v760 = vadd.f32 %v744, 1.0
  %v761 = vadd.f32 %v745, 1.0
  %v762 = vadd.f32 %v746, 1.0
  %v763 = vadd.f32 %v747, 1.0
  %v764 = vadd.f32 %v748, 1.0
  %v765 = vadd.f32 %v749, 1.0
  %v766 = vadd.f32 %v750, 1.0
  %v767 = vadd.f32 %v751, 1.0
  %v768 = vadd.f32 %v752, 1.0
  %v769 = vmul.f32 %v705, %v753
  %v770 = vmul.f32 %v706, %v754
  %v771 = vmul.f32 %v707, %v755
  %v772 = vmul.f32 %v708, %v756
  %v773 = vmul.f32 %v709, %v757
  %v774 = vmul.f32 %v710, %v758
  %v775 = vmul.f32 %v711, %v759
  %v776 = vmul.f32 %v712, %v760
  %v777 = vmul.f32 %v713, %v761
  %v778 = vmul.f32 %v714, %v762
  %v779 = vmul.f32 %v715, %v763
  %v780 = vmul.f32 %v716, %v764
  %v781 = vmul.f32 %v717, %v765
  %v782 = vmul.f32 %v718, %v766
  %v783 = vmul.f32 %v719, %v767
  %v784 = vmul.f32 %v720, %v768
  %v785 = vmul.f32 %v523, %v769
  %v786 = vmul.f32 %v526, %v770
  %v787 = vmul.f32 %v531, %v771
  %v788 = vmul.f32 %v534, %v772
  %v789 = vmul.f32 %v539, %v773
  %v790 = vmul.f32 %v542, %v774
  %v791 = vmul.f32 %v547, %v775
  %v792 = vmul.f32 %v550, %v776
  %v793 = vmul.f32 %v555, %v777
  %v794 = vmul.f32 %v558, %v778
  %v795 = vmul.f32 %v563, %v779
  %v796 = vmul.f32 %v566, %v780
  %v797 = vmul.f32 %v571, %v781
  %v798 = vmul.f32 %v574, %v782
  %v799 = vmul.f32 %v579, %v783
  %v800 = vmul.f32 %v582, %v784
  %v801 = vpack.c.bf16 %v786, %v785
  %v802 = vpack.c.bf16 %v788, %v787
  %v803 = vpack.c.bf16 %v790, %v789
  %v804 = vpack.c.bf16 %v792, %v791
  %v805 = vpack.c.bf16 %v794, %v793
  %v806 = vpack.c.bf16 %v796, %v795
  %v807 = vpack.c.bf16 %v798, %v797
  %v808 = vpack.c.bf16 %v800, %v799
  %v817 = vunpack.c.l.b16 %v801
  %v818 = vunpack.c.h.b16 %v801
  %v819 = vunpack.c.l.b16 %v802
  %v820 = vunpack.c.h.b16 %v802
  %v821 = vunpack.c.l.b16 %v803
  %v822 = vunpack.c.h.b16 %v803
  %v823 = vunpack.c.l.b16 %v804
  %v824 = vunpack.c.h.b16 %v804
  %v825 = vunpack.c.l.b16 %v805
  %v826 = vunpack.c.h.b16 %v805
  %v827 = vunpack.c.l.b16 %v806
  %v828 = vunpack.c.h.b16 %v806
  %v829 = vunpack.c.l.b16 %v807
  %v830 = vunpack.c.h.b16 %v807
  %v831 = vunpack.c.l.b16 %v808
  %v832 = vunpack.c.h.b16 %v808
  %v833 = vpack.c.b16 %v817, %v817
  %v834 = vpack.c.b16 %v818, %v818
  %v835 = vpack.c.b16 %v819, %v819
  %v836 = vpack.c.b16 %v820, %v820
  %v837 = vpack.c.b16 %v821, %v821
  %v838 = vpack.c.b16 %v822, %v822
  %v839 = vpack.c.b16 %v823, %v823
  %v840 = vpack.c.b16 %v824, %v824
  %v841 = vpack.c.b16 %v825, %v825
  %v842 = vpack.c.b16 %v826, %v826
  %v843 = vpack.c.b16 %v827, %v827
  %v844 = vpack.c.b16 %v828, %v828
  %v845 = vpack.c.b16 %v829, %v829
  %v846 = vpack.c.b16 %v830, %v830
  %v847 = vpack.c.b16 %v831, %v831
  %v848 = vpack.c.b16 %v832, %v832
  %865 = vst [vmem:[%s7] sm:$0xf] %v833
  %866 = vst [vmem:[%s7 + $0x4] sm:$0xf] %v834
  %867 = vst [vmem:[%s7 + $0x8] sm:$0xf] %v835
  %868 = vst [vmem:[%s7 + $0xc] sm:$0xf] %v836
  %869 = vst [vmem:[%s7 + $0x10] sm:$0xf] %v837
  %870 = vst [vmem:[%s7 + $0x14] sm:$0xf] %v838
  %871 = vst [vmem:[%s7 + $0x18] sm:$0xf] %v839
  %872 = vst [vmem:[%s7 + $0x1c] sm:$0xf] %v840
  %873 = vst [vmem:[%s7 + $0x20] sm:$0xf] %v841
  %874 = vst [vmem:[%s7 + $0x24] sm:$0xf] %v842
  %875 = vst [vmem:[%s7 + $0x28] sm:$0xf] %v843
  %876 = vst [vmem:[%s7 + $0x2c] sm:$0xf] %v844
  %877 = vst [vmem:[%s7 + $0x30] sm:$0xf] %v845
  %878 = vst [vmem:[%s7 + $0x34] sm:$0xf] %v846
  %879 = vst [vmem:[%s7 + $0x38] sm:$0xf] %v847
  %880 = vst [vmem:[%s7 + $0x3c] sm:$0xf] %v848
  // Predicated region
  $region34: #{_lambda_.21} parent=0 // pred_check
    _
  $region35: #{_lambda_.21} parent=0 // pred_check_branch
    %882 = sbr.rel (0) target = $region37
  $region36: #{_lambda_.21} parent=0 // pred_region
    _
  $region37: #{_lambda_.21} parent=0 // pred_fallthru
    _
  // Predicated region
  $region38: #{_lambda_.21} parent=0 // pred_check
    _
  $region39: #{_lambda_.21} parent=0 // pred_check_branch
    %884 = sbr.rel (0) target = $region41
  $region40: #{_lambda_.21} parent=0 // pred_region
    _
  $region41: #{_lambda_.21} parent=0 // pred_fallthru
    _

// kernel: _lambda_.23
$region0: #{_lambda_.23}
  #allocation0 [shape = 'u32[]', space=smem, size = 0x4, offset = 0x4, fixed_abs, tag = 'smem constant byte address 0x4 - core index']
  #allocation1 [shape = 'u32[144,128]{1,0:T(1,128)}', space=vmem, size = 0x12000, scoped, tag = 'internal scratch']
  #allocation2 [shape = 'f32[128,32]{1,0:T(8,128)}', space=vmem, size = 0x10000, scoped, tag = 'scratch operand']
  %s0 = inlined_call_operand.vmem [shape: f32[128,32], index: 0, kind: input, shape index: {}]
  %s1 = inlined_call_operand.vmem [shape: bf16[32,32], index: 1, kind: input, shape index: {}]
  %s2 = inlined_call_operand.vmem [shape: f32[1,32], index: 2, kind: input, shape index: {}]
  %s3 = inlined_call_operand.vmem [shape: f32[128,32], index: 3, kind: input, shape index: {}]
  %s4 = inlined_call_operand.hbm [shape: f32[128,32], index: 4, kind: output, shape index: {}]
  %s5 = sld [smem:[#allocation0]]
  $region34: #{_lambda_.23} parent=0
    _
  %s7 = ssub.s32 1, %s5
  %s8 = scalar_select 0, %s7, %s5
  $region1: #{_lambda_.23} parent=0
    #allocation3 [shape = 'u8[65536]{0}', space=vmem, size = 0x10000, scoped, tag = 'output window, operand 0, single buffered']
    #allocation4 [shape = 's32[1]{0}', space=sflag, size = 0x4, scoped, tag = 'scoped memory for _lambda_.23']
    %9 = vsyncpa [#allocation4], 0
    // Predicated region
    $region2: #{_lambda_.23} parent=1 // pred_check
      _
    $region3: #{_lambda_.23} parent=1 // pred_check_branch
      %11 = sbr.rel (0) target = $region5
    $region4: #{_lambda_.23} parent=1 // pred_region
      _
    $region5: #{_lambda_.23} parent=1 // pred_fallthru
      _
    // Predicated region
    $region6: #{_lambda_.23} parent=1 // pred_check
      _
    $region7: #{_lambda_.23} parent=1 // pred_check_branch
      %13 = sbr.rel (0) target = $region9
    $region8: #{_lambda_.23} parent=1 // pred_region
      _
    $region9: #{_lambda_.23} parent=1 // pred_fallthru
      _
    // Predicated region
    $region10: #{_lambda_.23} parent=1 // pred_check
      _
    $region11: #{_lambda_.23} parent=1 // pred_check_branch
      %15 = sbr.rel (0) target = $region13
    $region12: #{_lambda_.23} parent=1 // pred_region
      _
    $region13: #{_lambda_.23} parent=1 // pred_fallthru
      _
    // Predicated region
    $region14: #{_lambda_.23} parent=1 // pred_check
      _
    $region15: #{_lambda_.23} parent=1 // pred_check_branch
      %17 = sbr.rel (0) target = $region17
    $region16: #{_lambda_.23} parent=1 // pred_region
      _
    $region17: #{_lambda_.23} parent=1 // pred_fallthru
      _
    %p19 = scmp.eq.s32.totalorder 0, 0
    // Predicated region
    $region18: #{_lambda_.23} parent=1 // pred_check
      %p20 = pneg %p19
    $region19: #{_lambda_.23} parent=1 // pred_check_branch
      %22 = sbr.rel (%p20) target = $region21
    $region20: #{_lambda_.23} parent=1 // pred_region
      %vm23 = vcmask 261120
      %24 = vst.msk [vmem:[#allocation2] sm:$0xff] %vm23, 0.0
      %25 = vst.msk [vmem:[#allocation2 + $0x8] sm:$0xff] %vm23, 0.0
      %26 = vst.msk [vmem:[#allocation2 + $0x10] sm:$0xff] %vm23, 0.0
      %27 = vst.msk [vmem:[#allocation2 + $0x18] sm:$0xff] %vm23, 0.0
      %28 = vst.msk [vmem:[#allocation2 + $0x20] sm:$0xff] %vm23, 0.0
      %29 = vst.msk [vmem:[#allocation2 + $0x28] sm:$0xff] %vm23, 0.0
      %30 = vst.msk [vmem:[#allocation2 + $0x30] sm:$0xff] %vm23, 0.0
      %31 = vst.msk [vmem:[#allocation2 + $0x38] sm:$0xff] %vm23, 0.0
      %32 = vst.msk [vmem:[#allocation2 + $0x40] sm:$0xff] %vm23, 0.0
      %33 = vst.msk [vmem:[#allocation2 + $0x48] sm:$0xff] %vm23, 0.0
      %34 = vst.msk [vmem:[#allocation2 + $0x50] sm:$0xff] %vm23, 0.0
      %35 = vst.msk [vmem:[#allocation2 + $0x58] sm:$0xff] %vm23, 0.0
      %36 = vst.msk [vmem:[#allocation2 + $0x60] sm:$0xff] %vm23, 0.0
      %37 = vst.msk [vmem:[#allocation2 + $0x68] sm:$0xff] %vm23, 0.0
      %38 = vst.msk [vmem:[#allocation2 + $0x70] sm:$0xff] %vm23, 0.0
      %39 = vst.msk [vmem:[#allocation2 + $0x78] sm:$0xff] %vm23, 0.0
    $region21: #{_lambda_.23} parent=1 // pred_fallthru
      _
    %v40 = vld [vmem:[#allocation2] sm:$0xff]
    %v41 = vld [vmem:[#allocation2 + $0x8] sm:$0xff]
    %v42 = vld [vmem:[#allocation2 + $0x10] sm:$0xff]
    %v43 = vld [vmem:[#allocation2 + $0x18] sm:$0xff]
    %v44 = vld [vmem:[#allocation2 + $0x20] sm:$0xff]
    %v45 = vld [vmem:[#allocation2 + $0x28] sm:$0xff]
    %v46 = vld [vmem:[#allocation2 + $0x30] sm:$0xff]
    %v47 = vld [vmem:[#allocation2 + $0x38] sm:$0xff]
    %v48 = vld [vmem:[#allocation2 + $0x40] sm:$0xff]
    %v49 = vld [vmem:[#allocation2 + $0x48] sm:$0xff]
    %v50 = vld [vmem:[#allocation2 + $0x50] sm:$0xff]
    %v51 = vld [vmem:[#allocation2 + $0x58] sm:$0xff]
    %v52 = vld [vmem:[#allocation2 + $0x60] sm:$0xff]
    %v53 = vld [vmem:[#allocation2 + $0x68] sm:$0xff]
    %v54 = vld [vmem:[#allocation2 + $0x70] sm:$0xff]
    %v55 = vld [vmem:[#allocation2 + $0x78] sm:$0xff]
    %v56 = vld [vmem:[%s0] sm:$0xff]
    %v57 = vld [vmem:[%s0 + $0x8] sm:$0xff]
    %v58 = vld [vmem:[%s0 + $0x10] sm:$0xff]
    %v59 = vld [vmem:[%s0 + $0x18] sm:$0xff]
    %v60 = vld [vmem:[%s0 + $0x20] sm:$0xff]
    %v61 = vld [vmem:[%s0 + $0x28] sm:$0xff]
    %v62 = vld [vmem:[%s0 + $0x30] sm:$0xff]
    %v63 = vld [vmem:[%s0 + $0x38] sm:$0xff]
    %v64 = vld [vmem:[%s0 + $0x40] sm:$0xff]
    %v65 = vld [vmem:[%s0 + $0x48] sm:$0xff]
    %v66 = vld [vmem:[%s0 + $0x50] sm:$0xff]
    %v67 = vld [vmem:[%s0 + $0x58] sm:$0xff]
    %v68 = vld [vmem:[%s0 + $0x60] sm:$0xff]
    %v69 = vld [vmem:[%s0 + $0x68] sm:$0xff]
    %v70 = vld [vmem:[%s0 + $0x70] sm:$0xff]
    %v71 = vld [vmem:[%s0 + $0x78] sm:$0xff]
    %v72 = vpack.c.bf16 %v57, %v56
    %v73 = vpack.c.bf16 %v59, %v58
    %v74 = vpack.c.bf16 %v61, %v60
    %v75 = vpack.c.bf16 %v63, %v62
    %v76 = vpack.c.bf16 %v65, %v64
    %v77 = vpack.c.bf16 %v67, %v66
    %v78 = vpack.c.bf16 %v69, %v68
    %v79 = vpack.c.bf16 %v71, %v70
    %v80 = vld [vmem:[%s1] sm:$0xf]
    %v81 = vld [vmem:[%s1 + $0x4] sm:$0xf]
    %v82 = vld [vmem:[%s1 + $0x8] sm:$0xf]
    %v83 = vld [vmem:[%s1 + $0xc] sm:$0xf]
    %v88 = vunpack.c.l.b16 %v80
    %v89 = vunpack.c.l.b16 %v81
    %v90 = vunpack.c.l.b16 %v82
    %v91 = vunpack.c.l.b16 %v83
    %v92 = vpack.c.b16 %v89, %v88
    %v93 = vpack.c.b16 %v91, %v90
    %vm96 = vcmask 261120
    %v98 = vsel %vm96, %v72, 0
    %v101 = vsel %vm96, %v73, 0
    %v104 = vsel %vm96, %v74, 0
    %v107 = vsel %vm96, %v75, 0
    %v110 = vsel %vm96, %v76, 0
    %v113 = vsel %vm96, %v77, 0
    %v116 = vsel %vm96, %v78, 0
    %v119 = vsel %vm96, %v79, 0
    %121 = vmatprep.subr.bf16.mxu0 0
    %122 = vmatpush1.bf16.msra.mxu0 0
    %123 = vmatprep.subr.bf16.mxu0 0
    %124 = vmatpush1.bf16.msra.mxu0 0
    %125 = vmatprep.subr.bf16.mxu0 0
    %126 = vmatpush1.bf16.msra.mxu0 0
    %127 = vmatprep.subr.bf16.mxu0 0
    %128 = vmatpush1.bf16.msra.mxu0 0
    %129 = vmatprep.subr.bf16.mxu0 0
    %130 = vmatpush1.bf16.msra.mxu0 0
    %131 = vmatprep.subr.bf16.mxu0 0
    %132 = vmatpush1.bf16.msra.mxu0 0
    %133 = vmatprep.subr.bf16.mxu0 0
    %134 = vmatpush1.bf16.msra.mxu0 %v93
    %135 = vmatprep.subr.bf16.mxu0 0
    %136 = vmatpush1.bf16.msra.mxu0 %v92
    %137 = vmatprep.subr.bf16.mxu0 0
    %138 = vmatpush2.bf16.msra.mxu0 0
    %139 = vmatprep.subr.bf16.mxu0 0
    %140 = vmatpush2.bf16.msra.mxu0 0
    %141 = vmatprep.subr.bf16.mxu0 0
    %142 = vmatpush2.bf16.msra.mxu0 0
    %143 = vmatprep.subr.bf16.mxu0 0
    %144 = vmatpush2.bf16.msra.mxu0 0
    %145 = vmatprep.subr.bf16.mxu0 0
    %146 = vmatpush2.bf16.msra.mxu0 0
    %147 = vmatprep.subr.bf16.mxu0 0
    %148 = vmatpush2.bf16.msra.mxu0 0
    %149 = vmatprep.subr.bf16.mxu0 0
    %150 = vmatpush2.bf16.msra.mxu0 0
    %151 = vmatprep.subr.bf16.mxu0 0
    %152 = vmatpush2.bf16.msra.mxu0 0
    %153 = vmatprep.mubr.bf16.mxu0 0
    %154 = vmatmul.mubr.bf16.gmra.mxu0 %v98
    %v155 = vpop.f32.mrf.mxu0
    %v156 = vadd.f32 0.0, %v155
    %v157 = vpop.f32.mrf.mxu0
    %v158 = vpop.f32.mrf.mxu0
    %v159 = vadd.f32 0.0, %v158
    %v160 = vpop.f32.mrf.mxu0
    %161 = vmatprep.mubr.bf16.mxu0 0
    %162 = vmatmul.mubr.bf16.gmra.mxu0 %v101
    %v163 = vpop.f32.mrf.mxu0
    %v164 = vadd.f32 0.0, %v163
    %v165 = vpop.f32.mrf.mxu0
    %v166 = vpop.f32.mrf.mxu0
    %v167 = vadd.f32 0.0, %v166
    %v168 = vpop.f32.mrf.mxu0
    %169 = vmatprep.mubr.bf16.mxu0 0
    %170 = vmatmul.mubr.bf16.gmra.mxu0 %v104
    %v171 = vpop.f32.mrf.mxu0
    %v172 = vadd.f32 0.0, %v171
    %v173 = vpop.f32.mrf.mxu0
    %v174 = vpop.f32.mrf.mxu0
    %v175 = vadd.f32 0.0, %v174
    %v176 = vpop.f32.mrf.mxu0
    %177 = vmatprep.mubr.bf16.mxu0 0
    %178 = vmatmul.mubr.bf16.gmra.mxu0 %v107
    %v179 = vpop.f32.mrf.mxu0
    %v180 = vadd.f32 0.0, %v179
    %v181 = vpop.f32.mrf.mxu0
    %v182 = vpop.f32.mrf.mxu0
    %v183 = vadd.f32 0.0, %v182
    %v184 = vpop.f32.mrf.mxu0
    %185 = vmatprep.mubr.bf16.mxu0 0
    %186 = vmatmul.mubr.bf16.gmra.mxu0 %v110
    %v187 = vpop.f32.mrf.mxu0
    %v188 = vadd.f32 0.0, %v187
    %v189 = vpop.f32.mrf.mxu0
    %v190 = vpop.f32.mrf.mxu0
    %v191 = vadd.f32 0.0, %v190
    %v192 = vpop.f32.mrf.mxu0
    %193 = vmatprep.mubr.bf16.mxu0 0
    %194 = vmatmul.mubr.bf16.gmra.mxu0 %v113
    %v195 = vpop.f32.mrf.mxu0
    %v196 = vadd.f32 0.0, %v195
    %v197 = vpop.f32.mrf.mxu0
    %v198 = vpop.f32.mrf.mxu0
    %v199 = vadd.f32 0.0, %v198
    %v200 = vpop.f32.mrf.mxu0
    %201 = vmatprep.mubr.bf16.mxu0 0
    %202 = vmatmul.mubr.bf16.gmra.mxu0 %v116
    %v203 = vpop.f32.mrf.mxu0
    %v204 = vadd.f32 0.0, %v203
    %v205 = vpop.f32.mrf.mxu0
    %v206 = vpop.f32.mrf.mxu0
    %v207 = vadd.f32 0.0, %v206
    %v208 = vpop.f32.mrf.mxu0
    %209 = vmatprep.mubr.bf16.mxu0 0
    %210 = vmatmul.mubr.bf16.gmra.mxu0 %v119
    %v211 = vpop.f32.mrf.mxu0
    %v212 = vadd.f32 0.0, %v211
    %v213 = vpop.f32.mrf.mxu0
    %v214 = vpop.f32.mrf.mxu0
    %v215 = vadd.f32 0.0, %v214
    %v216 = vpop.f32.mrf.mxu0
    %217 = vdwg.mxu0
    %v218 = vadd.f32 %v40, %v156
    %v219 = vadd.f32 %v41, %v159
    %v220 = vadd.f32 %v42, %v164
    %v221 = vadd.f32 %v43, %v167
    %v222 = vadd.f32 %v44, %v172
    %v223 = vadd.f32 %v45, %v175
    %v224 = vadd.f32 %v46, %v180
    %v225 = vadd.f32 %v47, %v183
    %v226 = vadd.f32 %v48, %v188
    %v227 = vadd.f32 %v49, %v191
    %v228 = vadd.f32 %v50, %v196
    %v229 = vadd.f32 %v51, %v199
    %v230 = vadd.f32 %v52, %v204
    %v231 = vadd.f32 %v53, %v207
    %v232 = vadd.f32 %v54, %v212
    %v233 = vadd.f32 %v55, %v215
    %234 = vst.msk [vmem:[#allocation2] sm:$0xff] %vm96, %v218
    %235 = vst.msk [vmem:[#allocation2 + $0x8] sm:$0xff] %vm96, %v219
    %236 = vst.msk [vmem:[#allocation2 + $0x10] sm:$0xff] %vm96, %v220
    %237 = vst.msk [vmem:[#allocation2 + $0x18] sm:$0xff] %vm96, %v221
    %238 = vst.msk [vmem:[#allocation2 + $0x20] sm:$0xff] %vm96, %v222
    %239 = vst.msk [vmem:[#allocation2 + $0x28] sm:$0xff] %vm96, %v223
    %240 = vst.msk [vmem:[#allocation2 + $0x30] sm:$0xff] %vm96, %v224
    %241 = vst.msk [vmem:[#allocation2 + $0x38] sm:$0xff] %vm96, %v225
    %242 = vst.msk [vmem:[#allocation2 + $0x40] sm:$0xff] %vm96, %v226
    %243 = vst.msk [vmem:[#allocation2 + $0x48] sm:$0xff] %vm96, %v227
    %244 = vst.msk [vmem:[#allocation2 + $0x50] sm:$0xff] %vm96, %v228
    %245 = vst.msk [vmem:[#allocation2 + $0x58] sm:$0xff] %vm96, %v229
    %246 = vst.msk [vmem:[#allocation2 + $0x60] sm:$0xff] %vm96, %v230
    %247 = vst.msk [vmem:[#allocation2 + $0x68] sm:$0xff] %vm96, %v231
    %248 = vst.msk [vmem:[#allocation2 + $0x70] sm:$0xff] %vm96, %v232
    %249 = vst.msk [vmem:[#allocation2 + $0x78] sm:$0xff] %vm96, %v233
    // Predicated region
    $region22: #{_lambda_.23} parent=1 // pred_check
      %p250 = pneg %p19
    $region23: #{_lambda_.23} parent=1 // pred_check_branch
      %252 = sbr.rel (%p250) target = $region25
    $region24: #{_lambda_.23} parent=1 // pred_region
      %v253 = vld [vmem:[#allocation2] sm:$0xff]
      %v254 = vld [vmem:[#allocation2 + $0x8] sm:$0xff]
      %v255 = vld [vmem:[#allocation2 + $0x10] sm:$0xff]
      %v256 = vld [vmem:[#allocation2 + $0x18] sm:$0xff]
      %v257 = vld [vmem:[#allocation2 + $0x20] sm:$0xff]
      %v258 = vld [vmem:[#allocation2 + $0x28] sm:$0xff]
      %v259 = vld [vmem:[#allocation2 + $0x30] sm:$0xff]
      %v260 = vld [vmem:[#allocation2 + $0x38] sm:$0xff]
      %v261 = vld [vmem:[#allocation2 + $0x40] sm:$0xff]
      %v262 = vld [vmem:[#allocation2 + $0x48] sm:$0xff]
      %v263 = vld [vmem:[#allocation2 + $0x50] sm:$0xff]
      %v264 = vld [vmem:[#allocation2 + $0x58] sm:$0xff]
      %v265 = vld [vmem:[#allocation2 + $0x60] sm:$0xff]
      %v266 = vld [vmem:[#allocation2 + $0x68] sm:$0xff]
      %v267 = vld [vmem:[#allocation2 + $0x70] sm:$0xff]
      %v268 = vld [vmem:[#allocation2 + $0x78] sm:$0xff]
      %v269 = vld [vmem:[%s2] sm:$0x1]
      %v271 = vlaneseq
      %v272 = vshrl.u32 %v271, 7
      %v273 = vsub.s32 0, %v272
      %v274 = vrot.slane %v269, %v273
      %v276 = vadd.f32 %v253, %v274
      %v277 = vadd.f32 %v254, %v274
      %v278 = vadd.f32 %v255, %v274
      %v279 = vadd.f32 %v256, %v274
      %v280 = vadd.f32 %v257, %v274
      %v281 = vadd.f32 %v258, %v274
      %v282 = vadd.f32 %v259, %v274
      %v283 = vadd.f32 %v260, %v274
      %v284 = vadd.f32 %v261, %v274
      %v285 = vadd.f32 %v262, %v274
      %v286 = vadd.f32 %v263, %v274
      %v287 = vadd.f32 %v264, %v274
      %v288 = vadd.f32 %v265, %v274
      %v289 = vadd.f32 %v266, %v274
      %v290 = vadd.f32 %v267, %v274
      %v291 = vadd.f32 %v268, %v274
      %v292 = vld [vmem:[%s3] sm:$0xff]
      %v293 = vld [vmem:[%s3 + $0x8] sm:$0xff]
      %v294 = vld [vmem:[%s3 + $0x10] sm:$0xff]
      %v295 = vld [vmem:[%s3 + $0x18] sm:$0xff]
      %v296 = vld [vmem:[%s3 + $0x20] sm:$0xff]
      %v297 = vld [vmem:[%s3 + $0x28] sm:$0xff]
      %v298 = vld [vmem:[%s3 + $0x30] sm:$0xff]
      %v299 = vld [vmem:[%s3 + $0x38] sm:$0xff]
      %v300 = vld [vmem:[%s3 + $0x40] sm:$0xff]
      %v301 = vld [vmem:[%s3 + $0x48] sm:$0xff]
      %v302 = vld [vmem:[%s3 + $0x50] sm:$0xff]
      %v303 = vld [vmem:[%s3 + $0x58] sm:$0xff]
      %v304 = vld [vmem:[%s3 + $0x60] sm:$0xff]
      %v305 = vld [vmem:[%s3 + $0x68] sm:$0xff]
      %v306 = vld [vmem:[%s3 + $0x70] sm:$0xff]
      %v307 = vld [vmem:[%s3 + $0x78] sm:$0xff]
      %v308 = vadd.f32 %v276, %v292
      %v309 = vadd.f32 %v277, %v293
      %v310 = vadd.f32 %v278, %v294
      %v311 = vadd.f32 %v279, %v295
      %v312 = vadd.f32 %v280, %v296
      %v313 = vadd.f32 %v281, %v297
      %v314 = vadd.f32 %v282, %v298
      %v315 = vadd.f32 %v283, %v299
      %v316 = vadd.f32 %v284, %v300
      %v317 = vadd.f32 %v285, %v301
      %v318 = vadd.f32 %v286, %v302
      %v319 = vadd.f32 %v287, %v303
      %v320 = vadd.f32 %v288, %v304
      %v321 = vadd.f32 %v289, %v305
      %v322 = vadd.f32 %v290, %v306
      %v323 = vadd.f32 %v291, %v307
      %324 = vst.msk [vmem:[#allocation3] sm:$0xff] %vm96, %v308
      %325 = vst.msk [vmem:[#allocation3 + $0x8] sm:$0xff] %vm96, %v309
      %326 = vst.msk [vmem:[#allocation3 + $0x10] sm:$0xff] %vm96, %v310
      %327 = vst.msk [vmem:[#allocation3 + $0x18] sm:$0xff] %vm96, %v311
      %328 = vst.msk [vmem:[#allocation3 + $0x20] sm:$0xff] %vm96, %v312
      %329 = vst.msk [vmem:[#allocation3 + $0x28] sm:$0xff] %vm96, %v313
      %330 = vst.msk [vmem:[#allocation3 + $0x30] sm:$0xff] %vm96, %v314
      %331 = vst.msk [vmem:[#allocation3 + $0x38] sm:$0xff] %vm96, %v315
      %332 = vst.msk [vmem:[#allocation3 + $0x40] sm:$0xff] %vm96, %v316
      %333 = vst.msk [vmem:[#allocation3 + $0x48] sm:$0xff] %vm96, %v317
      %334 = vst.msk [vmem:[#allocation3 + $0x50] sm:$0xff] %vm96, %v318
      %335 = vst.msk [vmem:[#allocation3 + $0x58] sm:$0xff] %vm96, %v319
      %336 = vst.msk [vmem:[#allocation3 + $0x60] sm:$0xff] %vm96, %v320
      %337 = vst.msk [vmem:[#allocation3 + $0x68] sm:$0xff] %vm96, %v321
      %338 = vst.msk [vmem:[#allocation3 + $0x70] sm:$0xff] %vm96, %v322
      %339 = vst.msk [vmem:[#allocation3 + $0x78] sm:$0xff] %vm96, %v323
    $region25: #{_lambda_.23} parent=1 // pred_fallthru
      _
    // Predicated region
    $region26: #{_lambda_.23} parent=1 // pred_check
      _
    $region27: #{_lambda_.23} parent=1 // pred_check_branch
      %341 = sbr.rel (0) target = $region29
    $region28: #{_lambda_.23} parent=1 // pred_region
      %s343 = ssub.s32 2048, 2048
      %344 = vsyncadd [#allocation4], %s343
      %s345 = sshll.u32 [#allocation3], 4
      %s346 = int_to_ptr.vmem [resolvable:$true] %s345
      %351 = dma.vmem_to_hbm [thread:$0]  %s346, 2048, %s4, [#allocation4], 128, 128, 8
    $region29: #{_lambda_.23} parent=1 // pred_fallthru
      _
    // Predicated region
    $region30: #{_lambda_.23} parent=1 // pred_check
      _
    $region31: #{_lambda_.23} parent=1 // pred_check_branch
      %353 = sbr.rel (0) target = $region33
    $region32: #{_lambda_.23} parent=1 // pred_region
      %354 = dma.done [#allocation4], 2048
    $region33: #{_lambda_.23} parent=1 // pred_fallthru
      _
    %355 = vsyncpa [#allocation4], 1

// kernel: _lambda_.19
$region0: #{_lambda_.19}
  #allocation0 [shape = 'u32[]', space=smem, size = 0x4, offset = 0x4, fixed_abs, tag = 'smem constant byte address 0x4 - core index']
  #allocation1 [shape = 'u32[144,128]{1,0:T(1,128)}', space=vmem, size = 0x12000, scoped, tag = 'internal scratch']
  %s0 = inlined_call_operand.vmem [shape: bf16[2,4,64,8], index: 0, kind: input, shape index: {}]
  %s1 = inlined_call_operand.vmem [shape: bf16[2,4,8,8], index: 1, kind: input, shape index: {}]
  %s2 = inlined_call_operand.vmem [shape: bf16[2,4,8,8], index: 2, kind: input, shape index: {}]
  %s3 = inlined_call_operand.vmem [shape: bf16[2,64,32], index: 3, kind: output, shape index: {}]
  %s4 = sld [smem:[#allocation0]]
  $region45: #{_lambda_.19} parent=0
    _
  %s6 = ssub.s32 1, %s4
  %s7 = scalar_select 0, %s6, %s4
  loop: start=0, step=1, limit=4
  $region2: #{_lambda_.19} parent=0 // loop_pre_header
    _
  $region3: #{_lambda_.19} parent=0 // loop_header
    %s9 = sphi 0, %s13
    %p10 = scmp.ge.s32.totalorder %s9, 4
    %s16 = sphi 0, %s28
    %s17 = sphi 0, %s24
    %s18 = sphi 0, %s16
    %s19 = sphi 0, %s17
    %s20 = sphi 0, %s18
    %s21 = sphi 0, %s19
    %s33 = sphi 0, %s35
    %s36 = sphi 0, %s33
    %s37 = sphi 0, %s36
    %s53 = sphi 0, %s37
    %s59 = sphi 0, %s61
    %s62 = sphi 0, %s59
    %s63 = sphi 0, %s62
    %s79 = sphi 0, %s63
    %s85 = sphi 0, %s87
    %s88 = sphi 0, %s85
    %s89 = sphi 0, %s88
    %s105 = sphi 0, %s89
    %s113 = sphi 0, %s115
    %s116 = sphi 0, %s113
    %s117 = sphi 0, %s116
    %s133 = sphi 0, %s117
  $region4: #{_lambda_.19} parent=0 // loop_header_branch
    %12 = sbr.rel (%p10) target = $region8
  $region5: #{_lambda_.19} parent=0 // loop_body
    %s14 = ssub.s32 %s9, 1
    %s15 = ssub.s32 %s9, 2
    %s22 = sadd.s32 1, %s17
    %p23 = scmp.ge.s32.totalorder %s22, 1
    %s24 = scalar_select %p23, 0, %s22
    %s25 = sadd.s32 1, %s16
    %s26 = scalar_select %p23, %s25, %s16
    %p27 = scmp.ge.s32.totalorder %s26, 2
    %s28 = scalar_select %p27, 0, %s26
    %s29 = ssub.s32 %s16, %s28
    %s30 = ssub.s32 %s17, %s24
    %s31 = sor.u32 %s29, %s30
    %p32 = scmp.eq.s32.totalorder %s31, 0
    %s34 = sadd.s32 %s33, 1
    %s35 = scalar_select %p32, %s33, %s34
    %p38 = pneg %p32
    %p39 = scmp.eq.s32.totalorder %s9, 1
    %p40 = por %p38, %p39
    %p41 = scmp.ne.s32.totalorder %s33, %s36
    %p42 = scmp.eq.s32.totalorder %s9, 0
    %p43 = por %p41, %p42
    %p44 = scmp.ne.s32.totalorder %s33, %s36
    %p45 = scmp.eq.s32.totalorder %s14, 1
    %p46 = por %p44, %p45
    %p47 = scmp.ne.s32.totalorder %s36, %s37
    %p48 = scmp.eq.s32.totalorder %s14, 0
    %p49 = por %p47, %p48
    %p50 = scmp.ne.s32.totalorder %s36, %s37
    %p51 = scmp.eq.s32.totalorder %s15, 1
    %p52 = por %p50, %p51
    %p54 = scmp.ne.s32.totalorder %s37, %s53
    %p55 = scmp.eq.s32.totalorder %s15, 0
    %p56 = por %p54, %p55
    %s57 = ssub.s32 %s16, %s28
    %p58 = scmp.eq.s32.totalorder %s57, 0
    %s60 = sadd.s32 %s59, 1
    %s61 = scalar_select %p58, %s59, %s60
    %p64 = pneg %p58
    %p65 = scmp.eq.s32.totalorder %s9, 1
    %p66 = por %p64, %p65
    %p67 = scmp.ne.s32.totalorder %s59, %s62
    %p68 = scmp.eq.s32.totalorder %s9, 0
    %p69 = por %p67, %p68
    %p70 = scmp.ne.s32.totalorder %s59, %s62
    %p71 = scmp.eq.s32.totalorder %s14, 1
    %p72 = por %p70, %p71
    %p73 = scmp.ne.s32.totalorder %s62, %s63
    %p74 = scmp.eq.s32.totalorder %s14, 0
    %p75 = por %p73, %p74
    %p76 = scmp.ne.s32.totalorder %s62, %s63
    %p77 = scmp.eq.s32.totalorder %s15, 1
    %p78 = por %p76, %p77
    %p80 = scmp.ne.s32.totalorder %s63, %s79
    %p81 = scmp.eq.s32.totalorder %s15, 0
    %p82 = por %p80, %p81
    %s83 = ssub.s32 %s16, %s28
    %p84 = scmp.eq.s32.totalorder %s83, 0
    %s86 = sadd.s32 %s85, 1
    %s87 = scalar_select %p84, %s85, %s86
    %p90 = pneg %p84
    %p91 = scmp.eq.s32.totalorder %s9, 1
    %p92 = por %p90, %p91
    %p93 = scmp.ne.s32.totalorder %s85, %s88
    %p94 = scmp.eq.s32.totalorder %s9, 0
    %p95 = por %p93, %p94
    %p96 = scmp.ne.s32.totalorder %s85, %s88
    %p97 = scmp.eq.s32.totalorder %s14, 1
    %p98 = por %p96, %p97
    %p99 = scmp.ne.s32.totalorder %s88, %s89
    %p100 = scmp.eq.s32.totalorder %s14, 0
    %p101 = por %p99, %p100
    %p102 = scmp.ne.s32.totalorder %s88, %s89
    %p103 = scmp.eq.s32.totalorder %s15, 1
    %p104 = por %p102, %p103
    %p106 = scmp.ne.s32.totalorder %s89, %s105
    %p107 = scmp.eq.s32.totalorder %s15, 0
    %p108 = por %p106, %p107
    %s109 = ssub.s32 %s16, %s28
    %s110 = ssub.s32 %s17, %s24
    %s111 = sor.u32 %s109, %s110
    %p112 = scmp.eq.s32.totalorder %s111, 0
    %s114 = sadd.s32 %s113, 1
    %s115 = scalar_select %p112, %s113, %s114
    %p118 = pneg %p112
    %p119 = scmp.eq.s32.totalorder %s9, 1
    %p120 = por %p118, %p119
    %p121 = scmp.ne.s32.totalorder %s113, %s116
    %p122 = scmp.eq.s32.totalorder %s9, 0
    %p123 = por %p121, %p122
    %p124 = scmp.ne.s32.totalorder %s113, %s116
    %p125 = scmp.eq.s32.totalorder %s14, 1
    %p126 = por %p124, %p125
    %p127 = scmp.ne.s32.totalorder %s116, %s117
    %p128 = scmp.eq.s32.totalorder %s14, 0
    %p129 = por %p127, %p128
    %p130 = scmp.ne.s32.totalorder %s116, %s117
    %p131 = scmp.eq.s32.totalorder %s15, 1
    %p132 = por %p130, %p131
    %p134 = scmp.ne.s32.totalorder %s117, %s133
    %p135 = scmp.eq.s32.totalorder %s15, 0
    %p136 = por %p134, %p135
    %p137 = scmp.le.s32.totalorder 1, %s9
    %p138 = scmp.lt.s32.totalorder %s9, 3
    %p139 = pnand %p137, %p138
    %p140 = pneg %p139
    // Predicated region
    $region9: #{_lambda_.19} parent=5 // pred_check
      _
    $region10: #{_lambda_.19} parent=5 // pred_check_branch
      %142 = sbr.rel (%p139) target = $region12
    $region11: #{_lambda_.19} parent=5 // pred_region
      %s143 = ssub.s32 %s9, 1
    $region12: #{_lambda_.19} parent=5 // pred_fallthru
      _
    %p144 = scmp.lt.s32.totalorder %s9, 2
    // Predicated region
    $region13: #{_lambda_.19} parent=5 // pred_check
      %p145 = pneg %p144
    $region14: #{_lambda_.19} parent=5 // pred_check_branch
      %147 = sbr.rel (%p145) target = $region16
    $region15: #{_lambda_.19} parent=5 // pred_region
      // Predicated region
      $region17: #{_lambda_.19} parent=15 // pred_check
        %p148 = pneg %p43
      $region18: #{_lambda_.19} parent=15 // pred_check_branch
        %150 = sbr.rel (%p148) target = $region20
      $region19: #{_lambda_.19} parent=15 // pred_region
        %s151 = smul.u32 8, %s17
        %p152 = scmp.lt.s32.totalorder %s16, 1
        %s153 = scalar_select %p152, %s16, 1
        %p154 = scmp.lt.s32.totalorder %s151, 7
        %s155 = scalar_select %p154, %s151, 7
        %s156 = smul.addr %s153, 32
        %s157 = sadd.s32 %s155, %s156
        %s158 = smul.addr %s157, 4
        %s159 = scalar_lea.vmem %s0, %s158
        %s160 = smul.u32 8, %s17
      $region20: #{_lambda_.19} parent=15 // pred_fallthru
        _
      // Predicated region
      $region21: #{_lambda_.19} parent=15 // pred_check
        %p161 = pneg %p69
      $region22: #{_lambda_.19} parent=15 // pred_check_branch
        %163 = sbr.rel (%p161) target = $region24
      $region23: #{_lambda_.19} parent=15 // pred_region
        %p164 = scmp.lt.s32.totalorder %s16, 1
        %s165 = scalar_select %p164, %s16, 1
        %s166 = smul.addr %s165, 4
        %s167 = smul.addr %s166, 4
        %s168 = scalar_lea.vmem %s1, %s167
      $region24: #{_lambda_.19} parent=15 // pred_fallthru
        _
      // Predicated region
      $region25: #{_lambda_.19} parent=15 // pred_check
        %p169 = pneg %p95
      $region26: #{_lambda_.19} parent=15 // pred_check_branch
        %171 = sbr.rel (%p169) target = $region28
      $region27: #{_lambda_.19} parent=15 // pred_region
        %p172 = scmp.lt.s32.totalorder %s16, 1
        %s173 = scalar_select %p172, %s16, 1
        %s174 = smul.addr %s173, 4
        %s175 = smul.addr %s174, 4
        %s176 = scalar_lea.vmem %s2, %s175
      $region28: #{_lambda_.19} parent=15 // pred_fallthru
        _
    $region16: #{_lambda_.19} parent=5 // pred_fallthru
      _
    %p177 = scmp.le.s32.totalorder 1, %s9
    %p178 = scmp.lt.s32.totalorder %s9, 3
    %p179 = pnand %p177, %p178
    %p180 = pneg %p179
    // Predicated region
    $region29: #{_lambda_.19} parent=5 // pred_check
      _
    $region30: #{_lambda_.19} parent=5 // pred_check_branch
      %182 = sbr.rel (%p179) target = $region32
    $region31: #{_lambda_.19} parent=5 // pred_region
      %s183 = ssub.s32 %s9, 1
      %s184 = smul.u32 8, %s19
      %p185 = scmp.lt.s32.totalorder %s18, 1
      %s186 = scalar_select %p185, %s18, 1
      %p187 = scmp.lt.s32.totalorder %s184, 7
      %s188 = scalar_select %p187, %s184, 7
      %s189 = smul.addr %s186, 32
      %s190 = sadd.s32 %s188, %s189
      %s191 = smul.addr %s190, 4
      %s192 = scalar_lea.vmem %s0, %s191
      %p193 = pneg %p49
      %p194 = pneg %p46
      %p195 = scmp.lt.s32.totalorder %s18, 1
      %s196 = scalar_select %p195, %s18, 1
      %s197 = smul.addr %s196, 4
      %s198 = smul.addr %s197, 4
      %s199 = scalar_lea.vmem %s1, %s198
      %p200 = pneg %p75
      %p201 = pneg %p72
      %p202 = scmp.lt.s32.totalorder %s18, 1
      %s203 = scalar_select %p202, %s18, 1
      %s204 = smul.addr %s203, 4
      %s205 = smul.addr %s204, 4
      %s206 = scalar_lea.vmem %s2, %s205
      %p207 = pneg %p101
      %p208 = pneg %p98
      %p209 = pneg %p129
      %p210 = pneg %p126
      %s211 = smul.u32 8, %s19
      %p212 = scmp.lt.s32.totalorder %s18, 1
      %s213 = scalar_select %p212, %s18, 1
      %p214 = scmp.lt.s32.totalorder %s211, 7
      %s215 = scalar_select %p214, %s211, 7
      %s216 = smul.addr %s213, 8
      %s217 = sadd.s32 %s215, %s216
      %s218 = smul.addr %s217, 4
      %s219 = scalar_lea.vmem %s3, %s218
      %s220 = smul.u32 8, %s19
      %p221 = scmp.lt.s32.totalorder %s18, 1
      %s222 = scalar_select %p221, %s18, 1
      %p223 = scmp.lt.s32.totalorder %s220, 7
      %s224 = scalar_select %p223, %s220, 7
      %s225 = smul.addr %s222, 32
      %s226 = sadd.s32 %s224, %s225
      %s227 = smul.addr %s226, 4
      %s228 = scalar_lea.vmem %s0, %s227
      %s229 = smul.u32 8, %s19
      %p230 = scmp.lt.s32.totalorder %s18, 1
      %s231 = scalar_select %p230, %s18, 1
      %s232 = smul.addr %s231, 4
      %s233 = smul.addr %s232, 4
      %s234 = scalar_lea.vmem %s1, %s233
      %p235 = scmp.lt.s32.totalorder %s18, 1
      %s236 = scalar_select %p235, %s18, 1
      %s237 = smul.addr %s236, 4
      %s238 = smul.addr %s237, 4
      %s239 = scalar_lea.vmem %s2, %s238
      %s240 = smul.u32 8, %s19
      %p241 = scmp.lt.s32.totalorder %s18, 1
      %s242 = scalar_select %p241, %s18, 1
      %p243 = scmp.lt.s32.totalorder %s240, 7
      %s244 = scalar_select %p243, %s240, 7
      %s245 = smul.addr %s242, 8
      %s246 = sadd.s32 %s244, %s245
      %s247 = smul.addr %s246, 4
      %s248 = scalar_lea.vmem %s3, %s247
      %s249 = smul.u32 8, %s19
      %v251 = vld [vmem:[%s228] sm:$0xf]
      %v252 = vld [vmem:[%s228 + $0x4] sm:$0xf]
      %v253 = vld [vmem:[%s228 + $0x8] sm:$0xf]
      %v254 = vld [vmem:[%s228 + $0xc] sm:$0xf]
      %v255 = vld [vmem:[%s228 + $0x10] sm:$0xf]
      %v256 = vld [vmem:[%s228 + $0x14] sm:$0xf]
      %v257 = vld [vmem:[%s228 + $0x18] sm:$0xf]
      %v258 = vld [vmem:[%s228 + $0x1c] sm:$0xf]
      %v259 = vld [vmem:[%s228 + $0x20] sm:$0xf]
      %v260 = vld [vmem:[%s228 + $0x24] sm:$0xf]
      %v261 = vld [vmem:[%s228 + $0x28] sm:$0xf]
      %v262 = vld [vmem:[%s228 + $0x2c] sm:$0xf]
      %v263 = vld [vmem:[%s228 + $0x30] sm:$0xf]
      %v264 = vld [vmem:[%s228 + $0x34] sm:$0xf]
      %v265 = vld [vmem:[%s228 + $0x38] sm:$0xf]
      %v266 = vld [vmem:[%s228 + $0x3c] sm:$0xf]
      %v267 = vld [vmem:[%s228 + $0x40] sm:$0xf]
      %v268 = vld [vmem:[%s228 + $0x44] sm:$0xf]
      %v269 = vld [vmem:[%s228 + $0x48] sm:$0xf]
      %v270 = vld [vmem:[%s228 + $0x4c] sm:$0xf]
      %v271 = vld [vmem:[%s228 + $0x50] sm:$0xf]
      %v272 = vld [vmem:[%s228 + $0x54] sm:$0xf]
      %v273 = vld [vmem:[%s228 + $0x58] sm:$0xf]
      %v274 = vld [vmem:[%s228 + $0x5c] sm:$0xf]
      %v275 = vld [vmem:[%s228 + $0x60] sm:$0xf]
      %v276 = vld [vmem:[%s228 + $0x64] sm:$0xf]
      %v277 = vld [vmem:[%s228 + $0x68] sm:$0xf]
      %v278 = vld [vmem:[%s228 + $0x6c] sm:$0xf]
      %v279 = vld [vmem:[%s228 + $0x70] sm:$0xf]
      %v280 = vld [vmem:[%s228 + $0x74] sm:$0xf]
      %v281 = vld [vmem:[%s228 + $0x78] sm:$0xf]
      %v282 = vld [vmem:[%s228 + $0x7c] sm:$0xf]
      %v283 = vunpack.c.l.bf16 %v251
      %v284 = vunpack.c.l.bf16 %v252
      %v285 = vunpack.c.l.bf16 %v253
      %v286 = vunpack.c.l.bf16 %v254
      %v287 = vunpack.c.l.bf16 %v255
      %v288 = vunpack.c.l.bf16 %v256
      %v289 = vunpack.c.l.bf16 %v257
      %v290 = vunpack.c.l.bf16 %v258
      %v291 = vunpack.c.l.bf16 %v259
      %v292 = vunpack.c.l.bf16 %v260
      %v293 = vunpack.c.l.bf16 %v261
      %v294 = vunpack.c.l.bf16 %v262
      %v295 = vunpack.c.l.bf16 %v263
      %v296 = vunpack.c.l.bf16 %v264
      %v297 = vunpack.c.l.bf16 %v265
      %v298 = vunpack.c.l.bf16 %v266
      %v299 = vunpack.c.l.bf16 %v267
      %v300 = vunpack.c.l.bf16 %v268
      %v301 = vunpack.c.l.bf16 %v269
      %v302 = vunpack.c.l.bf16 %v270
      %v303 = vunpack.c.l.bf16 %v271
      %v304 = vunpack.c.l.bf16 %v272
      %v305 = vunpack.c.l.bf16 %v273
      %v306 = vunpack.c.l.bf16 %v274
      %v307 = vunpack.c.l.bf16 %v275
      %v308 = vunpack.c.l.bf16 %v276
      %v309 = vunpack.c.l.bf16 %v277
      %v310 = vunpack.c.l.bf16 %v278
      %v311 = vunpack.c.l.bf16 %v279
      %v312 = vunpack.c.l.bf16 %v280
      %v313 = vunpack.c.l.bf16 %v281
      %v314 = vunpack.c.l.bf16 %v282
      %v315 = vmul.f32 %v283, 0.35355338
      %v316 = vmul.f32 %v284, 0.35355338
      %v317 = vmul.f32 %v285, 0.35355338
      %v318 = vmul.f32 %v286, 0.35355338
      %v319 = vmul.f32 %v287, 0.35355338
      %v320 = vmul.f32 %v288, 0.35355338
      %v321 = vmul.f32 %v289, 0.35355338
      %v322 = vmul.f32 %v290, 0.35355338
      %v323 = vmul.f32 %v291, 0.35355338
      %v324 = vmul.f32 %v292, 0.35355338
      %v325 = vmul.f32 %v293, 0.35355338
      %v326 = vmul.f32 %v294, 0.35355338
      %v327 = vmul.f32 %v295, 0.35355338
      %v328 = vmul.f32 %v296, 0.35355338
      %v329 = vmul.f32 %v297, 0.35355338
      %v330 = vmul.f32 %v298, 0.35355338
      %v331 = vmul.f32 %v299, 0.35355338
      %v332 = vmul.f32 %v300, 0.35355338
      %v333 = vmul.f32 %v301, 0.35355338
      %v334 = vmul.f32 %v302, 0.35355338
      %v335 = vmul.f32 %v303, 0.35355338
      %v336 = vmul.f32 %v304, 0.35355338
      %v337 = vmul.f32 %v305, 0.35355338
      %v338 = vmul.f32 %v306, 0.35355338
      %v339 = vmul.f32 %v307, 0.35355338
      %v340 = vmul.f32 %v308, 0.35355338
      %v341 = vmul.f32 %v309, 0.35355338
      %v342 = vmul.f32 %v310, 0.35355338
      %v343 = vmul.f32 %v311, 0.35355338
      %v344 = vmul.f32 %v312, 0.35355338
      %v345 = vmul.f32 %v313, 0.35355338
      %v346 = vmul.f32 %v314, 0.35355338
      %v347 = vpack.c.bf16 %v316, %v315
      %v348 = vpack.c.bf16 %v318, %v317
      %v349 = vpack.c.bf16 %v320, %v319
      %v350 = vpack.c.bf16 %v322, %v321
      %v351 = vld [vmem:[%s234] sm:$0xf]
      %v352 = vld [vmem:[%s239] sm:$0xf]
      %vm353 = vcmask 64512
      %v355 = vsel %vm353, %v347, 0
      %v358 = vsel %vm353, %v348, 0
      %v361 = vsel %vm353, %v349, 0
      %v364 = vsel %vm353, %v350, 0
      %v367 = vsel %vm353, %v351, 0
      %369 = vmatprep.subr.bf16.mxu0 0
      %370 = vmatpush1.bf16.xpose.msra.mxu0 0
      %371 = vmatprep.subr.bf16.mxu0 0
      %372 = vmatpush1.bf16.xpose.msra.mxu0 0
      %373 = vmatprep.subr.bf16.mxu0 0
      %374 = vmatpush1.bf16.xpose.msra.mxu0 0
      %375 = vmatprep.subr.bf16.mxu0 0
      %376 = vmatpush1.bf16.xpose.msra.mxu0 0
      %377 = vmatprep.subr.bf16.mxu0 0
      %378 = vmatpush1.bf16.xpose.msra.mxu0 0
      %379 = vmatprep.subr.bf16.mxu0 0
      %380 = vmatpush1.bf16.xpose.msra.mxu0 0
      %381 = vmatprep.subr.bf16.mxu0 0
      %382 = vmatpush1.bf16.xpose.msra.mxu0 0
      %383 = vmatprep.subr.bf16.mxu0 0
      %384 = vmatpush1.bf16.xpose.msra.mxu0 %v367
      %385 = vmatprep.subr.bf16.mxu0 0
      %386 = vmatpush2.bf16.xpose.msra.mxu0 0
      %387 = vmatprep.subr.bf16.mxu0 0
      %388 = vmatpush2.bf16.xpose.msra.mxu0 0
      %389 = vmatprep.subr.bf16.mxu0 0
      %390 = vmatpush2.bf16.xpose.msra.mxu0 0
      %391 = vmatprep.subr.bf16.mxu0 0
      %392 = vmatpush2.bf16.xpose.msra.mxu0 0
      %393 = vmatprep.subr.bf16.mxu0 0
      %394 = vmatpush2.bf16.xpose.msra.mxu0 0
      %395 = vmatprep.subr.bf16.mxu0 0
      %396 = vmatpush2.bf16.xpose.msra.mxu0 0
      %397 = vmatprep.subr.bf16.mxu0 0
      %398 = vmatpush2.bf16.xpose.msra.mxu0 0
      %399 = vmatprep.subr.bf16.mxu0 0
      %400 = vmatpush2.bf16.xpose.msra.mxu0 0
      %401 = vmatprep.mubr.bf16.mxu0 0
      %402 = vmatmul.mubr.bf16.gmra.mxu0 %v355
      %v403 = vpop.f32.mrf.mxu0
      %v404 = vadd.f32 0.0, %v403
      %v405 = vpop.f32.mrf.mxu0
      %v406 = vpop.f32.mrf.mxu0
      %v407 = vadd.f32 0.0, %v406
      %v408 = vpop.f32.mrf.mxu0
      %409 = vmatprep.mubr.bf16.mxu0 0
      %410 = vmatmul.mubr.bf16.gmra.mxu0 %v358
      %v411 = vpop.f32.mrf.mxu0
      %v412 = vadd.f32 0.0, %v411
      %v413 = vpop.f32.mrf.mxu0
      %v414 = vpop.f32.mrf.mxu0
      %v415 = vadd.f32 0.0, %v414
      %v416 = vpop.f32.mrf.mxu0
      %417 = vmatprep.mubr.bf16.mxu0 0
      %418 = vmatmul.mubr.bf16.gmra.mxu0 %v361
      %v419 = vpop.f32.mrf.mxu0
      %v420 = vadd.f32 0.0, %v419
      %v421 = vpop.f32.mrf.mxu0
      %v422 = vpop.f32.mrf.mxu0
      %v423 = vadd.f32 0.0, %v422
      %v424 = vpop.f32.mrf.mxu0
      %425 = vmatprep.mubr.bf16.mxu0 0
      %426 = vmatmul.mubr.bf16.gmra.mxu0 %v364
      %v427 = vpop.f32.mrf.mxu0
      %v428 = vadd.f32 0.0, %v427
      %v429 = vpop.f32.mrf.mxu0
      %v430 = vpop.f32.mrf.mxu0
      %v431 = vadd.f32 0.0, %v430
      %v432 = vpop.f32.mrf.mxu0
      %433 = vdwg.mxu0
      %v434 = vsel %vm353, %v404, -inf
      %435 = vmax.xlane.f32.xlu0 %v434
      %v436 = vpop.xlane.xlu0 %435
      %v437 = vsel %vm353, %v407, -inf
      %438 = vmax.xlane.f32.xlu0 %v437
      %v439 = vpop.xlane.xlu0 %438
      %v440 = vsel %vm353, %v412, -inf
      %441 = vmax.xlane.f32.xlu0 %v440
      %v442 = vpop.xlane.xlu0 %441
      %v443 = vsel %vm353, %v415, -inf
      %444 = vmax.xlane.f32.xlu0 %v443
      %v445 = vpop.xlane.xlu0 %444
      %v446 = vsel %vm353, %v420, -inf
      %447 = vmax.xlane.f32.xlu0 %v446
      %v448 = vpop.xlane.xlu0 %447
      %v449 = vsel %vm353, %v423, -inf
      %450 = vmax.xlane.f32.xlu0 %v449
      %v451 = vpop.xlane.xlu0 %450
      %v452 = vsel %vm353, %v428, -inf
      %453 = vmax.xlane.f32.xlu0 %v452
      %v454 = vpop.xlane.xlu0 %453
      %v455 = vsel %vm353, %v431, -inf
      %456 = vmax.xlane.f32.xlu0 %v455
      %v457 = vpop.xlane.xlu0 %456
      %v458 = vsub.f32 %v404, %v436
      %v459 = vsub.f32 %v407, %v439
      %v460 = vsub.f32 %v412, %v442
      %v461 = vsub.f32 %v415, %v445
      %v462 = vsub.f32 %v420, %v448
      %v463 = vsub.f32 %v423, %v451
      %v464 = vsub.f32 %v428, %v454
      %v465 = vsub.f32 %v431, %v457
      %v466 = vmul.f32 %v458, 1.442695
      %v467 = vpow.pop %v466
      %v468 = vmul.f32 %v459, 1.442695
      %v469 = vpow.pop %v468
      %v470 = vmul.f32 %v460, 1.442695
      %v471 = vpow.pop %v470
      %v472 = vmul.f32 %v461, 1.442695
      %v473 = vpow.pop %v472
      %v474 = vmul.f32 %v462, 1.442695
      %v475 = vpow.pop %v474
      %v476 = vmul.f32 %v463, 1.442695
      %v477 = vpow.pop %v476
      %v478 = vmul.f32 %v464, 1.442695
      %v479 = vpow.pop %v478
      %v480 = vmul.f32 %v465, 1.442695
      %v481 = vpow.pop %v480
      %v482 = vsel %vm353, %v467, 0.0
      %483 = vadd.xlane.f32.xlu0 %v482
      %v484 = vpop.xlane.xlu0 %483
      %v485 = vsel %vm353, %v469, 0.0
      %486 = vadd.xlane.f32.xlu0 %v485
      %v487 = vpop.xlane.xlu0 %486
      %v488 = vsel %vm353, %v471, 0.0
      %489 = vadd.xlane.f32.xlu0 %v488
      %v490 = vpop.xlane.xlu0 %489
      %v491 = vsel %vm353, %v473, 0.0
      %492 = vadd.xlane.f32.xlu0 %v491
      %v493 = vpop.xlane.xlu0 %492
      %v494 = vsel %vm353, %v475, 0.0
      %495 = vadd.xlane.f32.xlu0 %v494
      %v496 = vpop.xlane.xlu0 %495
      %v497 = vsel %vm353, %v477, 0.0
      %498 = vadd.xlane.f32.xlu0 %v497
      %v499 = vpop.xlane.xlu0 %498
      %v500 = vsel %vm353, %v479, 0.0
      %501 = vadd.xlane.f32.xlu0 %v500
      %v502 = vpop.xlane.xlu0 %501
      %v503 = vsel %vm353, %v481, 0.0
      %504 = vadd.xlane.f32.xlu0 %v503
      %v505 = vpop.xlane.xlu0 %504
      %v506 = vpack.c.bf16 %v469, %v467
      %v507 = vpack.c.bf16 %v473, %v471
      %v508 = vpack.c.bf16 %v477, %v475
      %v509 = vpack.c.bf16 %v481, %v479
      %v511 = vsel %vm353, %v506, 0
      %v514 = vsel %vm353, %v507, 0
      %v517 = vsel %vm353, %v508, 0
      %v520 = vsel %vm353, %v509, 0
      %vm522 = vcmask 1043456
      %v524 = vsel %vm522, %v352, 0
      %526 = vmatprep.subr.bf16.mxu0 0
      %527 = vmatpush1.bf16.msra.mxu0 0
      %528 = vmatprep.subr.bf16.mxu0 0
      %529 = vmatpush1.bf16.msra.mxu0 0
      %530 = vmatprep.subr.bf16.mxu0 0
      %531 = vmatpush1.bf16.msra.mxu0 0
      %532 = vmatprep.subr.bf16.mxu0 0
      %533 = vmatpush1.bf16.msra.mxu0 0
      %534 = vmatprep.subr.bf16.mxu0 0
      %535 = vmatpush1.bf16.msra.mxu0 0
      %536 = vmatprep.subr.bf16.mxu0 0
      %537 = vmatpush1.bf16.msra.mxu0 0
      %538 = vmatprep.subr.bf16.mxu0 0
      %539 = vmatpush1.bf16.msra.mxu0 0
      %540 = vmatprep.subr.bf16.mxu0 0
      %541 = vmatpush1.bf16.msra.mxu0 %v524
      %542 = vmatprep.subr.bf16.mxu0 0
      %543 = vmatpush2.bf16.msra.mxu0 0
      %544 = vmatprep.subr.bf16.mxu0 0
      %545 = vmatpush2.bf16.msra.mxu0 0
      %546 = vmatprep.subr.bf16.mxu0 0
      %547 = vmatpush2.bf16.msra.mxu0 0
      %548 = vmatprep.subr.bf16.mxu0 0
      %549 = vmatpush2.bf16.msra.mxu0 0
      %550 = vmatprep.subr.bf16.mxu0 0
      %551 = vmatpush2.bf16.msra.mxu0 0
      %552 = vmatprep.subr.bf16.mxu0 0
      %553 = vmatpush2.bf16.msra.mxu0 0
      %554 = vmatprep.subr.bf16.mxu0 0
      %555 = vmatpush2.bf16.msra.mxu0 0
      %556 = vmatprep.subr.bf16.mxu0 0
      %557 = vmatpush2.bf16.msra.mxu0 0
      %558 = vmatprep.mubr.bf16.mxu0 0
      %559 = vmatmul.mubr.bf16.gmra.mxu0 %v511
      %v560 = vpop.f32.mrf.mxu0
      %v561 = vadd.f32 0.0, %v560
      %v562 = vpop.f32.mrf.mxu0
      %v563 = vpop.f32.mrf.mxu0
      %v564 = vadd.f32 0.0, %v563
      %v565 = vpop.f32.mrf.mxu0
      %566 = vmatprep.mubr.bf16.mxu0 0
      %567 = vmatmul.mubr.bf16.gmra.mxu0 %v514
      %v568 = vpop.f32.mrf.mxu0
      %v569 = vadd.f32 0.0, %v568
      %v570 = vpop.f32.mrf.mxu0
      %v571 = vpop.f32.mrf.mxu0
      %v572 = vadd.f32 0.0, %v571
      %v573 = vpop.f32.mrf.mxu0
      %574 = vmatprep.mubr.bf16.mxu0 0
      %575 = vmatmul.mubr.bf16.gmra.mxu0 %v517
      %v576 = vpop.f32.mrf.mxu0
      %v577 = vadd.f32 0.0, %v576
      %v578 = vpop.f32.mrf.mxu0
      %v579 = vpop.f32.mrf.mxu0
      %v580 = vadd.f32 0.0, %v579
      %v581 = vpop.f32.mrf.mxu0
      %582 = vmatprep.mubr.bf16.mxu0 0
      %583 = vmatmul.mubr.bf16.gmra.mxu0 %v520
      %v584 = vpop.f32.mrf.mxu0
      %v585 = vadd.f32 0.0, %v584
      %v586 = vpop.f32.mrf.mxu0
      %v587 = vpop.f32.mrf.mxu0
      %v588 = vadd.f32 0.0, %v587
      %v589 = vpop.f32.mrf.mxu0
      %590 = vdwg.mxu0
      %v591 = vrcp.pop %v484
      %v592 = vmul.f32 %v561, %v591
      %v593 = vrcp.pop %v487
      %v594 = vmul.f32 %v564, %v593
      %v595 = vrcp.pop %v490
      %v596 = vmul.f32 %v569, %v595
      %v597 = vrcp.pop %v493
      %v598 = vmul.f32 %v572, %v597
      %v599 = vrcp.pop %v496
      %v600 = vmul.f32 %v577, %v599
      %v601 = vrcp.pop %v499
      %v602 = vmul.f32 %v580, %v601
      %v603 = vrcp.pop %v502
      %v604 = vmul.f32 %v585, %v603
      %v605 = vrcp.pop %v505
      %v606 = vmul.f32 %v588, %v605
      %v607 = vpack.c.bf16 %v594, %v592
      %v608 = vpack.c.bf16 %v598, %v596
      %v609 = vpack.c.bf16 %v602, %v600
      %v610 = vpack.c.bf16 %v606, %v604
      %v615 = vunpack.c.l.b16 %v607
      %v616 = vunpack.c.h.b16 %v607
      %v617 = vunpack.c.l.b16 %v608
      %v618 = vunpack.c.h.b16 %v608
      %v619 = vunpack.c.l.b16 %v609
      %v620 = vunpack.c.h.b16 %v609
      %v621 = vunpack.c.l.b16 %v610
      %v622 = vunpack.c.h.b16 %v610
      %v623 = vpack.c.b16 %v615, %v615
      %v624 = vpack.c.b16 %v616, %v616
      %v625 = vpack.c.b16 %v617, %v617
      %v626 = vpack.c.b16 %v618, %v618
      %v627 = vpack.c.b16 %v619, %v619
      %v628 = vpack.c.b16 %v620, %v620
      %v629 = vpack.c.b16 %v621, %v621
      %v630 = vpack.c.b16 %v622, %v622
      %vm639 = vcmask 60416
      %640 = vst.msk [vmem:[%s248] sm:$0xf] %vm639, %v623
      %641 = vst.msk [vmem:[%s248 + $0x4] sm:$0xf] %vm639, %v624
      %642 = vst.msk [vmem:[%s248 + $0x8] sm:$0xf] %vm639, %v625
      %643 = vst.msk [vmem:[%s248 + $0xc] sm:$0xf] %vm639, %v626
      %644 = vst.msk [vmem:[%s248 + $0x10] sm:$0xf] %vm639, %v627
      %645 = vst.msk [vmem:[%s248 + $0x14] sm:$0xf] %vm639, %v628
      %646 = vst.msk [vmem:[%s248 + $0x18] sm:$0xf] %vm639, %v629
      %647 = vst.msk [vmem:[%s248 + $0x1c] sm:$0xf] %vm639, %v630
      %v648 = vpack.c.bf16 %v324, %v323
      %v649 = vpack.c.bf16 %v326, %v325
      %v650 = vpack.c.bf16 %v328, %v327
      %v651 = vpack.c.bf16 %v330, %v329
      %s652 = scalar_lea.vmem %s234, 4
      %v653 = vld [vmem:[%s652] sm:$0xf]
      %s654 = scalar_lea.vmem %s239, 4
      %v655 = vld [vmem:[%s654] sm:$0xf]
      %v657 = vsel %vm353, %v648, 0
      %v660 = vsel %vm353, %v649, 0
      %v663 = vsel %vm353, %v650, 0
      %v666 = vsel %vm353, %v651, 0
      %v669 = vsel %vm353, %v653, 0
      %671 = vmatprep.subr.bf16.mxu0 0
      %672 = vmatpush1.bf16.xpose.msra.mxu0 0
      %673 = vmatprep.subr.bf16.mxu0 0
      %674 = vmatpush1.bf16.xpose.msra.mxu0 0
      %675 = vmatprep.subr.bf16.mxu0 0
      %676 = vmatpush1.bf16.xpose.msra.mxu0 0
      %677 = vmatprep.subr.bf16.mxu0 0
      %678 = vmatpush1.bf16.xpose.msra.mxu0 0
      %679 = vmatprep.subr.bf16.mxu0 0
      %680 = vmatpush1.bf16.xpose.msra.mxu0 0
      %681 = vmatprep.subr.bf16.mxu0 0
      %682 = vmatpush1.bf16.xpose.msra.mxu0 0
      %683 = vmatprep.subr.bf16.mxu0 0
      %684 = vmatpush1.bf16.xpose.msra.mxu0 0
      %685 = vmatprep.subr.bf16.mxu0 0
      %686 = vmatpush1.bf16.xpose.msra.mxu0 %v669
      %687 = vmatprep.subr.bf16.mxu0 0
      %688 = vmatpush2.bf16.xpose.msra.mxu0 0
      %689 = vmatprep.subr.bf16.mxu0 0
      %690 = vmatpush2.bf16.xpose.msra.mxu0 0
      %691 = vmatprep.subr.bf16.mxu0 0
      %692 = vmatpush2.bf16.xpose.msra.mxu0 0
      %693 = vmatprep.subr.bf16.mxu0 0
      %694 = vmatpush2.bf16.xpose.msra.mxu0 0
      %695 = vmatprep.subr.bf16.mxu0 0
      %696 = vmatpush2.bf16.xpose.msra.mxu0 0
      %697 = vmatprep.subr.bf16.mxu0 0
      %698 = vmatpush2.bf16.xpose.msra.mxu0 0
      %699 = vmatprep.subr.bf16.mxu0 0
      %700 = vmatpush2.bf16.xpose.msra.mxu0 0
      %701 = vmatprep.subr.bf16.mxu0 0
      %702 = vmatpush2.bf16.xpose.msra.mxu0 0
      %703 = vmatprep.mubr.bf16.mxu0 0
      %704 = vmatmul.mubr.bf16.gmra.mxu0 %v657
      %v705 = vpop.f32.mrf.mxu0
      %v706 = vadd.f32 0.0, %v705
      %v707 = vpop.f32.mrf.mxu0
      %v708 = vpop.f32.mrf.mxu0
      %v709 = vadd.f32 0.0, %v708
      %v710 = vpop.f32.mrf.mxu0
      %711 = vmatprep.mubr.bf16.mxu0 0
      %712 = vmatmul.mubr.bf16.gmra.mxu0 %v660
      %v713 = vpop.f32.mrf.mxu0
      %v714 = vadd.f32 0.0, %v713
      %v715 = vpop.f32.mrf.mxu0
      %v716 = vpop.f32.mrf.mxu0
      %v717 = vadd.f32 0.0, %v716
      %v718 = vpop.f32.mrf.mxu0
      %719 = vmatprep.mubr.bf16.mxu0 0
      %720 = vmatmul.mubr.bf16.gmra.mxu0 %v663
      %v721 = vpop.f32.mrf.mxu0
      %v722 = vadd.f32 0.0, %v721
      %v723 = vpop.f32.mrf.mxu0
      %v724 = vpop.f32.mrf.mxu0
      %v725 = vadd.f32 0.0, %v724
      %v726 = vpop.f32.mrf.mxu0
      %727 = vmatprep.mubr.bf16.mxu0 0
      %728 = vmatmul.mubr.bf16.gmra.mxu0 %v666
      %v729 = vpop.f32.mrf.mxu0
      %v730 = vadd.f32 0.0, %v729
      %v731 = vpop.f32.mrf.mxu0
      %v732 = vpop.f32.mrf.mxu0
      %v733 = vadd.f32 0.0, %v732
      %v734 = vpop.f32.mrf.mxu0
      %735 = vdwg.mxu0
      %v736 = vsel %vm353, %v706, -inf
      %737 = vmax.xlane.f32.xlu0 %v736
      %v738 = vpop.xlane.xlu0 %737
      %v739 = vsel %vm353, %v709, -inf
      %740 = vmax.xlane.f32.xlu0 %v739
      %v741 = vpop.xlane.xlu0 %740
      %v742 = vsel %vm353, %v714, -inf
      %743 = vmax.xlane.f32.xlu0 %v742
      %v744 = vpop.xlane.xlu0 %743
      %v745 = vsel %vm353, %v717, -inf
      %746 = vmax.xlane.f32.xlu0 %v745
      %v747 = vpop.xlane.xlu0 %746
      %v748 = vsel %vm353, %v722, -inf
      %749 = vmax.xlane.f32.xlu0 %v748
      %v750 = vpop.xlane.xlu0 %749
      %v751 = vsel %vm353, %v725, -inf
      %752 = vmax.xlane.f32.xlu0 %v751
      %v753 = vpop.xlane.xlu0 %752
      %v754 = vsel %vm353, %v730, -inf
      %755 = vmax.xlane.f32.xlu0 %v754
      %v756 = vpop.xlane.xlu0 %755
      %v757 = vsel %vm353, %v733, -inf
      %758 = vmax.xlane.f32.xlu0 %v757
      %v759 = vpop.xlane.xlu0 %758
      %v760 = vsub.f32 %v706, %v738
      %v761 = vsub.f32 %v709, %v741
      %v762 = vsub.f32 %v714, %v744
      %v763 = vsub.f32 %v717, %v747
      %v764 = vsub.f32 %v722, %v750
      %v765 = vsub.f32 %v725, %v753
      %v766 = vsub.f32 %v730, %v756
      %v767 = vsub.f32 %v733, %v759
      %v768 = vmul.f32 %v760, 1.442695
      %v769 = vpow.pop %v768
      %v770 = vmul.f32 %v761, 1.442695
      %v771 = vpow.pop %v770
      %v772 = vmul.f32 %v762, 1.442695
      %v773 = vpow.pop %v772
      %v774 = vmul.f32 %v763, 1.442695
      %v775 = vpow.pop %v774
      %v776 = vmul.f32 %v764, 1.442695
      %v777 = vpow.pop %v776
      %v778 = vmul.f32 %v765, 1.442695
      %v779 = vpow.pop %v778
      %v780 = vmul.f32 %v766, 1.442695
      %v781 = vpow.pop %v780
      %v782 = vmul.f32 %v767, 1.442695
      %v783 = vpow.pop %v782
      %v784 = vsel %vm353, %v769, 0.0
      %785 = vadd.xlane.f32.xlu0 %v784
      %v786 = vpop.xlane.xlu0 %785
      %v787 = vsel %vm353, %v771, 0.0
      %788 = vadd.xlane.f32.xlu0 %v787
      %v789 = vpop.xlane.xlu0 %788
      %v790 = vsel %vm353, %v773, 0.0
      %791 = vadd.xlane.f32.xlu0 %v790
      %v792 = vpop.xlane.xlu0 %791
      %v793 = vsel %vm353, %v775, 0.0
      %794 = vadd.xlane.f32.xlu0 %v793
      %v795 = vpop.xlane.xlu0 %794
      %v796 = vsel %vm353, %v777, 0.0
      %797 = vadd.xlane.f32.xlu0 %v796
      %v798 = vpop.xlane.xlu0 %797
      %v799 = vsel %vm353, %v779, 0.0
      %800 = vadd.xlane.f32.xlu0 %v799
      %v801 = vpop.xlane.xlu0 %800
      %v802 = vsel %vm353, %v781, 0.0
      %803 = vadd.xlane.f32.xlu0 %v802
      %v804 = vpop.xlane.xlu0 %803
      %v805 = vsel %vm353, %v783, 0.0
      %806 = vadd.xlane.f32.xlu0 %v805
      %v807 = vpop.xlane.xlu0 %806
      %v808 = vpack.c.bf16 %v771, %v769
      %v809 = vpack.c.bf16 %v775, %v773
      %v810 = vpack.c.bf16 %v779, %v777
      %v811 = vpack.c.bf16 %v783, %v781
      %v813 = vsel %vm353, %v808, 0
      %v816 = vsel %vm353, %v809, 0
      %v819 = vsel %vm353, %v810, 0
      %v822 = vsel %vm353, %v811, 0
      %v825 = vsel %vm522, %v655, 0
      %827 = vmatprep.subr.bf16.mxu0 0
      %828 = vmatpush1.bf16.msra.mxu0 0
      %829 = vmatprep.subr.bf16.mxu0 0
      %830 = vmatpush1.bf16.msra.mxu0 0
      %831 = vmatprep.subr.bf16.mxu0 0
      %832 = vmatpush1.bf16.msra.mxu0 0
      %833 = vmatprep.subr.bf16.mxu0 0
      %834 = vmatpush1.bf16.msra.mxu0 0
      %835 = vmatprep.subr.bf16.mxu0 0
      %836 = vmatpush1.bf16.msra.mxu0 0
      %837 = vmatprep.subr.bf16.mxu0 0
      %838 = vmatpush1.bf16.msra.mxu0 0
      %839 = vmatprep.subr.bf16.mxu0 0
      %840 = vmatpush1.bf16.msra.mxu0 0
      %841 = vmatprep.subr.bf16.mxu0 0
      %842 = vmatpush1.bf16.msra.mxu0 %v825
      %843 = vmatprep.subr.bf16.mxu0 0
      %844 = vmatpush2.bf16.msra.mxu0 0
      %845 = vmatprep.subr.bf16.mxu0 0
      %846 = vmatpush2.bf16.msra.mxu0 0
      %847 = vmatprep.subr.bf16.mxu0 0
      %848 = vmatpush2.bf16.msra.mxu0 0
      %849 = vmatprep.subr.bf16.mxu0 0
      %850 = vmatpush2.bf16.msra.mxu0 0
      %851 = vmatprep.subr.bf16.mxu0 0
      %852 = vmatpush2.bf16.msra.mxu0 0
      %853 = vmatprep.subr.bf16.mxu0 0
      %854 = vmatpush2.bf16.msra.mxu0 0
      %855 = vmatprep.subr.bf16.mxu0 0
      %856 = vmatpush2.bf16.msra.mxu0 0
      %857 = vmatprep.subr.bf16.mxu0 0
      %858 = vmatpush2.bf16.msra.mxu0 0
      %859 = vmatprep.mubr.bf16.mxu0 0
      %860 = vmatmul.mubr.bf16.gmra.mxu0 %v813
      %v861 = vpop.f32.mrf.mxu0
      %v862 = vadd.f32 0.0, %v861
      %v863 = vpop.f32.mrf.mxu0
      %v864 = vpop.f32.mrf.mxu0
      %v865 = vadd.f32 0.0, %v864
      %v866 = vpop.f32.mrf.mxu0
      %867 = vmatprep.mubr.bf16.mxu0 0
      %868 = vmatmul.mubr.bf16.gmra.mxu0 %v816
      %v869 = vpop.f32.mrf.mxu0
      %v870 = vadd.f32 0.0, %v869
      %v871 = vpop.f32.mrf.mxu0
      %v872 = vpop.f32.mrf.mxu0
      %v873 = vadd.f32 0.0, %v872
      %v874 = vpop.f32.mrf.mxu0
      %875 = vmatprep.mubr.bf16.mxu0 0
      %876 = vmatmul.mubr.bf16.gmra.mxu0 %v819
      %v877 = vpop.f32.mrf.mxu0
      %v878 = vadd.f32 0.0, %v877
      %v879 = vpop.f32.mrf.mxu0
      %v880 = vpop.f32.mrf.mxu0
      %v881 = vadd.f32 0.0, %v880
      %v882 = vpop.f32.mrf.mxu0
      %883 = vmatprep.mubr.bf16.mxu0 0
      %884 = vmatmul.mubr.bf16.gmra.mxu0 %v822
      %v885 = vpop.f32.mrf.mxu0
      %v886 = vadd.f32 0.0, %v885
      %v887 = vpop.f32.mrf.mxu0
      %v888 = vpop.f32.mrf.mxu0
      %v889 = vadd.f32 0.0, %v888
      %v890 = vpop.f32.mrf.mxu0
      %891 = vdwg.mxu0
      %v892 = vrcp.pop %v786
      %v893 = vmul.f32 %v862, %v892
      %v894 = vrcp.pop %v789
      %v895 = vmul.f32 %v865, %v894
      %v896 = vrcp.pop %v792
      %v897 = vmul.f32 %v870, %v896
      %v898 = vrcp.pop %v795
      %v899 = vmul.f32 %v873, %v898
      %v900 = vrcp.pop %v798
      %v901 = vmul.f32 %v878, %v900
      %v902 = vrcp.pop %v801
      %v903 = vmul.f32 %v881, %v902
      %v904 = vrcp.pop %v804
      %v905 = vmul.f32 %v886, %v904
      %v906 = vrcp.pop %v807
      %v907 = vmul.f32 %v889, %v906
      %v908 = vpack.c.bf16 %v895, %v893
      %v909 = vpack.c.bf16 %v899, %v897
      %v910 = vpack.c.bf16 %v903, %v901
      %v911 = vpack.c.bf16 %v907, %v905
      %v916 = vunpack.c.l.b16 %v908
      %v917 = vunpack.c.h.b16 %v908
      %v918 = vunpack.c.l.b16 %v909
      %v919 = vunpack.c.h.b16 %v909
      %v920 = vunpack.c.l.b16 %v910
      %v921 = vunpack.c.h.b16 %v910
      %v922 = vunpack.c.l.b16 %v911
      %v923 = vunpack.c.h.b16 %v911
      %v924 = vpack.c.b16 %v916, %v916
      %v925 = vpack.c.b16 %v917, %v917
      %v926 = vpack.c.b16 %v918, %v918
      %v927 = vpack.c.b16 %v919, %v919
      %v928 = vpack.c.b16 %v920, %v920
      %v929 = vpack.c.b16 %v921, %v921
      %v930 = vpack.c.b16 %v922, %v922
      %v931 = vpack.c.b16 %v923, %v923
      %932 = vrot.lane.b32.xlu0 %v924, 8
      %v933 = vpop.permute.xlu0 %932
      %934 = vrot.lane.b32.xlu0 %v925, 8
      %v935 = vpop.permute.xlu0 %934
      %936 = vrot.lane.b32.xlu0 %v926, 8
      %v937 = vpop.permute.xlu0 %936
      %938 = vrot.lane.b32.xlu0 %v927, 8
      %v939 = vpop.permute.xlu0 %938
      %940 = vrot.lane.b32.xlu0 %v928, 8
      %v941 = vpop.permute.xlu0 %940
      %942 = vrot.lane.b32.xlu0 %v929, 8
      %v943 = vpop.permute.xlu0 %942
      %944 = vrot.lane.b32.xlu0 %v930, 8
      %v945 = vpop.permute.xlu0 %944
      %946 = vrot.lane.b32.xlu0 %v931, 8
      %v947 = vpop.permute.xlu0 %946
      %vm956 = vcmask 126016
      %957 = vst.msk [vmem:[%s248] sm:$0xf] %vm956, %v933
      %958 = vst.msk [vmem:[%s248 + $0x4] sm:$0xf] %vm956, %v935
      %959 = vst.msk [vmem:[%s248 + $0x8] sm:$0xf] %vm956, %v937
      %960 = vst.msk [vmem:[%s248 + $0xc] sm:$0xf] %vm956, %v939
      %961 = vst.msk [vmem:[%s248 + $0x10] sm:$0xf] %vm956, %v941
      %962 = vst.msk [vmem:[%s248 + $0x14] sm:$0xf] %vm956, %v943
      %963 = vst.msk [vmem:[%s248 + $0x18] sm:$0xf] %vm956, %v945
      %964 = vst.msk [vmem:[%s248 + $0x1c] sm:$0xf] %vm956, %v947
      %v965 = vpack.c.bf16 %v332, %v331
      %v966 = vpack.c.bf16 %v334, %v333
      %v967 = vpack.c.bf16 %v336, %v335
      %v968 = vpack.c.bf16 %v338, %v337
      %s969 = scalar_lea.vmem %s234, 8
      %v970 = vld [vmem:[%s969] sm:$0xf]
      %s971 = scalar_lea.vmem %s239, 8
      %v972 = vld [vmem:[%s971] sm:$0xf]
      %v974 = vsel %vm353, %v965, 0
      %v977 = vsel %vm353, %v966, 0
      %v980 = vsel %vm353, %v967, 0
      %v983 = vsel %vm353, %v968, 0
      %v986 = vsel %vm353, %v970, 0
      %988 = vmatprep.subr.bf16.mxu0 0
      %989 = vmatpush1.bf16.xpose.msra.mxu0 0
      %990 = vmatprep.subr.bf16.mxu0 0
      %991 = vmatpush1.bf16.xpose.msra.mxu0 0
      %992 = vmatprep.subr.bf16.mxu0 0
      %993 = vmatpush1.bf16.xpose.msra.mxu0 0
      %994 = vmatprep.subr.bf16.mxu0 0
      %995 = vmatpush1.bf16.xpose.msra.mxu0 0
      %996 = vmatprep.subr.bf16.mxu0 0
      %997 = vmatpush1.bf16.xpose.msra.mxu0 0
      %998 = vmatprep.subr.bf16.mxu0 0
      %999 = vmatpush1.bf16.xpose.msra.mxu0 0
      %1000 = vmatprep.subr.bf16.mxu0 0
      %1001 = vmatpush1.bf16.xpose.msra.mxu0 0
      %1002 = vmatprep.subr.bf16.mxu0 0
      %1003 = vmatpush1.bf16.xpose.msra.mxu0 %v986
      %1004 = vmatprep.subr.bf16.mxu0 0
      %1005 = vmatpush2.bf16.xpose.msra.mxu0 0
      %1006 = vmatprep.subr.bf16.mxu0 0
      %1007 = vmatpush2.bf16.xpose.msra.mxu0 0
      %1008 = vmatprep.subr.bf16.mxu0 0
      %1009 = vmatpush2.bf16.xpose.msra.mxu0 0
      %1010 = vmatprep.subr.bf16.mxu0 0
      %1011 = vmatpush2.bf16.xpose.msra.mxu0 0
      %1012 = vmatprep.subr.bf16.mxu0 0
      %1013 = vmatpush2.bf16.xpose.msra.mxu0 0
      %1014 = vmatprep.subr.bf16.mxu0 0
      %1015 = vmatpush2.bf16.xpose.msra.mxu0 0
      %1016 = vmatprep.subr.bf16.mxu0 0
      %1017 = vmatpush2.bf16.xpose.msra.mxu0 0
      %1018 = vmatprep.subr.bf16.mxu0 0
      %1019 = vmatpush2.bf16.xpose.msra.mxu0 0
      %1020 = vmatprep.mubr.bf16.mxu0 0
      %1021 = vmatmul.mubr.bf16.gmra.mxu0 %v974
      %v1022 = vpop.f32.mrf.mxu0
      %v1023 = vadd.f32 0.0, %v1022
      %v1024 = vpop.f32.mrf.mxu0
      %v1025 = vpop.f32.mrf.mxu0
      %v1026 = vadd.f32 0.0, %v1025
      %v1027 = vpop.f32.mrf.mxu0
      %1028 = vmatprep.mubr.bf16.mxu0 0
      %1029 = vmatmul.mubr.bf16.gmra.mxu0 %v977
      %v1030 = vpop.f32.mrf.mxu0
      %v1031 = vadd.f32 0.0, %v1030
      %v1032 = vpop.f32.mrf.mxu0
      %v1033 = vpop.f32.mrf.mxu0
      %v1034 = vadd.f32 0.0, %v1033
      %v1035 = vpop.f32.mrf.mxu0
      %1036 = vmatprep.mubr.bf16.mxu0 0
      %1037 = vmatmul.mubr.bf16.gmra.mxu0 %v980
      %v1038 = vpop.f32.mrf.mxu0
      %v1039 = vadd.f32 0.0, %v1038
      %v1040 = vpop.f32.mrf.mxu0
      %v1041 = vpop.f32.mrf.mxu0
      %v1042 = vadd.f32 0.0, %v1041
      %v1043 = vpop.f32.mrf.mxu0
      %1044 = vmatprep.mubr.bf16.mxu0 0
      %1045 = vmatmul.mubr.bf16.gmra.mxu0 %v983
      %v1046 = vpop.f32.mrf.mxu0
      %v1047 = vadd.f32 0.0, %v1046
      %v1048 = vpop.f32.mrf.mxu0
      %v1049 = vpop.f32.mrf.mxu0
      %v1050 = vadd.f32 0.0, %v1049
      %v1051 = vpop.f32.mrf.mxu0
      %1052 = vdwg.mxu0
      %v1053 = vsel %vm353, %v1023, -inf
      %1054 = vmax.xlane.f32.xlu0 %v1053
      %v1055 = vpop.xlane.xlu0 %1054
      %v1056 = vsel %vm353, %v1026, -inf
      %1057 = vmax.xlane.f32.xlu0 %v1056
      %v1058 = vpop.xlane.xlu0 %1057
      %v1059 = vsel %vm353, %v1031, -inf
      %1060 = vmax.xlane.f32.xlu0 %v1059
      %v1061 = vpop.xlane.xlu0 %1060
      %v1062 = vsel %vm353, %v1034, -inf
      %1063 = vmax.xlane.f32.xlu0 %v1062
      %v1064 = vpop.xlane.xlu0 %1063
      %v1065 = vsel %vm353, %v1039, -inf
      %1066 = vmax.xlane.f32.xlu0 %v1065
      %v1067 = vpop.xlane.xlu0 %1066
      %v1068 = vsel %vm353, %v1042, -inf
      %1069 = vmax.xlane.f32.xlu0 %v1068
      %v1070 = vpop.xlane.xlu0 %1069
      %v1071 = vsel %vm353, %v1047, -inf
      %1072 = vmax.xlane.f32.xlu0 %v1071
      %v1073 = vpop.xlane.xlu0 %1072
      %v1074 = vsel %vm353, %v1050, -inf
      %1075 = vmax.xlane.f32.xlu0 %v1074
      %v1076 = vpop.xlane.xlu0 %1075
      %v1077 = vsub.f32 %v1023, %v1055
      %v1078 = vsub.f32 %v1026, %v1058
      %v1079 = vsub.f32 %v1031, %v1061
      %v1080 = vsub.f32 %v1034, %v1064
      %v1081 = vsub.f32 %v1039, %v1067
      %v1082 = vsub.f32 %v1042, %v1070
      %v1083 = vsub.f32 %v1047, %v1073
      %v1084 = vsub.f32 %v1050, %v1076
      %v1085 = vmul.f32 %v1077, 1.442695
      %v1086 = vpow.pop %v1085
      %v1087 = vmul.f32 %v1078, 1.442695
      %v1088 = vpow.pop %v1087
      %v1089 = vmul.f32 %v1079, 1.442695
      %v1090 = vpow.pop %v1089
      %v1091 = vmul.f32 %v1080, 1.442695
      %v1092 = vpow.pop %v1091
      %v1093 = vmul.f32 %v1081, 1.442695
      %v1094 = vpow.pop %v1093
      %v1095 = vmul.f32 %v1082, 1.442695
      %v1096 = vpow.pop %v1095
      %v1097 = vmul.f32 %v1083, 1.442695
      %v1098 = vpow.pop %v1097
      %v1099 = vmul.f32 %v1084, 1.442695
      %v1100 = vpow.pop %v1099
      %v1101 = vsel %vm353, %v1086, 0.0
      %1102 = vadd.xlane.f32.xlu0 %v1101
      %v1103 = vpop.xlane.xlu0 %1102
      %v1104 = vsel %vm353, %v1088, 0.0
      %1105 = vadd.xlane.f32.xlu0 %v1104
      %v1106 = vpop.xlane.xlu0 %1105
      %v1107 = vsel %vm353, %v1090, 0.0
      %1108 = vadd.xlane.f32.xlu0 %v1107
      %v1109 = vpop.xlane.xlu0 %1108
      %v1110 = vsel %vm353, %v1092, 0.0
      %1111 = vadd.xlane.f32.xlu0 %v1110
      %v1112 = vpop.xlane.xlu0 %1111
      %v1113 = vsel %vm353, %v1094, 0.0
      %1114 = vadd.xlane.f32.xlu0 %v1113
      %v1115 = vpop.xlane.xlu0 %1114
      %v1116 = vsel %vm353, %v1096, 0.0
      %1117 = vadd.xlane.f32.xlu0 %v1116
      %v1118 = vpop.xlane.xlu0 %1117
      %v1119 = vsel %vm353, %v1098, 0.0
      %1120 = vadd.xlane.f32.xlu0 %v1119
      %v1121 = vpop.xlane.xlu0 %1120
      %v1122 = vsel %vm353, %v1100, 0.0
      %1123 = vadd.xlane.f32.xlu0 %v1122
      %v1124 = vpop.xlane.xlu0 %1123
      %v1125 = vpack.c.bf16 %v1088, %v1086
      %v1126 = vpack.c.bf16 %v1092, %v1090
      %v1127 = vpack.c.bf16 %v1096, %v1094
      %v1128 = vpack.c.bf16 %v1100, %v1098
      %v1130 = vsel %vm353, %v1125, 0
      %v1133 = vsel %vm353, %v1126, 0
      %v1136 = vsel %vm353, %v1127, 0
      %v1139 = vsel %vm353, %v1128, 0
      %v1142 = vsel %vm522, %v972, 0
      %1144 = vmatprep.subr.bf16.mxu0 0
      %1145 = vmatpush1.bf16.msra.mxu0 0
      %1146 = vmatprep.subr.bf16.mxu0 0
      %1147 = vmatpush1.bf16.msra.mxu0 0
      %1148 = vmatprep.subr.bf16.mxu0 0
      %1149 = vmatpush1.bf16.msra.mxu0 0
      %1150 = vmatprep.subr.bf16.mxu0 0
      %1151 = vmatpush1.bf16.msra.mxu0 0
      %1152 = vmatprep.subr.bf16.mxu0 0
      %1153 = vmatpush1.bf16.msra.mxu0 0
      %1154 = vmatprep.subr.bf16.mxu0 0
      %1155 = vmatpush1.bf16.msra.mxu0 0
      %1156 = vmatprep.subr.bf16.mxu0 0
      %1157 = vmatpush1.bf16.msra.mxu0 0
      %1158 = vmatprep.subr.bf16.mxu0 0
      %1159 = vmatpush1.bf16.msra.mxu0 %v1142
      %1160 = vmatprep.subr.bf16.mxu0 0
      %1161 = vmatpush2.bf16.msra.mxu0 0
      %1162 = vmatprep.subr.bf16.mxu0 0
      %1163 = vmatpush2.bf16.msra.mxu0 0
      %1164 = vmatprep.subr.bf16.mxu0 0
      %1165 = vmatpush2.bf16.msra.mxu0 0
      %1166 = vmatprep.subr.bf16.mxu0 0
      %1167 = vmatpush2.bf16.msra.mxu0 0
      %1168 = vmatprep.subr.bf16.mxu0 0
      %1169 = vmatpush2.bf16.msra.mxu0 0
      %1170 = vmatprep.subr.bf16.mxu0 0
      %1171 = vmatpush2.bf16.msra.mxu0 0
      %1172 = vmatprep.subr.bf16.mxu0 0
      %1173 = vmatpush2.bf16.msra.mxu0 0
      %1174 = vmatprep.subr.bf16.mxu0 0
      %1175 = vmatpush2.bf16.msra.mxu0 0
      %1176 = vmatprep.mubr.bf16.mxu0 0
      %1177 = vmatmul.mubr.bf16.gmra.mxu0 %v1130
      %v1178 = vpop.f32.mrf.mxu0
      %v1179 = vadd.f32 0.0, %v1178
      %v1180 = vpop.f32.mrf.mxu0
      %v1181 = vpop.f32.mrf.mxu0
      %v1182 = vadd.f32 0.0, %v1181
      %v1183 = vpop.f32.mrf.mxu0
      %1184 = vmatprep.mubr.bf16.mxu0 0
      %1185 = vmatmul.mubr.bf16.gmra.mxu0 %v1133
      %v1186 = vpop.f32.mrf.mxu0
      %v1187 = vadd.f32 0.0, %v1186
      %v1188 = vpop.f32.mrf.mxu0
      %v1189 = vpop.f32.mrf.mxu0
      %v1190 = vadd.f32 0.0, %v1189
      %v1191 = vpop.f32.mrf.mxu0
      %1192 = vmatprep.mubr.bf16.mxu0 0
      %1193 = vmatmul.mubr.bf16.gmra.mxu0 %v1136
      %v1194 = vpop.f32.mrf.mxu0
      %v1195 = vadd.f32 0.0, %v1194
      %v1196 = vpop.f32.mrf.mxu0
      %v1197 = vpop.f32.mrf.mxu0
      %v1198 = vadd.f32 0.0, %v1197
      %v1199 = vpop.f32.mrf.mxu0
      %1200 = vmatprep.mubr.bf16.mxu0 0
      %1201 = vmatmul.mubr.bf16.gmra.mxu0 %v1139
      %v1202 = vpop.f32.mrf.mxu0
      %v1203 = vadd.f32 0.0, %v1202
      %v1204 = vpop.f32.mrf.mxu0
      %v1205 = vpop.f32.mrf.mxu0
      %v1206 = vadd.f32 0.0, %v1205
      %v1207 = vpop.f32.mrf.mxu0
      %1208 = vdwg.mxu0
      %v1209 = vrcp.pop %v1103
      %v1210 = vmul.f32 %v1179, %v1209
      %v1211 = vrcp.pop %v1106
      %v1212 = vmul.f32 %v1182, %v1211
      %v1213 = vrcp.pop %v1109
      %v1214 = vmul.f32 %v1187, %v1213
      %v1215 = vrcp.pop %v1112
      %v1216 = vmul.f32 %v1190, %v1215
      %v1217 = vrcp.pop %v1115
      %v1218 = vmul.f32 %v1195, %v1217
      %v1219 = vrcp.pop %v1118
      %v1220 = vmul.f32 %v1198, %v1219
      %v1221 = vrcp.pop %v1121
      %v1222 = vmul.f32 %v1203, %v1221
      %v1223 = vrcp.pop %v1124
      %v1224 = vmul.f32 %v1206, %v1223
      %v1225 = vpack.c.bf16 %v1212, %v1210
      %v1226 = vpack.c.bf16 %v1216, %v1214
      %v1227 = vpack.c.bf16 %v1220, %v1218
      %v1228 = vpack.c.bf16 %v1224, %v1222
      %v1233 = vunpack.c.l.b16 %v1225
      %v1234 = vunpack.c.h.b16 %v1225
      %v1235 = vunpack.c.l.b16 %v1226
      %v1236 = vunpack.c.h.b16 %v1226
      %v1237 = vunpack.c.l.b16 %v1227
      %v1238 = vunpack.c.h.b16 %v1227
      %v1239 = vunpack.c.l.b16 %v1228
      %v1240 = vunpack.c.h.b16 %v1228
      %v1241 = vpack.c.b16 %v1233, %v1233
      %v1242 = vpack.c.b16 %v1234, %v1234
      %v1243 = vpack.c.b16 %v1235, %v1235
      %v1244 = vpack.c.b16 %v1236, %v1236
      %v1245 = vpack.c.b16 %v1237, %v1237
      %v1246 = vpack.c.b16 %v1238, %v1238
      %v1247 = vpack.c.b16 %v1239, %v1239
      %v1248 = vpack.c.b16 %v1240, %v1240
      %1249 = vrot.lane.b32.xlu0 %v1241, 16
      %v1250 = vpop.permute.xlu0 %1249
      %1251 = vrot.lane.b32.xlu0 %v1242, 16
      %v1252 = vpop.permute.xlu0 %1251
      %1253 = vrot.lane.b32.xlu0 %v1243, 16
      %v1254 = vpop.permute.xlu0 %1253
      %1255 = vrot.lane.b32.xlu0 %v1244, 16
      %v1256 = vpop.permute.xlu0 %1255
      %1257 = vrot.lane.b32.xlu0 %v1245, 16
      %v1258 = vpop.permute.xlu0 %1257
      %1259 = vrot.lane.b32.xlu0 %v1246, 16
      %v1260 = vpop.permute.xlu0 %1259
      %1261 = vrot.lane.b32.xlu0 %v1247, 16
      %v1262 = vpop.permute.xlu0 %1261
      %1263 = vrot.lane.b32.xlu0 %v1248, 16
      %v1264 = vpop.permute.xlu0 %1263
      %vm1273 = vcmask 191616
      %1274 = vst.msk [vmem:[%s248] sm:$0xf] %vm1273, %v1250
      %1275 = vst.msk [vmem:[%s248 + $0x4] sm:$0xf] %vm1273, %v1252
      %1276 = vst.msk [vmem:[%s248 + $0x8] sm:$0xf] %vm1273, %v1254
      %1277 = vst.msk [vmem:[%s248 + $0xc] sm:$0xf] %vm1273, %v1256
      %1278 = vst.msk [vmem:[%s248 + $0x10] sm:$0xf] %vm1273, %v1258
      %1279 = vst.msk [vmem:[%s248 + $0x14] sm:$0xf] %vm1273, %v1260
      %1280 = vst.msk [vmem:[%s248 + $0x18] sm:$0xf] %vm1273, %v1262
      %1281 = vst.msk [vmem:[%s248 + $0x1c] sm:$0xf] %vm1273, %v1264
      %v1282 = vpack.c.bf16 %v340, %v339
      %v1283 = vpack.c.bf16 %v342, %v341
      %v1284 = vpack.c.bf16 %v344, %v343
      %v1285 = vpack.c.bf16 %v346, %v345
      %s1286 = scalar_lea.vmem %s234, 12
      %v1287 = vld [vmem:[%s1286] sm:$0xf]
      %s1288 = scalar_lea.vmem %s239, 12
      %v1289 = vld [vmem:[%s1288] sm:$0xf]
      %v1291 = vsel %vm353, %v1282, 0
      %v1294 = vsel %vm353, %v1283, 0
      %v1297 = vsel %vm353, %v1284, 0
      %v1300 = vsel %vm353, %v1285, 0
      %v1303 = vsel %vm353, %v1287, 0
      %1305 = vmatprep.subr.bf16.mxu0 0
      %1306 = vmatpush1.bf16.xpose.msra.mxu0 0
      %1307 = vmatprep.subr.bf16.mxu0 0
      %1308 = vmatpush1.bf16.xpose.msra.mxu0 0
      %1309 = vmatprep.subr.bf16.mxu0 0
      %1310 = vmatpush1.bf16.xpose.msra.mxu0 0
      %1311 = vmatprep.subr.bf16.mxu0 0
      %1312 = vmatpush1.bf16.xpose.msra.mxu0 0
      %1313 = vmatprep.subr.bf16.mxu0 0
      %1314 = vmatpush1.bf16.xpose.msra.mxu0 0
      %1315 = vmatprep.subr.bf16.mxu0 0
      %1316 = vmatpush1.bf16.xpose.msra.mxu0 0
      %1317 = vmatprep.subr.bf16.mxu0 0
      %1318 = vmatpush1.bf16.xpose.msra.mxu0 0
      %1319 = vmatprep.subr.bf16.mxu0 0
      %1320 = vmatpush1.bf16.xpose.msra.mxu0 %v1303
      %1321 = vmatprep.subr.bf16.mxu0 0
      %1322 = vmatpush2.bf16.xpose.msra.mxu0 0
      %1323 = vmatprep.subr.bf16.mxu0 0
      %1324 = vmatpush2.bf16.xpose.msra.mxu0 0
      %1325 = vmatprep.subr.bf16.mxu0 0
      %1326 = vmatpush2.bf16.xpose.msra.mxu0 0
      %1327 = vmatprep.subr.bf16.mxu0 0
      %1328 = vmatpush2.bf16.xpose.msra.mxu0 0
      %1329 = vmatprep.subr.bf16.mxu0 0
      %1330 = vmatpush2.bf16.xpose.msra.mxu0 0
      %1331 = vmatprep.subr.bf16.mxu0 0
      %1332 = vmatpush2.bf16.xpose.msra.mxu0 0
      %1333 = vmatprep.subr.bf16.mxu0 0
      %1334 = vmatpush2.bf16.xpose.msra.mxu0 0
      %1335 = vmatprep.subr.bf16.mxu0 0
      %1336 = vmatpush2.bf16.xpose.msra.mxu0 0
      %1337 = vmatprep.mubr.bf16.mxu0 0
      %1338 = vmatmul.mubr.bf16.gmra.mxu0 %v1291
      %v1339 = vpop.f32.mrf.mxu0
      %v1340 = vadd.f32 0.0, %v1339
      %v1341 = vpop.f32.mrf.mxu0
      %v1342 = vpop.f32.mrf.mxu0
      %v1343 = vadd.f32 0.0, %v1342
      %v1344 = vpop.f32.mrf.mxu0
      %1345 = vmatprep.mubr.bf16.mxu0 0
      %1346 = vmatmul.mubr.bf16.gmra.mxu0 %v1294
      %v1347 = vpop.f32.mrf.mxu0
      %v1348 = vadd.f32 0.0, %v1347
      %v1349 = vpop.f32.mrf.mxu0
      %v1350 = vpop.f32.mrf.mxu0
      %v1351 = vadd.f32 0.0, %v1350
      %v1352 = vpop.f32.mrf.mxu0
      %1353 = vmatprep.mubr.bf16.mxu0 0
      %1354 = vmatmul.mubr.bf16.gmra.mxu0 %v1297
      %v1355 = vpop.f32.mrf.mxu0
      %v1356 = vadd.f32 0.0, %v1355
      %v1357 = vpop.f32.mrf.mxu0
      %v1358 = vpop.f32.mrf.mxu0
      %v1359 = vadd.f32 0.0, %v1358
      %v1360 = vpop.f32.mrf.mxu0
      %1361 = vmatprep.mubr.bf16.mxu0 0
      %1362 = vmatmul.mubr.bf16.gmra.mxu0 %v1300
      %v1363 = vpop.f32.mrf.mxu0
      %v1364 = vadd.f32 0.0, %v1363
      %v1365 = vpop.f32.mrf.mxu0
      %v1366 = vpop.f32.mrf.mxu0
      %v1367 = vadd.f32 0.0, %v1366
      %v1368 = vpop.f32.mrf.mxu0
      %1369 = vdwg.mxu0
      %v1370 = vsel %vm353, %v1340, -inf
      %1371 = vmax.xlane.f32.xlu0 %v1370
      %v1372 = vpop.xlane.xlu0 %1371
      %v1373 = vsel %vm353, %v1343, -inf
      %1374 = vmax.xlane.f32.xlu0 %v1373
      %v1375 = vpop.xlane.xlu0 %1374
      %v1376 = vsel %vm353, %v1348, -inf
      %1377 = vmax.xlane.f32.xlu0 %v1376
      %v1378 = vpop.xlane.xlu0 %1377
      %v1379 = vsel %vm353, %v1351, -inf
      %1380 = vmax.xlane.f32.xlu0 %v1379
      %v1381 = vpop.xlane.xlu0 %1380
      %v1382 = vsel %vm353, %v1356, -inf
      %1383 = vmax.xlane.f32.xlu0 %v1382
      %v1384 = vpop.xlane.xlu0 %1383
      %v1385 = vsel %vm353, %v1359, -inf
      %1386 = vmax.xlane.f32.xlu0 %v1385
      %v1387 = vpop.xlane.xlu0 %1386
      %v1388 = vsel %vm353, %v1364, -inf
      %1389 = vmax.xlane.f32.xlu0 %v1388
      %v1390 = vpop.xlane.xlu0 %1389
      %v1391 = vsel %vm353, %v1367, -inf
      %1392 = vmax.xlane.f32.xlu0 %v1391
      %v1393 = vpop.xlane.xlu0 %1392
      %v1394 = vsub.f32 %v1340, %v1372
      %v1395 = vsub.f32 %v1343, %v1375
      %v1396 = vsub.f32 %v1348, %v1378
      %v1397 = vsub.f32 %v1351, %v1381
      %v1398 = vsub.f32 %v1356, %v1384
      %v1399 = vsub.f32 %v1359, %v1387
      %v1400 = vsub.f32 %v1364, %v1390
      %v1401 = vsub.f32 %v1367, %v1393
      %v1402 = vmul.f32 %v1394, 1.442695
      %v1403 = vpow.pop %v1402
      %v1404 = vmul.f32 %v1395, 1.442695
      %v1405 = vpow.pop %v1404
      %v1406 = vmul.f32 %v1396, 1.442695
      %v1407 = vpow.pop %v1406
      %v1408 = vmul.f32 %v1397, 1.442695
      %v1409 = vpow.pop %v1408
      %v1410 = vmul.f32 %v1398, 1.442695
      %v1411 = vpow.pop %v1410
      %v1412 = vmul.f32 %v1399, 1.442695
      %v1413 = vpow.pop %v1412
      %v1414 = vmul.f32 %v1400, 1.442695
      %v1415 = vpow.pop %v1414
      %v1416 = vmul.f32 %v1401, 1.442695
      %v1417 = vpow.pop %v1416
      %v1418 = vsel %vm353, %v1403, 0.0
      %1419 = vadd.xlane.f32.xlu0 %v1418
      %v1420 = vpop.xlane.xlu0 %1419
      %v1421 = vsel %vm353, %v1405, 0.0
      %1422 = vadd.xlane.f32.xlu0 %v1421
      %v1423 = vpop.xlane.xlu0 %1422
      %v1424 = vsel %vm353, %v1407, 0.0
      %1425 = vadd.xlane.f32.xlu0 %v1424
      %v1426 = vpop.xlane.xlu0 %1425
      %v1427 = vsel %vm353, %v1409, 0.0
      %1428 = vadd.xlane.f32.xlu0 %v1427
      %v1429 = vpop.xlane.xlu0 %1428
      %v1430 = vsel %vm353, %v1411, 0.0
      %1431 = vadd.xlane.f32.xlu0 %v1430
      %v1432 = vpop.xlane.xlu0 %1431
      %v1433 = vsel %vm353, %v1413, 0.0
      %1434 = vadd.xlane.f32.xlu0 %v1433
      %v1435 = vpop.xlane.xlu0 %1434
      %v1436 = vsel %vm353, %v1415, 0.0
      %1437 = vadd.xlane.f32.xlu0 %v1436
      %v1438 = vpop.xlane.xlu0 %1437
      %v1439 = vsel %vm353, %v1417, 0.0
      %1440 = vadd.xlane.f32.xlu0 %v1439
      %v1441 = vpop.xlane.xlu0 %1440
      %v1442 = vpack.c.bf16 %v1405, %v1403
      %v1443 = vpack.c.bf16 %v1409, %v1407
      %v1444 = vpack.c.bf16 %v1413, %v1411
      %v1445 = vpack.c.bf16 %v1417, %v1415
      %v1447 = vsel %vm353, %v1442, 0
      %v1450 = vsel %vm353, %v1443, 0
      %v1453 = vsel %vm353, %v1444, 0
      %v1456 = vsel %vm353, %v1445, 0
      %v1459 = vsel %vm522, %v1289, 0
      %1461 = vmatprep.subr.bf16.mxu0 0
      %1462 = vmatpush1.bf16.msra.mxu0 0
      %1463 = vmatprep.subr.bf16.mxu0 0
      %1464 = vmatpush1.bf16.msra.mxu0 0
      %1465 = vmatprep.subr.bf16.mxu0 0
      %1466 = vmatpush1.bf16.msra.mxu0 0
      %1467 = vmatprep.subr.bf16.mxu0 0
      %1468 = vmatpush1.bf16.msra.mxu0 0
      %1469 = vmatprep.subr.bf16.mxu0 0
      %1470 = vmatpush1.bf16.msra.mxu0 0
      %1471 = vmatprep.subr.bf16.mxu0 0
      %1472 = vmatpush1.bf16.msra.mxu0 0
      %1473 = vmatprep.subr.bf16.mxu0 0
      %1474 = vmatpush1.bf16.msra.mxu0 0
      %1475 = vmatprep.subr.bf16.mxu0 0
      %1476 = vmatpush1.bf16.msra.mxu0 %v1459
      %1477 = vmatprep.subr.bf16.mxu0 0
      %1478 = vmatpush2.bf16.msra.mxu0 0
      %1479 = vmatprep.subr.bf16.mxu0 0
      %1480 = vmatpush2.bf16.msra.mxu0 0
      %1481 = vmatprep.subr.bf16.mxu0 0
      %1482 = vmatpush2.bf16.msra.mxu0 0
      %1483 = vmatprep.subr.bf16.mxu0 0
      %1484 = vmatpush2.bf16.msra.mxu0 0
      %1485 = vmatprep.subr.bf16.mxu0 0
      %1486 = vmatpush2.bf16.msra.mxu0 0
      %1487 = vmatprep.subr.bf16.mxu0 0
      %1488 = vmatpush2.bf16.msra.mxu0 0
      %1489 = vmatprep.subr.bf16.mxu0 0
      %1490 = vmatpush2.bf16.msra.mxu0 0
      %1491 = vmatprep.subr.bf16.mxu0 0
      %1492 = vmatpush2.bf16.msra.mxu0 0
      %1493 = vmatprep.mubr.bf16.mxu0 0
      %1494 = vmatmul.mubr.bf16.gmra.mxu0 %v1447
      %v1495 = vpop.f32.mrf.mxu0
      %v1496 = vadd.f32 0.0, %v1495
      %v1497 = vpop.f32.mrf.mxu0
      %v1498 = vpop.f32.mrf.mxu0
      %v1499 = vadd.f32 0.0, %v1498
      %v1500 = vpop.f32.mrf.mxu0
      %1501 = vmatprep.mubr.bf16.mxu0 0
      %1502 = vmatmul.mubr.bf16.gmra.mxu0 %v1450
      %v1503 = vpop.f32.mrf.mxu0
      %v1504 = vadd.f32 0.0, %v1503
      %v1505 = vpop.f32.mrf.mxu0
      %v1506 = vpop.f32.mrf.mxu0
      %v1507 = vadd.f32 0.0, %v1506
      %v1508 = vpop.f32.mrf.mxu0
      %1509 = vmatprep.mubr.bf16.mxu0 0
      %1510 = vmatmul.mubr.bf16.gmra.mxu0 %v1453
      %v1511 = vpop.f32.mrf.mxu0
      %v1512 = vadd.f32 0.0, %v1511
      %v1513 = vpop.f32.mrf.mxu0
      %v1514 = vpop.f32.mrf.mxu0
      %v1515 = vadd.f32 0.0, %v1514
      %v1516 = vpop.f32.mrf.mxu0
      %1517 = vmatprep.mubr.bf16.mxu0 0
      %1518 = vmatmul.mubr.bf16.gmra.mxu0 %v1456
      %v1519 = vpop.f32.mrf.mxu0
      %v1520 = vadd.f32 0.0, %v1519
      %v1521 = vpop.f32.mrf.mxu0
      %v1522 = vpop.f32.mrf.mxu0
      %v1523 = vadd.f32 0.0, %v1522
      %v1524 = vpop.f32.mrf.mxu0
      %1525 = vdwg.mxu0
      %v1526 = vrcp.pop %v1420
      %v1527 = vmul.f32 %v1496, %v1526
      %v1528 = vrcp.pop %v1423
      %v1529 = vmul.f32 %v1499, %v1528
      %v1530 = vrcp.pop %v1426
      %v1531 = vmul.f32 %v1504, %v1530
      %v1532 = vrcp.pop %v1429
      %v1533 = vmul.f32 %v1507, %v1532
      %v1534 = vrcp.pop %v1432
      %v1535 = vmul.f32 %v1512, %v1534
      %v1536 = vrcp.pop %v1435
      %v1537 = vmul.f32 %v1515, %v1536
      %v1538 = vrcp.pop %v1438
      %v1539 = vmul.f32 %v1520, %v1538
      %v1540 = vrcp.pop %v1441
      %v1541 = vmul.f32 %v1523, %v1540
      %v1542 = vpack.c.bf16 %v1529, %v1527
      %v1543 = vpack.c.bf16 %v1533, %v1531
      %v1544 = vpack.c.bf16 %v1537, %v1535
      %v1545 = vpack.c.bf16 %v1541, %v1539
      %v1550 = vunpack.c.l.b16 %v1542
      %v1551 = vunpack.c.h.b16 %v1542
      %v1552 = vunpack.c.l.b16 %v1543
      %v1553 = vunpack.c.h.b16 %v1543
      %v1554 = vunpack.c.l.b16 %v1544
      %v1555 = vunpack.c.h.b16 %v1544
      %v1556 = vunpack.c.l.b16 %v1545
      %v1557 = vunpack.c.h.b16 %v1545
      %v1558 = vpack.c.b16 %v1550, %v1550
      %v1559 = vpack.c.b16 %v1551, %v1551
      %v1560 = vpack.c.b16 %v1552, %v1552
      %v1561 = vpack.c.b16 %v1553, %v1553
      %v1562 = vpack.c.b16 %v1554, %v1554
      %v1563 = vpack.c.b16 %v1555, %v1555
      %v1564 = vpack.c.b16 %v1556, %v1556
      %v1565 = vpack.c.b16 %v1557, %v1557
      %1566 = vrot.lane.b32.xlu0 %v1558, 24
      %v1567 = vpop.permute.xlu0 %1566
      %1568 = vrot.lane.b32.xlu0 %v1559, 24
      %v1569 = vpop.permute.xlu0 %1568
      %1570 = vrot.lane.b32.xlu0 %v1560, 24
      %v1571 = vpop.permute.xlu0 %1570
      %1572 = vrot.lane.b32.xlu0 %v1561, 24
      %v1573 = vpop.permute.xlu0 %1572
      %1574 = vrot.lane.b32.xlu0 %v1562, 24
      %v1575 = vpop.permute.xlu0 %1574
      %1576 = vrot.lane.b32.xlu0 %v1563, 24
      %v1577 = vpop.permute.xlu0 %1576
      %1578 = vrot.lane.b32.xlu0 %v1564, 24
      %v1579 = vpop.permute.xlu0 %1578
      %1580 = vrot.lane.b32.xlu0 %v1565, 24
      %v1581 = vpop.permute.xlu0 %1580
      %vm1590 = vcmask 257216
      %1591 = vst.msk [vmem:[%s248] sm:$0xf] %vm1590, %v1567
      %1592 = vst.msk [vmem:[%s248 + $0x4] sm:$0xf] %vm1590, %v1569
      %1593 = vst.msk [vmem:[%s248 + $0x8] sm:$0xf] %vm1590, %v1571
      %1594 = vst.msk [vmem:[%s248 + $0xc] sm:$0xf] %vm1590, %v1573
      %1595 = vst.msk [vmem:[%s248 + $0x10] sm:$0xf] %vm1590, %v1575
      %1596 = vst.msk [vmem:[%s248 + $0x14] sm:$0xf] %vm1590, %v1577
      %1597 = vst.msk [vmem:[%s248 + $0x18] sm:$0xf] %vm1590, %v1579
      %1598 = vst.msk [vmem:[%s248 + $0x1c] sm:$0xf] %vm1590, %v1581
      %s1599 = smul.u32 8, %s19
      %p1600 = scmp.lt.s32.totalorder %s18, 1
      %s1601 = scalar_select %p1600, %s18, 1
      %p1602 = scmp.lt.s32.totalorder %s1599, 7
      %s1603 = scalar_select %p1602, %s1599, 7
      %s1604 = smul.addr %s1601, 8
      %s1605 = sadd.s32 %s1603, %s1604
      %s1606 = smul.addr %s1605, 4
      %s1607 = scalar_lea.vmem %s3, %s1606
      // Predicated region
      $region33: #{_lambda_.19} parent=31 // pred_check
        %p1608 = pneg %p126
      $region34: #{_lambda_.19} parent=31 // pred_check_branch
        %1610 = sbr.rel (%p1608) target = $region36
      $region35: #{_lambda_.19} parent=31 // pred_region
        %s1611 = smul.u32 8, %s19
      $region36: #{_lambda_.19} parent=31 // pred_fallthru
        _
    $region32: #{_lambda_.19} parent=5 // pred_fallthru
      _
    %p1612 = scmp.le.s32.totalorder 2, %s9
    // Predicated region
    $region37: #{_lambda_.19} parent=5 // pred_check
      %p1613 = pneg %p1612
    $region38: #{_lambda_.19} parent=5 // pred_check_branch
      %1615 = sbr.rel (%p1613) target = $region40
    $region39: #{_lambda_.19} parent=5 // pred_region
      %s1616 = ssub.s32 %s9, 2
      // Predicated region
      $region41: #{_lambda_.19} parent=39 // pred_check
        %p1617 = pneg %p132
      $region42: #{_lambda_.19} parent=39 // pred_check_branch
        %1619 = sbr.rel (%p1617) target = $region44
      $region43: #{_lambda_.19} parent=39 // pred_region
        %s1620 = smul.u32 8, %s21
        %p1621 = scmp.lt.s32.totalorder %s20, 1
        %s1622 = scalar_select %p1621, %s20, 1
        %p1623 = scmp.lt.s32.totalorder %s1620, 7
        %s1624 = scalar_select %p1623, %s1620, 7
        %s1625 = smul.addr %s1622, 8
        %s1626 = sadd.s32 %s1624, %s1625
        %s1627 = smul.addr %s1626, 4
        %s1628 = scalar_lea.vmem %s3, %s1627
      $region44: #{_lambda_.19} parent=39 // pred_fallthru
        _
    $region40: #{_lambda_.19} parent=5 // pred_fallthru
      _
  $region6: #{_lambda_.19} parent=0 // loop_footer
    %s13 = sadd.s32 1, %s9
  $region7: #{_lambda_.19} parent=0 // loop_footer_branch
    %8 = sbr.rel target = $region3
  $region8: #{_lambda_.19} parent=0 // loop_exit
    _

</llo_original>
